<compile_context>
chip_gen: v7x
topology: tpu7x:2x2x1
jax: 0.10.0
libtpu: 0.0.40
codegen_flags: <defaults>
</compile_context>

<pallas_src>
import functools
import math

import jax
import jax.numpy as jnp
from jax.experimental import pallas as pl
from jax.experimental.pallas import tpu as pltpu


def _lowrank_kernel(xs_hbm, wh_ref, wt_ref, o_ref, xbuf, tapbuf, sem, *,
                    cin, cout, ksize, dil, pad, ws, r_rows, rs_rows, n_tiles,
                    ranks, stage_num, eps, exact_div, prefetch_next):
    """One (batch, row-tile) grid step.

    xs_hbm : (B, Cin, n_rows, 128)  lane-dense folded stream, left in HBM (pl.ANY)
    wh_ref : (Cout, Cin)            head 1x1 conv weight, SMEM scalars
    wt_ref : (Cin, Cout)            tail 1x1 conv weight, SMEM scalars
    o_ref  : (1, Cin, r_rows, 128)  lane-dense output block, VMEM
    xbuf   : (2, Cin, rs_rows, 128) double-buffered haloed slab
    tapbuf : (Cout, K*K, r_rows, 128) unfolded taps (bounds their live range)
    """
    b = pl.program_id(0)
    t = pl.program_id(1)
    kk = ksize * ksize
    r_scale = float(ranks)

    # ---- double-buffered slab DMA: overlap tile t+1's HBM read with tile t's NMF ----
    def slab_copy(tt, slot):
        row0 = pl.multiple_of(tt * r_rows, r_rows)
        return pltpu.make_async_copy(
            xs_hbm.at[b, :, pl.ds(row0, rs_rows), :],
            xbuf.at[slot], sem.at[slot])

    slot = jax.lax.rem(t, 2)
    if prefetch_next:
        @pl.when(t == 0)
        def _():
            slab_copy(t, slot).start()          # cold start: first tile of this image

        slab_copy(t, slot).wait()

        @pl.when(t + 1 < n_tiles)
        def _():
            slab_copy(t + 1, 1 - slot).start()  # prefetch next row tile
    else:
        # B == 1 & multi-tile: t axis is megacore-parallel, so no cross-step chain.
        cp = slab_copy(t, slot)
        cp.start()
        cp.wait()

    x_all = xbuf[slot]                          # (cin, rs_rows, 128)

    # ---- 1x1 head conv + ReLU on the folded slab -------------------------------------
    # Channel contraction sits on a major axis: unrolled scalar*tile FMAs on full vregs.
    y = []
    for co in range(cout):
        acc = wh_ref[co, 0] * x_all[0]
        for ci in range(1, cin):
            acc = acc + wh_ref[co, ci] * x_all[ci]
        y.append(jnp.maximum(acc, 0.0))         # (rs_rows, 128)

    # ---- flat-shift window helper (dilated unfold on the folded layout) --------------
    lane = jax.lax.broadcasted_iota(jnp.int32, (r_rows, 128), 1)
    _masks = {}

    def _mask(off):
        if off not in _masks:
            _masks[off] = lane < (128 - off)
        return _masks[off]

    def _window(src, start):
        """Rows-of-128 view of flat positions [start, start + r_rows*128) of `src`."""
        a, off = divmod(start, 128)
        s0 = src[a:a + r_rows]
        if off == 0:
            return s0
        s1 = src[a + 1:a + 1 + r_rows]
        sh = 128 - off
        return jnp.where(_mask(off),
                         pltpu.roll(s0, shift=sh, axis=1),
                         pltpu.roll(s1, shift=sh, axis=1))

    # ---- build taps into VMEM scratch + rank-collapsed U/V init ----------------------
    inv_kk = 1.0 / float(kk)
    inv_c = 1.0 / float(cout)
    u_acc = [None] * cout
    v = []
    for k in range(kk):
        kh, kw = divmod(k, ksize)
        start = kh * dil * ws + kw * dil
        c_acc = None
        for co in range(cout):
            tap = _window(y[co], start)
            tapbuf[co, k] = tap
            c_acc = tap if c_acc is None else c_acc + tap
            u_acc[co] = tap if u_acc[co] is None else u_acc[co] + tap
        v.append(c_acc * inv_c)
    u = tuple(acc * inv_kk for acc in u_acc)
    v = tuple(v)

    def _recip(z):
        if exact_div:
            return 1.0 / z
        # EUP approx reciprocal + one Newton-Raphson step: ~f32 accuracy (passes the
        # 1e-4 parity check) at a fraction of the exact-divide VALU cost.
        r0 = pl.reciprocal(z, approx=True)
        return r0 * (2.0 - z * r0)

    # ---- rank-collapsed NMF multiplicative updates ------------------------------------
    def _stage(u, v):
        s_uu = u[0] * u[0]
        for co in range(1, cout):
            s_uu = s_uu + u[co] * u[co]
        s_uu_r = s_uu * r_scale                           # hoisted ranks factor
        v_new = []
        for k in range(kk):
            num = u[0] * tapbuf[0, k]
            for co in range(1, cout):
                num = num + u[co] * tapbuf[co, k]
            v_new.append(v[k] * num * _recip(v[k] * s_uu_r + eps))
        v_new = tuple(v_new)
        s_vv = v_new[0] * v_new[0]
        for k in range(1, kk):
            s_vv = s_vv + v_new[k] * v_new[k]
        s_vv_r = s_vv * r_scale
        u_new = []
        for co in range(cout):
            num = tapbuf[co, 0] * v_new[0]
            for k in range(1, kk):
                num = num + tapbuf[co, k] * v_new[k]
            u_new.append(u[co] * num * _recip(u[co] * s_vv_r + eps))
        return tuple(u_new), v_new

    n_updates = max(stage_num, 1)        # torch runs (stage_num-1) in-loop + 1 final
    if n_updates == 1:
        u, v = _stage(u, v)
    else:
        u, v = jax.lax.fori_loop(0, n_updates, lambda _, c: _stage(*c), (u, v))

    # ---- centre-tap reconstruction, 1x1 tail conv, residual ---------------------------
    center = (ksize // 2) * ksize + ksize // 2
    vc_r = v[center] * r_scale
    uv = [u[co] * vc_r for co in range(cout)]
    res_start = pad * ws + pad
    for ci in range(cin):
        acc = wt_ref[ci, 0] * uv[0]
        for co in range(1, cout):
            acc = acc + wt_ref[ci, co] * uv[co]
        res = _window(x_all[ci], res_start)   # residual from the resident slab
        o_ref[0, ci] = acc + res              # lane-dense, unmasked stores


def low_rank_layer_dilation(x, w_head, w_tail, *, kernel_size, dilation, padding,
                            stride=1, ranks=3, stage_num=1, eps=1e-6,
                            tile_h=None, exact_div=False,
                            vmem_limit_bytes=48 * 1024 * 1024,
                            vmem_budget_bytes=24 * 1024 * 1024):
    """Forward pass of LowRankLayer_dilation (NCHW float32).

    Restrictions (match the only usable PyTorch configuration): stride == 1 and
    padding == dilation*(kernel_size-1)//2, so the unfold keeps the HxW grid.
    The rank axis is collapsed exactly because the module always initialises U/V as
    rank-replicated means; if that init ever changes, this collapse is invalid.
    w_head: (Cout, Cin), w_tail: (Cin, Cout) 1x1 conv weights (bias=False).
    vmem_limit_bytes defaults to 48 MiB (v7x-safe); raise toward 96-128 MiB on v5e/v6e.
    """
    B, Cin, H, W = x.shape
    Cout = w_head.shape[0]
    K, d, p = kernel_size, dilation, padding
    kk = K * K
    assert stride == 1, "only stride=1 is supported"
    assert p == d * (K - 1) // 2, "padding must equal dilation*(kernel_size-1)//2"
    Wp = W + 2 * p

    def _cdiv(a, bb):
        return -(-a // bb)

    def _ws_for(th):
        need = 128 // math.gcd(th, 128)
        return _cdiv(Wp, need) * need            # padded row width; tile_h*Ws % 128 == 0

    def _geom(th):
        ws = _ws_for(th)
        r = th * ws // 128
        rs = _cdiv((th + 2 * p) * ws + 2 * p, 128) + 1
        return ws, r, rs

    def _vmem(th):
        ws, r, rs = _geom(th)
        per = 128 * 4
        return per * (2 * Cin * rs + Cout * rs + Cout * kk * r
                      + 2 * Cin * r + (2 * (Cout + kk) + Cin + 16) * r)

    if tile_h is None:
        divs = [dd for dd in range(H, 0, -1) if H % dd == 0]
        fits = [dd for dd in divs if _vmem(dd) <= vmem_budget_bytes] or [divs[-1]]
        tile_h = fits[0]
        if B == 1:
            # v7x megacore: with one image, prefer >=2 row tiles so both cores get work.
            two_plus = [dd for dd in fits if H // dd >= 2]
            if two_plus:
                tile_h = two_plus[0]
    assert H % tile_h == 0, "tile_h must divide H"

    ws, r_rows, rs_rows = _geom(tile_h)
    n_tiles = H // tile_h
    Hp = H + 2 * p
    n_rows = (H - tile_h) * ws // 128 + rs_rows
    n_out_rows = H * ws // 128

    # ---- build the lane-dense folded stream in JAX glue -------------------------------
    xp = jnp.pad(x, ((0, 0), (0, 0), (p, p), (p, p)), mode="edge")
    if ws > Wp:
        xp = jnp.pad(xp, ((0, 0), (0, 0), (0, 0), (0, ws - Wp)))   # never read by valid cols
    flat = xp.reshape(B, Cin, Hp * ws)
    tail = n_rows * 128 - (p + Hp * ws)
    assert tail >= 0
    stream = jnp.pad(flat, ((0, 0), (0, 0), (p, tail))).reshape(B, Cin, n_rows, 128)

    prefetch_next = (B > 1) or (n_tiles == 1)
    dim_sems = ("parallel", "arbitrary") if prefetch_next else ("parallel", "parallel")

    kern = functools.partial(
        _lowrank_kernel, cin=Cin, cout=Cout, ksize=K, dil=d, pad=p, ws=ws,
        r_rows=r_rows, rs_rows=rs_rows, n_tiles=n_tiles, ranks=ranks,
        stage_num=stage_num, eps=eps, exact_div=exact_div,
        prefetch_next=prefetch_next)

    out = pl.pallas_call(
        kern,
        out_shape=jax.ShapeDtypeStruct((B, Cin, n_out_rows, 128), jnp.float32),
        grid_spec=pltpu.PrefetchScalarGridSpec(
            num_scalar_prefetch=0,
            grid=(B, n_tiles),
            in_specs=[
                pl.BlockSpec(memory_space=pl.ANY),                   # stream stays in HBM
                pl.BlockSpec(memory_space=pltpu.MemorySpace.SMEM),   # head 1x1 weights
                pl.BlockSpec(memory_space=pltpu.MemorySpace.SMEM),   # tail 1x1 weights
            ],
            out_specs=pl.BlockSpec((1, Cin, r_rows, 128),
                                   lambda b, t: (b, 0, t, 0)),
            scratch_shapes=[
                pltpu.VMEM((2, Cin, rs_rows, 128), jnp.float32),   # double-buffered slab
                pltpu.VMEM((Cout, kk, r_rows, 128), jnp.float32),  # unfolded taps
                pltpu.SemaphoreType.DMA((2,)),
            ]),
        compiler_params=pltpu.CompilerParams(
            dimension_semantics=dim_sems,
            vmem_limit_bytes=vmem_limit_bytes),
    )(stream, w_head, w_tail)

    # fold the lane-dense result back to NCHW and drop the replicate/rounding columns
    return out.reshape(B, Cin, H, ws)[:, :, :, p:p + W]


# ---------------- pure-JAX reference (mirrors the torch forward, full-rank) ----------------
def ref_forward(x, w_head, w_tail, *, kernel_size, dilation, padding,
                ranks=3, stage_num=1, eps=1e-6):
    B, Cin, H, W = x.shape
    Cout = w_head.shape[0]
    y = jnp.sum(w_head[None, :, :, None, None] * x[:, None, :, :, :], axis=2)
    y = jnp.maximum(y, 0.0)
    yp = jnp.pad(y, ((0, 0), (0, 0), (padding, padding), (padding, padding)),
                 mode="edge")
    patches = [yp[:, :, kh * dilation:kh * dilation + H,
                  kw * dilation:kw * dilation + W]
               for kh in range(kernel_size) for kw in range(kernel_size)]
    X = jnp.stack(patches, axis=2)                                        # (B,C,K,H,W)
    U = jnp.broadcast_to(jnp.mean(X, axis=2, keepdims=True), (B, Cout, ranks, H, W))
    V = jnp.broadcast_to(jnp.mean(X, axis=1, keepdims=True),
                         (B, ranks, kernel_size * kernel_size, H, W))
    for _ in range(max(stage_num, 1)):
        num_v = jnp.sum(U[:, :, :, None] * X[:, :, None, :], axis=1)      # (B,r,K,H,W)
        uv = jnp.sum(U[:, :, :, None] * V[:, None, :, :], axis=2)         # (B,C,K,H,W)
        den_v = jnp.sum(U[:, :, :, None] * uv[:, :, None, :], axis=1)
        V = V * num_v / (den_v + eps)
        num_u = jnp.sum(X[:, :, None, :] * V[:, None, :, :], axis=3)      # (B,C,r,H,W)
        uv2 = jnp.sum(U[:, :, :, None] * V[:, None, :, :], axis=2)
        den_u = jnp.sum(uv2[:, :, None, :] * V[:, None, :, :], axis=3)
        U = U * num_u / (den_u + eps)
    center = (kernel_size // 2) * kernel_size + kernel_size // 2
    uv_c = jnp.sum(U * V[:, None, :, center, :, :], axis=2)               # (B,C,H,W)
    out = jnp.sum(w_tail[None, :, :, None, None] * uv_c[:, None, :, :, :], axis=2) + x
    return out


if __name__ == "__main__":
    key = jax.random.PRNGKey(0)
    k1, k2, k3 = jax.random.split(key, 3)

    B, Cin, Cout, H, W = 2, 4, 8, 16, 16
    kernel_size, dilation, stride = 3, 2, 1
    padding = dilation * (kernel_size - 1) // 2        # keeps unfold spatial == HxW
    ranks = 3

    x = jax.random.normal(k1, (B, Cin, H, W), dtype=jnp.float32)
    w_head = jax.random.normal(k2, (Cout, Cin), dtype=jnp.float32) / jnp.sqrt(float(Cin))
    w_tail = jax.random.normal(k3, (Cin, Cout), dtype=jnp.float32) / jnp.sqrt(float(Cout))

    # stage_num=1, auto tile: one row-tile per image, grid (2,1) -> one image per
    # TensorCore on v7x; approx-reciprocal + Newton is the default fast path.
    out = low_rank_layer_dilation(x, w_head, w_tail, kernel_size=kernel_size,
                                  dilation=dilation, padding=padding, stride=stride,
                                  ranks=ranks, stage_num=1)
    out = jax.block_until_ready(out)
    ref = ref_forward(x, w_head, w_tail, kernel_size=kernel_size, dilation=dilation,
                      padding=padding, ranks=ranks, stage_num=1)
    assert out.shape == (B, Cin, H, W)
    assert jnp.allclose(out, ref, rtol=1e-4, atol=1e-4), \
        float(jnp.max(jnp.abs(out - ref)))

    # stage_num=2, tile_h=8: two row tiles per image -> exercises the halo windows at a
    # tile boundary, the double-buffered slab prefetch chain and the fori_loop stages.
    out2 = jax.block_until_ready(
        low_rank_layer_dilation(x, w_head, w_tail, kernel_size=kernel_size,
                                dilation=dilation, padding=padding, stride=stride,
                                ranks=ranks, stage_num=2, tile_h=8))
    ref2 = ref_forward(x, w_head, w_tail, kernel_size=kernel_size, dilation=dilation,
                       padding=padding, ranks=ranks, stage_num=2)
    assert jnp.allclose(out2, ref2, rtol=1e-4, atol=1e-4), \
        float(jnp.max(jnp.abs(out2 - ref2)))

    print("KERNEL_OK")
</pallas_src>

<mosaic_0001>
module attributes {stable_mosaic.version = 11 : i64} {
  func.func @_lowrank_kernel(%arg0: i32, %arg1: i32, %arg2: memref<2x4x5x128xf32, #tpu.memory_space<any>>, %arg3: memref<8x4xf32, #tpu.memory_space<smem>>, %arg4: memref<4x8xf32, #tpu.memory_space<smem>>, %arg5: memref<1x4x3x128xf32, #tpu.memory_space<vmem>>, %arg6: memref<2x4x5x128xf32, #tpu.memory_space<vmem>>, %arg7: memref<8x9x3x128xf32, #tpu.memory_space<vmem>>, %arg8: memref<2x!tpu.dma_semaphore, #tpu.memory_space<semaphore_mem>>) attributes {dimension_semantics = [#tpu.dimension_semantics<parallel>, #tpu.dimension_semantics<arbitrary>], iteration_bounds = array<i64: 2, 1>, scalar_prefetch = 0 : i64, scratch_operands = 3 : i64, tpu.core_type = #tpu.core_type<tc>, window_params = [{}, {transform_indices = @transform_1, window_bounds = array<i64: 8, 4>}, {transform_indices = @transform_2, window_bounds = array<i64: 4, 8>}, {transform_indices = @transform_3, window_bounds = array<i64: 1, 4, 3, 128>}]} {
    %c2_i32 = arith.constant 2 : i32
    %0 = arith.remsi %arg1, %c2_i32 : i32
    %c0_i32 = arith.constant 0 : i32
    %1 = arith.cmpi eq, %arg1, %c0_i32 : i32
    %2 = arith.extui %1 : i1 to i32
    %c0_i32_0 = arith.constant 0 : i32
    %3 = arith.cmpi ne, %2, %c0_i32_0 : i32
    scf.if %3 {
      %c3_i32_1207 = arith.constant 3 : i32
      %1884 = arith.muli %arg1, %c3_i32_1207 : i32
      %1885 = tpu.assume_multiple %1884, 3 : i32
      %c0_i32_1208 = arith.constant 0 : i32
      %c0_i32_1209 = arith.constant 0 : i32
      %1886 = tpu.memref_slice %arg2[%arg0, %c0_i32_1208, %1885, %c0_i32_1209] : memref<2x4x5x128xf32, #tpu.memory_space<any>> -> memref<1x4x5x128xf32, #tpu.memory_space<any>>
      %1887 = tpu.memref_squeeze %1886 : memref<1x4x5x128xf32, #tpu.memory_space<any>> -> memref<4x5x128xf32, #tpu.memory_space<any>>
      %c0_i32_1210 = arith.constant 0 : i32
      %c0_i32_1211 = arith.constant 0 : i32
      %c0_i32_1212 = arith.constant 0 : i32
      %1888 = tpu.memref_slice %arg6[%0, %c0_i32_1210, %c0_i32_1211, %c0_i32_1212] : memref<2x4x5x128xf32, #tpu.memory_space<vmem>> -> memref<1x4x5x128xf32, #tpu.memory_space<vmem>>
      %1889 = tpu.memref_squeeze %1888 : memref<1x4x5x128xf32, #tpu.memory_space<vmem>> -> memref<4x5x128xf32, #tpu.memory_space<vmem>>
      %1890 = tpu.memref_slice %arg8[%0] : memref<2x!tpu.dma_semaphore, #tpu.memory_space<semaphore_mem>> -> memref<1x!tpu.dma_semaphore, #tpu.memory_space<semaphore_mem>>
      %1891 = tpu.memref_squeeze %1890 : memref<1x!tpu.dma_semaphore, #tpu.memory_space<semaphore_mem>> -> memref<!tpu.dma_semaphore, #tpu.memory_space<semaphore_mem>>
      tpu.enqueue_dma source(%1887 : memref<4x5x128xf32, #tpu.memory_space<any>>) target(%1889 : memref<4x5x128xf32, #tpu.memory_space<vmem>>) target_semaphore(%1891 : memref<!tpu.dma_semaphore, #tpu.memory_space<semaphore_mem>>)
    } else {
    }
    %c3_i32 = arith.constant 3 : i32
    %4 = arith.muli %arg1, %c3_i32 : i32
    %5 = tpu.assume_multiple %4, 3 : i32
    %c0_i32_1 = arith.constant 0 : i32
    %c0_i32_2 = arith.constant 0 : i32
    %6 = tpu.memref_slice %arg2[%arg0, %c0_i32_1, %5, %c0_i32_2] : memref<2x4x5x128xf32, #tpu.memory_space<any>> -> memref<1x4x5x128xf32, #tpu.memory_space<any>>
    %7 = tpu.memref_squeeze %6 : memref<1x4x5x128xf32, #tpu.memory_space<any>> -> memref<4x5x128xf32, #tpu.memory_space<any>>
    %c0_i32_3 = arith.constant 0 : i32
    %c0_i32_4 = arith.constant 0 : i32
    %c0_i32_5 = arith.constant 0 : i32
    %8 = tpu.memref_slice %arg6[%0, %c0_i32_3, %c0_i32_4, %c0_i32_5] : memref<2x4x5x128xf32, #tpu.memory_space<vmem>> -> memref<1x4x5x128xf32, #tpu.memory_space<vmem>>
    %9 = tpu.memref_squeeze %8 : memref<1x4x5x128xf32, #tpu.memory_space<vmem>> -> memref<4x5x128xf32, #tpu.memory_space<vmem>>
    %10 = tpu.memref_slice %arg8[%0] : memref<2x!tpu.dma_semaphore, #tpu.memory_space<semaphore_mem>> -> memref<1x!tpu.dma_semaphore, #tpu.memory_space<semaphore_mem>>
    %11 = tpu.memref_squeeze %10 : memref<1x!tpu.dma_semaphore, #tpu.memory_space<semaphore_mem>> -> memref<!tpu.dma_semaphore, #tpu.memory_space<semaphore_mem>>
    tpu.wait_dma2 semaphore(%11 : memref<!tpu.dma_semaphore, #tpu.memory_space<semaphore_mem>>) src(%7 : memref<4x5x128xf32, #tpu.memory_space<any>>) dst(%9 : memref<4x5x128xf32, #tpu.memory_space<vmem>>)
    %c1_i32 = arith.constant 1 : i32
    %12 = arith.addi %arg1, %c1_i32 : i32
    %c1_i32_6 = arith.constant 1 : i32
    %13 = arith.cmpi slt, %12, %c1_i32_6 : i32
    %14 = arith.extui %13 : i1 to i32
    %c0_i32_7 = arith.constant 0 : i32
    %15 = arith.cmpi ne, %14, %c0_i32_7 : i32
    scf.if %15 {
      %c1_i32_1207 = arith.constant 1 : i32
      %1884 = arith.addi %arg1, %c1_i32_1207 : i32
      %c1_i32_1208 = arith.constant 1 : i32
      %1885 = arith.subi %c1_i32_1208, %0 : i32
      %c3_i32_1209 = arith.constant 3 : i32
      %1886 = arith.muli %1884, %c3_i32_1209 : i32
      %1887 = tpu.assume_multiple %1886, 3 : i32
      %c0_i32_1210 = arith.constant 0 : i32
      %c0_i32_1211 = arith.constant 0 : i32
      %1888 = tpu.memref_slice %arg2[%arg0, %c0_i32_1210, %1887, %c0_i32_1211] : memref<2x4x5x128xf32, #tpu.memory_space<any>> -> memref<1x4x5x128xf32, #tpu.memory_space<any>>
      %1889 = tpu.memref_squeeze %1888 : memref<1x4x5x128xf32, #tpu.memory_space<any>> -> memref<4x5x128xf32, #tpu.memory_space<any>>
      %c0_i32_1212 = arith.constant 0 : i32
      %c0_i32_1213 = arith.constant 0 : i32
      %c0_i32_1214 = arith.constant 0 : i32
      %1890 = tpu.memref_slice %arg6[%1885, %c0_i32_1212, %c0_i32_1213, %c0_i32_1214] : memref<2x4x5x128xf32, #tpu.memory_space<vmem>> -> memref<1x4x5x128xf32, #tpu.memory_space<vmem>>
      %1891 = tpu.memref_squeeze %1890 : memref<1x4x5x128xf32, #tpu.memory_space<vmem>> -> memref<4x5x128xf32, #tpu.memory_space<vmem>>
      %1892 = tpu.memref_slice %arg8[%1885] : memref<2x!tpu.dma_semaphore, #tpu.memory_space<semaphore_mem>> -> memref<1x!tpu.dma_semaphore, #tpu.memory_space<semaphore_mem>>
      %1893 = tpu.memref_squeeze %1892 : memref<1x!tpu.dma_semaphore, #tpu.memory_space<semaphore_mem>> -> memref<!tpu.dma_semaphore, #tpu.memory_space<semaphore_mem>>
      tpu.enqueue_dma source(%1889 : memref<4x5x128xf32, #tpu.memory_space<any>>) target(%1891 : memref<4x5x128xf32, #tpu.memory_space<vmem>>) target_semaphore(%1893 : memref<!tpu.dma_semaphore, #tpu.memory_space<semaphore_mem>>)
    } else {
    }
    %16 = arith.index_cast %0 : i32 to index
    %c0 = arith.constant 0 : index
    %c0_8 = arith.constant 0 : index
    %c0_9 = arith.constant 0 : index
    %17 = vector.load %arg6[%16, %c0, %c0_8, %c0_9] : memref<2x4x5x128xf32, #tpu.memory_space<vmem>>, vector<1x4x5x128xf32>
    %18 = vector.shape_cast %17 : vector<1x4x5x128xf32> to vector<4x5x128xf32>
    %c0_10 = arith.constant 0 : index
    %c0_11 = arith.constant 0 : index
    %19 = memref.load %arg3[%c0_10, %c0_11] : memref<8x4xf32, #tpu.memory_space<smem>>
    %20 = vector.extract_strided_slice %18 {offsets = [0, 0, 0], sizes = [1, 5, 128], strides = [1, 1, 1]} : vector<4x5x128xf32> to vector<1x5x128xf32>
    %21 = vector.shape_cast %20 : vector<1x5x128xf32> to vector<5x128xf32>
    %22 = vector.broadcast %19 : f32 to vector<5x128xf32>
    %23 = arith.mulf %22, %21 : vector<5x128xf32>
    %c0_12 = arith.constant 0 : index
    %c1 = arith.constant 1 : index
    %24 = memref.load %arg3[%c0_12, %c1] : memref<8x4xf32, #tpu.memory_space<smem>>
    %25 = vector.extract_strided_slice %18 {offsets = [1, 0, 0], sizes = [1, 5, 128], strides = [1, 1, 1]} : vector<4x5x128xf32> to vector<1x5x128xf32>
    %26 = vector.shape_cast %25 : vector<1x5x128xf32> to vector<5x128xf32>
    %27 = vector.broadcast %24 : f32 to vector<5x128xf32>
    %28 = arith.mulf %27, %26 : vector<5x128xf32>
    %29 = arith.addf %23, %28 : vector<5x128xf32>
    %c0_13 = arith.constant 0 : index
    %c2 = arith.constant 2 : index
    %30 = memref.load %arg3[%c0_13, %c2] : memref<8x4xf32, #tpu.memory_space<smem>>
    %31 = vector.extract_strided_slice %18 {offsets = [2, 0, 0], sizes = [1, 5, 128], strides = [1, 1, 1]} : vector<4x5x128xf32> to vector<1x5x128xf32>
    %32 = vector.shape_cast %31 : vector<1x5x128xf32> to vector<5x128xf32>
    %33 = vector.broadcast %30 : f32 to vector<5x128xf32>
    %34 = arith.mulf %33, %32 : vector<5x128xf32>
    %35 = arith.addf %29, %34 : vector<5x128xf32>
    %c0_14 = arith.constant 0 : index
    %c3 = arith.constant 3 : index
    %36 = memref.load %arg3[%c0_14, %c3] : memref<8x4xf32, #tpu.memory_space<smem>>
    %37 = vector.extract_strided_slice %18 {offsets = [3, 0, 0], sizes = [1, 5, 128], strides = [1, 1, 1]} : vector<4x5x128xf32> to vector<1x5x128xf32>
    %38 = vector.shape_cast %37 : vector<1x5x128xf32> to vector<5x128xf32>
    %39 = vector.broadcast %36 : f32 to vector<5x128xf32>
    %40 = arith.mulf %39, %38 : vector<5x128xf32>
    %41 = arith.addf %35, %40 : vector<5x128xf32>
    %cst = arith.constant 0.000000e+00 : f32
    %42 = vector.broadcast %cst : f32 to vector<5x128xf32>
    %43 = arith.maximumf %41, %42 : vector<5x128xf32>
    %c1_15 = arith.constant 1 : index
    %c0_16 = arith.constant 0 : index
    %44 = memref.load %arg3[%c1_15, %c0_16] : memref<8x4xf32, #tpu.memory_space<smem>>
    %45 = vector.extract_strided_slice %18 {offsets = [0, 0, 0], sizes = [1, 5, 128], strides = [1, 1, 1]} : vector<4x5x128xf32> to vector<1x5x128xf32>
    %46 = vector.shape_cast %45 : vector<1x5x128xf32> to vector<5x128xf32>
    %47 = vector.broadcast %44 : f32 to vector<5x128xf32>
    %48 = arith.mulf %47, %46 : vector<5x128xf32>
    %c1_17 = arith.constant 1 : index
    %c1_18 = arith.constant 1 : index
    %49 = memref.load %arg3[%c1_17, %c1_18] : memref<8x4xf32, #tpu.memory_space<smem>>
    %50 = vector.extract_strided_slice %18 {offsets = [1, 0, 0], sizes = [1, 5, 128], strides = [1, 1, 1]} : vector<4x5x128xf32> to vector<1x5x128xf32>
    %51 = vector.shape_cast %50 : vector<1x5x128xf32> to vector<5x128xf32>
    %52 = vector.broadcast %49 : f32 to vector<5x128xf32>
    %53 = arith.mulf %52, %51 : vector<5x128xf32>
    %54 = arith.addf %48, %53 : vector<5x128xf32>
    %c1_19 = arith.constant 1 : index
    %c2_20 = arith.constant 2 : index
    %55 = memref.load %arg3[%c1_19, %c2_20] : memref<8x4xf32, #tpu.memory_space<smem>>
    %56 = vector.extract_strided_slice %18 {offsets = [2, 0, 0], sizes = [1, 5, 128], strides = [1, 1, 1]} : vector<4x5x128xf32> to vector<1x5x128xf32>
    %57 = vector.shape_cast %56 : vector<1x5x128xf32> to vector<5x128xf32>
    %58 = vector.broadcast %55 : f32 to vector<5x128xf32>
    %59 = arith.mulf %58, %57 : vector<5x128xf32>
    %60 = arith.addf %54, %59 : vector<5x128xf32>
    %c1_21 = arith.constant 1 : index
    %c3_22 = arith.constant 3 : index
    %61 = memref.load %arg3[%c1_21, %c3_22] : memref<8x4xf32, #tpu.memory_space<smem>>
    %62 = vector.extract_strided_slice %18 {offsets = [3, 0, 0], sizes = [1, 5, 128], strides = [1, 1, 1]} : vector<4x5x128xf32> to vector<1x5x128xf32>
    %63 = vector.shape_cast %62 : vector<1x5x128xf32> to vector<5x128xf32>
    %64 = vector.broadcast %61 : f32 to vector<5x128xf32>
    %65 = arith.mulf %64, %63 : vector<5x128xf32>
    %66 = arith.addf %60, %65 : vector<5x128xf32>
    %cst_23 = arith.constant 0.000000e+00 : f32
    %67 = vector.broadcast %cst_23 : f32 to vector<5x128xf32>
    %68 = arith.maximumf %66, %67 : vector<5x128xf32>
    %c2_24 = arith.constant 2 : index
    %c0_25 = arith.constant 0 : index
    %69 = memref.load %arg3[%c2_24, %c0_25] : memref<8x4xf32, #tpu.memory_space<smem>>
    %70 = vector.extract_strided_slice %18 {offsets = [0, 0, 0], sizes = [1, 5, 128], strides = [1, 1, 1]} : vector<4x5x128xf32> to vector<1x5x128xf32>
    %71 = vector.shape_cast %70 : vector<1x5x128xf32> to vector<5x128xf32>
    %72 = vector.broadcast %69 : f32 to vector<5x128xf32>
    %73 = arith.mulf %72, %71 : vector<5x128xf32>
    %c2_26 = arith.constant 2 : index
    %c1_27 = arith.constant 1 : index
    %74 = memref.load %arg3[%c2_26, %c1_27] : memref<8x4xf32, #tpu.memory_space<smem>>
    %75 = vector.extract_strided_slice %18 {offsets = [1, 0, 0], sizes = [1, 5, 128], strides = [1, 1, 1]} : vector<4x5x128xf32> to vector<1x5x128xf32>
    %76 = vector.shape_cast %75 : vector<1x5x128xf32> to vector<5x128xf32>
    %77 = vector.broadcast %74 : f32 to vector<5x128xf32>
    %78 = arith.mulf %77, %76 : vector<5x128xf32>
    %79 = arith.addf %73, %78 : vector<5x128xf32>
    %c2_28 = arith.constant 2 : index
    %c2_29 = arith.constant 2 : index
    %80 = memref.load %arg3[%c2_28, %c2_29] : memref<8x4xf32, #tpu.memory_space<smem>>
    %81 = vector.extract_strided_slice %18 {offsets = [2, 0, 0], sizes = [1, 5, 128], strides = [1, 1, 1]} : vector<4x5x128xf32> to vector<1x5x128xf32>
    %82 = vector.shape_cast %81 : vector<1x5x128xf32> to vector<5x128xf32>
    %83 = vector.broadcast %80 : f32 to vector<5x128xf32>
    %84 = arith.mulf %83, %82 : vector<5x128xf32>
    %85 = arith.addf %79, %84 : vector<5x128xf32>
    %c2_30 = arith.constant 2 : index
    %c3_31 = arith.constant 3 : index
    %86 = memref.load %arg3[%c2_30, %c3_31] : memref<8x4xf32, #tpu.memory_space<smem>>
    %87 = vector.extract_strided_slice %18 {offsets = [3, 0, 0], sizes = [1, 5, 128], strides = [1, 1, 1]} : vector<4x5x128xf32> to vector<1x5x128xf32>
    %88 = vector.shape_cast %87 : vector<1x5x128xf32> to vector<5x128xf32>
    %89 = vector.broadcast %86 : f32 to vector<5x128xf32>
    %90 = arith.mulf %89, %88 : vector<5x128xf32>
    %91 = arith.addf %85, %90 : vector<5x128xf32>
    %cst_32 = arith.constant 0.000000e+00 : f32
    %92 = vector.broadcast %cst_32 : f32 to vector<5x128xf32>
    %93 = arith.maximumf %91, %92 : vector<5x128xf32>
    %c3_33 = arith.constant 3 : index
    %c0_34 = arith.constant 0 : index
    %94 = memref.load %arg3[%c3_33, %c0_34] : memref<8x4xf32, #tpu.memory_space<smem>>
    %95 = vector.extract_strided_slice %18 {offsets = [0, 0, 0], sizes = [1, 5, 128], strides = [1, 1, 1]} : vector<4x5x128xf32> to vector<1x5x128xf32>
    %96 = vector.shape_cast %95 : vector<1x5x128xf32> to vector<5x128xf32>
    %97 = vector.broadcast %94 : f32 to vector<5x128xf32>
    %98 = arith.mulf %97, %96 : vector<5x128xf32>
    %c3_35 = arith.constant 3 : index
    %c1_36 = arith.constant 1 : index
    %99 = memref.load %arg3[%c3_35, %c1_36] : memref<8x4xf32, #tpu.memory_space<smem>>
    %100 = vector.extract_strided_slice %18 {offsets = [1, 0, 0], sizes = [1, 5, 128], strides = [1, 1, 1]} : vector<4x5x128xf32> to vector<1x5x128xf32>
    %101 = vector.shape_cast %100 : vector<1x5x128xf32> to vector<5x128xf32>
    %102 = vector.broadcast %99 : f32 to vector<5x128xf32>
    %103 = arith.mulf %102, %101 : vector<5x128xf32>
    %104 = arith.addf %98, %103 : vector<5x128xf32>
    %c3_37 = arith.constant 3 : index
    %c2_38 = arith.constant 2 : index
    %105 = memref.load %arg3[%c3_37, %c2_38] : memref<8x4xf32, #tpu.memory_space<smem>>
    %106 = vector.extract_strided_slice %18 {offsets = [2, 0, 0], sizes = [1, 5, 128], strides = [1, 1, 1]} : vector<4x5x128xf32> to vector<1x5x128xf32>
    %107 = vector.shape_cast %106 : vector<1x5x128xf32> to vector<5x128xf32>
    %108 = vector.broadcast %105 : f32 to vector<5x128xf32>
    %109 = arith.mulf %108, %107 : vector<5x128xf32>
    %110 = arith.addf %104, %109 : vector<5x128xf32>
    %c3_39 = arith.constant 3 : index
    %c3_40 = arith.constant 3 : index
    %111 = memref.load %arg3[%c3_39, %c3_40] : memref<8x4xf32, #tpu.memory_space<smem>>
    %112 = vector.extract_strided_slice %18 {offsets = [3, 0, 0], sizes = [1, 5, 128], strides = [1, 1, 1]} : vector<4x5x128xf32> to vector<1x5x128xf32>
    %113 = vector.shape_cast %112 : vector<1x5x128xf32> to vector<5x128xf32>
    %114 = vector.broadcast %111 : f32 to vector<5x128xf32>
    %115 = arith.mulf %114, %113 : vector<5x128xf32>
    %116 = arith.addf %110, %115 : vector<5x128xf32>
    %cst_41 = arith.constant 0.000000e+00 : f32
    %117 = vector.broadcast %cst_41 : f32 to vector<5x128xf32>
    %118 = arith.maximumf %116, %117 : vector<5x128xf32>
    %c4 = arith.constant 4 : index
    %c0_42 = arith.constant 0 : index
    %119 = memref.load %arg3[%c4, %c0_42] : memref<8x4xf32, #tpu.memory_space<smem>>
    %120 = vector.extract_strided_slice %18 {offsets = [0, 0, 0], sizes = [1, 5, 128], strides = [1, 1, 1]} : vector<4x5x128xf32> to vector<1x5x128xf32>
    %121 = vector.shape_cast %120 : vector<1x5x128xf32> to vector<5x128xf32>
    %122 = vector.broadcast %119 : f32 to vector<5x128xf32>
    %123 = arith.mulf %122, %121 : vector<5x128xf32>
    %c4_43 = arith.constant 4 : index
    %c1_44 = arith.constant 1 : index
    %124 = memref.load %arg3[%c4_43, %c1_44] : memref<8x4xf32, #tpu.memory_space<smem>>
    %125 = vector.extract_strided_slice %18 {offsets = [1, 0, 0], sizes = [1, 5, 128], strides = [1, 1, 1]} : vector<4x5x128xf32> to vector<1x5x128xf32>
    %126 = vector.shape_cast %125 : vector<1x5x128xf32> to vector<5x128xf32>
    %127 = vector.broadcast %124 : f32 to vector<5x128xf32>
    %128 = arith.mulf %127, %126 : vector<5x128xf32>
    %129 = arith.addf %123, %128 : vector<5x128xf32>
    %c4_45 = arith.constant 4 : index
    %c2_46 = arith.constant 2 : index
    %130 = memref.load %arg3[%c4_45, %c2_46] : memref<8x4xf32, #tpu.memory_space<smem>>
    %131 = vector.extract_strided_slice %18 {offsets = [2, 0, 0], sizes = [1, 5, 128], strides = [1, 1, 1]} : vector<4x5x128xf32> to vector<1x5x128xf32>
    %132 = vector.shape_cast %131 : vector<1x5x128xf32> to vector<5x128xf32>
    %133 = vector.broadcast %130 : f32 to vector<5x128xf32>
    %134 = arith.mulf %133, %132 : vector<5x128xf32>
    %135 = arith.addf %129, %134 : vector<5x128xf32>
    %c4_47 = arith.constant 4 : index
    %c3_48 = arith.constant 3 : index
    %136 = memref.load %arg3[%c4_47, %c3_48] : memref<8x4xf32, #tpu.memory_space<smem>>
    %137 = vector.extract_strided_slice %18 {offsets = [3, 0, 0], sizes = [1, 5, 128], strides = [1, 1, 1]} : vector<4x5x128xf32> to vector<1x5x128xf32>
    %138 = vector.shape_cast %137 : vector<1x5x128xf32> to vector<5x128xf32>
    %139 = vector.broadcast %136 : f32 to vector<5x128xf32>
    %140 = arith.mulf %139, %138 : vector<5x128xf32>
    %141 = arith.addf %135, %140 : vector<5x128xf32>
    %cst_49 = arith.constant 0.000000e+00 : f32
    %142 = vector.broadcast %cst_49 : f32 to vector<5x128xf32>
    %143 = arith.maximumf %141, %142 : vector<5x128xf32>
    %c5 = arith.constant 5 : index
    %c0_50 = arith.constant 0 : index
    %144 = memref.load %arg3[%c5, %c0_50] : memref<8x4xf32, #tpu.memory_space<smem>>
    %145 = vector.extract_strided_slice %18 {offsets = [0, 0, 0], sizes = [1, 5, 128], strides = [1, 1, 1]} : vector<4x5x128xf32> to vector<1x5x128xf32>
    %146 = vector.shape_cast %145 : vector<1x5x128xf32> to vector<5x128xf32>
    %147 = vector.broadcast %144 : f32 to vector<5x128xf32>
    %148 = arith.mulf %147, %146 : vector<5x128xf32>
    %c5_51 = arith.constant 5 : index
    %c1_52 = arith.constant 1 : index
    %149 = memref.load %arg3[%c5_51, %c1_52] : memref<8x4xf32, #tpu.memory_space<smem>>
    %150 = vector.extract_strided_slice %18 {offsets = [1, 0, 0], sizes = [1, 5, 128], strides = [1, 1, 1]} : vector<4x5x128xf32> to vector<1x5x128xf32>
    %151 = vector.shape_cast %150 : vector<1x5x128xf32> to vector<5x128xf32>
    %152 = vector.broadcast %149 : f32 to vector<5x128xf32>
    %153 = arith.mulf %152, %151 : vector<5x128xf32>
    %154 = arith.addf %148, %153 : vector<5x128xf32>
    %c5_53 = arith.constant 5 : index
    %c2_54 = arith.constant 2 : index
    %155 = memref.load %arg3[%c5_53, %c2_54] : memref<8x4xf32, #tpu.memory_space<smem>>
    %156 = vector.extract_strided_slice %18 {offsets = [2, 0, 0], sizes = [1, 5, 128], strides = [1, 1, 1]} : vector<4x5x128xf32> to vector<1x5x128xf32>
    %157 = vector.shape_cast %156 : vector<1x5x128xf32> to vector<5x128xf32>
    %158 = vector.broadcast %155 : f32 to vector<5x128xf32>
    %159 = arith.mulf %158, %157 : vector<5x128xf32>
    %160 = arith.addf %154, %159 : vector<5x128xf32>
    %c5_55 = arith.constant 5 : index
    %c3_56 = arith.constant 3 : index
    %161 = memref.load %arg3[%c5_55, %c3_56] : memref<8x4xf32, #tpu.memory_space<smem>>
    %162 = vector.extract_strided_slice %18 {offsets = [3, 0, 0], sizes = [1, 5, 128], strides = [1, 1, 1]} : vector<4x5x128xf32> to vector<1x5x128xf32>
    %163 = vector.shape_cast %162 : vector<1x5x128xf32> to vector<5x128xf32>
    %164 = vector.broadcast %161 : f32 to vector<5x128xf32>
    %165 = arith.mulf %164, %163 : vector<5x128xf32>
    %166 = arith.addf %160, %165 : vector<5x128xf32>
    %cst_57 = arith.constant 0.000000e+00 : f32
    %167 = vector.broadcast %cst_57 : f32 to vector<5x128xf32>
    %168 = arith.maximumf %166, %167 : vector<5x128xf32>
    %c6 = arith.constant 6 : index
    %c0_58 = arith.constant 0 : index
    %169 = memref.load %arg3[%c6, %c0_58] : memref<8x4xf32, #tpu.memory_space<smem>>
    %170 = vector.extract_strided_slice %18 {offsets = [0, 0, 0], sizes = [1, 5, 128], strides = [1, 1, 1]} : vector<4x5x128xf32> to vector<1x5x128xf32>
    %171 = vector.shape_cast %170 : vector<1x5x128xf32> to vector<5x128xf32>
    %172 = vector.broadcast %169 : f32 to vector<5x128xf32>
    %173 = arith.mulf %172, %171 : vector<5x128xf32>
    %c6_59 = arith.constant 6 : index
    %c1_60 = arith.constant 1 : index
    %174 = memref.load %arg3[%c6_59, %c1_60] : memref<8x4xf32, #tpu.memory_space<smem>>
    %175 = vector.extract_strided_slice %18 {offsets = [1, 0, 0], sizes = [1, 5, 128], strides = [1, 1, 1]} : vector<4x5x128xf32> to vector<1x5x128xf32>
    %176 = vector.shape_cast %175 : vector<1x5x128xf32> to vector<5x128xf32>
    %177 = vector.broadcast %174 : f32 to vector<5x128xf32>
    %178 = arith.mulf %177, %176 : vector<5x128xf32>
    %179 = arith.addf %173, %178 : vector<5x128xf32>
    %c6_61 = arith.constant 6 : index
    %c2_62 = arith.constant 2 : index
    %180 = memref.load %arg3[%c6_61, %c2_62] : memref<8x4xf32, #tpu.memory_space<smem>>
    %181 = vector.extract_strided_slice %18 {offsets = [2, 0, 0], sizes = [1, 5, 128], strides = [1, 1, 1]} : vector<4x5x128xf32> to vector<1x5x128xf32>
    %182 = vector.shape_cast %181 : vector<1x5x128xf32> to vector<5x128xf32>
    %183 = vector.broadcast %180 : f32 to vector<5x128xf32>
    %184 = arith.mulf %183, %182 : vector<5x128xf32>
    %185 = arith.addf %179, %184 : vector<5x128xf32>
    %c6_63 = arith.constant 6 : index
    %c3_64 = arith.constant 3 : index
    %186 = memref.load %arg3[%c6_63, %c3_64] : memref<8x4xf32, #tpu.memory_space<smem>>
    %187 = vector.extract_strided_slice %18 {offsets = [3, 0, 0], sizes = [1, 5, 128], strides = [1, 1, 1]} : vector<4x5x128xf32> to vector<1x5x128xf32>
    %188 = vector.shape_cast %187 : vector<1x5x128xf32> to vector<5x128xf32>
    %189 = vector.broadcast %186 : f32 to vector<5x128xf32>
    %190 = arith.mulf %189, %188 : vector<5x128xf32>
    %191 = arith.addf %185, %190 : vector<5x128xf32>
    %cst_65 = arith.constant 0.000000e+00 : f32
    %192 = vector.broadcast %cst_65 : f32 to vector<5x128xf32>
    %193 = arith.maximumf %191, %192 : vector<5x128xf32>
    %c7 = arith.constant 7 : index
    %c0_66 = arith.constant 0 : index
    %194 = memref.load %arg3[%c7, %c0_66] : memref<8x4xf32, #tpu.memory_space<smem>>
    %195 = vector.extract_strided_slice %18 {offsets = [0, 0, 0], sizes = [1, 5, 128], strides = [1, 1, 1]} : vector<4x5x128xf32> to vector<1x5x128xf32>
    %196 = vector.shape_cast %195 : vector<1x5x128xf32> to vector<5x128xf32>
    %197 = vector.broadcast %194 : f32 to vector<5x128xf32>
    %198 = arith.mulf %197, %196 : vector<5x128xf32>
    %c7_67 = arith.constant 7 : index
    %c1_68 = arith.constant 1 : index
    %199 = memref.load %arg3[%c7_67, %c1_68] : memref<8x4xf32, #tpu.memory_space<smem>>
    %200 = vector.extract_strided_slice %18 {offsets = [1, 0, 0], sizes = [1, 5, 128], strides = [1, 1, 1]} : vector<4x5x128xf32> to vector<1x5x128xf32>
    %201 = vector.shape_cast %200 : vector<1x5x128xf32> to vector<5x128xf32>
    %202 = vector.broadcast %199 : f32 to vector<5x128xf32>
    %203 = arith.mulf %202, %201 : vector<5x128xf32>
    %204 = arith.addf %198, %203 : vector<5x128xf32>
    %c7_69 = arith.constant 7 : index
    %c2_70 = arith.constant 2 : index
    %205 = memref.load %arg3[%c7_69, %c2_70] : memref<8x4xf32, #tpu.memory_space<smem>>
    %206 = vector.extract_strided_slice %18 {offsets = [2, 0, 0], sizes = [1, 5, 128], strides = [1, 1, 1]} : vector<4x5x128xf32> to vector<1x5x128xf32>
    %207 = vector.shape_cast %206 : vector<1x5x128xf32> to vector<5x128xf32>
    %208 = vector.broadcast %205 : f32 to vector<5x128xf32>
    %209 = arith.mulf %208, %207 : vector<5x128xf32>
    %210 = arith.addf %204, %209 : vector<5x128xf32>
    %c7_71 = arith.constant 7 : index
    %c3_72 = arith.constant 3 : index
    %211 = memref.load %arg3[%c7_71, %c3_72] : memref<8x4xf32, #tpu.memory_space<smem>>
    %212 = vector.extract_strided_slice %18 {offsets = [3, 0, 0], sizes = [1, 5, 128], strides = [1, 1, 1]} : vector<4x5x128xf32> to vector<1x5x128xf32>
    %213 = vector.shape_cast %212 : vector<1x5x128xf32> to vector<5x128xf32>
    %214 = vector.broadcast %211 : f32 to vector<5x128xf32>
    %215 = arith.mulf %214, %213 : vector<5x128xf32>
    %216 = arith.addf %210, %215 : vector<5x128xf32>
    %cst_73 = arith.constant 0.000000e+00 : f32
    %217 = vector.broadcast %cst_73 : f32 to vector<5x128xf32>
    %218 = arith.maximumf %216, %217 : vector<5x128xf32>
    %219 = tpu.iota {dimensions = array<i32: 1>} : vector<3x128xi32>
    %220 = vector.extract_strided_slice %43 {offsets = [0, 0], sizes = [3, 128], strides = [1, 1]} : vector<5x128xf32> to vector<3x128xf32>
    %c0_74 = arith.constant 0 : index
    %c0_75 = arith.constant 0 : index
    %c0_76 = arith.constant 0 : index
    %c0_77 = arith.constant 0 : index
    %221 = vector.load %arg7[%c0_74, %c0_75, %c0_76, %c0_77] : memref<8x9x3x128xf32, #tpu.memory_space<vmem>>, vector<1x1x3x128xf32>
    %222 = vector.shape_cast %221 : vector<1x1x3x128xf32> to vector<3x128xf32>
    %223 = vector.shape_cast %220 : vector<3x128xf32> to vector<1x1x3x128xf32>
    tpu.vector_store %arg7[%c0_74, %c0_75, %c0_76, %c0_77], %223 {strides = array<i32>} : memref<8x9x3x128xf32, #tpu.memory_space<vmem>>, vector<1x1x3x128xf32>,
    %224 = vector.extract_strided_slice %68 {offsets = [0, 0], sizes = [3, 128], strides = [1, 1]} : vector<5x128xf32> to vector<3x128xf32>
    %c1_78 = arith.constant 1 : index
    %c0_79 = arith.constant 0 : index
    %c0_80 = arith.constant 0 : index
    %c0_81 = arith.constant 0 : index
    %225 = vector.load %arg7[%c1_78, %c0_79, %c0_80, %c0_81] : memref<8x9x3x128xf32, #tpu.memory_space<vmem>>, vector<1x1x3x128xf32>
    %226 = vector.shape_cast %225 : vector<1x1x3x128xf32> to vector<3x128xf32>
    %227 = vector.shape_cast %224 : vector<3x128xf32> to vector<1x1x3x128xf32>
    tpu.vector_store %arg7[%c1_78, %c0_79, %c0_80, %c0_81], %227 {strides = array<i32>} : memref<8x9x3x128xf32, #tpu.memory_space<vmem>>, vector<1x1x3x128xf32>,
    %228 = arith.addf %220, %224 : vector<3x128xf32>
    %229 = vector.extract_strided_slice %93 {offsets = [0, 0], sizes = [3, 128], strides = [1, 1]} : vector<5x128xf32> to vector<3x128xf32>
    %c2_82 = arith.constant 2 : index
    %c0_83 = arith.constant 0 : index
    %c0_84 = arith.constant 0 : index
    %c0_85 = arith.constant 0 : index
    %230 = vector.load %arg7[%c2_82, %c0_83, %c0_84, %c0_85] : memref<8x9x3x128xf32, #tpu.memory_space<vmem>>, vector<1x1x3x128xf32>
    %231 = vector.shape_cast %230 : vector<1x1x3x128xf32> to vector<3x128xf32>
    %232 = vector.shape_cast %229 : vector<3x128xf32> to vector<1x1x3x128xf32>
    tpu.vector_store %arg7[%c2_82, %c0_83, %c0_84, %c0_85], %232 {strides = array<i32>} : memref<8x9x3x128xf32, #tpu.memory_space<vmem>>, vector<1x1x3x128xf32>,
    %233 = arith.addf %228, %229 : vector<3x128xf32>
    %234 = vector.extract_strided_slice %118 {offsets = [0, 0], sizes = [3, 128], strides = [1, 1]} : vector<5x128xf32> to vector<3x128xf32>
    %c3_86 = arith.constant 3 : index
    %c0_87 = arith.constant 0 : index
    %c0_88 = arith.constant 0 : index
    %c0_89 = arith.constant 0 : index
    %235 = vector.load %arg7[%c3_86, %c0_87, %c0_88, %c0_89] : memref<8x9x3x128xf32, #tpu.memory_space<vmem>>, vector<1x1x3x128xf32>
    %236 = vector.shape_cast %235 : vector<1x1x3x128xf32> to vector<3x128xf32>
    %237 = vector.shape_cast %234 : vector<3x128xf32> to vector<1x1x3x128xf32>
    tpu.vector_store %arg7[%c3_86, %c0_87, %c0_88, %c0_89], %237 {strides = array<i32>} : memref<8x9x3x128xf32, #tpu.memory_space<vmem>>, vector<1x1x3x128xf32>,
    %238 = arith.addf %233, %234 : vector<3x128xf32>
    %239 = vector.extract_strided_slice %143 {offsets = [0, 0], sizes = [3, 128], strides = [1, 1]} : vector<5x128xf32> to vector<3x128xf32>
    %c4_90 = arith.constant 4 : index
    %c0_91 = arith.constant 0 : index
    %c0_92 = arith.constant 0 : index
    %c0_93 = arith.constant 0 : index
    %240 = vector.load %arg7[%c4_90, %c0_91, %c0_92, %c0_93] : memref<8x9x3x128xf32, #tpu.memory_space<vmem>>, vector<1x1x3x128xf32>
    %241 = vector.shape_cast %240 : vector<1x1x3x128xf32> to vector<3x128xf32>
    %242 = vector.shape_cast %239 : vector<3x128xf32> to vector<1x1x3x128xf32>
    tpu.vector_store %arg7[%c4_90, %c0_91, %c0_92, %c0_93], %242 {strides = array<i32>} : memref<8x9x3x128xf32, #tpu.memory_space<vmem>>, vector<1x1x3x128xf32>,
    %243 = arith.addf %238, %239 : vector<3x128xf32>
    %244 = vector.extract_strided_slice %168 {offsets = [0, 0], sizes = [3, 128], strides = [1, 1]} : vector<5x128xf32> to vector<3x128xf32>
    %c5_94 = arith.constant 5 : index
    %c0_95 = arith.constant 0 : index
    %c0_96 = arith.constant 0 : index
    %c0_97 = arith.constant 0 : index
    %245 = vector.load %arg7[%c5_94, %c0_95, %c0_96, %c0_97] : memref<8x9x3x128xf32, #tpu.memory_space<vmem>>, vector<1x1x3x128xf32>
    %246 = vector.shape_cast %245 : vector<1x1x3x128xf32> to vector<3x128xf32>
    %247 = vector.shape_cast %244 : vector<3x128xf32> to vector<1x1x3x128xf32>
    tpu.vector_store %arg7[%c5_94, %c0_95, %c0_96, %c0_97], %247 {strides = array<i32>} : memref<8x9x3x128xf32, #tpu.memory_space<vmem>>, vector<1x1x3x128xf32>,
    %248 = arith.addf %243, %244 : vector<3x128xf32>
    %249 = vector.extract_strided_slice %193 {offsets = [0, 0], sizes = [3, 128], strides = [1, 1]} : vector<5x128xf32> to vector<3x128xf32>
    %c6_98 = arith.constant 6 : index
    %c0_99 = arith.constant 0 : index
    %c0_100 = arith.constant 0 : index
    %c0_101 = arith.constant 0 : index
    %250 = vector.load %arg7[%c6_98, %c0_99, %c0_100, %c0_101] : memref<8x9x3x128xf32, #tpu.memory_space<vmem>>, vector<1x1x3x128xf32>
    %251 = vector.shape_cast %250 : vector<1x1x3x128xf32> to vector<3x128xf32>
    %252 = vector.shape_cast %249 : vector<3x128xf32> to vector<1x1x3x128xf32>
    tpu.vector_store %arg7[%c6_98, %c0_99, %c0_100, %c0_101], %252 {strides = array<i32>} : memref<8x9x3x128xf32, #tpu.memory_space<vmem>>, vector<1x1x3x128xf32>,
    %253 = arith.addf %248, %249 : vector<3x128xf32>
    %254 = vector.extract_strided_slice %218 {offsets = [0, 0], sizes = [3, 128], strides = [1, 1]} : vector<5x128xf32> to vector<3x128xf32>
    %c7_102 = arith.constant 7 : index
    %c0_103 = arith.constant 0 : index
    %c0_104 = arith.constant 0 : index
    %c0_105 = arith.constant 0 : index
    %255 = vector.load %arg7[%c7_102, %c0_103, %c0_104, %c0_105] : memref<8x9x3x128xf32, #tpu.memory_space<vmem>>, vector<1x1x3x128xf32>
    %256 = vector.shape_cast %255 : vector<1x1x3x128xf32> to vector<3x128xf32>
    %257 = vector.shape_cast %254 : vector<3x128xf32> to vector<1x1x3x128xf32>
    tpu.vector_store %arg7[%c7_102, %c0_103, %c0_104, %c0_105], %257 {strides = array<i32>} : memref<8x9x3x128xf32, #tpu.memory_space<vmem>>, vector<1x1x3x128xf32>,
    %258 = arith.addf %253, %254 : vector<3x128xf32>
    %cst_106 = arith.constant 1.250000e-01 : f32
    %259 = vector.broadcast %cst_106 : f32 to vector<3x128xf32>
    %260 = arith.mulf %258, %259 : vector<3x128xf32>
    %261 = vector.extract_strided_slice %43 {offsets = [0, 0], sizes = [3, 128], strides = [1, 1]} : vector<5x128xf32> to vector<3x128xf32>
    %262 = vector.extract_strided_slice %43 {offsets = [1, 0], sizes = [3, 128], strides = [1, 1]} : vector<5x128xf32> to vector<3x128xf32>
    %c126_i32 = arith.constant 126 : i32
    %263 = vector.broadcast %c126_i32 : i32 to vector<3x128xi32>
    %264 = arith.cmpi slt, %219, %263 : vector<3x128xi32>
    %c126_i32_107 = arith.constant 126 : i32
    %265 = tpu.dynamic_rotate %261 by %c126_i32_107 dim 1 : vector<3x128xf32>, i32 -> vector<3x128xf32>
    %c126_i32_108 = arith.constant 126 : i32
    %266 = tpu.dynamic_rotate %262 by %c126_i32_108 dim 1 : vector<3x128xf32>, i32 -> vector<3x128xf32>
    %267 = arith.select %264, %265, %266 : vector<3x128xi1>, vector<3x128xf32>
    %c0_109 = arith.constant 0 : index
    %c1_110 = arith.constant 1 : index
    %c0_111 = arith.constant 0 : index
    %c0_112 = arith.constant 0 : index
    %268 = vector.load %arg7[%c0_109, %c1_110, %c0_111, %c0_112] : memref<8x9x3x128xf32, #tpu.memory_space<vmem>>, vector<1x1x3x128xf32>
    %269 = vector.shape_cast %268 : vector<1x1x3x128xf32> to vector<3x128xf32>
    %270 = vector.shape_cast %267 : vector<3x128xf32> to vector<1x1x3x128xf32>
    tpu.vector_store %arg7[%c0_109, %c1_110, %c0_111, %c0_112], %270 {strides = array<i32>} : memref<8x9x3x128xf32, #tpu.memory_space<vmem>>, vector<1x1x3x128xf32>,
    %271 = arith.addf %220, %267 : vector<3x128xf32>
    %272 = vector.extract_strided_slice %68 {offsets = [0, 0], sizes = [3, 128], strides = [1, 1]} : vector<5x128xf32> to vector<3x128xf32>
    %273 = vector.extract_strided_slice %68 {offsets = [1, 0], sizes = [3, 128], strides = [1, 1]} : vector<5x128xf32> to vector<3x128xf32>
    %c126_i32_113 = arith.constant 126 : i32
    %274 = tpu.dynamic_rotate %272 by %c126_i32_113 dim 1 : vector<3x128xf32>, i32 -> vector<3x128xf32>
    %c126_i32_114 = arith.constant 126 : i32
    %275 = tpu.dynamic_rotate %273 by %c126_i32_114 dim 1 : vector<3x128xf32>, i32 -> vector<3x128xf32>
    %276 = arith.select %264, %274, %275 : vector<3x128xi1>, vector<3x128xf32>
    %c1_115 = arith.constant 1 : index
    %c1_116 = arith.constant 1 : index
    %c0_117 = arith.constant 0 : index
    %c0_118 = arith.constant 0 : index
    %277 = vector.load %arg7[%c1_115, %c1_116, %c0_117, %c0_118] : memref<8x9x3x128xf32, #tpu.memory_space<vmem>>, vector<1x1x3x128xf32>
    %278 = vector.shape_cast %277 : vector<1x1x3x128xf32> to vector<3x128xf32>
    %279 = vector.shape_cast %276 : vector<3x128xf32> to vector<1x1x3x128xf32>
    tpu.vector_store %arg7[%c1_115, %c1_116, %c0_117, %c0_118], %279 {strides = array<i32>} : memref<8x9x3x128xf32, #tpu.memory_space<vmem>>, vector<1x1x3x128xf32>,
    %280 = arith.addf %267, %276 : vector<3x128xf32>
    %281 = arith.addf %224, %276 : vector<3x128xf32>
    %282 = vector.extract_strided_slice %93 {offsets = [0, 0], sizes = [3, 128], strides = [1, 1]} : vector<5x128xf32> to vector<3x128xf32>
    %283 = vector.extract_strided_slice %93 {offsets = [1, 0], sizes = [3, 128], strides = [1, 1]} : vector<5x128xf32> to vector<3x128xf32>
    %c126_i32_119 = arith.constant 126 : i32
    %284 = tpu.dynamic_rotate %282 by %c126_i32_119 dim 1 : vector<3x128xf32>, i32 -> vector<3x128xf32>
    %c126_i32_120 = arith.constant 126 : i32
    %285 = tpu.dynamic_rotate %283 by %c126_i32_120 dim 1 : vector<3x128xf32>, i32 -> vector<3x128xf32>
    %286 = arith.select %264, %284, %285 : vector<3x128xi1>, vector<3x128xf32>
    %c2_121 = arith.constant 2 : index
    %c1_122 = arith.constant 1 : index
    %c0_123 = arith.constant 0 : index
    %c0_124 = arith.constant 0 : index
    %287 = vector.load %arg7[%c2_121, %c1_122, %c0_123, %c0_124] : memref<8x9x3x128xf32, #tpu.memory_space<vmem>>, vector<1x1x3x128xf32>
    %288 = vector.shape_cast %287 : vector<1x1x3x128xf32> to vector<3x128xf32>
    %289 = vector.shape_cast %286 : vector<3x128xf32> to vector<1x1x3x128xf32>
    tpu.vector_store %arg7[%c2_121, %c1_122, %c0_123, %c0_124], %289 {strides = array<i32>} : memref<8x9x3x128xf32, #tpu.memory_space<vmem>>, vector<1x1x3x128xf32>,
    %290 = arith.addf %280, %286 : vector<3x128xf32>
    %291 = arith.addf %229, %286 : vector<3x128xf32>
    %292 = vector.extract_strided_slice %118 {offsets = [0, 0], sizes = [3, 128], strides = [1, 1]} : vector<5x128xf32> to vector<3x128xf32>
    %293 = vector.extract_strided_slice %118 {offsets = [1, 0], sizes = [3, 128], strides = [1, 1]} : vector<5x128xf32> to vector<3x128xf32>
    %c126_i32_125 = arith.constant 126 : i32
    %294 = tpu.dynamic_rotate %292 by %c126_i32_125 dim 1 : vector<3x128xf32>, i32 -> vector<3x128xf32>
    %c126_i32_126 = arith.constant 126 : i32
    %295 = tpu.dynamic_rotate %293 by %c126_i32_126 dim 1 : vector<3x128xf32>, i32 -> vector<3x128xf32>
    %296 = arith.select %264, %294, %295 : vector<3x128xi1>, vector<3x128xf32>
    %c3_127 = arith.constant 3 : index
    %c1_128 = arith.constant 1 : index
    %c0_129 = arith.constant 0 : index
    %c0_130 = arith.constant 0 : index
    %297 = vector.load %arg7[%c3_127, %c1_128, %c0_129, %c0_130] : memref<8x9x3x128xf32, #tpu.memory_space<vmem>>, vector<1x1x3x128xf32>
    %298 = vector.shape_cast %297 : vector<1x1x3x128xf32> to vector<3x128xf32>
    %299 = vector.shape_cast %296 : vector<3x128xf32> to vector<1x1x3x128xf32>
    tpu.vector_store %arg7[%c3_127, %c1_128, %c0_129, %c0_130], %299 {strides = array<i32>} : memref<8x9x3x128xf32, #tpu.memory_space<vmem>>, vector<1x1x3x128xf32>,
    %300 = arith.addf %290, %296 : vector<3x128xf32>
    %301 = arith.addf %234, %296 : vector<3x128xf32>
    %302 = vector.extract_strided_slice %143 {offsets = [0, 0], sizes = [3, 128], strides = [1, 1]} : vector<5x128xf32> to vector<3x128xf32>
    %303 = vector.extract_strided_slice %143 {offsets = [1, 0], sizes = [3, 128], strides = [1, 1]} : vector<5x128xf32> to vector<3x128xf32>
    %c126_i32_131 = arith.constant 126 : i32
    %304 = tpu.dynamic_rotate %302 by %c126_i32_131 dim 1 : vector<3x128xf32>, i32 -> vector<3x128xf32>
    %c126_i32_132 = arith.constant 126 : i32
    %305 = tpu.dynamic_rotate %303 by %c126_i32_132 dim 1 : vector<3x128xf32>, i32 -> vector<3x128xf32>
    %306 = arith.select %264, %304, %305 : vector<3x128xi1>, vector<3x128xf32>
    %c4_133 = arith.constant 4 : index
    %c1_134 = arith.constant 1 : index
    %c0_135 = arith.constant 0 : index
    %c0_136 = arith.constant 0 : index
    %307 = vector.load %arg7[%c4_133, %c1_134, %c0_135, %c0_136] : memref<8x9x3x128xf32, #tpu.memory_space<vmem>>, vector<1x1x3x128xf32>
    %308 = vector.shape_cast %307 : vector<1x1x3x128xf32> to vector<3x128xf32>
    %309 = vector.shape_cast %306 : vector<3x128xf32> to vector<1x1x3x128xf32>
    tpu.vector_store %arg7[%c4_133, %c1_134, %c0_135, %c0_136], %309 {strides = array<i32>} : memref<8x9x3x128xf32, #tpu.memory_space<vmem>>, vector<1x1x3x128xf32>,
    %310 = arith.addf %300, %306 : vector<3x128xf32>
    %311 = arith.addf %239, %306 : vector<3x128xf32>
    %312 = vector.extract_strided_slice %168 {offsets = [0, 0], sizes = [3, 128], strides = [1, 1]} : vector<5x128xf32> to vector<3x128xf32>
    %313 = vector.extract_strided_slice %168 {offsets = [1, 0], sizes = [3, 128], strides = [1, 1]} : vector<5x128xf32> to vector<3x128xf32>
    %c126_i32_137 = arith.constant 126 : i32
    %314 = tpu.dynamic_rotate %312 by %c126_i32_137 dim 1 : vector<3x128xf32>, i32 -> vector<3x128xf32>
    %c126_i32_138 = arith.constant 126 : i32
    %315 = tpu.dynamic_rotate %313 by %c126_i32_138 dim 1 : vector<3x128xf32>, i32 -> vector<3x128xf32>
    %316 = arith.select %264, %314, %315 : vector<3x128xi1>, vector<3x128xf32>
    %c5_139 = arith.constant 5 : index
    %c1_140 = arith.constant 1 : index
    %c0_141 = arith.constant 0 : index
    %c0_142 = arith.constant 0 : index
    %317 = vector.load %arg7[%c5_139, %c1_140, %c0_141, %c0_142] : memref<8x9x3x128xf32, #tpu.memory_space<vmem>>, vector<1x1x3x128xf32>
    %318 = vector.shape_cast %317 : vector<1x1x3x128xf32> to vector<3x128xf32>
    %319 = vector.shape_cast %316 : vector<3x128xf32> to vector<1x1x3x128xf32>
    tpu.vector_store %arg7[%c5_139, %c1_140, %c0_141, %c0_142], %319 {strides = array<i32>} : memref<8x9x3x128xf32, #tpu.memory_space<vmem>>, vector<1x1x3x128xf32>,
    %320 = arith.addf %310, %316 : vector<3x128xf32>
    %321 = arith.addf %244, %316 : vector<3x128xf32>
    %322 = vector.extract_strided_slice %193 {offsets = [0, 0], sizes = [3, 128], strides = [1, 1]} : vector<5x128xf32> to vector<3x128xf32>
    %323 = vector.extract_strided_slice %193 {offsets = [1, 0], sizes = [3, 128], strides = [1, 1]} : vector<5x128xf32> to vector<3x128xf32>
    %c126_i32_143 = arith.constant 126 : i32
    %324 = tpu.dynamic_rotate %322 by %c126_i32_143 dim 1 : vector<3x128xf32>, i32 -> vector<3x128xf32>
    %c126_i32_144 = arith.constant 126 : i32
    %325 = tpu.dynamic_rotate %323 by %c126_i32_144 dim 1 : vector<3x128xf32>, i32 -> vector<3x128xf32>
    %326 = arith.select %264, %324, %325 : vector<3x128xi1>, vector<3x128xf32>
    %c6_145 = arith.constant 6 : index
    %c1_146 = arith.constant 1 : index
    %c0_147 = arith.constant 0 : index
    %c0_148 = arith.constant 0 : index
    %327 = vector.load %arg7[%c6_145, %c1_146, %c0_147, %c0_148] : memref<8x9x3x128xf32, #tpu.memory_space<vmem>>, vector<1x1x3x128xf32>
    %328 = vector.shape_cast %327 : vector<1x1x3x128xf32> to vector<3x128xf32>
    %329 = vector.shape_cast %326 : vector<3x128xf32> to vector<1x1x3x128xf32>
    tpu.vector_store %arg7[%c6_145, %c1_146, %c0_147, %c0_148], %329 {strides = array<i32>} : memref<8x9x3x128xf32, #tpu.memory_space<vmem>>, vector<1x1x3x128xf32>,
    %330 = arith.addf %320, %326 : vector<3x128xf32>
    %331 = arith.addf %249, %326 : vector<3x128xf32>
    %332 = vector.extract_strided_slice %218 {offsets = [0, 0], sizes = [3, 128], strides = [1, 1]} : vector<5x128xf32> to vector<3x128xf32>
    %333 = vector.extract_strided_slice %218 {offsets = [1, 0], sizes = [3, 128], strides = [1, 1]} : vector<5x128xf32> to vector<3x128xf32>
    %c126_i32_149 = arith.constant 126 : i32
    %334 = tpu.dynamic_rotate %332 by %c126_i32_149 dim 1 : vector<3x128xf32>, i32 -> vector<3x128xf32>
    %c126_i32_150 = arith.constant 126 : i32
    %335 = tpu.dynamic_rotate %333 by %c126_i32_150 dim 1 : vector<3x128xf32>, i32 -> vector<3x128xf32>
    %336 = arith.select %264, %334, %335 : vector<3x128xi1>, vector<3x128xf32>
    %c7_151 = arith.constant 7 : index
    %c1_152 = arith.constant 1 : index
    %c0_153 = arith.constant 0 : index
    %c0_154 = arith.constant 0 : index
    %337 = vector.load %arg7[%c7_151, %c1_152, %c0_153, %c0_154] : memref<8x9x3x128xf32, #tpu.memory_space<vmem>>, vector<1x1x3x128xf32>
    %338 = vector.shape_cast %337 : vector<1x1x3x128xf32> to vector<3x128xf32>
    %339 = vector.shape_cast %336 : vector<3x128xf32> to vector<1x1x3x128xf32>
    tpu.vector_store %arg7[%c7_151, %c1_152, %c0_153, %c0_154], %339 {strides = array<i32>} : memref<8x9x3x128xf32, #tpu.memory_space<vmem>>, vector<1x1x3x128xf32>,
    %340 = arith.addf %330, %336 : vector<3x128xf32>
    %341 = arith.addf %254, %336 : vector<3x128xf32>
    %cst_155 = arith.constant 1.250000e-01 : f32
    %342 = vector.broadcast %cst_155 : f32 to vector<3x128xf32>
    %343 = arith.mulf %340, %342 : vector<3x128xf32>
    %344 = vector.extract_strided_slice %43 {offsets = [0, 0], sizes = [3, 128], strides = [1, 1]} : vector<5x128xf32> to vector<3x128xf32>
    %345 = vector.extract_strided_slice %43 {offsets = [1, 0], sizes = [3, 128], strides = [1, 1]} : vector<5x128xf32> to vector<3x128xf32>
    %c124_i32 = arith.constant 124 : i32
    %346 = vector.broadcast %c124_i32 : i32 to vector<3x128xi32>
    %347 = arith.cmpi slt, %219, %346 : vector<3x128xi32>
    %c124_i32_156 = arith.constant 124 : i32
    %348 = tpu.dynamic_rotate %344 by %c124_i32_156 dim 1 : vector<3x128xf32>, i32 -> vector<3x128xf32>
    %c124_i32_157 = arith.constant 124 : i32
    %349 = tpu.dynamic_rotate %345 by %c124_i32_157 dim 1 : vector<3x128xf32>, i32 -> vector<3x128xf32>
    %350 = arith.select %347, %348, %349 : vector<3x128xi1>, vector<3x128xf32>
    %c0_158 = arith.constant 0 : index
    %c2_159 = arith.constant 2 : index
    %c0_160 = arith.constant 0 : index
    %c0_161 = arith.constant 0 : index
    %351 = vector.load %arg7[%c0_158, %c2_159, %c0_160, %c0_161] : memref<8x9x3x128xf32, #tpu.memory_space<vmem>>, vector<1x1x3x128xf32>
    %352 = vector.shape_cast %351 : vector<1x1x3x128xf32> to vector<3x128xf32>
    %353 = vector.shape_cast %350 : vector<3x128xf32> to vector<1x1x3x128xf32>
    tpu.vector_store %arg7[%c0_158, %c2_159, %c0_160, %c0_161], %353 {strides = array<i32>} : memref<8x9x3x128xf32, #tpu.memory_space<vmem>>, vector<1x1x3x128xf32>,
    %354 = arith.addf %271, %350 : vector<3x128xf32>
    %355 = vector.extract_strided_slice %68 {offsets = [0, 0], sizes = [3, 128], strides = [1, 1]} : vector<5x128xf32> to vector<3x128xf32>
    %356 = vector.extract_strided_slice %68 {offsets = [1, 0], sizes = [3, 128], strides = [1, 1]} : vector<5x128xf32> to vector<3x128xf32>
    %c124_i32_162 = arith.constant 124 : i32
    %357 = tpu.dynamic_rotate %355 by %c124_i32_162 dim 1 : vector<3x128xf32>, i32 -> vector<3x128xf32>
    %c124_i32_163 = arith.constant 124 : i32
    %358 = tpu.dynamic_rotate %356 by %c124_i32_163 dim 1 : vector<3x128xf32>, i32 -> vector<3x128xf32>
    %359 = arith.select %347, %357, %358 : vector<3x128xi1>, vector<3x128xf32>
    %c1_164 = arith.constant 1 : index
    %c2_165 = arith.constant 2 : index
    %c0_166 = arith.constant 0 : index
    %c0_167 = arith.constant 0 : index
    %360 = vector.load %arg7[%c1_164, %c2_165, %c0_166, %c0_167] : memref<8x9x3x128xf32, #tpu.memory_space<vmem>>, vector<1x1x3x128xf32>
    %361 = vector.shape_cast %360 : vector<1x1x3x128xf32> to vector<3x128xf32>
    %362 = vector.shape_cast %359 : vector<3x128xf32> to vector<1x1x3x128xf32>
    tpu.vector_store %arg7[%c1_164, %c2_165, %c0_166, %c0_167], %362 {strides = array<i32>} : memref<8x9x3x128xf32, #tpu.memory_space<vmem>>, vector<1x1x3x128xf32>,
    %363 = arith.addf %350, %359 : vector<3x128xf32>
    %364 = arith.addf %281, %359 : vector<3x128xf32>
    %365 = vector.extract_strided_slice %93 {offsets = [0, 0], sizes = [3, 128], strides = [1, 1]} : vector<5x128xf32> to vector<3x128xf32>
    %366 = vector.extract_strided_slice %93 {offsets = [1, 0], sizes = [3, 128], strides = [1, 1]} : vector<5x128xf32> to vector<3x128xf32>
    %c124_i32_168 = arith.constant 124 : i32
    %367 = tpu.dynamic_rotate %365 by %c124_i32_168 dim 1 : vector<3x128xf32>, i32 -> vector<3x128xf32>
    %c124_i32_169 = arith.constant 124 : i32
    %368 = tpu.dynamic_rotate %366 by %c124_i32_169 dim 1 : vector<3x128xf32>, i32 -> vector<3x128xf32>
    %369 = arith.select %347, %367, %368 : vector<3x128xi1>, vector<3x128xf32>
    %c2_170 = arith.constant 2 : index
    %c2_171 = arith.constant 2 : index
    %c0_172 = arith.constant 0 : index
    %c0_173 = arith.constant 0 : index
    %370 = vector.load %arg7[%c2_170, %c2_171, %c0_172, %c0_173] : memref<8x9x3x128xf32, #tpu.memory_space<vmem>>, vector<1x1x3x128xf32>
    %371 = vector.shape_cast %370 : vector<1x1x3x128xf32> to vector<3x128xf32>
    %372 = vector.shape_cast %369 : vector<3x128xf32> to vector<1x1x3x128xf32>
    tpu.vector_store %arg7[%c2_170, %c2_171, %c0_172, %c0_173], %372 {strides = array<i32>} : memref<8x9x3x128xf32, #tpu.memory_space<vmem>>, vector<1x1x3x128xf32>,
    %373 = arith.addf %363, %369 : vector<3x128xf32>
    %374 = arith.addf %291, %369 : vector<3x128xf32>
    %375 = vector.extract_strided_slice %118 {offsets = [0, 0], sizes = [3, 128], strides = [1, 1]} : vector<5x128xf32> to vector<3x128xf32>
    %376 = vector.extract_strided_slice %118 {offsets = [1, 0], sizes = [3, 128], strides = [1, 1]} : vector<5x128xf32> to vector<3x128xf32>
    %c124_i32_174 = arith.constant 124 : i32
    %377 = tpu.dynamic_rotate %375 by %c124_i32_174 dim 1 : vector<3x128xf32>, i32 -> vector<3x128xf32>
    %c124_i32_175 = arith.constant 124 : i32
    %378 = tpu.dynamic_rotate %376 by %c124_i32_175 dim 1 : vector<3x128xf32>, i32 -> vector<3x128xf32>
    %379 = arith.select %347, %377, %378 : vector<3x128xi1>, vector<3x128xf32>
    %c3_176 = arith.constant 3 : index
    %c2_177 = arith.constant 2 : index
    %c0_178 = arith.constant 0 : index
    %c0_179 = arith.constant 0 : index
    %380 = vector.load %arg7[%c3_176, %c2_177, %c0_178, %c0_179] : memref<8x9x3x128xf32, #tpu.memory_space<vmem>>, vector<1x1x3x128xf32>
    %381 = vector.shape_cast %380 : vector<1x1x3x128xf32> to vector<3x128xf32>
    %382 = vector.shape_cast %379 : vector<3x128xf32> to vector<1x1x3x128xf32>
    tpu.vector_store %arg7[%c3_176, %c2_177, %c0_178, %c0_179], %382 {strides = array<i32>} : memref<8x9x3x128xf32, #tpu.memory_space<vmem>>, vector<1x1x3x128xf32>,
    %383 = arith.addf %373, %379 : vector<3x128xf32>
    %384 = arith.addf %301, %379 : vector<3x128xf32>
    %385 = vector.extract_strided_slice %143 {offsets = [0, 0], sizes = [3, 128], strides = [1, 1]} : vector<5x128xf32> to vector<3x128xf32>
    %386 = vector.extract_strided_slice %143 {offsets = [1, 0], sizes = [3, 128], strides = [1, 1]} : vector<5x128xf32> to vector<3x128xf32>
    %c124_i32_180 = arith.constant 124 : i32
    %387 = tpu.dynamic_rotate %385 by %c124_i32_180 dim 1 : vector<3x128xf32>, i32 -> vector<3x128xf32>
    %c124_i32_181 = arith.constant 124 : i32
    %388 = tpu.dynamic_rotate %386 by %c124_i32_181 dim 1 : vector<3x128xf32>, i32 -> vector<3x128xf32>
    %389 = arith.select %347, %387, %388 : vector<3x128xi1>, vector<3x128xf32>
    %c4_182 = arith.constant 4 : index
    %c2_183 = arith.constant 2 : index
    %c0_184 = arith.constant 0 : index
    %c0_185 = arith.constant 0 : index
    %390 = vector.load %arg7[%c4_182, %c2_183, %c0_184, %c0_185] : memref<8x9x3x128xf32, #tpu.memory_space<vmem>>, vector<1x1x3x128xf32>
    %391 = vector.shape_cast %390 : vector<1x1x3x128xf32> to vector<3x128xf32>
    %392 = vector.shape_cast %389 : vector<3x128xf32> to vector<1x1x3x128xf32>
    tpu.vector_store %arg7[%c4_182, %c2_183, %c0_184, %c0_185], %392 {strides = array<i32>} : memref<8x9x3x128xf32, #tpu.memory_space<vmem>>, vector<1x1x3x128xf32>,
    %393 = arith.addf %383, %389 : vector<3x128xf32>
    %394 = arith.addf %311, %389 : vector<3x128xf32>
    %395 = vector.extract_strided_slice %168 {offsets = [0, 0], sizes = [3, 128], strides = [1, 1]} : vector<5x128xf32> to vector<3x128xf32>
    %396 = vector.extract_strided_slice %168 {offsets = [1, 0], sizes = [3, 128], strides = [1, 1]} : vector<5x128xf32> to vector<3x128xf32>
    %c124_i32_186 = arith.constant 124 : i32
    %397 = tpu.dynamic_rotate %395 by %c124_i32_186 dim 1 : vector<3x128xf32>, i32 -> vector<3x128xf32>
    %c124_i32_187 = arith.constant 124 : i32
    %398 = tpu.dynamic_rotate %396 by %c124_i32_187 dim 1 : vector<3x128xf32>, i32 -> vector<3x128xf32>
    %399 = arith.select %347, %397, %398 : vector<3x128xi1>, vector<3x128xf32>
    %c5_188 = arith.constant 5 : index
    %c2_189 = arith.constant 2 : index
    %c0_190 = arith.constant 0 : index
    %c0_191 = arith.constant 0 : index
    %400 = vector.load %arg7[%c5_188, %c2_189, %c0_190, %c0_191] : memref<8x9x3x128xf32, #tpu.memory_space<vmem>>, vector<1x1x3x128xf32>
    %401 = vector.shape_cast %400 : vector<1x1x3x128xf32> to vector<3x128xf32>
    %402 = vector.shape_cast %399 : vector<3x128xf32> to vector<1x1x3x128xf32>
    tpu.vector_store %arg7[%c5_188, %c2_189, %c0_190, %c0_191], %402 {strides = array<i32>} : memref<8x9x3x128xf32, #tpu.memory_space<vmem>>, vector<1x1x3x128xf32>,
    %403 = arith.addf %393, %399 : vector<3x128xf32>
    %404 = arith.addf %321, %399 : vector<3x128xf32>
    %405 = vector.extract_strided_slice %193 {offsets = [0, 0], sizes = [3, 128], strides = [1, 1]} : vector<5x128xf32> to vector<3x128xf32>
    %406 = vector.extract_strided_slice %193 {offsets = [1, 0], sizes = [3, 128], strides = [1, 1]} : vector<5x128xf32> to vector<3x128xf32>
    %c124_i32_192 = arith.constant 124 : i32
    %407 = tpu.dynamic_rotate %405 by %c124_i32_192 dim 1 : vector<3x128xf32>, i32 -> vector<3x128xf32>
    %c124_i32_193 = arith.constant 124 : i32
    %408 = tpu.dynamic_rotate %406 by %c124_i32_193 dim 1 : vector<3x128xf32>, i32 -> vector<3x128xf32>
    %409 = arith.select %347, %407, %408 : vector<3x128xi1>, vector<3x128xf32>
    %c6_194 = arith.constant 6 : index
    %c2_195 = arith.constant 2 : index
    %c0_196 = arith.constant 0 : index
    %c0_197 = arith.constant 0 : index
    %410 = vector.load %arg7[%c6_194, %c2_195, %c0_196, %c0_197] : memref<8x9x3x128xf32, #tpu.memory_space<vmem>>, vector<1x1x3x128xf32>
    %411 = vector.shape_cast %410 : vector<1x1x3x128xf32> to vector<3x128xf32>
    %412 = vector.shape_cast %409 : vector<3x128xf32> to vector<1x1x3x128xf32>
    tpu.vector_store %arg7[%c6_194, %c2_195, %c0_196, %c0_197], %412 {strides = array<i32>} : memref<8x9x3x128xf32, #tpu.memory_space<vmem>>, vector<1x1x3x128xf32>,
    %413 = arith.addf %403, %409 : vector<3x128xf32>
    %414 = arith.addf %331, %409 : vector<3x128xf32>
    %415 = vector.extract_strided_slice %218 {offsets = [0, 0], sizes = [3, 128], strides = [1, 1]} : vector<5x128xf32> to vector<3x128xf32>
    %416 = vector.extract_strided_slice %218 {offsets = [1, 0], sizes = [3, 128], strides = [1, 1]} : vector<5x128xf32> to vector<3x128xf32>
    %c124_i32_198 = arith.constant 124 : i32
    %417 = tpu.dynamic_rotate %415 by %c124_i32_198 dim 1 : vector<3x128xf32>, i32 -> vector<3x128xf32>
    %c124_i32_199 = arith.constant 124 : i32
    %418 = tpu.dynamic_rotate %416 by %c124_i32_199 dim 1 : vector<3x128xf32>, i32 -> vector<3x128xf32>
    %419 = arith.select %347, %417, %418 : vector<3x128xi1>, vector<3x128xf32>
    %c7_200 = arith.constant 7 : index
    %c2_201 = arith.constant 2 : index
    %c0_202 = arith.constant 0 : index
    %c0_203 = arith.constant 0 : index
    %420 = vector.load %arg7[%c7_200, %c2_201, %c0_202, %c0_203] : memref<8x9x3x128xf32, #tpu.memory_space<vmem>>, vector<1x1x3x128xf32>
    %421 = vector.shape_cast %420 : vector<1x1x3x128xf32> to vector<3x128xf32>
    %422 = vector.shape_cast %419 : vector<3x128xf32> to vector<1x1x3x128xf32>
    tpu.vector_store %arg7[%c7_200, %c2_201, %c0_202, %c0_203], %422 {strides = array<i32>} : memref<8x9x3x128xf32, #tpu.memory_space<vmem>>, vector<1x1x3x128xf32>,
    %423 = arith.addf %413, %419 : vector<3x128xf32>
    %424 = arith.addf %341, %419 : vector<3x128xf32>
    %cst_204 = arith.constant 1.250000e-01 : f32
    %425 = vector.broadcast %cst_204 : f32 to vector<3x128xf32>
    %426 = arith.mulf %423, %425 : vector<3x128xf32>
    %427 = vector.extract_strided_slice %43 {offsets = [0, 0], sizes = [3, 128], strides = [1, 1]} : vector<5x128xf32> to vector<3x128xf32>
    %428 = vector.extract_strided_slice %43 {offsets = [1, 0], sizes = [3, 128], strides = [1, 1]} : vector<5x128xf32> to vector<3x128xf32>
    %c80_i32 = arith.constant 80 : i32
    %429 = vector.broadcast %c80_i32 : i32 to vector<3x128xi32>
    %430 = arith.cmpi slt, %219, %429 : vector<3x128xi32>
    %c80_i32_205 = arith.constant 80 : i32
    %431 = tpu.dynamic_rotate %427 by %c80_i32_205 dim 1 : vector<3x128xf32>, i32 -> vector<3x128xf32>
    %c80_i32_206 = arith.constant 80 : i32
    %432 = tpu.dynamic_rotate %428 by %c80_i32_206 dim 1 : vector<3x128xf32>, i32 -> vector<3x128xf32>
    %433 = arith.select %430, %431, %432 : vector<3x128xi1>, vector<3x128xf32>
    %c0_207 = arith.constant 0 : index
    %c3_208 = arith.constant 3 : index
    %c0_209 = arith.constant 0 : index
    %c0_210 = arith.constant 0 : index
    %434 = vector.load %arg7[%c0_207, %c3_208, %c0_209, %c0_210] : memref<8x9x3x128xf32, #tpu.memory_space<vmem>>, vector<1x1x3x128xf32>
    %435 = vector.shape_cast %434 : vector<1x1x3x128xf32> to vector<3x128xf32>
    %436 = vector.shape_cast %433 : vector<3x128xf32> to vector<1x1x3x128xf32>
    tpu.vector_store %arg7[%c0_207, %c3_208, %c0_209, %c0_210], %436 {strides = array<i32>} : memref<8x9x3x128xf32, #tpu.memory_space<vmem>>, vector<1x1x3x128xf32>,
    %437 = arith.addf %354, %433 : vector<3x128xf32>
    %438 = vector.extract_strided_slice %68 {offsets = [0, 0], sizes = [3, 128], strides = [1, 1]} : vector<5x128xf32> to vector<3x128xf32>
    %439 = vector.extract_strided_slice %68 {offsets = [1, 0], sizes = [3, 128], strides = [1, 1]} : vector<5x128xf32> to vector<3x128xf32>
    %c80_i32_211 = arith.constant 80 : i32
    %440 = tpu.dynamic_rotate %438 by %c80_i32_211 dim 1 : vector<3x128xf32>, i32 -> vector<3x128xf32>
    %c80_i32_212 = arith.constant 80 : i32
    %441 = tpu.dynamic_rotate %439 by %c80_i32_212 dim 1 : vector<3x128xf32>, i32 -> vector<3x128xf32>
    %442 = arith.select %430, %440, %441 : vector<3x128xi1>, vector<3x128xf32>
    %c1_213 = arith.constant 1 : index
    %c3_214 = arith.constant 3 : index
    %c0_215 = arith.constant 0 : index
    %c0_216 = arith.constant 0 : index
    %443 = vector.load %arg7[%c1_213, %c3_214, %c0_215, %c0_216] : memref<8x9x3x128xf32, #tpu.memory_space<vmem>>, vector<1x1x3x128xf32>
    %444 = vector.shape_cast %443 : vector<1x1x3x128xf32> to vector<3x128xf32>
    %445 = vector.shape_cast %442 : vector<3x128xf32> to vector<1x1x3x128xf32>
    tpu.vector_store %arg7[%c1_213, %c3_214, %c0_215, %c0_216], %445 {strides = array<i32>} : memref<8x9x3x128xf32, #tpu.memory_space<vmem>>, vector<1x1x3x128xf32>,
    %446 = arith.addf %433, %442 : vector<3x128xf32>
    %447 = arith.addf %364, %442 : vector<3x128xf32>
    %448 = vector.extract_strided_slice %93 {offsets = [0, 0], sizes = [3, 128], strides = [1, 1]} : vector<5x128xf32> to vector<3x128xf32>
    %449 = vector.extract_strided_slice %93 {offsets = [1, 0], sizes = [3, 128], strides = [1, 1]} : vector<5x128xf32> to vector<3x128xf32>
    %c80_i32_217 = arith.constant 80 : i32
    %450 = tpu.dynamic_rotate %448 by %c80_i32_217 dim 1 : vector<3x128xf32>, i32 -> vector<3x128xf32>
    %c80_i32_218 = arith.constant 80 : i32
    %451 = tpu.dynamic_rotate %449 by %c80_i32_218 dim 1 : vector<3x128xf32>, i32 -> vector<3x128xf32>
    %452 = arith.select %430, %450, %451 : vector<3x128xi1>, vector<3x128xf32>
    %c2_219 = arith.constant 2 : index
    %c3_220 = arith.constant 3 : index
    %c0_221 = arith.constant 0 : index
    %c0_222 = arith.constant 0 : index
    %453 = vector.load %arg7[%c2_219, %c3_220, %c0_221, %c0_222] : memref<8x9x3x128xf32, #tpu.memory_space<vmem>>, vector<1x1x3x128xf32>
    %454 = vector.shape_cast %453 : vector<1x1x3x128xf32> to vector<3x128xf32>
    %455 = vector.shape_cast %452 : vector<3x128xf32> to vector<1x1x3x128xf32>
    tpu.vector_store %arg7[%c2_219, %c3_220, %c0_221, %c0_222], %455 {strides = array<i32>} : memref<8x9x3x128xf32, #tpu.memory_space<vmem>>, vector<1x1x3x128xf32>,
    %456 = arith.addf %446, %452 : vector<3x128xf32>
    %457 = arith.addf %374, %452 : vector<3x128xf32>
    %458 = vector.extract_strided_slice %118 {offsets = [0, 0], sizes = [3, 128], strides = [1, 1]} : vector<5x128xf32> to vector<3x128xf32>
    %459 = vector.extract_strided_slice %118 {offsets = [1, 0], sizes = [3, 128], strides = [1, 1]} : vector<5x128xf32> to vector<3x128xf32>
    %c80_i32_223 = arith.constant 80 : i32
    %460 = tpu.dynamic_rotate %458 by %c80_i32_223 dim 1 : vector<3x128xf32>, i32 -> vector<3x128xf32>
    %c80_i32_224 = arith.constant 80 : i32
    %461 = tpu.dynamic_rotate %459 by %c80_i32_224 dim 1 : vector<3x128xf32>, i32 -> vector<3x128xf32>
    %462 = arith.select %430, %460, %461 : vector<3x128xi1>, vector<3x128xf32>
    %c3_225 = arith.constant 3 : index
    %c3_226 = arith.constant 3 : index
    %c0_227 = arith.constant 0 : index
    %c0_228 = arith.constant 0 : index
    %463 = vector.load %arg7[%c3_225, %c3_226, %c0_227, %c0_228] : memref<8x9x3x128xf32, #tpu.memory_space<vmem>>, vector<1x1x3x128xf32>
    %464 = vector.shape_cast %463 : vector<1x1x3x128xf32> to vector<3x128xf32>
    %465 = vector.shape_cast %462 : vector<3x128xf32> to vector<1x1x3x128xf32>
    tpu.vector_store %arg7[%c3_225, %c3_226, %c0_227, %c0_228], %465 {strides = array<i32>} : memref<8x9x3x128xf32, #tpu.memory_space<vmem>>, vector<1x1x3x128xf32>,
    %466 = arith.addf %456, %462 : vector<3x128xf32>
    %467 = arith.addf %384, %462 : vector<3x128xf32>
    %468 = vector.extract_strided_slice %143 {offsets = [0, 0], sizes = [3, 128], strides = [1, 1]} : vector<5x128xf32> to vector<3x128xf32>
    %469 = vector.extract_strided_slice %143 {offsets = [1, 0], sizes = [3, 128], strides = [1, 1]} : vector<5x128xf32> to vector<3x128xf32>
    %c80_i32_229 = arith.constant 80 : i32
    %470 = tpu.dynamic_rotate %468 by %c80_i32_229 dim 1 : vector<3x128xf32>, i32 -> vector<3x128xf32>
    %c80_i32_230 = arith.constant 80 : i32
    %471 = tpu.dynamic_rotate %469 by %c80_i32_230 dim 1 : vector<3x128xf32>, i32 -> vector<3x128xf32>
    %472 = arith.select %430, %470, %471 : vector<3x128xi1>, vector<3x128xf32>
    %c4_231 = arith.constant 4 : index
    %c3_232 = arith.constant 3 : index
    %c0_233 = arith.constant 0 : index
    %c0_234 = arith.constant 0 : index
    %473 = vector.load %arg7[%c4_231, %c3_232, %c0_233, %c0_234] : memref<8x9x3x128xf32, #tpu.memory_space<vmem>>, vector<1x1x3x128xf32>
    %474 = vector.shape_cast %473 : vector<1x1x3x128xf32> to vector<3x128xf32>
    %475 = vector.shape_cast %472 : vector<3x128xf32> to vector<1x1x3x128xf32>
    tpu.vector_store %arg7[%c4_231, %c3_232, %c0_233, %c0_234], %475 {strides = array<i32>} : memref<8x9x3x128xf32, #tpu.memory_space<vmem>>, vector<1x1x3x128xf32>,
    %476 = arith.addf %466, %472 : vector<3x128xf32>
    %477 = arith.addf %394, %472 : vector<3x128xf32>
    %478 = vector.extract_strided_slice %168 {offsets = [0, 0], sizes = [3, 128], strides = [1, 1]} : vector<5x128xf32> to vector<3x128xf32>
    %479 = vector.extract_strided_slice %168 {offsets = [1, 0], sizes = [3, 128], strides = [1, 1]} : vector<5x128xf32> to vector<3x128xf32>
    %c80_i32_235 = arith.constant 80 : i32
    %480 = tpu.dynamic_rotate %478 by %c80_i32_235 dim 1 : vector<3x128xf32>, i32 -> vector<3x128xf32>
    %c80_i32_236 = arith.constant 80 : i32
    %481 = tpu.dynamic_rotate %479 by %c80_i32_236 dim 1 : vector<3x128xf32>, i32 -> vector<3x128xf32>
    %482 = arith.select %430, %480, %481 : vector<3x128xi1>, vector<3x128xf32>
    %c5_237 = arith.constant 5 : index
    %c3_238 = arith.constant 3 : index
    %c0_239 = arith.constant 0 : index
    %c0_240 = arith.constant 0 : index
    %483 = vector.load %arg7[%c5_237, %c3_238, %c0_239, %c0_240] : memref<8x9x3x128xf32, #tpu.memory_space<vmem>>, vector<1x1x3x128xf32>
    %484 = vector.shape_cast %483 : vector<1x1x3x128xf32> to vector<3x128xf32>
    %485 = vector.shape_cast %482 : vector<3x128xf32> to vector<1x1x3x128xf32>
    tpu.vector_store %arg7[%c5_237, %c3_238, %c0_239, %c0_240], %485 {strides = array<i32>} : memref<8x9x3x128xf32, #tpu.memory_space<vmem>>, vector<1x1x3x128xf32>,
    %486 = arith.addf %476, %482 : vector<3x128xf32>
    %487 = arith.addf %404, %482 : vector<3x128xf32>
    %488 = vector.extract_strided_slice %193 {offsets = [0, 0], sizes = [3, 128], strides = [1, 1]} : vector<5x128xf32> to vector<3x128xf32>
    %489 = vector.extract_strided_slice %193 {offsets = [1, 0], sizes = [3, 128], strides = [1, 1]} : vector<5x128xf32> to vector<3x128xf32>
    %c80_i32_241 = arith.constant 80 : i32
    %490 = tpu.dynamic_rotate %488 by %c80_i32_241 dim 1 : vector<3x128xf32>, i32 -> vector<3x128xf32>
    %c80_i32_242 = arith.constant 80 : i32
    %491 = tpu.dynamic_rotate %489 by %c80_i32_242 dim 1 : vector<3x128xf32>, i32 -> vector<3x128xf32>
    %492 = arith.select %430, %490, %491 : vector<3x128xi1>, vector<3x128xf32>
    %c6_243 = arith.constant 6 : index
    %c3_244 = arith.constant 3 : index
    %c0_245 = arith.constant 0 : index
    %c0_246 = arith.constant 0 : index
    %493 = vector.load %arg7[%c6_243, %c3_244, %c0_245, %c0_246] : memref<8x9x3x128xf32, #tpu.memory_space<vmem>>, vector<1x1x3x128xf32>
    %494 = vector.shape_cast %493 : vector<1x1x3x128xf32> to vector<3x128xf32>
    %495 = vector.shape_cast %492 : vector<3x128xf32> to vector<1x1x3x128xf32>
    tpu.vector_store %arg7[%c6_243, %c3_244, %c0_245, %c0_246], %495 {strides = array<i32>} : memref<8x9x3x128xf32, #tpu.memory_space<vmem>>, vector<1x1x3x128xf32>,
    %496 = arith.addf %486, %492 : vector<3x128xf32>
    %497 = arith.addf %414, %492 : vector<3x128xf32>
    %498 = vector.extract_strided_slice %218 {offsets = [0, 0], sizes = [3, 128], strides = [1, 1]} : vector<5x128xf32> to vector<3x128xf32>
    %499 = vector.extract_strided_slice %218 {offsets = [1, 0], sizes = [3, 128], strides = [1, 1]} : vector<5x128xf32> to vector<3x128xf32>
    %c80_i32_247 = arith.constant 80 : i32
    %500 = tpu.dynamic_rotate %498 by %c80_i32_247 dim 1 : vector<3x128xf32>, i32 -> vector<3x128xf32>
    %c80_i32_248 = arith.constant 80 : i32
    %501 = tpu.dynamic_rotate %499 by %c80_i32_248 dim 1 : vector<3x128xf32>, i32 -> vector<3x128xf32>
    %502 = arith.select %430, %500, %501 : vector<3x128xi1>, vector<3x128xf32>
    %c7_249 = arith.constant 7 : index
    %c3_250 = arith.constant 3 : index
    %c0_251 = arith.constant 0 : index
    %c0_252 = arith.constant 0 : index
    %503 = vector.load %arg7[%c7_249, %c3_250, %c0_251, %c0_252] : memref<8x9x3x128xf32, #tpu.memory_space<vmem>>, vector<1x1x3x128xf32>
    %504 = vector.shape_cast %503 : vector<1x1x3x128xf32> to vector<3x128xf32>
    %505 = vector.shape_cast %502 : vector<3x128xf32> to vector<1x1x3x128xf32>
    tpu.vector_store %arg7[%c7_249, %c3_250, %c0_251, %c0_252], %505 {strides = array<i32>} : memref<8x9x3x128xf32, #tpu.memory_space<vmem>>, vector<1x1x3x128xf32>,
    %506 = arith.addf %496, %502 : vector<3x128xf32>
    %507 = arith.addf %424, %502 : vector<3x128xf32>
    %cst_253 = arith.constant 1.250000e-01 : f32
    %508 = vector.broadcast %cst_253 : f32 to vector<3x128xf32>
    %509 = arith.mulf %506, %508 : vector<3x128xf32>
    %510 = vector.extract_strided_slice %43 {offsets = [0, 0], sizes = [3, 128], strides = [1, 1]} : vector<5x128xf32> to vector<3x128xf32>
    %511 = vector.extract_strided_slice %43 {offsets = [1, 0], sizes = [3, 128], strides = [1, 1]} : vector<5x128xf32> to vector<3x128xf32>
    %c78_i32 = arith.constant 78 : i32
    %512 = vector.broadcast %c78_i32 : i32 to vector<3x128xi32>
    %513 = arith.cmpi slt, %219, %512 : vector<3x128xi32>
    %c78_i32_254 = arith.constant 78 : i32
    %514 = tpu.dynamic_rotate %510 by %c78_i32_254 dim 1 : vector<3x128xf32>, i32 -> vector<3x128xf32>
    %c78_i32_255 = arith.constant 78 : i32
    %515 = tpu.dynamic_rotate %511 by %c78_i32_255 dim 1 : vector<3x128xf32>, i32 -> vector<3x128xf32>
    %516 = arith.select %513, %514, %515 : vector<3x128xi1>, vector<3x128xf32>
    %c0_256 = arith.constant 0 : index
    %c4_257 = arith.constant 4 : index
    %c0_258 = arith.constant 0 : index
    %c0_259 = arith.constant 0 : index
    %517 = vector.load %arg7[%c0_256, %c4_257, %c0_258, %c0_259] : memref<8x9x3x128xf32, #tpu.memory_space<vmem>>, vector<1x1x3x128xf32>
    %518 = vector.shape_cast %517 : vector<1x1x3x128xf32> to vector<3x128xf32>
    %519 = vector.shape_cast %516 : vector<3x128xf32> to vector<1x1x3x128xf32>
    tpu.vector_store %arg7[%c0_256, %c4_257, %c0_258, %c0_259], %519 {strides = array<i32>} : memref<8x9x3x128xf32, #tpu.memory_space<vmem>>, vector<1x1x3x128xf32>,
    %520 = arith.addf %437, %516 : vector<3x128xf32>
    %521 = vector.extract_strided_slice %68 {offsets = [0, 0], sizes = [3, 128], strides = [1, 1]} : vector<5x128xf32> to vector<3x128xf32>
    %522 = vector.extract_strided_slice %68 {offsets = [1, 0], sizes = [3, 128], strides = [1, 1]} : vector<5x128xf32> to vector<3x128xf32>
    %c78_i32_260 = arith.constant 78 : i32
    %523 = tpu.dynamic_rotate %521 by %c78_i32_260 dim 1 : vector<3x128xf32>, i32 -> vector<3x128xf32>
    %c78_i32_261 = arith.constant 78 : i32
    %524 = tpu.dynamic_rotate %522 by %c78_i32_261 dim 1 : vector<3x128xf32>, i32 -> vector<3x128xf32>
    %525 = arith.select %513, %523, %524 : vector<3x128xi1>, vector<3x128xf32>
    %c1_262 = arith.constant 1 : index
    %c4_263 = arith.constant 4 : index
    %c0_264 = arith.constant 0 : index
    %c0_265 = arith.constant 0 : index
    %526 = vector.load %arg7[%c1_262, %c4_263, %c0_264, %c0_265] : memref<8x9x3x128xf32, #tpu.memory_space<vmem>>, vector<1x1x3x128xf32>
    %527 = vector.shape_cast %526 : vector<1x1x3x128xf32> to vector<3x128xf32>
    %528 = vector.shape_cast %525 : vector<3x128xf32> to vector<1x1x3x128xf32>
    tpu.vector_store %arg7[%c1_262, %c4_263, %c0_264, %c0_265], %528 {strides = array<i32>} : memref<8x9x3x128xf32, #tpu.memory_space<vmem>>, vector<1x1x3x128xf32>,
    %529 = arith.addf %516, %525 : vector<3x128xf32>
    %530 = arith.addf %447, %525 : vector<3x128xf32>
    %531 = vector.extract_strided_slice %93 {offsets = [0, 0], sizes = [3, 128], strides = [1, 1]} : vector<5x128xf32> to vector<3x128xf32>
    %532 = vector.extract_strided_slice %93 {offsets = [1, 0], sizes = [3, 128], strides = [1, 1]} : vector<5x128xf32> to vector<3x128xf32>
    %c78_i32_266 = arith.constant 78 : i32
    %533 = tpu.dynamic_rotate %531 by %c78_i32_266 dim 1 : vector<3x128xf32>, i32 -> vector<3x128xf32>
    %c78_i32_267 = arith.constant 78 : i32
    %534 = tpu.dynamic_rotate %532 by %c78_i32_267 dim 1 : vector<3x128xf32>, i32 -> vector<3x128xf32>
    %535 = arith.select %513, %533, %534 : vector<3x128xi1>, vector<3x128xf32>
    %c2_268 = arith.constant 2 : index
    %c4_269 = arith.constant 4 : index
    %c0_270 = arith.constant 0 : index
    %c0_271 = arith.constant 0 : index
    %536 = vector.load %arg7[%c2_268, %c4_269, %c0_270, %c0_271] : memref<8x9x3x128xf32, #tpu.memory_space<vmem>>, vector<1x1x3x128xf32>
    %537 = vector.shape_cast %536 : vector<1x1x3x128xf32> to vector<3x128xf32>
    %538 = vector.shape_cast %535 : vector<3x128xf32> to vector<1x1x3x128xf32>
    tpu.vector_store %arg7[%c2_268, %c4_269, %c0_270, %c0_271], %538 {strides = array<i32>} : memref<8x9x3x128xf32, #tpu.memory_space<vmem>>, vector<1x1x3x128xf32>,
    %539 = arith.addf %529, %535 : vector<3x128xf32>
    %540 = arith.addf %457, %535 : vector<3x128xf32>
    %541 = vector.extract_strided_slice %118 {offsets = [0, 0], sizes = [3, 128], strides = [1, 1]} : vector<5x128xf32> to vector<3x128xf32>
    %542 = vector.extract_strided_slice %118 {offsets = [1, 0], sizes = [3, 128], strides = [1, 1]} : vector<5x128xf32> to vector<3x128xf32>
    %c78_i32_272 = arith.constant 78 : i32
    %543 = tpu.dynamic_rotate %541 by %c78_i32_272 dim 1 : vector<3x128xf32>, i32 -> vector<3x128xf32>
    %c78_i32_273 = arith.constant 78 : i32
    %544 = tpu.dynamic_rotate %542 by %c78_i32_273 dim 1 : vector<3x128xf32>, i32 -> vector<3x128xf32>
    %545 = arith.select %513, %543, %544 : vector<3x128xi1>, vector<3x128xf32>
    %c3_274 = arith.constant 3 : index
    %c4_275 = arith.constant 4 : index
    %c0_276 = arith.constant 0 : index
    %c0_277 = arith.constant 0 : index
    %546 = vector.load %arg7[%c3_274, %c4_275, %c0_276, %c0_277] : memref<8x9x3x128xf32, #tpu.memory_space<vmem>>, vector<1x1x3x128xf32>
    %547 = vector.shape_cast %546 : vector<1x1x3x128xf32> to vector<3x128xf32>
    %548 = vector.shape_cast %545 : vector<3x128xf32> to vector<1x1x3x128xf32>
    tpu.vector_store %arg7[%c3_274, %c4_275, %c0_276, %c0_277], %548 {strides = array<i32>} : memref<8x9x3x128xf32, #tpu.memory_space<vmem>>, vector<1x1x3x128xf32>,
    %549 = arith.addf %539, %545 : vector<3x128xf32>
    %550 = arith.addf %467, %545 : vector<3x128xf32>
    %551 = vector.extract_strided_slice %143 {offsets = [0, 0], sizes = [3, 128], strides = [1, 1]} : vector<5x128xf32> to vector<3x128xf32>
    %552 = vector.extract_strided_slice %143 {offsets = [1, 0], sizes = [3, 128], strides = [1, 1]} : vector<5x128xf32> to vector<3x128xf32>
    %c78_i32_278 = arith.constant 78 : i32
    %553 = tpu.dynamic_rotate %551 by %c78_i32_278 dim 1 : vector<3x128xf32>, i32 -> vector<3x128xf32>
    %c78_i32_279 = arith.constant 78 : i32
    %554 = tpu.dynamic_rotate %552 by %c78_i32_279 dim 1 : vector<3x128xf32>, i32 -> vector<3x128xf32>
    %555 = arith.select %513, %553, %554 : vector<3x128xi1>, vector<3x128xf32>
    %c4_280 = arith.constant 4 : index
    %c4_281 = arith.constant 4 : index
    %c0_282 = arith.constant 0 : index
    %c0_283 = arith.constant 0 : index
    %556 = vector.load %arg7[%c4_280, %c4_281, %c0_282, %c0_283] : memref<8x9x3x128xf32, #tpu.memory_space<vmem>>, vector<1x1x3x128xf32>
    %557 = vector.shape_cast %556 : vector<1x1x3x128xf32> to vector<3x128xf32>
    %558 = vector.shape_cast %555 : vector<3x128xf32> to vector<1x1x3x128xf32>
    tpu.vector_store %arg7[%c4_280, %c4_281, %c0_282, %c0_283], %558 {strides = array<i32>} : memref<8x9x3x128xf32, #tpu.memory_space<vmem>>, vector<1x1x3x128xf32>,
    %559 = arith.addf %549, %555 : vector<3x128xf32>
    %560 = arith.addf %477, %555 : vector<3x128xf32>
    %561 = vector.extract_strided_slice %168 {offsets = [0, 0], sizes = [3, 128], strides = [1, 1]} : vector<5x128xf32> to vector<3x128xf32>
    %562 = vector.extract_strided_slice %168 {offsets = [1, 0], sizes = [3, 128], strides = [1, 1]} : vector<5x128xf32> to vector<3x128xf32>
    %c78_i32_284 = arith.constant 78 : i32
    %563 = tpu.dynamic_rotate %561 by %c78_i32_284 dim 1 : vector<3x128xf32>, i32 -> vector<3x128xf32>
    %c78_i32_285 = arith.constant 78 : i32
    %564 = tpu.dynamic_rotate %562 by %c78_i32_285 dim 1 : vector<3x128xf32>, i32 -> vector<3x128xf32>
    %565 = arith.select %513, %563, %564 : vector<3x128xi1>, vector<3x128xf32>
    %c5_286 = arith.constant 5 : index
    %c4_287 = arith.constant 4 : index
    %c0_288 = arith.constant 0 : index
    %c0_289 = arith.constant 0 : index
    %566 = vector.load %arg7[%c5_286, %c4_287, %c0_288, %c0_289] : memref<8x9x3x128xf32, #tpu.memory_space<vmem>>, vector<1x1x3x128xf32>
    %567 = vector.shape_cast %566 : vector<1x1x3x128xf32> to vector<3x128xf32>
    %568 = vector.shape_cast %565 : vector<3x128xf32> to vector<1x1x3x128xf32>
    tpu.vector_store %arg7[%c5_286, %c4_287, %c0_288, %c0_289], %568 {strides = array<i32>} : memref<8x9x3x128xf32, #tpu.memory_space<vmem>>, vector<1x1x3x128xf32>,
    %569 = arith.addf %559, %565 : vector<3x128xf32>
    %570 = arith.addf %487, %565 : vector<3x128xf32>
    %571 = vector.extract_strided_slice %193 {offsets = [0, 0], sizes = [3, 128], strides = [1, 1]} : vector<5x128xf32> to vector<3x128xf32>
    %572 = vector.extract_strided_slice %193 {offsets = [1, 0], sizes = [3, 128], strides = [1, 1]} : vector<5x128xf32> to vector<3x128xf32>
    %c78_i32_290 = arith.constant 78 : i32
    %573 = tpu.dynamic_rotate %571 by %c78_i32_290 dim 1 : vector<3x128xf32>, i32 -> vector<3x128xf32>
    %c78_i32_291 = arith.constant 78 : i32
    %574 = tpu.dynamic_rotate %572 by %c78_i32_291 dim 1 : vector<3x128xf32>, i32 -> vector<3x128xf32>
    %575 = arith.select %513, %573, %574 : vector<3x128xi1>, vector<3x128xf32>
    %c6_292 = arith.constant 6 : index
    %c4_293 = arith.constant 4 : index
    %c0_294 = arith.constant 0 : index
    %c0_295 = arith.constant 0 : index
    %576 = vector.load %arg7[%c6_292, %c4_293, %c0_294, %c0_295] : memref<8x9x3x128xf32, #tpu.memory_space<vmem>>, vector<1x1x3x128xf32>
    %577 = vector.shape_cast %576 : vector<1x1x3x128xf32> to vector<3x128xf32>
    %578 = vector.shape_cast %575 : vector<3x128xf32> to vector<1x1x3x128xf32>
    tpu.vector_store %arg7[%c6_292, %c4_293, %c0_294, %c0_295], %578 {strides = array<i32>} : memref<8x9x3x128xf32, #tpu.memory_space<vmem>>, vector<1x1x3x128xf32>,
    %579 = arith.addf %569, %575 : vector<3x128xf32>
    %580 = arith.addf %497, %575 : vector<3x128xf32>
    %581 = vector.extract_strided_slice %218 {offsets = [0, 0], sizes = [3, 128], strides = [1, 1]} : vector<5x128xf32> to vector<3x128xf32>
    %582 = vector.extract_strided_slice %218 {offsets = [1, 0], sizes = [3, 128], strides = [1, 1]} : vector<5x128xf32> to vector<3x128xf32>
    %c78_i32_296 = arith.constant 78 : i32
    %583 = tpu.dynamic_rotate %581 by %c78_i32_296 dim 1 : vector<3x128xf32>, i32 -> vector<3x128xf32>
    %c78_i32_297 = arith.constant 78 : i32
    %584 = tpu.dynamic_rotate %582 by %c78_i32_297 dim 1 : vector<3x128xf32>, i32 -> vector<3x128xf32>
    %585 = arith.select %513, %583, %584 : vector<3x128xi1>, vector<3x128xf32>
    %c7_298 = arith.constant 7 : index
    %c4_299 = arith.constant 4 : index
    %c0_300 = arith.constant 0 : index
    %c0_301 = arith.constant 0 : index
    %586 = vector.load %arg7[%c7_298, %c4_299, %c0_300, %c0_301] : memref<8x9x3x128xf32, #tpu.memory_space<vmem>>, vector<1x1x3x128xf32>
    %587 = vector.shape_cast %586 : vector<1x1x3x128xf32> to vector<3x128xf32>
    %588 = vector.shape_cast %585 : vector<3x128xf32> to vector<1x1x3x128xf32>
    tpu.vector_store %arg7[%c7_298, %c4_299, %c0_300, %c0_301], %588 {strides = array<i32>} : memref<8x9x3x128xf32, #tpu.memory_space<vmem>>, vector<1x1x3x128xf32>,
    %589 = arith.addf %579, %585 : vector<3x128xf32>
    %590 = arith.addf %507, %585 : vector<3x128xf32>
    %cst_302 = arith.constant 1.250000e-01 : f32
    %591 = vector.broadcast %cst_302 : f32 to vector<3x128xf32>
    %592 = arith.mulf %589, %591 : vector<3x128xf32>
    %593 = vector.extract_strided_slice %43 {offsets = [0, 0], sizes = [3, 128], strides = [1, 1]} : vector<5x128xf32> to vector<3x128xf32>
    %594 = vector.extract_strided_slice %43 {offsets = [1, 0], sizes = [3, 128], strides = [1, 1]} : vector<5x128xf32> to vector<3x128xf32>
    %c76_i32 = arith.constant 76 : i32
    %595 = vector.broadcast %c76_i32 : i32 to vector<3x128xi32>
    %596 = arith.cmpi slt, %219, %595 : vector<3x128xi32>
    %c76_i32_303 = arith.constant 76 : i32
    %597 = tpu.dynamic_rotate %593 by %c76_i32_303 dim 1 : vector<3x128xf32>, i32 -> vector<3x128xf32>
    %c76_i32_304 = arith.constant 76 : i32
    %598 = tpu.dynamic_rotate %594 by %c76_i32_304 dim 1 : vector<3x128xf32>, i32 -> vector<3x128xf32>
    %599 = arith.select %596, %597, %598 : vector<3x128xi1>, vector<3x128xf32>
    %c0_305 = arith.constant 0 : index
    %c5_306 = arith.constant 5 : index
    %c0_307 = arith.constant 0 : index
    %c0_308 = arith.constant 0 : index
    %600 = vector.load %arg7[%c0_305, %c5_306, %c0_307, %c0_308] : memref<8x9x3x128xf32, #tpu.memory_space<vmem>>, vector<1x1x3x128xf32>
    %601 = vector.shape_cast %600 : vector<1x1x3x128xf32> to vector<3x128xf32>
    %602 = vector.shape_cast %599 : vector<3x128xf32> to vector<1x1x3x128xf32>
    tpu.vector_store %arg7[%c0_305, %c5_306, %c0_307, %c0_308], %602 {strides = array<i32>} : memref<8x9x3x128xf32, #tpu.memory_space<vmem>>, vector<1x1x3x128xf32>,
    %603 = arith.addf %520, %599 : vector<3x128xf32>
    %604 = vector.extract_strided_slice %68 {offsets = [0, 0], sizes = [3, 128], strides = [1, 1]} : vector<5x128xf32> to vector<3x128xf32>
    %605 = vector.extract_strided_slice %68 {offsets = [1, 0], sizes = [3, 128], strides = [1, 1]} : vector<5x128xf32> to vector<3x128xf32>
    %c76_i32_309 = arith.constant 76 : i32
    %606 = tpu.dynamic_rotate %604 by %c76_i32_309 dim 1 : vector<3x128xf32>, i32 -> vector<3x128xf32>
    %c76_i32_310 = arith.constant 76 : i32
    %607 = tpu.dynamic_rotate %605 by %c76_i32_310 dim 1 : vector<3x128xf32>, i32 -> vector<3x128xf32>
    %608 = arith.select %596, %606, %607 : vector<3x128xi1>, vector<3x128xf32>
    %c1_311 = arith.constant 1 : index
    %c5_312 = arith.constant 5 : index
    %c0_313 = arith.constant 0 : index
    %c0_314 = arith.constant 0 : index
    %609 = vector.load %arg7[%c1_311, %c5_312, %c0_313, %c0_314] : memref<8x9x3x128xf32, #tpu.memory_space<vmem>>, vector<1x1x3x128xf32>
    %610 = vector.shape_cast %609 : vector<1x1x3x128xf32> to vector<3x128xf32>
    %611 = vector.shape_cast %608 : vector<3x128xf32> to vector<1x1x3x128xf32>
    tpu.vector_store %arg7[%c1_311, %c5_312, %c0_313, %c0_314], %611 {strides = array<i32>} : memref<8x9x3x128xf32, #tpu.memory_space<vmem>>, vector<1x1x3x128xf32>,
    %612 = arith.addf %599, %608 : vector<3x128xf32>
    %613 = arith.addf %530, %608 : vector<3x128xf32>
    %614 = vector.extract_strided_slice %93 {offsets = [0, 0], sizes = [3, 128], strides = [1, 1]} : vector<5x128xf32> to vector<3x128xf32>
    %615 = vector.extract_strided_slice %93 {offsets = [1, 0], sizes = [3, 128], strides = [1, 1]} : vector<5x128xf32> to vector<3x128xf32>
    %c76_i32_315 = arith.constant 76 : i32
    %616 = tpu.dynamic_rotate %614 by %c76_i32_315 dim 1 : vector<3x128xf32>, i32 -> vector<3x128xf32>
    %c76_i32_316 = arith.constant 76 : i32
    %617 = tpu.dynamic_rotate %615 by %c76_i32_316 dim 1 : vector<3x128xf32>, i32 -> vector<3x128xf32>
    %618 = arith.select %596, %616, %617 : vector<3x128xi1>, vector<3x128xf32>
    %c2_317 = arith.constant 2 : index
    %c5_318 = arith.constant 5 : index
    %c0_319 = arith.constant 0 : index
    %c0_320 = arith.constant 0 : index
    %619 = vector.load %arg7[%c2_317, %c5_318, %c0_319, %c0_320] : memref<8x9x3x128xf32, #tpu.memory_space<vmem>>, vector<1x1x3x128xf32>
    %620 = vector.shape_cast %619 : vector<1x1x3x128xf32> to vector<3x128xf32>
    %621 = vector.shape_cast %618 : vector<3x128xf32> to vector<1x1x3x128xf32>
    tpu.vector_store %arg7[%c2_317, %c5_318, %c0_319, %c0_320], %621 {strides = array<i32>} : memref<8x9x3x128xf32, #tpu.memory_space<vmem>>, vector<1x1x3x128xf32>,
    %622 = arith.addf %612, %618 : vector<3x128xf32>
    %623 = arith.addf %540, %618 : vector<3x128xf32>
    %624 = vector.extract_strided_slice %118 {offsets = [0, 0], sizes = [3, 128], strides = [1, 1]} : vector<5x128xf32> to vector<3x128xf32>
    %625 = vector.extract_strided_slice %118 {offsets = [1, 0], sizes = [3, 128], strides = [1, 1]} : vector<5x128xf32> to vector<3x128xf32>
    %c76_i32_321 = arith.constant 76 : i32
    %626 = tpu.dynamic_rotate %624 by %c76_i32_321 dim 1 : vector<3x128xf32>, i32 -> vector<3x128xf32>
    %c76_i32_322 = arith.constant 76 : i32
    %627 = tpu.dynamic_rotate %625 by %c76_i32_322 dim 1 : vector<3x128xf32>, i32 -> vector<3x128xf32>
    %628 = arith.select %596, %626, %627 : vector<3x128xi1>, vector<3x128xf32>
    %c3_323 = arith.constant 3 : index
    %c5_324 = arith.constant 5 : index
    %c0_325 = arith.constant 0 : index
    %c0_326 = arith.constant 0 : index
    %629 = vector.load %arg7[%c3_323, %c5_324, %c0_325, %c0_326] : memref<8x9x3x128xf32, #tpu.memory_space<vmem>>, vector<1x1x3x128xf32>
    %630 = vector.shape_cast %629 : vector<1x1x3x128xf32> to vector<3x128xf32>
    %631 = vector.shape_cast %628 : vector<3x128xf32> to vector<1x1x3x128xf32>
    tpu.vector_store %arg7[%c3_323, %c5_324, %c0_325, %c0_326], %631 {strides = array<i32>} : memref<8x9x3x128xf32, #tpu.memory_space<vmem>>, vector<1x1x3x128xf32>,
    %632 = arith.addf %622, %628 : vector<3x128xf32>
    %633 = arith.addf %550, %628 : vector<3x128xf32>
    %634 = vector.extract_strided_slice %143 {offsets = [0, 0], sizes = [3, 128], strides = [1, 1]} : vector<5x128xf32> to vector<3x128xf32>
    %635 = vector.extract_strided_slice %143 {offsets = [1, 0], sizes = [3, 128], strides = [1, 1]} : vector<5x128xf32> to vector<3x128xf32>
    %c76_i32_327 = arith.constant 76 : i32
    %636 = tpu.dynamic_rotate %634 by %c76_i32_327 dim 1 : vector<3x128xf32>, i32 -> vector<3x128xf32>
    %c76_i32_328 = arith.constant 76 : i32
    %637 = tpu.dynamic_rotate %635 by %c76_i32_328 dim 1 : vector<3x128xf32>, i32 -> vector<3x128xf32>
    %638 = arith.select %596, %636, %637 : vector<3x128xi1>, vector<3x128xf32>
    %c4_329 = arith.constant 4 : index
    %c5_330 = arith.constant 5 : index
    %c0_331 = arith.constant 0 : index
    %c0_332 = arith.constant 0 : index
    %639 = vector.load %arg7[%c4_329, %c5_330, %c0_331, %c0_332] : memref<8x9x3x128xf32, #tpu.memory_space<vmem>>, vector<1x1x3x128xf32>
    %640 = vector.shape_cast %639 : vector<1x1x3x128xf32> to vector<3x128xf32>
    %641 = vector.shape_cast %638 : vector<3x128xf32> to vector<1x1x3x128xf32>
    tpu.vector_store %arg7[%c4_329, %c5_330, %c0_331, %c0_332], %641 {strides = array<i32>} : memref<8x9x3x128xf32, #tpu.memory_space<vmem>>, vector<1x1x3x128xf32>,
    %642 = arith.addf %632, %638 : vector<3x128xf32>
    %643 = arith.addf %560, %638 : vector<3x128xf32>
    %644 = vector.extract_strided_slice %168 {offsets = [0, 0], sizes = [3, 128], strides = [1, 1]} : vector<5x128xf32> to vector<3x128xf32>
    %645 = vector.extract_strided_slice %168 {offsets = [1, 0], sizes = [3, 128], strides = [1, 1]} : vector<5x128xf32> to vector<3x128xf32>
    %c76_i32_333 = arith.constant 76 : i32
    %646 = tpu.dynamic_rotate %644 by %c76_i32_333 dim 1 : vector<3x128xf32>, i32 -> vector<3x128xf32>
    %c76_i32_334 = arith.constant 76 : i32
    %647 = tpu.dynamic_rotate %645 by %c76_i32_334 dim 1 : vector<3x128xf32>, i32 -> vector<3x128xf32>
    %648 = arith.select %596, %646, %647 : vector<3x128xi1>, vector<3x128xf32>
    %c5_335 = arith.constant 5 : index
    %c5_336 = arith.constant 5 : index
    %c0_337 = arith.constant 0 : index
    %c0_338 = arith.constant 0 : index
    %649 = vector.load %arg7[%c5_335, %c5_336, %c0_337, %c0_338] : memref<8x9x3x128xf32, #tpu.memory_space<vmem>>, vector<1x1x3x128xf32>
    %650 = vector.shape_cast %649 : vector<1x1x3x128xf32> to vector<3x128xf32>
    %651 = vector.shape_cast %648 : vector<3x128xf32> to vector<1x1x3x128xf32>
    tpu.vector_store %arg7[%c5_335, %c5_336, %c0_337, %c0_338], %651 {strides = array<i32>} : memref<8x9x3x128xf32, #tpu.memory_space<vmem>>, vector<1x1x3x128xf32>,
    %652 = arith.addf %642, %648 : vector<3x128xf32>
    %653 = arith.addf %570, %648 : vector<3x128xf32>
    %654 = vector.extract_strided_slice %193 {offsets = [0, 0], sizes = [3, 128], strides = [1, 1]} : vector<5x128xf32> to vector<3x128xf32>
    %655 = vector.extract_strided_slice %193 {offsets = [1, 0], sizes = [3, 128], strides = [1, 1]} : vector<5x128xf32> to vector<3x128xf32>
    %c76_i32_339 = arith.constant 76 : i32
    %656 = tpu.dynamic_rotate %654 by %c76_i32_339 dim 1 : vector<3x128xf32>, i32 -> vector<3x128xf32>
    %c76_i32_340 = arith.constant 76 : i32
    %657 = tpu.dynamic_rotate %655 by %c76_i32_340 dim 1 : vector<3x128xf32>, i32 -> vector<3x128xf32>
    %658 = arith.select %596, %656, %657 : vector<3x128xi1>, vector<3x128xf32>
    %c6_341 = arith.constant 6 : index
    %c5_342 = arith.constant 5 : index
    %c0_343 = arith.constant 0 : index
    %c0_344 = arith.constant 0 : index
    %659 = vector.load %arg7[%c6_341, %c5_342, %c0_343, %c0_344] : memref<8x9x3x128xf32, #tpu.memory_space<vmem>>, vector<1x1x3x128xf32>
    %660 = vector.shape_cast %659 : vector<1x1x3x128xf32> to vector<3x128xf32>
    %661 = vector.shape_cast %658 : vector<3x128xf32> to vector<1x1x3x128xf32>
    tpu.vector_store %arg7[%c6_341, %c5_342, %c0_343, %c0_344], %661 {strides = array<i32>} : memref<8x9x3x128xf32, #tpu.memory_space<vmem>>, vector<1x1x3x128xf32>,
    %662 = arith.addf %652, %658 : vector<3x128xf32>
    %663 = arith.addf %580, %658 : vector<3x128xf32>
    %664 = vector.extract_strided_slice %218 {offsets = [0, 0], sizes = [3, 128], strides = [1, 1]} : vector<5x128xf32> to vector<3x128xf32>
    %665 = vector.extract_strided_slice %218 {offsets = [1, 0], sizes = [3, 128], strides = [1, 1]} : vector<5x128xf32> to vector<3x128xf32>
    %c76_i32_345 = arith.constant 76 : i32
    %666 = tpu.dynamic_rotate %664 by %c76_i32_345 dim 1 : vector<3x128xf32>, i32 -> vector<3x128xf32>
    %c76_i32_346 = arith.constant 76 : i32
    %667 = tpu.dynamic_rotate %665 by %c76_i32_346 dim 1 : vector<3x128xf32>, i32 -> vector<3x128xf32>
    %668 = arith.select %596, %666, %667 : vector<3x128xi1>, vector<3x128xf32>
    %c7_347 = arith.constant 7 : index
    %c5_348 = arith.constant 5 : index
    %c0_349 = arith.constant 0 : index
    %c0_350 = arith.constant 0 : index
    %669 = vector.load %arg7[%c7_347, %c5_348, %c0_349, %c0_350] : memref<8x9x3x128xf32, #tpu.memory_space<vmem>>, vector<1x1x3x128xf32>
    %670 = vector.shape_cast %669 : vector<1x1x3x128xf32> to vector<3x128xf32>
    %671 = vector.shape_cast %668 : vector<3x128xf32> to vector<1x1x3x128xf32>
    tpu.vector_store %arg7[%c7_347, %c5_348, %c0_349, %c0_350], %671 {strides = array<i32>} : memref<8x9x3x128xf32, #tpu.memory_space<vmem>>, vector<1x1x3x128xf32>,
    %672 = arith.addf %662, %668 : vector<3x128xf32>
    %673 = arith.addf %590, %668 : vector<3x128xf32>
    %cst_351 = arith.constant 1.250000e-01 : f32
    %674 = vector.broadcast %cst_351 : f32 to vector<3x128xf32>
    %675 = arith.mulf %672, %674 : vector<3x128xf32>
    %676 = vector.extract_strided_slice %43 {offsets = [0, 0], sizes = [3, 128], strides = [1, 1]} : vector<5x128xf32> to vector<3x128xf32>
    %677 = vector.extract_strided_slice %43 {offsets = [1, 0], sizes = [3, 128], strides = [1, 1]} : vector<5x128xf32> to vector<3x128xf32>
    %c32_i32 = arith.constant 32 : i32
    %678 = vector.broadcast %c32_i32 : i32 to vector<3x128xi32>
    %679 = arith.cmpi slt, %219, %678 : vector<3x128xi32>
    %c32_i32_352 = arith.constant 32 : i32
    %680 = tpu.dynamic_rotate %676 by %c32_i32_352 dim 1 : vector<3x128xf32>, i32 -> vector<3x128xf32>
    %c32_i32_353 = arith.constant 32 : i32
    %681 = tpu.dynamic_rotate %677 by %c32_i32_353 dim 1 : vector<3x128xf32>, i32 -> vector<3x128xf32>
    %682 = arith.select %679, %680, %681 : vector<3x128xi1>, vector<3x128xf32>
    %c0_354 = arith.constant 0 : index
    %c6_355 = arith.constant 6 : index
    %c0_356 = arith.constant 0 : index
    %c0_357 = arith.constant 0 : index
    %683 = vector.load %arg7[%c0_354, %c6_355, %c0_356, %c0_357] : memref<8x9x3x128xf32, #tpu.memory_space<vmem>>, vector<1x1x3x128xf32>
    %684 = vector.shape_cast %683 : vector<1x1x3x128xf32> to vector<3x128xf32>
    %685 = vector.shape_cast %682 : vector<3x128xf32> to vector<1x1x3x128xf32>
    tpu.vector_store %arg7[%c0_354, %c6_355, %c0_356, %c0_357], %685 {strides = array<i32>} : memref<8x9x3x128xf32, #tpu.memory_space<vmem>>, vector<1x1x3x128xf32>,
    %686 = arith.addf %603, %682 : vector<3x128xf32>
    %687 = vector.extract_strided_slice %68 {offsets = [0, 0], sizes = [3, 128], strides = [1, 1]} : vector<5x128xf32> to vector<3x128xf32>
    %688 = vector.extract_strided_slice %68 {offsets = [1, 0], sizes = [3, 128], strides = [1, 1]} : vector<5x128xf32> to vector<3x128xf32>
    %c32_i32_358 = arith.constant 32 : i32
    %689 = tpu.dynamic_rotate %687 by %c32_i32_358 dim 1 : vector<3x128xf32>, i32 -> vector<3x128xf32>
    %c32_i32_359 = arith.constant 32 : i32
    %690 = tpu.dynamic_rotate %688 by %c32_i32_359 dim 1 : vector<3x128xf32>, i32 -> vector<3x128xf32>
    %691 = arith.select %679, %689, %690 : vector<3x128xi1>, vector<3x128xf32>
    %c1_360 = arith.constant 1 : index
    %c6_361 = arith.constant 6 : index
    %c0_362 = arith.constant 0 : index
    %c0_363 = arith.constant 0 : index
    %692 = vector.load %arg7[%c1_360, %c6_361, %c0_362, %c0_363] : memref<8x9x3x128xf32, #tpu.memory_space<vmem>>, vector<1x1x3x128xf32>
    %693 = vector.shape_cast %692 : vector<1x1x3x128xf32> to vector<3x128xf32>
    %694 = vector.shape_cast %691 : vector<3x128xf32> to vector<1x1x3x128xf32>
    tpu.vector_store %arg7[%c1_360, %c6_361, %c0_362, %c0_363], %694 {strides = array<i32>} : memref<8x9x3x128xf32, #tpu.memory_space<vmem>>, vector<1x1x3x128xf32>,
    %695 = arith.addf %682, %691 : vector<3x128xf32>
    %696 = arith.addf %613, %691 : vector<3x128xf32>
    %697 = vector.extract_strided_slice %93 {offsets = [0, 0], sizes = [3, 128], strides = [1, 1]} : vector<5x128xf32> to vector<3x128xf32>
    %698 = vector.extract_strided_slice %93 {offsets = [1, 0], sizes = [3, 128], strides = [1, 1]} : vector<5x128xf32> to vector<3x128xf32>
    %c32_i32_364 = arith.constant 32 : i32
    %699 = tpu.dynamic_rotate %697 by %c32_i32_364 dim 1 : vector<3x128xf32>, i32 -> vector<3x128xf32>
    %c32_i32_365 = arith.constant 32 : i32
    %700 = tpu.dynamic_rotate %698 by %c32_i32_365 dim 1 : vector<3x128xf32>, i32 -> vector<3x128xf32>
    %701 = arith.select %679, %699, %700 : vector<3x128xi1>, vector<3x128xf32>
    %c2_366 = arith.constant 2 : index
    %c6_367 = arith.constant 6 : index
    %c0_368 = arith.constant 0 : index
    %c0_369 = arith.constant 0 : index
    %702 = vector.load %arg7[%c2_366, %c6_367, %c0_368, %c0_369] : memref<8x9x3x128xf32, #tpu.memory_space<vmem>>, vector<1x1x3x128xf32>
    %703 = vector.shape_cast %702 : vector<1x1x3x128xf32> to vector<3x128xf32>
    %704 = vector.shape_cast %701 : vector<3x128xf32> to vector<1x1x3x128xf32>
    tpu.vector_store %arg7[%c2_366, %c6_367, %c0_368, %c0_369], %704 {strides = array<i32>} : memref<8x9x3x128xf32, #tpu.memory_space<vmem>>, vector<1x1x3x128xf32>,
    %705 = arith.addf %695, %701 : vector<3x128xf32>
    %706 = arith.addf %623, %701 : vector<3x128xf32>
    %707 = vector.extract_strided_slice %118 {offsets = [0, 0], sizes = [3, 128], strides = [1, 1]} : vector<5x128xf32> to vector<3x128xf32>
    %708 = vector.extract_strided_slice %118 {offsets = [1, 0], sizes = [3, 128], strides = [1, 1]} : vector<5x128xf32> to vector<3x128xf32>
    %c32_i32_370 = arith.constant 32 : i32
    %709 = tpu.dynamic_rotate %707 by %c32_i32_370 dim 1 : vector<3x128xf32>, i32 -> vector<3x128xf32>
    %c32_i32_371 = arith.constant 32 : i32
    %710 = tpu.dynamic_rotate %708 by %c32_i32_371 dim 1 : vector<3x128xf32>, i32 -> vector<3x128xf32>
    %711 = arith.select %679, %709, %710 : vector<3x128xi1>, vector<3x128xf32>
    %c3_372 = arith.constant 3 : index
    %c6_373 = arith.constant 6 : index
    %c0_374 = arith.constant 0 : index
    %c0_375 = arith.constant 0 : index
    %712 = vector.load %arg7[%c3_372, %c6_373, %c0_374, %c0_375] : memref<8x9x3x128xf32, #tpu.memory_space<vmem>>, vector<1x1x3x128xf32>
    %713 = vector.shape_cast %712 : vector<1x1x3x128xf32> to vector<3x128xf32>
    %714 = vector.shape_cast %711 : vector<3x128xf32> to vector<1x1x3x128xf32>
    tpu.vector_store %arg7[%c3_372, %c6_373, %c0_374, %c0_375], %714 {strides = array<i32>} : memref<8x9x3x128xf32, #tpu.memory_space<vmem>>, vector<1x1x3x128xf32>,
    %715 = arith.addf %705, %711 : vector<3x128xf32>
    %716 = arith.addf %633, %711 : vector<3x128xf32>
    %717 = vector.extract_strided_slice %143 {offsets = [0, 0], sizes = [3, 128], strides = [1, 1]} : vector<5x128xf32> to vector<3x128xf32>
    %718 = vector.extract_strided_slice %143 {offsets = [1, 0], sizes = [3, 128], strides = [1, 1]} : vector<5x128xf32> to vector<3x128xf32>
    %c32_i32_376 = arith.constant 32 : i32
    %719 = tpu.dynamic_rotate %717 by %c32_i32_376 dim 1 : vector<3x128xf32>, i32 -> vector<3x128xf32>
    %c32_i32_377 = arith.constant 32 : i32
    %720 = tpu.dynamic_rotate %718 by %c32_i32_377 dim 1 : vector<3x128xf32>, i32 -> vector<3x128xf32>
    %721 = arith.select %679, %719, %720 : vector<3x128xi1>, vector<3x128xf32>
    %c4_378 = arith.constant 4 : index
    %c6_379 = arith.constant 6 : index
    %c0_380 = arith.constant 0 : index
    %c0_381 = arith.constant 0 : index
    %722 = vector.load %arg7[%c4_378, %c6_379, %c0_380, %c0_381] : memref<8x9x3x128xf32, #tpu.memory_space<vmem>>, vector<1x1x3x128xf32>
    %723 = vector.shape_cast %722 : vector<1x1x3x128xf32> to vector<3x128xf32>
    %724 = vector.shape_cast %721 : vector<3x128xf32> to vector<1x1x3x128xf32>
    tpu.vector_store %arg7[%c4_378, %c6_379, %c0_380, %c0_381], %724 {strides = array<i32>} : memref<8x9x3x128xf32, #tpu.memory_space<vmem>>, vector<1x1x3x128xf32>,
    %725 = arith.addf %715, %721 : vector<3x128xf32>
    %726 = arith.addf %643, %721 : vector<3x128xf32>
    %727 = vector.extract_strided_slice %168 {offsets = [0, 0], sizes = [3, 128], strides = [1, 1]} : vector<5x128xf32> to vector<3x128xf32>
    %728 = vector.extract_strided_slice %168 {offsets = [1, 0], sizes = [3, 128], strides = [1, 1]} : vector<5x128xf32> to vector<3x128xf32>
    %c32_i32_382 = arith.constant 32 : i32
    %729 = tpu.dynamic_rotate %727 by %c32_i32_382 dim 1 : vector<3x128xf32>, i32 -> vector<3x128xf32>
    %c32_i32_383 = arith.constant 32 : i32
    %730 = tpu.dynamic_rotate %728 by %c32_i32_383 dim 1 : vector<3x128xf32>, i32 -> vector<3x128xf32>
    %731 = arith.select %679, %729, %730 : vector<3x128xi1>, vector<3x128xf32>
    %c5_384 = arith.constant 5 : index
    %c6_385 = arith.constant 6 : index
    %c0_386 = arith.constant 0 : index
    %c0_387 = arith.constant 0 : index
    %732 = vector.load %arg7[%c5_384, %c6_385, %c0_386, %c0_387] : memref<8x9x3x128xf32, #tpu.memory_space<vmem>>, vector<1x1x3x128xf32>
    %733 = vector.shape_cast %732 : vector<1x1x3x128xf32> to vector<3x128xf32>
    %734 = vector.shape_cast %731 : vector<3x128xf32> to vector<1x1x3x128xf32>
    tpu.vector_store %arg7[%c5_384, %c6_385, %c0_386, %c0_387], %734 {strides = array<i32>} : memref<8x9x3x128xf32, #tpu.memory_space<vmem>>, vector<1x1x3x128xf32>,
    %735 = arith.addf %725, %731 : vector<3x128xf32>
    %736 = arith.addf %653, %731 : vector<3x128xf32>
    %737 = vector.extract_strided_slice %193 {offsets = [0, 0], sizes = [3, 128], strides = [1, 1]} : vector<5x128xf32> to vector<3x128xf32>
    %738 = vector.extract_strided_slice %193 {offsets = [1, 0], sizes = [3, 128], strides = [1, 1]} : vector<5x128xf32> to vector<3x128xf32>
    %c32_i32_388 = arith.constant 32 : i32
    %739 = tpu.dynamic_rotate %737 by %c32_i32_388 dim 1 : vector<3x128xf32>, i32 -> vector<3x128xf32>
    %c32_i32_389 = arith.constant 32 : i32
    %740 = tpu.dynamic_rotate %738 by %c32_i32_389 dim 1 : vector<3x128xf32>, i32 -> vector<3x128xf32>
    %741 = arith.select %679, %739, %740 : vector<3x128xi1>, vector<3x128xf32>
    %c6_390 = arith.constant 6 : index
    %c6_391 = arith.constant 6 : index
    %c0_392 = arith.constant 0 : index
    %c0_393 = arith.constant 0 : index
    %742 = vector.load %arg7[%c6_390, %c6_391, %c0_392, %c0_393] : memref<8x9x3x128xf32, #tpu.memory_space<vmem>>, vector<1x1x3x128xf32>
    %743 = vector.shape_cast %742 : vector<1x1x3x128xf32> to vector<3x128xf32>
    %744 = vector.shape_cast %741 : vector<3x128xf32> to vector<1x1x3x128xf32>
    tpu.vector_store %arg7[%c6_390, %c6_391, %c0_392, %c0_393], %744 {strides = array<i32>} : memref<8x9x3x128xf32, #tpu.memory_space<vmem>>, vector<1x1x3x128xf32>,
    %745 = arith.addf %735, %741 : vector<3x128xf32>
    %746 = arith.addf %663, %741 : vector<3x128xf32>
    %747 = vector.extract_strided_slice %218 {offsets = [0, 0], sizes = [3, 128], strides = [1, 1]} : vector<5x128xf32> to vector<3x128xf32>
    %748 = vector.extract_strided_slice %218 {offsets = [1, 0], sizes = [3, 128], strides = [1, 1]} : vector<5x128xf32> to vector<3x128xf32>
    %c32_i32_394 = arith.constant 32 : i32
    %749 = tpu.dynamic_rotate %747 by %c32_i32_394 dim 1 : vector<3x128xf32>, i32 -> vector<3x128xf32>
    %c32_i32_395 = arith.constant 32 : i32
    %750 = tpu.dynamic_rotate %748 by %c32_i32_395 dim 1 : vector<3x128xf32>, i32 -> vector<3x128xf32>
    %751 = arith.select %679, %749, %750 : vector<3x128xi1>, vector<3x128xf32>
    %c7_396 = arith.constant 7 : index
    %c6_397 = arith.constant 6 : index
    %c0_398 = arith.constant 0 : index
    %c0_399 = arith.constant 0 : index
    %752 = vector.load %arg7[%c7_396, %c6_397, %c0_398, %c0_399] : memref<8x9x3x128xf32, #tpu.memory_space<vmem>>, vector<1x1x3x128xf32>
    %753 = vector.shape_cast %752 : vector<1x1x3x128xf32> to vector<3x128xf32>
    %754 = vector.shape_cast %751 : vector<3x128xf32> to vector<1x1x3x128xf32>
    tpu.vector_store %arg7[%c7_396, %c6_397, %c0_398, %c0_399], %754 {strides = array<i32>} : memref<8x9x3x128xf32, #tpu.memory_space<vmem>>, vector<1x1x3x128xf32>,
    %755 = arith.addf %745, %751 : vector<3x128xf32>
    %756 = arith.addf %673, %751 : vector<3x128xf32>
    %cst_400 = arith.constant 1.250000e-01 : f32
    %757 = vector.broadcast %cst_400 : f32 to vector<3x128xf32>
    %758 = arith.mulf %755, %757 : vector<3x128xf32>
    %759 = vector.extract_strided_slice %43 {offsets = [0, 0], sizes = [3, 128], strides = [1, 1]} : vector<5x128xf32> to vector<3x128xf32>
    %760 = vector.extract_strided_slice %43 {offsets = [1, 0], sizes = [3, 128], strides = [1, 1]} : vector<5x128xf32> to vector<3x128xf32>
    %c30_i32 = arith.constant 30 : i32
    %761 = vector.broadcast %c30_i32 : i32 to vector<3x128xi32>
    %762 = arith.cmpi slt, %219, %761 : vector<3x128xi32>
    %c30_i32_401 = arith.constant 30 : i32
    %763 = tpu.dynamic_rotate %759 by %c30_i32_401 dim 1 : vector<3x128xf32>, i32 -> vector<3x128xf32>
    %c30_i32_402 = arith.constant 30 : i32
    %764 = tpu.dynamic_rotate %760 by %c30_i32_402 dim 1 : vector<3x128xf32>, i32 -> vector<3x128xf32>
    %765 = arith.select %762, %763, %764 : vector<3x128xi1>, vector<3x128xf32>
    %c0_403 = arith.constant 0 : index
    %c7_404 = arith.constant 7 : index
    %c0_405 = arith.constant 0 : index
    %c0_406 = arith.constant 0 : index
    %766 = vector.load %arg7[%c0_403, %c7_404, %c0_405, %c0_406] : memref<8x9x3x128xf32, #tpu.memory_space<vmem>>, vector<1x1x3x128xf32>
    %767 = vector.shape_cast %766 : vector<1x1x3x128xf32> to vector<3x128xf32>
    %768 = vector.shape_cast %765 : vector<3x128xf32> to vector<1x1x3x128xf32>
    tpu.vector_store %arg7[%c0_403, %c7_404, %c0_405, %c0_406], %768 {strides = array<i32>} : memref<8x9x3x128xf32, #tpu.memory_space<vmem>>, vector<1x1x3x128xf32>,
    %769 = arith.addf %686, %765 : vector<3x128xf32>
    %770 = vector.extract_strided_slice %68 {offsets = [0, 0], sizes = [3, 128], strides = [1, 1]} : vector<5x128xf32> to vector<3x128xf32>
    %771 = vector.extract_strided_slice %68 {offsets = [1, 0], sizes = [3, 128], strides = [1, 1]} : vector<5x128xf32> to vector<3x128xf32>
    %c30_i32_407 = arith.constant 30 : i32
    %772 = tpu.dynamic_rotate %770 by %c30_i32_407 dim 1 : vector<3x128xf32>, i32 -> vector<3x128xf32>
    %c30_i32_408 = arith.constant 30 : i32
    %773 = tpu.dynamic_rotate %771 by %c30_i32_408 dim 1 : vector<3x128xf32>, i32 -> vector<3x128xf32>
    %774 = arith.select %762, %772, %773 : vector<3x128xi1>, vector<3x128xf32>
    %c1_409 = arith.constant 1 : index
    %c7_410 = arith.constant 7 : index
    %c0_411 = arith.constant 0 : index
    %c0_412 = arith.constant 0 : index
    %775 = vector.load %arg7[%c1_409, %c7_410, %c0_411, %c0_412] : memref<8x9x3x128xf32, #tpu.memory_space<vmem>>, vector<1x1x3x128xf32>
    %776 = vector.shape_cast %775 : vector<1x1x3x128xf32> to vector<3x128xf32>
    %777 = vector.shape_cast %774 : vector<3x128xf32> to vector<1x1x3x128xf32>
    tpu.vector_store %arg7[%c1_409, %c7_410, %c0_411, %c0_412], %777 {strides = array<i32>} : memref<8x9x3x128xf32, #tpu.memory_space<vmem>>, vector<1x1x3x128xf32>,
    %778 = arith.addf %765, %774 : vector<3x128xf32>
    %779 = arith.addf %696, %774 : vector<3x128xf32>
    %780 = vector.extract_strided_slice %93 {offsets = [0, 0], sizes = [3, 128], strides = [1, 1]} : vector<5x128xf32> to vector<3x128xf32>
    %781 = vector.extract_strided_slice %93 {offsets = [1, 0], sizes = [3, 128], strides = [1, 1]} : vector<5x128xf32> to vector<3x128xf32>
    %c30_i32_413 = arith.constant 30 : i32
    %782 = tpu.dynamic_rotate %780 by %c30_i32_413 dim 1 : vector<3x128xf32>, i32 -> vector<3x128xf32>
    %c30_i32_414 = arith.constant 30 : i32
    %783 = tpu.dynamic_rotate %781 by %c30_i32_414 dim 1 : vector<3x128xf32>, i32 -> vector<3x128xf32>
    %784 = arith.select %762, %782, %783 : vector<3x128xi1>, vector<3x128xf32>
    %c2_415 = arith.constant 2 : index
    %c7_416 = arith.constant 7 : index
    %c0_417 = arith.constant 0 : index
    %c0_418 = arith.constant 0 : index
    %785 = vector.load %arg7[%c2_415, %c7_416, %c0_417, %c0_418] : memref<8x9x3x128xf32, #tpu.memory_space<vmem>>, vector<1x1x3x128xf32>
    %786 = vector.shape_cast %785 : vector<1x1x3x128xf32> to vector<3x128xf32>
    %787 = vector.shape_cast %784 : vector<3x128xf32> to vector<1x1x3x128xf32>
    tpu.vector_store %arg7[%c2_415, %c7_416, %c0_417, %c0_418], %787 {strides = array<i32>} : memref<8x9x3x128xf32, #tpu.memory_space<vmem>>, vector<1x1x3x128xf32>,
    %788 = arith.addf %778, %784 : vector<3x128xf32>
    %789 = arith.addf %706, %784 : vector<3x128xf32>
    %790 = vector.extract_strided_slice %118 {offsets = [0, 0], sizes = [3, 128], strides = [1, 1]} : vector<5x128xf32> to vector<3x128xf32>
    %791 = vector.extract_strided_slice %118 {offsets = [1, 0], sizes = [3, 128], strides = [1, 1]} : vector<5x128xf32> to vector<3x128xf32>
    %c30_i32_419 = arith.constant 30 : i32
    %792 = tpu.dynamic_rotate %790 by %c30_i32_419 dim 1 : vector<3x128xf32>, i32 -> vector<3x128xf32>
    %c30_i32_420 = arith.constant 30 : i32
    %793 = tpu.dynamic_rotate %791 by %c30_i32_420 dim 1 : vector<3x128xf32>, i32 -> vector<3x128xf32>
    %794 = arith.select %762, %792, %793 : vector<3x128xi1>, vector<3x128xf32>
    %c3_421 = arith.constant 3 : index
    %c7_422 = arith.constant 7 : index
    %c0_423 = arith.constant 0 : index
    %c0_424 = arith.constant 0 : index
    %795 = vector.load %arg7[%c3_421, %c7_422, %c0_423, %c0_424] : memref<8x9x3x128xf32, #tpu.memory_space<vmem>>, vector<1x1x3x128xf32>
    %796 = vector.shape_cast %795 : vector<1x1x3x128xf32> to vector<3x128xf32>
    %797 = vector.shape_cast %794 : vector<3x128xf32> to vector<1x1x3x128xf32>
    tpu.vector_store %arg7[%c3_421, %c7_422, %c0_423, %c0_424], %797 {strides = array<i32>} : memref<8x9x3x128xf32, #tpu.memory_space<vmem>>, vector<1x1x3x128xf32>,
    %798 = arith.addf %788, %794 : vector<3x128xf32>
    %799 = arith.addf %716, %794 : vector<3x128xf32>
    %800 = vector.extract_strided_slice %143 {offsets = [0, 0], sizes = [3, 128], strides = [1, 1]} : vector<5x128xf32> to vector<3x128xf32>
    %801 = vector.extract_strided_slice %143 {offsets = [1, 0], sizes = [3, 128], strides = [1, 1]} : vector<5x128xf32> to vector<3x128xf32>
    %c30_i32_425 = arith.constant 30 : i32
    %802 = tpu.dynamic_rotate %800 by %c30_i32_425 dim 1 : vector<3x128xf32>, i32 -> vector<3x128xf32>
    %c30_i32_426 = arith.constant 30 : i32
    %803 = tpu.dynamic_rotate %801 by %c30_i32_426 dim 1 : vector<3x128xf32>, i32 -> vector<3x128xf32>
    %804 = arith.select %762, %802, %803 : vector<3x128xi1>, vector<3x128xf32>
    %c4_427 = arith.constant 4 : index
    %c7_428 = arith.constant 7 : index
    %c0_429 = arith.constant 0 : index
    %c0_430 = arith.constant 0 : index
    %805 = vector.load %arg7[%c4_427, %c7_428, %c0_429, %c0_430] : memref<8x9x3x128xf32, #tpu.memory_space<vmem>>, vector<1x1x3x128xf32>
    %806 = vector.shape_cast %805 : vector<1x1x3x128xf32> to vector<3x128xf32>
    %807 = vector.shape_cast %804 : vector<3x128xf32> to vector<1x1x3x128xf32>
    tpu.vector_store %arg7[%c4_427, %c7_428, %c0_429, %c0_430], %807 {strides = array<i32>} : memref<8x9x3x128xf32, #tpu.memory_space<vmem>>, vector<1x1x3x128xf32>,
    %808 = arith.addf %798, %804 : vector<3x128xf32>
    %809 = arith.addf %726, %804 : vector<3x128xf32>
    %810 = vector.extract_strided_slice %168 {offsets = [0, 0], sizes = [3, 128], strides = [1, 1]} : vector<5x128xf32> to vector<3x128xf32>
    %811 = vector.extract_strided_slice %168 {offsets = [1, 0], sizes = [3, 128], strides = [1, 1]} : vector<5x128xf32> to vector<3x128xf32>
    %c30_i32_431 = arith.constant 30 : i32
    %812 = tpu.dynamic_rotate %810 by %c30_i32_431 dim 1 : vector<3x128xf32>, i32 -> vector<3x128xf32>
    %c30_i32_432 = arith.constant 30 : i32
    %813 = tpu.dynamic_rotate %811 by %c30_i32_432 dim 1 : vector<3x128xf32>, i32 -> vector<3x128xf32>
    %814 = arith.select %762, %812, %813 : vector<3x128xi1>, vector<3x128xf32>
    %c5_433 = arith.constant 5 : index
    %c7_434 = arith.constant 7 : index
    %c0_435 = arith.constant 0 : index
    %c0_436 = arith.constant 0 : index
    %815 = vector.load %arg7[%c5_433, %c7_434, %c0_435, %c0_436] : memref<8x9x3x128xf32, #tpu.memory_space<vmem>>, vector<1x1x3x128xf32>
    %816 = vector.shape_cast %815 : vector<1x1x3x128xf32> to vector<3x128xf32>
    %817 = vector.shape_cast %814 : vector<3x128xf32> to vector<1x1x3x128xf32>
    tpu.vector_store %arg7[%c5_433, %c7_434, %c0_435, %c0_436], %817 {strides = array<i32>} : memref<8x9x3x128xf32, #tpu.memory_space<vmem>>, vector<1x1x3x128xf32>,
    %818 = arith.addf %808, %814 : vector<3x128xf32>
    %819 = arith.addf %736, %814 : vector<3x128xf32>
    %820 = vector.extract_strided_slice %193 {offsets = [0, 0], sizes = [3, 128], strides = [1, 1]} : vector<5x128xf32> to vector<3x128xf32>
    %821 = vector.extract_strided_slice %193 {offsets = [1, 0], sizes = [3, 128], strides = [1, 1]} : vector<5x128xf32> to vector<3x128xf32>
    %c30_i32_437 = arith.constant 30 : i32
    %822 = tpu.dynamic_rotate %820 by %c30_i32_437 dim 1 : vector<3x128xf32>, i32 -> vector<3x128xf32>
    %c30_i32_438 = arith.constant 30 : i32
    %823 = tpu.dynamic_rotate %821 by %c30_i32_438 dim 1 : vector<3x128xf32>, i32 -> vector<3x128xf32>
    %824 = arith.select %762, %822, %823 : vector<3x128xi1>, vector<3x128xf32>
    %c6_439 = arith.constant 6 : index
    %c7_440 = arith.constant 7 : index
    %c0_441 = arith.constant 0 : index
    %c0_442 = arith.constant 0 : index
    %825 = vector.load %arg7[%c6_439, %c7_440, %c0_441, %c0_442] : memref<8x9x3x128xf32, #tpu.memory_space<vmem>>, vector<1x1x3x128xf32>
    %826 = vector.shape_cast %825 : vector<1x1x3x128xf32> to vector<3x128xf32>
    %827 = vector.shape_cast %824 : vector<3x128xf32> to vector<1x1x3x128xf32>
    tpu.vector_store %arg7[%c6_439, %c7_440, %c0_441, %c0_442], %827 {strides = array<i32>} : memref<8x9x3x128xf32, #tpu.memory_space<vmem>>, vector<1x1x3x128xf32>,
    %828 = arith.addf %818, %824 : vector<3x128xf32>
    %829 = arith.addf %746, %824 : vector<3x128xf32>
    %830 = vector.extract_strided_slice %218 {offsets = [0, 0], sizes = [3, 128], strides = [1, 1]} : vector<5x128xf32> to vector<3x128xf32>
    %831 = vector.extract_strided_slice %218 {offsets = [1, 0], sizes = [3, 128], strides = [1, 1]} : vector<5x128xf32> to vector<3x128xf32>
    %c30_i32_443 = arith.constant 30 : i32
    %832 = tpu.dynamic_rotate %830 by %c30_i32_443 dim 1 : vector<3x128xf32>, i32 -> vector<3x128xf32>
    %c30_i32_444 = arith.constant 30 : i32
    %833 = tpu.dynamic_rotate %831 by %c30_i32_444 dim 1 : vector<3x128xf32>, i32 -> vector<3x128xf32>
    %834 = arith.select %762, %832, %833 : vector<3x128xi1>, vector<3x128xf32>
    %c7_445 = arith.constant 7 : index
    %c7_446 = arith.constant 7 : index
    %c0_447 = arith.constant 0 : index
    %c0_448 = arith.constant 0 : index
    %835 = vector.load %arg7[%c7_445, %c7_446, %c0_447, %c0_448] : memref<8x9x3x128xf32, #tpu.memory_space<vmem>>, vector<1x1x3x128xf32>
    %836 = vector.shape_cast %835 : vector<1x1x3x128xf32> to vector<3x128xf32>
    %837 = vector.shape_cast %834 : vector<3x128xf32> to vector<1x1x3x128xf32>
    tpu.vector_store %arg7[%c7_445, %c7_446, %c0_447, %c0_448], %837 {strides = array<i32>} : memref<8x9x3x128xf32, #tpu.memory_space<vmem>>, vector<1x1x3x128xf32>,
    %838 = arith.addf %828, %834 : vector<3x128xf32>
    %839 = arith.addf %756, %834 : vector<3x128xf32>
    %cst_449 = arith.constant 1.250000e-01 : f32
    %840 = vector.broadcast %cst_449 : f32 to vector<3x128xf32>
    %841 = arith.mulf %838, %840 : vector<3x128xf32>
    %842 = vector.extract_strided_slice %43 {offsets = [0, 0], sizes = [3, 128], strides = [1, 1]} : vector<5x128xf32> to vector<3x128xf32>
    %843 = vector.extract_strided_slice %43 {offsets = [1, 0], sizes = [3, 128], strides = [1, 1]} : vector<5x128xf32> to vector<3x128xf32>
    %c28_i32 = arith.constant 28 : i32
    %844 = vector.broadcast %c28_i32 : i32 to vector<3x128xi32>
    %845 = arith.cmpi slt, %219, %844 : vector<3x128xi32>
    %c28_i32_450 = arith.constant 28 : i32
    %846 = tpu.dynamic_rotate %842 by %c28_i32_450 dim 1 : vector<3x128xf32>, i32 -> vector<3x128xf32>
    %c28_i32_451 = arith.constant 28 : i32
    %847 = tpu.dynamic_rotate %843 by %c28_i32_451 dim 1 : vector<3x128xf32>, i32 -> vector<3x128xf32>
    %848 = arith.select %845, %846, %847 : vector<3x128xi1>, vector<3x128xf32>
    %c0_452 = arith.constant 0 : index
    %c8 = arith.constant 8 : index
    %c0_453 = arith.constant 0 : index
    %c0_454 = arith.constant 0 : index
    %849 = vector.load %arg7[%c0_452, %c8, %c0_453, %c0_454] : memref<8x9x3x128xf32, #tpu.memory_space<vmem>>, vector<1x1x3x128xf32>
    %850 = vector.shape_cast %849 : vector<1x1x3x128xf32> to vector<3x128xf32>
    %851 = vector.shape_cast %848 : vector<3x128xf32> to vector<1x1x3x128xf32>
    tpu.vector_store %arg7[%c0_452, %c8, %c0_453, %c0_454], %851 {strides = array<i32>} : memref<8x9x3x128xf32, #tpu.memory_space<vmem>>, vector<1x1x3x128xf32>,
    %852 = arith.addf %769, %848 : vector<3x128xf32>
    %853 = vector.extract_strided_slice %68 {offsets = [0, 0], sizes = [3, 128], strides = [1, 1]} : vector<5x128xf32> to vector<3x128xf32>
    %854 = vector.extract_strided_slice %68 {offsets = [1, 0], sizes = [3, 128], strides = [1, 1]} : vector<5x128xf32> to vector<3x128xf32>
    %c28_i32_455 = arith.constant 28 : i32
    %855 = tpu.dynamic_rotate %853 by %c28_i32_455 dim 1 : vector<3x128xf32>, i32 -> vector<3x128xf32>
    %c28_i32_456 = arith.constant 28 : i32
    %856 = tpu.dynamic_rotate %854 by %c28_i32_456 dim 1 : vector<3x128xf32>, i32 -> vector<3x128xf32>
    %857 = arith.select %845, %855, %856 : vector<3x128xi1>, vector<3x128xf32>
    %c1_457 = arith.constant 1 : index
    %c8_458 = arith.constant 8 : index
    %c0_459 = arith.constant 0 : index
    %c0_460 = arith.constant 0 : index
    %858 = vector.load %arg7[%c1_457, %c8_458, %c0_459, %c0_460] : memref<8x9x3x128xf32, #tpu.memory_space<vmem>>, vector<1x1x3x128xf32>
    %859 = vector.shape_cast %858 : vector<1x1x3x128xf32> to vector<3x128xf32>
    %860 = vector.shape_cast %857 : vector<3x128xf32> to vector<1x1x3x128xf32>
    tpu.vector_store %arg7[%c1_457, %c8_458, %c0_459, %c0_460], %860 {strides = array<i32>} : memref<8x9x3x128xf32, #tpu.memory_space<vmem>>, vector<1x1x3x128xf32>,
    %861 = arith.addf %848, %857 : vector<3x128xf32>
    %862 = arith.addf %779, %857 : vector<3x128xf32>
    %863 = vector.extract_strided_slice %93 {offsets = [0, 0], sizes = [3, 128], strides = [1, 1]} : vector<5x128xf32> to vector<3x128xf32>
    %864 = vector.extract_strided_slice %93 {offsets = [1, 0], sizes = [3, 128], strides = [1, 1]} : vector<5x128xf32> to vector<3x128xf32>
    %c28_i32_461 = arith.constant 28 : i32
    %865 = tpu.dynamic_rotate %863 by %c28_i32_461 dim 1 : vector<3x128xf32>, i32 -> vector<3x128xf32>
    %c28_i32_462 = arith.constant 28 : i32
    %866 = tpu.dynamic_rotate %864 by %c28_i32_462 dim 1 : vector<3x128xf32>, i32 -> vector<3x128xf32>
    %867 = arith.select %845, %865, %866 : vector<3x128xi1>, vector<3x128xf32>
    %c2_463 = arith.constant 2 : index
    %c8_464 = arith.constant 8 : index
    %c0_465 = arith.constant 0 : index
    %c0_466 = arith.constant 0 : index
    %868 = vector.load %arg7[%c2_463, %c8_464, %c0_465, %c0_466] : memref<8x9x3x128xf32, #tpu.memory_space<vmem>>, vector<1x1x3x128xf32>
    %869 = vector.shape_cast %868 : vector<1x1x3x128xf32> to vector<3x128xf32>
    %870 = vector.shape_cast %867 : vector<3x128xf32> to vector<1x1x3x128xf32>
    tpu.vector_store %arg7[%c2_463, %c8_464, %c0_465, %c0_466], %870 {strides = array<i32>} : memref<8x9x3x128xf32, #tpu.memory_space<vmem>>, vector<1x1x3x128xf32>,
    %871 = arith.addf %861, %867 : vector<3x128xf32>
    %872 = arith.addf %789, %867 : vector<3x128xf32>
    %873 = vector.extract_strided_slice %118 {offsets = [0, 0], sizes = [3, 128], strides = [1, 1]} : vector<5x128xf32> to vector<3x128xf32>
    %874 = vector.extract_strided_slice %118 {offsets = [1, 0], sizes = [3, 128], strides = [1, 1]} : vector<5x128xf32> to vector<3x128xf32>
    %c28_i32_467 = arith.constant 28 : i32
    %875 = tpu.dynamic_rotate %873 by %c28_i32_467 dim 1 : vector<3x128xf32>, i32 -> vector<3x128xf32>
    %c28_i32_468 = arith.constant 28 : i32
    %876 = tpu.dynamic_rotate %874 by %c28_i32_468 dim 1 : vector<3x128xf32>, i32 -> vector<3x128xf32>
    %877 = arith.select %845, %875, %876 : vector<3x128xi1>, vector<3x128xf32>
    %c3_469 = arith.constant 3 : index
    %c8_470 = arith.constant 8 : index
    %c0_471 = arith.constant 0 : index
    %c0_472 = arith.constant 0 : index
    %878 = vector.load %arg7[%c3_469, %c8_470, %c0_471, %c0_472] : memref<8x9x3x128xf32, #tpu.memory_space<vmem>>, vector<1x1x3x128xf32>
    %879 = vector.shape_cast %878 : vector<1x1x3x128xf32> to vector<3x128xf32>
    %880 = vector.shape_cast %877 : vector<3x128xf32> to vector<1x1x3x128xf32>
    tpu.vector_store %arg7[%c3_469, %c8_470, %c0_471, %c0_472], %880 {strides = array<i32>} : memref<8x9x3x128xf32, #tpu.memory_space<vmem>>, vector<1x1x3x128xf32>,
    %881 = arith.addf %871, %877 : vector<3x128xf32>
    %882 = arith.addf %799, %877 : vector<3x128xf32>
    %883 = vector.extract_strided_slice %143 {offsets = [0, 0], sizes = [3, 128], strides = [1, 1]} : vector<5x128xf32> to vector<3x128xf32>
    %884 = vector.extract_strided_slice %143 {offsets = [1, 0], sizes = [3, 128], strides = [1, 1]} : vector<5x128xf32> to vector<3x128xf32>
    %c28_i32_473 = arith.constant 28 : i32
    %885 = tpu.dynamic_rotate %883 by %c28_i32_473 dim 1 : vector<3x128xf32>, i32 -> vector<3x128xf32>
    %c28_i32_474 = arith.constant 28 : i32
    %886 = tpu.dynamic_rotate %884 by %c28_i32_474 dim 1 : vector<3x128xf32>, i32 -> vector<3x128xf32>
    %887 = arith.select %845, %885, %886 : vector<3x128xi1>, vector<3x128xf32>
    %c4_475 = arith.constant 4 : index
    %c8_476 = arith.constant 8 : index
    %c0_477 = arith.constant 0 : index
    %c0_478 = arith.constant 0 : index
    %888 = vector.load %arg7[%c4_475, %c8_476, %c0_477, %c0_478] : memref<8x9x3x128xf32, #tpu.memory_space<vmem>>, vector<1x1x3x128xf32>
    %889 = vector.shape_cast %888 : vector<1x1x3x128xf32> to vector<3x128xf32>
    %890 = vector.shape_cast %887 : vector<3x128xf32> to vector<1x1x3x128xf32>
    tpu.vector_store %arg7[%c4_475, %c8_476, %c0_477, %c0_478], %890 {strides = array<i32>} : memref<8x9x3x128xf32, #tpu.memory_space<vmem>>, vector<1x1x3x128xf32>,
    %891 = arith.addf %881, %887 : vector<3x128xf32>
    %892 = arith.addf %809, %887 : vector<3x128xf32>
    %893 = vector.extract_strided_slice %168 {offsets = [0, 0], sizes = [3, 128], strides = [1, 1]} : vector<5x128xf32> to vector<3x128xf32>
    %894 = vector.extract_strided_slice %168 {offsets = [1, 0], sizes = [3, 128], strides = [1, 1]} : vector<5x128xf32> to vector<3x128xf32>
    %c28_i32_479 = arith.constant 28 : i32
    %895 = tpu.dynamic_rotate %893 by %c28_i32_479 dim 1 : vector<3x128xf32>, i32 -> vector<3x128xf32>
    %c28_i32_480 = arith.constant 28 : i32
    %896 = tpu.dynamic_rotate %894 by %c28_i32_480 dim 1 : vector<3x128xf32>, i32 -> vector<3x128xf32>
    %897 = arith.select %845, %895, %896 : vector<3x128xi1>, vector<3x128xf32>
    %c5_481 = arith.constant 5 : index
    %c8_482 = arith.constant 8 : index
    %c0_483 = arith.constant 0 : index
    %c0_484 = arith.constant 0 : index
    %898 = vector.load %arg7[%c5_481, %c8_482, %c0_483, %c0_484] : memref<8x9x3x128xf32, #tpu.memory_space<vmem>>, vector<1x1x3x128xf32>
    %899 = vector.shape_cast %898 : vector<1x1x3x128xf32> to vector<3x128xf32>
    %900 = vector.shape_cast %897 : vector<3x128xf32> to vector<1x1x3x128xf32>
    tpu.vector_store %arg7[%c5_481, %c8_482, %c0_483, %c0_484], %900 {strides = array<i32>} : memref<8x9x3x128xf32, #tpu.memory_space<vmem>>, vector<1x1x3x128xf32>,
    %901 = arith.addf %891, %897 : vector<3x128xf32>
    %902 = arith.addf %819, %897 : vector<3x128xf32>
    %903 = vector.extract_strided_slice %193 {offsets = [0, 0], sizes = [3, 128], strides = [1, 1]} : vector<5x128xf32> to vector<3x128xf32>
    %904 = vector.extract_strided_slice %193 {offsets = [1, 0], sizes = [3, 128], strides = [1, 1]} : vector<5x128xf32> to vector<3x128xf32>
    %c28_i32_485 = arith.constant 28 : i32
    %905 = tpu.dynamic_rotate %903 by %c28_i32_485 dim 1 : vector<3x128xf32>, i32 -> vector<3x128xf32>
    %c28_i32_486 = arith.constant 28 : i32
    %906 = tpu.dynamic_rotate %904 by %c28_i32_486 dim 1 : vector<3x128xf32>, i32 -> vector<3x128xf32>
    %907 = arith.select %845, %905, %906 : vector<3x128xi1>, vector<3x128xf32>
    %c6_487 = arith.constant 6 : index
    %c8_488 = arith.constant 8 : index
    %c0_489 = arith.constant 0 : index
    %c0_490 = arith.constant 0 : index
    %908 = vector.load %arg7[%c6_487, %c8_488, %c0_489, %c0_490] : memref<8x9x3x128xf32, #tpu.memory_space<vmem>>, vector<1x1x3x128xf32>
    %909 = vector.shape_cast %908 : vector<1x1x3x128xf32> to vector<3x128xf32>
    %910 = vector.shape_cast %907 : vector<3x128xf32> to vector<1x1x3x128xf32>
    tpu.vector_store %arg7[%c6_487, %c8_488, %c0_489, %c0_490], %910 {strides = array<i32>} : memref<8x9x3x128xf32, #tpu.memory_space<vmem>>, vector<1x1x3x128xf32>,
    %911 = arith.addf %901, %907 : vector<3x128xf32>
    %912 = arith.addf %829, %907 : vector<3x128xf32>
    %913 = vector.extract_strided_slice %218 {offsets = [0, 0], sizes = [3, 128], strides = [1, 1]} : vector<5x128xf32> to vector<3x128xf32>
    %914 = vector.extract_strided_slice %218 {offsets = [1, 0], sizes = [3, 128], strides = [1, 1]} : vector<5x128xf32> to vector<3x128xf32>
    %c28_i32_491 = arith.constant 28 : i32
    %915 = tpu.dynamic_rotate %913 by %c28_i32_491 dim 1 : vector<3x128xf32>, i32 -> vector<3x128xf32>
    %c28_i32_492 = arith.constant 28 : i32
    %916 = tpu.dynamic_rotate %914 by %c28_i32_492 dim 1 : vector<3x128xf32>, i32 -> vector<3x128xf32>
    %917 = arith.select %845, %915, %916 : vector<3x128xi1>, vector<3x128xf32>
    %c7_493 = arith.constant 7 : index
    %c8_494 = arith.constant 8 : index
    %c0_495 = arith.constant 0 : index
    %c0_496 = arith.constant 0 : index
    %918 = vector.load %arg7[%c7_493, %c8_494, %c0_495, %c0_496] : memref<8x9x3x128xf32, #tpu.memory_space<vmem>>, vector<1x1x3x128xf32>
    %919 = vector.shape_cast %918 : vector<1x1x3x128xf32> to vector<3x128xf32>
    %920 = vector.shape_cast %917 : vector<3x128xf32> to vector<1x1x3x128xf32>
    tpu.vector_store %arg7[%c7_493, %c8_494, %c0_495, %c0_496], %920 {strides = array<i32>} : memref<8x9x3x128xf32, #tpu.memory_space<vmem>>, vector<1x1x3x128xf32>,
    %921 = arith.addf %911, %917 : vector<3x128xf32>
    %922 = arith.addf %839, %917 : vector<3x128xf32>
    %cst_497 = arith.constant 1.250000e-01 : f32
    %923 = vector.broadcast %cst_497 : f32 to vector<3x128xf32>
    %924 = arith.mulf %921, %923 : vector<3x128xf32>
    %cst_498 = arith.constant 0.111111112 : f32
    %925 = vector.broadcast %cst_498 : f32 to vector<3x128xf32>
    %926 = arith.mulf %852, %925 : vector<3x128xf32>
    %cst_499 = arith.constant 0.111111112 : f32
    %927 = vector.broadcast %cst_499 : f32 to vector<3x128xf32>
    %928 = arith.mulf %862, %927 : vector<3x128xf32>
    %cst_500 = arith.constant 0.111111112 : f32
    %929 = vector.broadcast %cst_500 : f32 to vector<3x128xf32>
    %930 = arith.mulf %872, %929 : vector<3x128xf32>
    %cst_501 = arith.constant 0.111111112 : f32
    %931 = vector.broadcast %cst_501 : f32 to vector<3x128xf32>
    %932 = arith.mulf %882, %931 : vector<3x128xf32>
    %cst_502 = arith.constant 0.111111112 : f32
    %933 = vector.broadcast %cst_502 : f32 to vector<3x128xf32>
    %934 = arith.mulf %892, %933 : vector<3x128xf32>
    %cst_503 = arith.constant 0.111111112 : f32
    %935 = vector.broadcast %cst_503 : f32 to vector<3x128xf32>
    %936 = arith.mulf %902, %935 : vector<3x128xf32>
    %cst_504 = arith.constant 0.111111112 : f32
    %937 = vector.broadcast %cst_504 : f32 to vector<3x128xf32>
    %938 = arith.mulf %912, %937 : vector<3x128xf32>
    %cst_505 = arith.constant 0.111111112 : f32
    %939 = vector.broadcast %cst_505 : f32 to vector<3x128xf32>
    %940 = arith.mulf %922, %939 : vector<3x128xf32>
    %941 = arith.mulf %926, %926 : vector<3x128xf32>
    %942 = arith.mulf %928, %928 : vector<3x128xf32>
    %943 = arith.addf %941, %942 : vector<3x128xf32>
    %944 = arith.mulf %930, %930 : vector<3x128xf32>
    %945 = arith.addf %943, %944 : vector<3x128xf32>
    %946 = arith.mulf %932, %932 : vector<3x128xf32>
    %947 = arith.addf %945, %946 : vector<3x128xf32>
    %948 = arith.mulf %934, %934 : vector<3x128xf32>
    %949 = arith.addf %947, %948 : vector<3x128xf32>
    %950 = arith.mulf %936, %936 : vector<3x128xf32>
    %951 = arith.addf %949, %950 : vector<3x128xf32>
    %952 = arith.mulf %938, %938 : vector<3x128xf32>
    %953 = arith.addf %951, %952 : vector<3x128xf32>
    %954 = arith.mulf %940, %940 : vector<3x128xf32>
    %955 = arith.addf %953, %954 : vector<3x128xf32>
    %cst_506 = arith.constant 3.000000e+00 : f32
    %956 = vector.broadcast %cst_506 : f32 to vector<3x128xf32>
    %957 = arith.mulf %955, %956 : vector<3x128xf32>
    %c0_507 = arith.constant 0 : index
    %c0_508 = arith.constant 0 : index
    %c0_509 = arith.constant 0 : index
    %c0_510 = arith.constant 0 : index
    %958 = vector.load %arg7[%c0_507, %c0_508, %c0_509, %c0_510] : memref<8x9x3x128xf32, #tpu.memory_space<vmem>>, vector<1x1x3x128xf32>
    %959 = vector.shape_cast %958 : vector<1x1x3x128xf32> to vector<3x128xf32>
    %960 = arith.mulf %926, %959 : vector<3x128xf32>
    %c1_511 = arith.constant 1 : index
    %c0_512 = arith.constant 0 : index
    %c0_513 = arith.constant 0 : index
    %c0_514 = arith.constant 0 : index
    %961 = vector.load %arg7[%c1_511, %c0_512, %c0_513, %c0_514] : memref<8x9x3x128xf32, #tpu.memory_space<vmem>>, vector<1x1x3x128xf32>
    %962 = vector.shape_cast %961 : vector<1x1x3x128xf32> to vector<3x128xf32>
    %963 = arith.mulf %928, %962 : vector<3x128xf32>
    %964 = arith.addf %960, %963 : vector<3x128xf32>
    %c2_515 = arith.constant 2 : index
    %c0_516 = arith.constant 0 : index
    %c0_517 = arith.constant 0 : index
    %c0_518 = arith.constant 0 : index
    %965 = vector.load %arg7[%c2_515, %c0_516, %c0_517, %c0_518] : memref<8x9x3x128xf32, #tpu.memory_space<vmem>>, vector<1x1x3x128xf32>
    %966 = vector.shape_cast %965 : vector<1x1x3x128xf32> to vector<3x128xf32>
    %967 = arith.mulf %930, %966 : vector<3x128xf32>
    %968 = arith.addf %964, %967 : vector<3x128xf32>
    %c3_519 = arith.constant 3 : index
    %c0_520 = arith.constant 0 : index
    %c0_521 = arith.constant 0 : index
    %c0_522 = arith.constant 0 : index
    %969 = vector.load %arg7[%c3_519, %c0_520, %c0_521, %c0_522] : memref<8x9x3x128xf32, #tpu.memory_space<vmem>>, vector<1x1x3x128xf32>
    %970 = vector.shape_cast %969 : vector<1x1x3x128xf32> to vector<3x128xf32>
    %971 = arith.mulf %932, %970 : vector<3x128xf32>
    %972 = arith.addf %968, %971 : vector<3x128xf32>
    %c4_523 = arith.constant 4 : index
    %c0_524 = arith.constant 0 : index
    %c0_525 = arith.constant 0 : index
    %c0_526 = arith.constant 0 : index
    %973 = vector.load %arg7[%c4_523, %c0_524, %c0_525, %c0_526] : memref<8x9x3x128xf32, #tpu.memory_space<vmem>>, vector<1x1x3x128xf32>
    %974 = vector.shape_cast %973 : vector<1x1x3x128xf32> to vector<3x128xf32>
    %975 = arith.mulf %934, %974 : vector<3x128xf32>
    %976 = arith.addf %972, %975 : vector<3x128xf32>
    %c5_527 = arith.constant 5 : index
    %c0_528 = arith.constant 0 : index
    %c0_529 = arith.constant 0 : index
    %c0_530 = arith.constant 0 : index
    %977 = vector.load %arg7[%c5_527, %c0_528, %c0_529, %c0_530] : memref<8x9x3x128xf32, #tpu.memory_space<vmem>>, vector<1x1x3x128xf32>
    %978 = vector.shape_cast %977 : vector<1x1x3x128xf32> to vector<3x128xf32>
    %979 = arith.mulf %936, %978 : vector<3x128xf32>
    %980 = arith.addf %976, %979 : vector<3x128xf32>
    %c6_531 = arith.constant 6 : index
    %c0_532 = arith.constant 0 : index
    %c0_533 = arith.constant 0 : index
    %c0_534 = arith.constant 0 : index
    %981 = vector.load %arg7[%c6_531, %c0_532, %c0_533, %c0_534] : memref<8x9x3x128xf32, #tpu.memory_space<vmem>>, vector<1x1x3x128xf32>
    %982 = vector.shape_cast %981 : vector<1x1x3x128xf32> to vector<3x128xf32>
    %983 = arith.mulf %938, %982 : vector<3x128xf32>
    %984 = arith.addf %980, %983 : vector<3x128xf32>
    %c7_535 = arith.constant 7 : index
    %c0_536 = arith.constant 0 : index
    %c0_537 = arith.constant 0 : index
    %c0_538 = arith.constant 0 : index
    %985 = vector.load %arg7[%c7_535, %c0_536, %c0_537, %c0_538] : memref<8x9x3x128xf32, #tpu.memory_space<vmem>>, vector<1x1x3x128xf32>
    %986 = vector.shape_cast %985 : vector<1x1x3x128xf32> to vector<3x128xf32>
    %987 = arith.mulf %940, %986 : vector<3x128xf32>
    %988 = arith.addf %984, %987 : vector<3x128xf32>
    %989 = arith.mulf %260, %988 : vector<3x128xf32>
    %990 = arith.mulf %260, %957 : vector<3x128xf32>
    %cst_539 = arith.constant 9.99999997E-7 : f32
    %991 = vector.broadcast %cst_539 : f32 to vector<3x128xf32>
    %992 = arith.addf %990, %991 : vector<3x128xf32>
    %993 = tpu.reciprocal %992 {approx = true} : vector<3x128xf32> -> vector<3x128xf32>
    %994 = arith.mulf %992, %993 : vector<3x128xf32>
    %cst_540 = arith.constant 2.000000e+00 : f32
    %995 = vector.broadcast %cst_540 : f32 to vector<3x128xf32>
    %996 = arith.subf %995, %994 : vector<3x128xf32>
    %997 = arith.mulf %993, %996 : vector<3x128xf32>
    %998 = arith.mulf %989, %997 : vector<3x128xf32>
    %c0_541 = arith.constant 0 : index
    %c1_542 = arith.constant 1 : index
    %c0_543 = arith.constant 0 : index
    %c0_544 = arith.constant 0 : index
    %999 = vector.load %arg7[%c0_541, %c1_542, %c0_543, %c0_544] : memref<8x9x3x128xf32, #tpu.memory_space<vmem>>, vector<1x1x3x128xf32>
    %1000 = vector.shape_cast %999 : vector<1x1x3x128xf32> to vector<3x128xf32>
    %1001 = arith.mulf %926, %1000 : vector<3x128xf32>
    %c1_545 = arith.constant 1 : index
    %c1_546 = arith.constant 1 : index
    %c0_547 = arith.constant 0 : index
    %c0_548 = arith.constant 0 : index
    %1002 = vector.load %arg7[%c1_545, %c1_546, %c0_547, %c0_548] : memref<8x9x3x128xf32, #tpu.memory_space<vmem>>, vector<1x1x3x128xf32>
    %1003 = vector.shape_cast %1002 : vector<1x1x3x128xf32> to vector<3x128xf32>
    %1004 = arith.mulf %928, %1003 : vector<3x128xf32>
    %1005 = arith.addf %1001, %1004 : vector<3x128xf32>
    %c2_549 = arith.constant 2 : index
    %c1_550 = arith.constant 1 : index
    %c0_551 = arith.constant 0 : index
    %c0_552 = arith.constant 0 : index
    %1006 = vector.load %arg7[%c2_549, %c1_550, %c0_551, %c0_552] : memref<8x9x3x128xf32, #tpu.memory_space<vmem>>, vector<1x1x3x128xf32>
    %1007 = vector.shape_cast %1006 : vector<1x1x3x128xf32> to vector<3x128xf32>
    %1008 = arith.mulf %930, %1007 : vector<3x128xf32>
    %1009 = arith.addf %1005, %1008 : vector<3x128xf32>
    %c3_553 = arith.constant 3 : index
    %c1_554 = arith.constant 1 : index
    %c0_555 = arith.constant 0 : index
    %c0_556 = arith.constant 0 : index
    %1010 = vector.load %arg7[%c3_553, %c1_554, %c0_555, %c0_556] : memref<8x9x3x128xf32, #tpu.memory_space<vmem>>, vector<1x1x3x128xf32>
    %1011 = vector.shape_cast %1010 : vector<1x1x3x128xf32> to vector<3x128xf32>
    %1012 = arith.mulf %932, %1011 : vector<3x128xf32>
    %1013 = arith.addf %1009, %1012 : vector<3x128xf32>
    %c4_557 = arith.constant 4 : index
    %c1_558 = arith.constant 1 : index
    %c0_559 = arith.constant 0 : index
    %c0_560 = arith.constant 0 : index
    %1014 = vector.load %arg7[%c4_557, %c1_558, %c0_559, %c0_560] : memref<8x9x3x128xf32, #tpu.memory_space<vmem>>, vector<1x1x3x128xf32>
    %1015 = vector.shape_cast %1014 : vector<1x1x3x128xf32> to vector<3x128xf32>
    %1016 = arith.mulf %934, %1015 : vector<3x128xf32>
    %1017 = arith.addf %1013, %1016 : vector<3x128xf32>
    %c5_561 = arith.constant 5 : index
    %c1_562 = arith.constant 1 : index
    %c0_563 = arith.constant 0 : index
    %c0_564 = arith.constant 0 : index
    %1018 = vector.load %arg7[%c5_561, %c1_562, %c0_563, %c0_564] : memref<8x9x3x128xf32, #tpu.memory_space<vmem>>, vector<1x1x3x128xf32>
    %1019 = vector.shape_cast %1018 : vector<1x1x3x128xf32> to vector<3x128xf32>
    %1020 = arith.mulf %936, %1019 : vector<3x128xf32>
    %1021 = arith.addf %1017, %1020 : vector<3x128xf32>
    %c6_565 = arith.constant 6 : index
    %c1_566 = arith.constant 1 : index
    %c0_567 = arith.constant 0 : index
    %c0_568 = arith.constant 0 : index
    %1022 = vector.load %arg7[%c6_565, %c1_566, %c0_567, %c0_568] : memref<8x9x3x128xf32, #tpu.memory_space<vmem>>, vector<1x1x3x128xf32>
    %1023 = vector.shape_cast %1022 : vector<1x1x3x128xf32> to vector<3x128xf32>
    %1024 = arith.mulf %938, %1023 : vector<3x128xf32>
    %1025 = arith.addf %1021, %1024 : vector<3x128xf32>
    %c7_569 = arith.constant 7 : index
    %c1_570 = arith.constant 1 : index
    %c0_571 = arith.constant 0 : index
    %c0_572 = arith.constant 0 : index
    %1026 = vector.load %arg7[%c7_569, %c1_570, %c0_571, %c0_572] : memref<8x9x3x128xf32, #tpu.memory_space<vmem>>, vector<1x1x3x128xf32>
    %1027 = vector.shape_cast %1026 : vector<1x1x3x128xf32> to vector<3x128xf32>
    %1028 = arith.mulf %940, %1027 : vector<3x128xf32>
    %1029 = arith.addf %1025, %1028 : vector<3x128xf32>
    %1030 = arith.mulf %343, %1029 : vector<3x128xf32>
    %1031 = arith.mulf %343, %957 : vector<3x128xf32>
    %cst_573 = arith.constant 9.99999997E-7 : f32
    %1032 = vector.broadcast %cst_573 : f32 to vector<3x128xf32>
    %1033 = arith.addf %1031, %1032 : vector<3x128xf32>
    %1034 = tpu.reciprocal %1033 {approx = true} : vector<3x128xf32> -> vector<3x128xf32>
    %1035 = arith.mulf %1033, %1034 : vector<3x128xf32>
    %cst_574 = arith.constant 2.000000e+00 : f32
    %1036 = vector.broadcast %cst_574 : f32 to vector<3x128xf32>
    %1037 = arith.subf %1036, %1035 : vector<3x128xf32>
    %1038 = arith.mulf %1034, %1037 : vector<3x128xf32>
    %1039 = arith.mulf %1030, %1038 : vector<3x128xf32>
    %c0_575 = arith.constant 0 : index
    %c2_576 = arith.constant 2 : index
    %c0_577 = arith.constant 0 : index
    %c0_578 = arith.constant 0 : index
    %1040 = vector.load %arg7[%c0_575, %c2_576, %c0_577, %c0_578] : memref<8x9x3x128xf32, #tpu.memory_space<vmem>>, vector<1x1x3x128xf32>
    %1041 = vector.shape_cast %1040 : vector<1x1x3x128xf32> to vector<3x128xf32>
    %1042 = arith.mulf %926, %1041 : vector<3x128xf32>
    %c1_579 = arith.constant 1 : index
    %c2_580 = arith.constant 2 : index
    %c0_581 = arith.constant 0 : index
    %c0_582 = arith.constant 0 : index
    %1043 = vector.load %arg7[%c1_579, %c2_580, %c0_581, %c0_582] : memref<8x9x3x128xf32, #tpu.memory_space<vmem>>, vector<1x1x3x128xf32>
    %1044 = vector.shape_cast %1043 : vector<1x1x3x128xf32> to vector<3x128xf32>
    %1045 = arith.mulf %928, %1044 : vector<3x128xf32>
    %1046 = arith.addf %1042, %1045 : vector<3x128xf32>
    %c2_583 = arith.constant 2 : index
    %c2_584 = arith.constant 2 : index
    %c0_585 = arith.constant 0 : index
    %c0_586 = arith.constant 0 : index
    %1047 = vector.load %arg7[%c2_583, %c2_584, %c0_585, %c0_586] : memref<8x9x3x128xf32, #tpu.memory_space<vmem>>, vector<1x1x3x128xf32>
    %1048 = vector.shape_cast %1047 : vector<1x1x3x128xf32> to vector<3x128xf32>
    %1049 = arith.mulf %930, %1048 : vector<3x128xf32>
    %1050 = arith.addf %1046, %1049 : vector<3x128xf32>
    %c3_587 = arith.constant 3 : index
    %c2_588 = arith.constant 2 : index
    %c0_589 = arith.constant 0 : index
    %c0_590 = arith.constant 0 : index
    %1051 = vector.load %arg7[%c3_587, %c2_588, %c0_589, %c0_590] : memref<8x9x3x128xf32, #tpu.memory_space<vmem>>, vector<1x1x3x128xf32>
    %1052 = vector.shape_cast %1051 : vector<1x1x3x128xf32> to vector<3x128xf32>
    %1053 = arith.mulf %932, %1052 : vector<3x128xf32>
    %1054 = arith.addf %1050, %1053 : vector<3x128xf32>
    %c4_591 = arith.constant 4 : index
    %c2_592 = arith.constant 2 : index
    %c0_593 = arith.constant 0 : index
    %c0_594 = arith.constant 0 : index
    %1055 = vector.load %arg7[%c4_591, %c2_592, %c0_593, %c0_594] : memref<8x9x3x128xf32, #tpu.memory_space<vmem>>, vector<1x1x3x128xf32>
    %1056 = vector.shape_cast %1055 : vector<1x1x3x128xf32> to vector<3x128xf32>
    %1057 = arith.mulf %934, %1056 : vector<3x128xf32>
    %1058 = arith.addf %1054, %1057 : vector<3x128xf32>
    %c5_595 = arith.constant 5 : index
    %c2_596 = arith.constant 2 : index
    %c0_597 = arith.constant 0 : index
    %c0_598 = arith.constant 0 : index
    %1059 = vector.load %arg7[%c5_595, %c2_596, %c0_597, %c0_598] : memref<8x9x3x128xf32, #tpu.memory_space<vmem>>, vector<1x1x3x128xf32>
    %1060 = vector.shape_cast %1059 : vector<1x1x3x128xf32> to vector<3x128xf32>
    %1061 = arith.mulf %936, %1060 : vector<3x128xf32>
    %1062 = arith.addf %1058, %1061 : vector<3x128xf32>
    %c6_599 = arith.constant 6 : index
    %c2_600 = arith.constant 2 : index
    %c0_601 = arith.constant 0 : index
    %c0_602 = arith.constant 0 : index
    %1063 = vector.load %arg7[%c6_599, %c2_600, %c0_601, %c0_602] : memref<8x9x3x128xf32, #tpu.memory_space<vmem>>, vector<1x1x3x128xf32>
    %1064 = vector.shape_cast %1063 : vector<1x1x3x128xf32> to vector<3x128xf32>
    %1065 = arith.mulf %938, %1064 : vector<3x128xf32>
    %1066 = arith.addf %1062, %1065 : vector<3x128xf32>
    %c7_603 = arith.constant 7 : index
    %c2_604 = arith.constant 2 : index
    %c0_605 = arith.constant 0 : index
    %c0_606 = arith.constant 0 : index
    %1067 = vector.load %arg7[%c7_603, %c2_604, %c0_605, %c0_606] : memref<8x9x3x128xf32, #tpu.memory_space<vmem>>, vector<1x1x3x128xf32>
    %1068 = vector.shape_cast %1067 : vector<1x1x3x128xf32> to vector<3x128xf32>
    %1069 = arith.mulf %940, %1068 : vector<3x128xf32>
    %1070 = arith.addf %1066, %1069 : vector<3x128xf32>
    %1071 = arith.mulf %426, %1070 : vector<3x128xf32>
    %1072 = arith.mulf %426, %957 : vector<3x128xf32>
    %cst_607 = arith.constant 9.99999997E-7 : f32
    %1073 = vector.broadcast %cst_607 : f32 to vector<3x128xf32>
    %1074 = arith.addf %1072, %1073 : vector<3x128xf32>
    %1075 = tpu.reciprocal %1074 {approx = true} : vector<3x128xf32> -> vector<3x128xf32>
    %1076 = arith.mulf %1074, %1075 : vector<3x128xf32>
    %cst_608 = arith.constant 2.000000e+00 : f32
    %1077 = vector.broadcast %cst_608 : f32 to vector<3x128xf32>
    %1078 = arith.subf %1077, %1076 : vector<3x128xf32>
    %1079 = arith.mulf %1075, %1078 : vector<3x128xf32>
    %1080 = arith.mulf %1071, %1079 : vector<3x128xf32>
    %c0_609 = arith.constant 0 : index
    %c3_610 = arith.constant 3 : index
    %c0_611 = arith.constant 0 : index
    %c0_612 = arith.constant 0 : index
    %1081 = vector.load %arg7[%c0_609, %c3_610, %c0_611, %c0_612] : memref<8x9x3x128xf32, #tpu.memory_space<vmem>>, vector<1x1x3x128xf32>
    %1082 = vector.shape_cast %1081 : vector<1x1x3x128xf32> to vector<3x128xf32>
    %1083 = arith.mulf %926, %1082 : vector<3x128xf32>
    %c1_613 = arith.constant 1 : index
    %c3_614 = arith.constant 3 : index
    %c0_615 = arith.constant 0 : index
    %c0_616 = arith.constant 0 : index
    %1084 = vector.load %arg7[%c1_613, %c3_614, %c0_615, %c0_616] : memref<8x9x3x128xf32, #tpu.memory_space<vmem>>, vector<1x1x3x128xf32>
    %1085 = vector.shape_cast %1084 : vector<1x1x3x128xf32> to vector<3x128xf32>
    %1086 = arith.mulf %928, %1085 : vector<3x128xf32>
    %1087 = arith.addf %1083, %1086 : vector<3x128xf32>
    %c2_617 = arith.constant 2 : index
    %c3_618 = arith.constant 3 : index
    %c0_619 = arith.constant 0 : index
    %c0_620 = arith.constant 0 : index
    %1088 = vector.load %arg7[%c2_617, %c3_618, %c0_619, %c0_620] : memref<8x9x3x128xf32, #tpu.memory_space<vmem>>, vector<1x1x3x128xf32>
    %1089 = vector.shape_cast %1088 : vector<1x1x3x128xf32> to vector<3x128xf32>
    %1090 = arith.mulf %930, %1089 : vector<3x128xf32>
    %1091 = arith.addf %1087, %1090 : vector<3x128xf32>
    %c3_621 = arith.constant 3 : index
    %c3_622 = arith.constant 3 : index
    %c0_623 = arith.constant 0 : index
    %c0_624 = arith.constant 0 : index
    %1092 = vector.load %arg7[%c3_621, %c3_622, %c0_623, %c0_624] : memref<8x9x3x128xf32, #tpu.memory_space<vmem>>, vector<1x1x3x128xf32>
    %1093 = vector.shape_cast %1092 : vector<1x1x3x128xf32> to vector<3x128xf32>
    %1094 = arith.mulf %932, %1093 : vector<3x128xf32>
    %1095 = arith.addf %1091, %1094 : vector<3x128xf32>
    %c4_625 = arith.constant 4 : index
    %c3_626 = arith.constant 3 : index
    %c0_627 = arith.constant 0 : index
    %c0_628 = arith.constant 0 : index
    %1096 = vector.load %arg7[%c4_625, %c3_626, %c0_627, %c0_628] : memref<8x9x3x128xf32, #tpu.memory_space<vmem>>, vector<1x1x3x128xf32>
    %1097 = vector.shape_cast %1096 : vector<1x1x3x128xf32> to vector<3x128xf32>
    %1098 = arith.mulf %934, %1097 : vector<3x128xf32>
    %1099 = arith.addf %1095, %1098 : vector<3x128xf32>
    %c5_629 = arith.constant 5 : index
    %c3_630 = arith.constant 3 : index
    %c0_631 = arith.constant 0 : index
    %c0_632 = arith.constant 0 : index
    %1100 = vector.load %arg7[%c5_629, %c3_630, %c0_631, %c0_632] : memref<8x9x3x128xf32, #tpu.memory_space<vmem>>, vector<1x1x3x128xf32>
    %1101 = vector.shape_cast %1100 : vector<1x1x3x128xf32> to vector<3x128xf32>
    %1102 = arith.mulf %936, %1101 : vector<3x128xf32>
    %1103 = arith.addf %1099, %1102 : vector<3x128xf32>
    %c6_633 = arith.constant 6 : index
    %c3_634 = arith.constant 3 : index
    %c0_635 = arith.constant 0 : index
    %c0_636 = arith.constant 0 : index
    %1104 = vector.load %arg7[%c6_633, %c3_634, %c0_635, %c0_636] : memref<8x9x3x128xf32, #tpu.memory_space<vmem>>, vector<1x1x3x128xf32>
    %1105 = vector.shape_cast %1104 : vector<1x1x3x128xf32> to vector<3x128xf32>
    %1106 = arith.mulf %938, %1105 : vector<3x128xf32>
    %1107 = arith.addf %1103, %1106 : vector<3x128xf32>
    %c7_637 = arith.constant 7 : index
    %c3_638 = arith.constant 3 : index
    %c0_639 = arith.constant 0 : index
    %c0_640 = arith.constant 0 : index
    %1108 = vector.load %arg7[%c7_637, %c3_638, %c0_639, %c0_640] : memref<8x9x3x128xf32, #tpu.memory_space<vmem>>, vector<1x1x3x128xf32>
    %1109 = vector.shape_cast %1108 : vector<1x1x3x128xf32> to vector<3x128xf32>
    %1110 = arith.mulf %940, %1109 : vector<3x128xf32>
    %1111 = arith.addf %1107, %1110 : vector<3x128xf32>
    %1112 = arith.mulf %509, %1111 : vector<3x128xf32>
    %1113 = arith.mulf %509, %957 : vector<3x128xf32>
    %cst_641 = arith.constant 9.99999997E-7 : f32
    %1114 = vector.broadcast %cst_641 : f32 to vector<3x128xf32>
    %1115 = arith.addf %1113, %1114 : vector<3x128xf32>
    %1116 = tpu.reciprocal %1115 {approx = true} : vector<3x128xf32> -> vector<3x128xf32>
    %1117 = arith.mulf %1115, %1116 : vector<3x128xf32>
    %cst_642 = arith.constant 2.000000e+00 : f32
    %1118 = vector.broadcast %cst_642 : f32 to vector<3x128xf32>
    %1119 = arith.subf %1118, %1117 : vector<3x128xf32>
    %1120 = arith.mulf %1116, %1119 : vector<3x128xf32>
    %1121 = arith.mulf %1112, %1120 : vector<3x128xf32>
    %c0_643 = arith.constant 0 : index
    %c4_644 = arith.constant 4 : index
    %c0_645 = arith.constant 0 : index
    %c0_646 = arith.constant 0 : index
    %1122 = vector.load %arg7[%c0_643, %c4_644, %c0_645, %c0_646] : memref<8x9x3x128xf32, #tpu.memory_space<vmem>>, vector<1x1x3x128xf32>
    %1123 = vector.shape_cast %1122 : vector<1x1x3x128xf32> to vector<3x128xf32>
    %1124 = arith.mulf %926, %1123 : vector<3x128xf32>
    %c1_647 = arith.constant 1 : index
    %c4_648 = arith.constant 4 : index
    %c0_649 = arith.constant 0 : index
    %c0_650 = arith.constant 0 : index
    %1125 = vector.load %arg7[%c1_647, %c4_648, %c0_649, %c0_650] : memref<8x9x3x128xf32, #tpu.memory_space<vmem>>, vector<1x1x3x128xf32>
    %1126 = vector.shape_cast %1125 : vector<1x1x3x128xf32> to vector<3x128xf32>
    %1127 = arith.mulf %928, %1126 : vector<3x128xf32>
    %1128 = arith.addf %1124, %1127 : vector<3x128xf32>
    %c2_651 = arith.constant 2 : index
    %c4_652 = arith.constant 4 : index
    %c0_653 = arith.constant 0 : index
    %c0_654 = arith.constant 0 : index
    %1129 = vector.load %arg7[%c2_651, %c4_652, %c0_653, %c0_654] : memref<8x9x3x128xf32, #tpu.memory_space<vmem>>, vector<1x1x3x128xf32>
    %1130 = vector.shape_cast %1129 : vector<1x1x3x128xf32> to vector<3x128xf32>
    %1131 = arith.mulf %930, %1130 : vector<3x128xf32>
    %1132 = arith.addf %1128, %1131 : vector<3x128xf32>
    %c3_655 = arith.constant 3 : index
    %c4_656 = arith.constant 4 : index
    %c0_657 = arith.constant 0 : index
    %c0_658 = arith.constant 0 : index
    %1133 = vector.load %arg7[%c3_655, %c4_656, %c0_657, %c0_658] : memref<8x9x3x128xf32, #tpu.memory_space<vmem>>, vector<1x1x3x128xf32>
    %1134 = vector.shape_cast %1133 : vector<1x1x3x128xf32> to vector<3x128xf32>
    %1135 = arith.mulf %932, %1134 : vector<3x128xf32>
    %1136 = arith.addf %1132, %1135 : vector<3x128xf32>
    %c4_659 = arith.constant 4 : index
    %c4_660 = arith.constant 4 : index
    %c0_661 = arith.constant 0 : index
    %c0_662 = arith.constant 0 : index
    %1137 = vector.load %arg7[%c4_659, %c4_660, %c0_661, %c0_662] : memref<8x9x3x128xf32, #tpu.memory_space<vmem>>, vector<1x1x3x128xf32>
    %1138 = vector.shape_cast %1137 : vector<1x1x3x128xf32> to vector<3x128xf32>
    %1139 = arith.mulf %934, %1138 : vector<3x128xf32>
    %1140 = arith.addf %1136, %1139 : vector<3x128xf32>
    %c5_663 = arith.constant 5 : index
    %c4_664 = arith.constant 4 : index
    %c0_665 = arith.constant 0 : index
    %c0_666 = arith.constant 0 : index
    %1141 = vector.load %arg7[%c5_663, %c4_664, %c0_665, %c0_666] : memref<8x9x3x128xf32, #tpu.memory_space<vmem>>, vector<1x1x3x128xf32>
    %1142 = vector.shape_cast %1141 : vector<1x1x3x128xf32> to vector<3x128xf32>
    %1143 = arith.mulf %936, %1142 : vector<3x128xf32>
    %1144 = arith.addf %1140, %1143 : vector<3x128xf32>
    %c6_667 = arith.constant 6 : index
    %c4_668 = arith.constant 4 : index
    %c0_669 = arith.constant 0 : index
    %c0_670 = arith.constant 0 : index
    %1145 = vector.load %arg7[%c6_667, %c4_668, %c0_669, %c0_670] : memref<8x9x3x128xf32, #tpu.memory_space<vmem>>, vector<1x1x3x128xf32>
    %1146 = vector.shape_cast %1145 : vector<1x1x3x128xf32> to vector<3x128xf32>
    %1147 = arith.mulf %938, %1146 : vector<3x128xf32>
    %1148 = arith.addf %1144, %1147 : vector<3x128xf32>
    %c7_671 = arith.constant 7 : index
    %c4_672 = arith.constant 4 : index
    %c0_673 = arith.constant 0 : index
    %c0_674 = arith.constant 0 : index
    %1149 = vector.load %arg7[%c7_671, %c4_672, %c0_673, %c0_674] : memref<8x9x3x128xf32, #tpu.memory_space<vmem>>, vector<1x1x3x128xf32>
    %1150 = vector.shape_cast %1149 : vector<1x1x3x128xf32> to vector<3x128xf32>
    %1151 = arith.mulf %940, %1150 : vector<3x128xf32>
    %1152 = arith.addf %1148, %1151 : vector<3x128xf32>
    %1153 = arith.mulf %592, %1152 : vector<3x128xf32>
    %1154 = arith.mulf %592, %957 : vector<3x128xf32>
    %cst_675 = arith.constant 9.99999997E-7 : f32
    %1155 = vector.broadcast %cst_675 : f32 to vector<3x128xf32>
    %1156 = arith.addf %1154, %1155 : vector<3x128xf32>
    %1157 = tpu.reciprocal %1156 {approx = true} : vector<3x128xf32> -> vector<3x128xf32>
    %1158 = arith.mulf %1156, %1157 : vector<3x128xf32>
    %cst_676 = arith.constant 2.000000e+00 : f32
    %1159 = vector.broadcast %cst_676 : f32 to vector<3x128xf32>
    %1160 = arith.subf %1159, %1158 : vector<3x128xf32>
    %1161 = arith.mulf %1157, %1160 : vector<3x128xf32>
    %1162 = arith.mulf %1153, %1161 : vector<3x128xf32>
    %c0_677 = arith.constant 0 : index
    %c5_678 = arith.constant 5 : index
    %c0_679 = arith.constant 0 : index
    %c0_680 = arith.constant 0 : index
    %1163 = vector.load %arg7[%c0_677, %c5_678, %c0_679, %c0_680] : memref<8x9x3x128xf32, #tpu.memory_space<vmem>>, vector<1x1x3x128xf32>
    %1164 = vector.shape_cast %1163 : vector<1x1x3x128xf32> to vector<3x128xf32>
    %1165 = arith.mulf %926, %1164 : vector<3x128xf32>
    %c1_681 = arith.constant 1 : index
    %c5_682 = arith.constant 5 : index
    %c0_683 = arith.constant 0 : index
    %c0_684 = arith.constant 0 : index
    %1166 = vector.load %arg7[%c1_681, %c5_682, %c0_683, %c0_684] : memref<8x9x3x128xf32, #tpu.memory_space<vmem>>, vector<1x1x3x128xf32>
    %1167 = vector.shape_cast %1166 : vector<1x1x3x128xf32> to vector<3x128xf32>
    %1168 = arith.mulf %928, %1167 : vector<3x128xf32>
    %1169 = arith.addf %1165, %1168 : vector<3x128xf32>
    %c2_685 = arith.constant 2 : index
    %c5_686 = arith.constant 5 : index
    %c0_687 = arith.constant 0 : index
    %c0_688 = arith.constant 0 : index
    %1170 = vector.load %arg7[%c2_685, %c5_686, %c0_687, %c0_688] : memref<8x9x3x128xf32, #tpu.memory_space<vmem>>, vector<1x1x3x128xf32>
    %1171 = vector.shape_cast %1170 : vector<1x1x3x128xf32> to vector<3x128xf32>
    %1172 = arith.mulf %930, %1171 : vector<3x128xf32>
    %1173 = arith.addf %1169, %1172 : vector<3x128xf32>
    %c3_689 = arith.constant 3 : index
    %c5_690 = arith.constant 5 : index
    %c0_691 = arith.constant 0 : index
    %c0_692 = arith.constant 0 : index
    %1174 = vector.load %arg7[%c3_689, %c5_690, %c0_691, %c0_692] : memref<8x9x3x128xf32, #tpu.memory_space<vmem>>, vector<1x1x3x128xf32>
    %1175 = vector.shape_cast %1174 : vector<1x1x3x128xf32> to vector<3x128xf32>
    %1176 = arith.mulf %932, %1175 : vector<3x128xf32>
    %1177 = arith.addf %1173, %1176 : vector<3x128xf32>
    %c4_693 = arith.constant 4 : index
    %c5_694 = arith.constant 5 : index
    %c0_695 = arith.constant 0 : index
    %c0_696 = arith.constant 0 : index
    %1178 = vector.load %arg7[%c4_693, %c5_694, %c0_695, %c0_696] : memref<8x9x3x128xf32, #tpu.memory_space<vmem>>, vector<1x1x3x128xf32>
    %1179 = vector.shape_cast %1178 : vector<1x1x3x128xf32> to vector<3x128xf32>
    %1180 = arith.mulf %934, %1179 : vector<3x128xf32>
    %1181 = arith.addf %1177, %1180 : vector<3x128xf32>
    %c5_697 = arith.constant 5 : index
    %c5_698 = arith.constant 5 : index
    %c0_699 = arith.constant 0 : index
    %c0_700 = arith.constant 0 : index
    %1182 = vector.load %arg7[%c5_697, %c5_698, %c0_699, %c0_700] : memref<8x9x3x128xf32, #tpu.memory_space<vmem>>, vector<1x1x3x128xf32>
    %1183 = vector.shape_cast %1182 : vector<1x1x3x128xf32> to vector<3x128xf32>
    %1184 = arith.mulf %936, %1183 : vector<3x128xf32>
    %1185 = arith.addf %1181, %1184 : vector<3x128xf32>
    %c6_701 = arith.constant 6 : index
    %c5_702 = arith.constant 5 : index
    %c0_703 = arith.constant 0 : index
    %c0_704 = arith.constant 0 : index
    %1186 = vector.load %arg7[%c6_701, %c5_702, %c0_703, %c0_704] : memref<8x9x3x128xf32, #tpu.memory_space<vmem>>, vector<1x1x3x128xf32>
    %1187 = vector.shape_cast %1186 : vector<1x1x3x128xf32> to vector<3x128xf32>
    %1188 = arith.mulf %938, %1187 : vector<3x128xf32>
    %1189 = arith.addf %1185, %1188 : vector<3x128xf32>
    %c7_705 = arith.constant 7 : index
    %c5_706 = arith.constant 5 : index
    %c0_707 = arith.constant 0 : index
    %c0_708 = arith.constant 0 : index
    %1190 = vector.load %arg7[%c7_705, %c5_706, %c0_707, %c0_708] : memref<8x9x3x128xf32, #tpu.memory_space<vmem>>, vector<1x1x3x128xf32>
    %1191 = vector.shape_cast %1190 : vector<1x1x3x128xf32> to vector<3x128xf32>
    %1192 = arith.mulf %940, %1191 : vector<3x128xf32>
    %1193 = arith.addf %1189, %1192 : vector<3x128xf32>
    %1194 = arith.mulf %675, %1193 : vector<3x128xf32>
    %1195 = arith.mulf %675, %957 : vector<3x128xf32>
    %cst_709 = arith.constant 9.99999997E-7 : f32
    %1196 = vector.broadcast %cst_709 : f32 to vector<3x128xf32>
    %1197 = arith.addf %1195, %1196 : vector<3x128xf32>
    %1198 = tpu.reciprocal %1197 {approx = true} : vector<3x128xf32> -> vector<3x128xf32>
    %1199 = arith.mulf %1197, %1198 : vector<3x128xf32>
    %cst_710 = arith.constant 2.000000e+00 : f32
    %1200 = vector.broadcast %cst_710 : f32 to vector<3x128xf32>
    %1201 = arith.subf %1200, %1199 : vector<3x128xf32>
    %1202 = arith.mulf %1198, %1201 : vector<3x128xf32>
    %1203 = arith.mulf %1194, %1202 : vector<3x128xf32>
    %c0_711 = arith.constant 0 : index
    %c6_712 = arith.constant 6 : index
    %c0_713 = arith.constant 0 : index
    %c0_714 = arith.constant 0 : index
    %1204 = vector.load %arg7[%c0_711, %c6_712, %c0_713, %c0_714] : memref<8x9x3x128xf32, #tpu.memory_space<vmem>>, vector<1x1x3x128xf32>
    %1205 = vector.shape_cast %1204 : vector<1x1x3x128xf32> to vector<3x128xf32>
    %1206 = arith.mulf %926, %1205 : vector<3x128xf32>
    %c1_715 = arith.constant 1 : index
    %c6_716 = arith.constant 6 : index
    %c0_717 = arith.constant 0 : index
    %c0_718 = arith.constant 0 : index
    %1207 = vector.load %arg7[%c1_715, %c6_716, %c0_717, %c0_718] : memref<8x9x3x128xf32, #tpu.memory_space<vmem>>, vector<1x1x3x128xf32>
    %1208 = vector.shape_cast %1207 : vector<1x1x3x128xf32> to vector<3x128xf32>
    %1209 = arith.mulf %928, %1208 : vector<3x128xf32>
    %1210 = arith.addf %1206, %1209 : vector<3x128xf32>
    %c2_719 = arith.constant 2 : index
    %c6_720 = arith.constant 6 : index
    %c0_721 = arith.constant 0 : index
    %c0_722 = arith.constant 0 : index
    %1211 = vector.load %arg7[%c2_719, %c6_720, %c0_721, %c0_722] : memref<8x9x3x128xf32, #tpu.memory_space<vmem>>, vector<1x1x3x128xf32>
    %1212 = vector.shape_cast %1211 : vector<1x1x3x128xf32> to vector<3x128xf32>
    %1213 = arith.mulf %930, %1212 : vector<3x128xf32>
    %1214 = arith.addf %1210, %1213 : vector<3x128xf32>
    %c3_723 = arith.constant 3 : index
    %c6_724 = arith.constant 6 : index
    %c0_725 = arith.constant 0 : index
    %c0_726 = arith.constant 0 : index
    %1215 = vector.load %arg7[%c3_723, %c6_724, %c0_725, %c0_726] : memref<8x9x3x128xf32, #tpu.memory_space<vmem>>, vector<1x1x3x128xf32>
    %1216 = vector.shape_cast %1215 : vector<1x1x3x128xf32> to vector<3x128xf32>
    %1217 = arith.mulf %932, %1216 : vector<3x128xf32>
    %1218 = arith.addf %1214, %1217 : vector<3x128xf32>
    %c4_727 = arith.constant 4 : index
    %c6_728 = arith.constant 6 : index
    %c0_729 = arith.constant 0 : index
    %c0_730 = arith.constant 0 : index
    %1219 = vector.load %arg7[%c4_727, %c6_728, %c0_729, %c0_730] : memref<8x9x3x128xf32, #tpu.memory_space<vmem>>, vector<1x1x3x128xf32>
    %1220 = vector.shape_cast %1219 : vector<1x1x3x128xf32> to vector<3x128xf32>
    %1221 = arith.mulf %934, %1220 : vector<3x128xf32>
    %1222 = arith.addf %1218, %1221 : vector<3x128xf32>
    %c5_731 = arith.constant 5 : index
    %c6_732 = arith.constant 6 : index
    %c0_733 = arith.constant 0 : index
    %c0_734 = arith.constant 0 : index
    %1223 = vector.load %arg7[%c5_731, %c6_732, %c0_733, %c0_734] : memref<8x9x3x128xf32, #tpu.memory_space<vmem>>, vector<1x1x3x128xf32>
    %1224 = vector.shape_cast %1223 : vector<1x1x3x128xf32> to vector<3x128xf32>
    %1225 = arith.mulf %936, %1224 : vector<3x128xf32>
    %1226 = arith.addf %1222, %1225 : vector<3x128xf32>
    %c6_735 = arith.constant 6 : index
    %c6_736 = arith.constant 6 : index
    %c0_737 = arith.constant 0 : index
    %c0_738 = arith.constant 0 : index
    %1227 = vector.load %arg7[%c6_735, %c6_736, %c0_737, %c0_738] : memref<8x9x3x128xf32, #tpu.memory_space<vmem>>, vector<1x1x3x128xf32>
    %1228 = vector.shape_cast %1227 : vector<1x1x3x128xf32> to vector<3x128xf32>
    %1229 = arith.mulf %938, %1228 : vector<3x128xf32>
    %1230 = arith.addf %1226, %1229 : vector<3x128xf32>
    %c7_739 = arith.constant 7 : index
    %c6_740 = arith.constant 6 : index
    %c0_741 = arith.constant 0 : index
    %c0_742 = arith.constant 0 : index
    %1231 = vector.load %arg7[%c7_739, %c6_740, %c0_741, %c0_742] : memref<8x9x3x128xf32, #tpu.memory_space<vmem>>, vector<1x1x3x128xf32>
    %1232 = vector.shape_cast %1231 : vector<1x1x3x128xf32> to vector<3x128xf32>
    %1233 = arith.mulf %940, %1232 : vector<3x128xf32>
    %1234 = arith.addf %1230, %1233 : vector<3x128xf32>
    %1235 = arith.mulf %758, %1234 : vector<3x128xf32>
    %1236 = arith.mulf %758, %957 : vector<3x128xf32>
    %cst_743 = arith.constant 9.99999997E-7 : f32
    %1237 = vector.broadcast %cst_743 : f32 to vector<3x128xf32>
    %1238 = arith.addf %1236, %1237 : vector<3x128xf32>
    %1239 = tpu.reciprocal %1238 {approx = true} : vector<3x128xf32> -> vector<3x128xf32>
    %1240 = arith.mulf %1238, %1239 : vector<3x128xf32>
    %cst_744 = arith.constant 2.000000e+00 : f32
    %1241 = vector.broadcast %cst_744 : f32 to vector<3x128xf32>
    %1242 = arith.subf %1241, %1240 : vector<3x128xf32>
    %1243 = arith.mulf %1239, %1242 : vector<3x128xf32>
    %1244 = arith.mulf %1235, %1243 : vector<3x128xf32>
    %c0_745 = arith.constant 0 : index
    %c7_746 = arith.constant 7 : index
    %c0_747 = arith.constant 0 : index
    %c0_748 = arith.constant 0 : index
    %1245 = vector.load %arg7[%c0_745, %c7_746, %c0_747, %c0_748] : memref<8x9x3x128xf32, #tpu.memory_space<vmem>>, vector<1x1x3x128xf32>
    %1246 = vector.shape_cast %1245 : vector<1x1x3x128xf32> to vector<3x128xf32>
    %1247 = arith.mulf %926, %1246 : vector<3x128xf32>
    %c1_749 = arith.constant 1 : index
    %c7_750 = arith.constant 7 : index
    %c0_751 = arith.constant 0 : index
    %c0_752 = arith.constant 0 : index
    %1248 = vector.load %arg7[%c1_749, %c7_750, %c0_751, %c0_752] : memref<8x9x3x128xf32, #tpu.memory_space<vmem>>, vector<1x1x3x128xf32>
    %1249 = vector.shape_cast %1248 : vector<1x1x3x128xf32> to vector<3x128xf32>
    %1250 = arith.mulf %928, %1249 : vector<3x128xf32>
    %1251 = arith.addf %1247, %1250 : vector<3x128xf32>
    %c2_753 = arith.constant 2 : index
    %c7_754 = arith.constant 7 : index
    %c0_755 = arith.constant 0 : index
    %c0_756 = arith.constant 0 : index
    %1252 = vector.load %arg7[%c2_753, %c7_754, %c0_755, %c0_756] : memref<8x9x3x128xf32, #tpu.memory_space<vmem>>, vector<1x1x3x128xf32>
    %1253 = vector.shape_cast %1252 : vector<1x1x3x128xf32> to vector<3x128xf32>
    %1254 = arith.mulf %930, %1253 : vector<3x128xf32>
    %1255 = arith.addf %1251, %1254 : vector<3x128xf32>
    %c3_757 = arith.constant 3 : index
    %c7_758 = arith.constant 7 : index
    %c0_759 = arith.constant 0 : index
    %c0_760 = arith.constant 0 : index
    %1256 = vector.load %arg7[%c3_757, %c7_758, %c0_759, %c0_760] : memref<8x9x3x128xf32, #tpu.memory_space<vmem>>, vector<1x1x3x128xf32>
    %1257 = vector.shape_cast %1256 : vector<1x1x3x128xf32> to vector<3x128xf32>
    %1258 = arith.mulf %932, %1257 : vector<3x128xf32>
    %1259 = arith.addf %1255, %1258 : vector<3x128xf32>
    %c4_761 = arith.constant 4 : index
    %c7_762 = arith.constant 7 : index
    %c0_763 = arith.constant 0 : index
    %c0_764 = arith.constant 0 : index
    %1260 = vector.load %arg7[%c4_761, %c7_762, %c0_763, %c0_764] : memref<8x9x3x128xf32, #tpu.memory_space<vmem>>, vector<1x1x3x128xf32>
    %1261 = vector.shape_cast %1260 : vector<1x1x3x128xf32> to vector<3x128xf32>
    %1262 = arith.mulf %934, %1261 : vector<3x128xf32>
    %1263 = arith.addf %1259, %1262 : vector<3x128xf32>
    %c5_765 = arith.constant 5 : index
    %c7_766 = arith.constant 7 : index
    %c0_767 = arith.constant 0 : index
    %c0_768 = arith.constant 0 : index
    %1264 = vector.load %arg7[%c5_765, %c7_766, %c0_767, %c0_768] : memref<8x9x3x128xf32, #tpu.memory_space<vmem>>, vector<1x1x3x128xf32>
    %1265 = vector.shape_cast %1264 : vector<1x1x3x128xf32> to vector<3x128xf32>
    %1266 = arith.mulf %936, %1265 : vector<3x128xf32>
    %1267 = arith.addf %1263, %1266 : vector<3x128xf32>
    %c6_769 = arith.constant 6 : index
    %c7_770 = arith.constant 7 : index
    %c0_771 = arith.constant 0 : index
    %c0_772 = arith.constant 0 : index
    %1268 = vector.load %arg7[%c6_769, %c7_770, %c0_771, %c0_772] : memref<8x9x3x128xf32, #tpu.memory_space<vmem>>, vector<1x1x3x128xf32>
    %1269 = vector.shape_cast %1268 : vector<1x1x3x128xf32> to vector<3x128xf32>
    %1270 = arith.mulf %938, %1269 : vector<3x128xf32>
    %1271 = arith.addf %1267, %1270 : vector<3x128xf32>
    %c7_773 = arith.constant 7 : index
    %c7_774 = arith.constant 7 : index
    %c0_775 = arith.constant 0 : index
    %c0_776 = arith.constant 0 : index
    %1272 = vector.load %arg7[%c7_773, %c7_774, %c0_775, %c0_776] : memref<8x9x3x128xf32, #tpu.memory_space<vmem>>, vector<1x1x3x128xf32>
    %1273 = vector.shape_cast %1272 : vector<1x1x3x128xf32> to vector<3x128xf32>
    %1274 = arith.mulf %940, %1273 : vector<3x128xf32>
    %1275 = arith.addf %1271, %1274 : vector<3x128xf32>
    %1276 = arith.mulf %841, %1275 : vector<3x128xf32>
    %1277 = arith.mulf %841, %957 : vector<3x128xf32>
    %cst_777 = arith.constant 9.99999997E-7 : f32
    %1278 = vector.broadcast %cst_777 : f32 to vector<3x128xf32>
    %1279 = arith.addf %1277, %1278 : vector<3x128xf32>
    %1280 = tpu.reciprocal %1279 {approx = true} : vector<3x128xf32> -> vector<3x128xf32>
    %1281 = arith.mulf %1279, %1280 : vector<3x128xf32>
    %cst_778 = arith.constant 2.000000e+00 : f32
    %1282 = vector.broadcast %cst_778 : f32 to vector<3x128xf32>
    %1283 = arith.subf %1282, %1281 : vector<3x128xf32>
    %1284 = arith.mulf %1280, %1283 : vector<3x128xf32>
    %1285 = arith.mulf %1276, %1284 : vector<3x128xf32>
    %c0_779 = arith.constant 0 : index
    %c8_780 = arith.constant 8 : index
    %c0_781 = arith.constant 0 : index
    %c0_782 = arith.constant 0 : index
    %1286 = vector.load %arg7[%c0_779, %c8_780, %c0_781, %c0_782] : memref<8x9x3x128xf32, #tpu.memory_space<vmem>>, vector<1x1x3x128xf32>
    %1287 = vector.shape_cast %1286 : vector<1x1x3x128xf32> to vector<3x128xf32>
    %1288 = arith.mulf %926, %1287 : vector<3x128xf32>
    %c1_783 = arith.constant 1 : index
    %c8_784 = arith.constant 8 : index
    %c0_785 = arith.constant 0 : index
    %c0_786 = arith.constant 0 : index
    %1289 = vector.load %arg7[%c1_783, %c8_784, %c0_785, %c0_786] : memref<8x9x3x128xf32, #tpu.memory_space<vmem>>, vector<1x1x3x128xf32>
    %1290 = vector.shape_cast %1289 : vector<1x1x3x128xf32> to vector<3x128xf32>
    %1291 = arith.mulf %928, %1290 : vector<3x128xf32>
    %1292 = arith.addf %1288, %1291 : vector<3x128xf32>
    %c2_787 = arith.constant 2 : index
    %c8_788 = arith.constant 8 : index
    %c0_789 = arith.constant 0 : index
    %c0_790 = arith.constant 0 : index
    %1293 = vector.load %arg7[%c2_787, %c8_788, %c0_789, %c0_790] : memref<8x9x3x128xf32, #tpu.memory_space<vmem>>, vector<1x1x3x128xf32>
    %1294 = vector.shape_cast %1293 : vector<1x1x3x128xf32> to vector<3x128xf32>
    %1295 = arith.mulf %930, %1294 : vector<3x128xf32>
    %1296 = arith.addf %1292, %1295 : vector<3x128xf32>
    %c3_791 = arith.constant 3 : index
    %c8_792 = arith.constant 8 : index
    %c0_793 = arith.constant 0 : index
    %c0_794 = arith.constant 0 : index
    %1297 = vector.load %arg7[%c3_791, %c8_792, %c0_793, %c0_794] : memref<8x9x3x128xf32, #tpu.memory_space<vmem>>, vector<1x1x3x128xf32>
    %1298 = vector.shape_cast %1297 : vector<1x1x3x128xf32> to vector<3x128xf32>
    %1299 = arith.mulf %932, %1298 : vector<3x128xf32>
    %1300 = arith.addf %1296, %1299 : vector<3x128xf32>
    %c4_795 = arith.constant 4 : index
    %c8_796 = arith.constant 8 : index
    %c0_797 = arith.constant 0 : index
    %c0_798 = arith.constant 0 : index
    %1301 = vector.load %arg7[%c4_795, %c8_796, %c0_797, %c0_798] : memref<8x9x3x128xf32, #tpu.memory_space<vmem>>, vector<1x1x3x128xf32>
    %1302 = vector.shape_cast %1301 : vector<1x1x3x128xf32> to vector<3x128xf32>
    %1303 = arith.mulf %934, %1302 : vector<3x128xf32>
    %1304 = arith.addf %1300, %1303 : vector<3x128xf32>
    %c5_799 = arith.constant 5 : index
    %c8_800 = arith.constant 8 : index
    %c0_801 = arith.constant 0 : index
    %c0_802 = arith.constant 0 : index
    %1305 = vector.load %arg7[%c5_799, %c8_800, %c0_801, %c0_802] : memref<8x9x3x128xf32, #tpu.memory_space<vmem>>, vector<1x1x3x128xf32>
    %1306 = vector.shape_cast %1305 : vector<1x1x3x128xf32> to vector<3x128xf32>
    %1307 = arith.mulf %936, %1306 : vector<3x128xf32>
    %1308 = arith.addf %1304, %1307 : vector<3x128xf32>
    %c6_803 = arith.constant 6 : index
    %c8_804 = arith.constant 8 : index
    %c0_805 = arith.constant 0 : index
    %c0_806 = arith.constant 0 : index
    %1309 = vector.load %arg7[%c6_803, %c8_804, %c0_805, %c0_806] : memref<8x9x3x128xf32, #tpu.memory_space<vmem>>, vector<1x1x3x128xf32>
    %1310 = vector.shape_cast %1309 : vector<1x1x3x128xf32> to vector<3x128xf32>
    %1311 = arith.mulf %938, %1310 : vector<3x128xf32>
    %1312 = arith.addf %1308, %1311 : vector<3x128xf32>
    %c7_807 = arith.constant 7 : index
    %c8_808 = arith.constant 8 : index
    %c0_809 = arith.constant 0 : index
    %c0_810 = arith.constant 0 : index
    %1313 = vector.load %arg7[%c7_807, %c8_808, %c0_809, %c0_810] : memref<8x9x3x128xf32, #tpu.memory_space<vmem>>, vector<1x1x3x128xf32>
    %1314 = vector.shape_cast %1313 : vector<1x1x3x128xf32> to vector<3x128xf32>
    %1315 = arith.mulf %940, %1314 : vector<3x128xf32>
    %1316 = arith.addf %1312, %1315 : vector<3x128xf32>
    %1317 = arith.mulf %924, %1316 : vector<3x128xf32>
    %1318 = arith.mulf %924, %957 : vector<3x128xf32>
    %cst_811 = arith.constant 9.99999997E-7 : f32
    %1319 = vector.broadcast %cst_811 : f32 to vector<3x128xf32>
    %1320 = arith.addf %1318, %1319 : vector<3x128xf32>
    %1321 = tpu.reciprocal %1320 {approx = true} : vector<3x128xf32> -> vector<3x128xf32>
    %1322 = arith.mulf %1320, %1321 : vector<3x128xf32>
    %cst_812 = arith.constant 2.000000e+00 : f32
    %1323 = vector.broadcast %cst_812 : f32 to vector<3x128xf32>
    %1324 = arith.subf %1323, %1322 : vector<3x128xf32>
    %1325 = arith.mulf %1321, %1324 : vector<3x128xf32>
    %1326 = arith.mulf %1317, %1325 : vector<3x128xf32>
    %1327 = arith.mulf %998, %998 : vector<3x128xf32>
    %1328 = arith.mulf %1039, %1039 : vector<3x128xf32>
    %1329 = arith.addf %1327, %1328 : vector<3x128xf32>
    %1330 = arith.mulf %1080, %1080 : vector<3x128xf32>
    %1331 = arith.addf %1329, %1330 : vector<3x128xf32>
    %1332 = arith.mulf %1121, %1121 : vector<3x128xf32>
    %1333 = arith.addf %1331, %1332 : vector<3x128xf32>
    %1334 = arith.mulf %1162, %1162 : vector<3x128xf32>
    %1335 = arith.addf %1333, %1334 : vector<3x128xf32>
    %1336 = arith.mulf %1203, %1203 : vector<3x128xf32>
    %1337 = arith.addf %1335, %1336 : vector<3x128xf32>
    %1338 = arith.mulf %1244, %1244 : vector<3x128xf32>
    %1339 = arith.addf %1337, %1338 : vector<3x128xf32>
    %1340 = arith.mulf %1285, %1285 : vector<3x128xf32>
    %1341 = arith.addf %1339, %1340 : vector<3x128xf32>
    %1342 = arith.mulf %1326, %1326 : vector<3x128xf32>
    %1343 = arith.addf %1341, %1342 : vector<3x128xf32>
    %cst_813 = arith.constant 3.000000e+00 : f32
    %1344 = vector.broadcast %cst_813 : f32 to vector<3x128xf32>
    %1345 = arith.mulf %1343, %1344 : vector<3x128xf32>
    %c0_814 = arith.constant 0 : index
    %c0_815 = arith.constant 0 : index
    %c0_816 = arith.constant 0 : index
    %c0_817 = arith.constant 0 : index
    %1346 = vector.load %arg7[%c0_814, %c0_815, %c0_816, %c0_817] : memref<8x9x3x128xf32, #tpu.memory_space<vmem>>, vector<1x1x3x128xf32>
    %1347 = vector.shape_cast %1346 : vector<1x1x3x128xf32> to vector<3x128xf32>
    %1348 = arith.mulf %1347, %998 : vector<3x128xf32>
    %c0_818 = arith.constant 0 : index
    %c1_819 = arith.constant 1 : index
    %c0_820 = arith.constant 0 : index
    %c0_821 = arith.constant 0 : index
    %1349 = vector.load %arg7[%c0_818, %c1_819, %c0_820, %c0_821] : memref<8x9x3x128xf32, #tpu.memory_space<vmem>>, vector<1x1x3x128xf32>
    %1350 = vector.shape_cast %1349 : vector<1x1x3x128xf32> to vector<3x128xf32>
    %1351 = arith.mulf %1350, %1039 : vector<3x128xf32>
    %1352 = arith.addf %1348, %1351 : vector<3x128xf32>
    %c0_822 = arith.constant 0 : index
    %c2_823 = arith.constant 2 : index
    %c0_824 = arith.constant 0 : index
    %c0_825 = arith.constant 0 : index
    %1353 = vector.load %arg7[%c0_822, %c2_823, %c0_824, %c0_825] : memref<8x9x3x128xf32, #tpu.memory_space<vmem>>, vector<1x1x3x128xf32>
    %1354 = vector.shape_cast %1353 : vector<1x1x3x128xf32> to vector<3x128xf32>
    %1355 = arith.mulf %1354, %1080 : vector<3x128xf32>
    %1356 = arith.addf %1352, %1355 : vector<3x128xf32>
    %c0_826 = arith.constant 0 : index
    %c3_827 = arith.constant 3 : index
    %c0_828 = arith.constant 0 : index
    %c0_829 = arith.constant 0 : index
    %1357 = vector.load %arg7[%c0_826, %c3_827, %c0_828, %c0_829] : memref<8x9x3x128xf32, #tpu.memory_space<vmem>>, vector<1x1x3x128xf32>
    %1358 = vector.shape_cast %1357 : vector<1x1x3x128xf32> to vector<3x128xf32>
    %1359 = arith.mulf %1358, %1121 : vector<3x128xf32>
    %1360 = arith.addf %1356, %1359 : vector<3x128xf32>
    %c0_830 = arith.constant 0 : index
    %c4_831 = arith.constant 4 : index
    %c0_832 = arith.constant 0 : index
    %c0_833 = arith.constant 0 : index
    %1361 = vector.load %arg7[%c0_830, %c4_831, %c0_832, %c0_833] : memref<8x9x3x128xf32, #tpu.memory_space<vmem>>, vector<1x1x3x128xf32>
    %1362 = vector.shape_cast %1361 : vector<1x1x3x128xf32> to vector<3x128xf32>
    %1363 = arith.mulf %1362, %1162 : vector<3x128xf32>
    %1364 = arith.addf %1360, %1363 : vector<3x128xf32>
    %c0_834 = arith.constant 0 : index
    %c5_835 = arith.constant 5 : index
    %c0_836 = arith.constant 0 : index
    %c0_837 = arith.constant 0 : index
    %1365 = vector.load %arg7[%c0_834, %c5_835, %c0_836, %c0_837] : memref<8x9x3x128xf32, #tpu.memory_space<vmem>>, vector<1x1x3x128xf32>
    %1366 = vector.shape_cast %1365 : vector<1x1x3x128xf32> to vector<3x128xf32>
    %1367 = arith.mulf %1366, %1203 : vector<3x128xf32>
    %1368 = arith.addf %1364, %1367 : vector<3x128xf32>
    %c0_838 = arith.constant 0 : index
    %c6_839 = arith.constant 6 : index
    %c0_840 = arith.constant 0 : index
    %c0_841 = arith.constant 0 : index
    %1369 = vector.load %arg7[%c0_838, %c6_839, %c0_840, %c0_841] : memref<8x9x3x128xf32, #tpu.memory_space<vmem>>, vector<1x1x3x128xf32>
    %1370 = vector.shape_cast %1369 : vector<1x1x3x128xf32> to vector<3x128xf32>
    %1371 = arith.mulf %1370, %1244 : vector<3x128xf32>
    %1372 = arith.addf %1368, %1371 : vector<3x128xf32>
    %c0_842 = arith.constant 0 : index
    %c7_843 = arith.constant 7 : index
    %c0_844 = arith.constant 0 : index
    %c0_845 = arith.constant 0 : index
    %1373 = vector.load %arg7[%c0_842, %c7_843, %c0_844, %c0_845] : memref<8x9x3x128xf32, #tpu.memory_space<vmem>>, vector<1x1x3x128xf32>
    %1374 = vector.shape_cast %1373 : vector<1x1x3x128xf32> to vector<3x128xf32>
    %1375 = arith.mulf %1374, %1285 : vector<3x128xf32>
    %1376 = arith.addf %1372, %1375 : vector<3x128xf32>
    %c0_846 = arith.constant 0 : index
    %c8_847 = arith.constant 8 : index
    %c0_848 = arith.constant 0 : index
    %c0_849 = arith.constant 0 : index
    %1377 = vector.load %arg7[%c0_846, %c8_847, %c0_848, %c0_849] : memref<8x9x3x128xf32, #tpu.memory_space<vmem>>, vector<1x1x3x128xf32>
    %1378 = vector.shape_cast %1377 : vector<1x1x3x128xf32> to vector<3x128xf32>
    %1379 = arith.mulf %1378, %1326 : vector<3x128xf32>
    %1380 = arith.addf %1376, %1379 : vector<3x128xf32>
    %1381 = arith.mulf %926, %1380 : vector<3x128xf32>
    %1382 = arith.mulf %926, %1345 : vector<3x128xf32>
    %cst_850 = arith.constant 9.99999997E-7 : f32
    %1383 = vector.broadcast %cst_850 : f32 to vector<3x128xf32>
    %1384 = arith.addf %1382, %1383 : vector<3x128xf32>
    %1385 = tpu.reciprocal %1384 {approx = true} : vector<3x128xf32> -> vector<3x128xf32>
    %1386 = arith.mulf %1384, %1385 : vector<3x128xf32>
    %cst_851 = arith.constant 2.000000e+00 : f32
    %1387 = vector.broadcast %cst_851 : f32 to vector<3x128xf32>
    %1388 = arith.subf %1387, %1386 : vector<3x128xf32>
    %1389 = arith.mulf %1385, %1388 : vector<3x128xf32>
    %1390 = arith.mulf %1381, %1389 : vector<3x128xf32>
    %c1_852 = arith.constant 1 : index
    %c0_853 = arith.constant 0 : index
    %c0_854 = arith.constant 0 : index
    %c0_855 = arith.constant 0 : index
    %1391 = vector.load %arg7[%c1_852, %c0_853, %c0_854, %c0_855] : memref<8x9x3x128xf32, #tpu.memory_space<vmem>>, vector<1x1x3x128xf32>
    %1392 = vector.shape_cast %1391 : vector<1x1x3x128xf32> to vector<3x128xf32>
    %1393 = arith.mulf %1392, %998 : vector<3x128xf32>
    %c1_856 = arith.constant 1 : index
    %c1_857 = arith.constant 1 : index
    %c0_858 = arith.constant 0 : index
    %c0_859 = arith.constant 0 : index
    %1394 = vector.load %arg7[%c1_856, %c1_857, %c0_858, %c0_859] : memref<8x9x3x128xf32, #tpu.memory_space<vmem>>, vector<1x1x3x128xf32>
    %1395 = vector.shape_cast %1394 : vector<1x1x3x128xf32> to vector<3x128xf32>
    %1396 = arith.mulf %1395, %1039 : vector<3x128xf32>
    %1397 = arith.addf %1393, %1396 : vector<3x128xf32>
    %c1_860 = arith.constant 1 : index
    %c2_861 = arith.constant 2 : index
    %c0_862 = arith.constant 0 : index
    %c0_863 = arith.constant 0 : index
    %1398 = vector.load %arg7[%c1_860, %c2_861, %c0_862, %c0_863] : memref<8x9x3x128xf32, #tpu.memory_space<vmem>>, vector<1x1x3x128xf32>
    %1399 = vector.shape_cast %1398 : vector<1x1x3x128xf32> to vector<3x128xf32>
    %1400 = arith.mulf %1399, %1080 : vector<3x128xf32>
    %1401 = arith.addf %1397, %1400 : vector<3x128xf32>
    %c1_864 = arith.constant 1 : index
    %c3_865 = arith.constant 3 : index
    %c0_866 = arith.constant 0 : index
    %c0_867 = arith.constant 0 : index
    %1402 = vector.load %arg7[%c1_864, %c3_865, %c0_866, %c0_867] : memref<8x9x3x128xf32, #tpu.memory_space<vmem>>, vector<1x1x3x128xf32>
    %1403 = vector.shape_cast %1402 : vector<1x1x3x128xf32> to vector<3x128xf32>
    %1404 = arith.mulf %1403, %1121 : vector<3x128xf32>
    %1405 = arith.addf %1401, %1404 : vector<3x128xf32>
    %c1_868 = arith.constant 1 : index
    %c4_869 = arith.constant 4 : index
    %c0_870 = arith.constant 0 : index
    %c0_871 = arith.constant 0 : index
    %1406 = vector.load %arg7[%c1_868, %c4_869, %c0_870, %c0_871] : memref<8x9x3x128xf32, #tpu.memory_space<vmem>>, vector<1x1x3x128xf32>
    %1407 = vector.shape_cast %1406 : vector<1x1x3x128xf32> to vector<3x128xf32>
    %1408 = arith.mulf %1407, %1162 : vector<3x128xf32>
    %1409 = arith.addf %1405, %1408 : vector<3x128xf32>
    %c1_872 = arith.constant 1 : index
    %c5_873 = arith.constant 5 : index
    %c0_874 = arith.constant 0 : index
    %c0_875 = arith.constant 0 : index
    %1410 = vector.load %arg7[%c1_872, %c5_873, %c0_874, %c0_875] : memref<8x9x3x128xf32, #tpu.memory_space<vmem>>, vector<1x1x3x128xf32>
    %1411 = vector.shape_cast %1410 : vector<1x1x3x128xf32> to vector<3x128xf32>
    %1412 = arith.mulf %1411, %1203 : vector<3x128xf32>
    %1413 = arith.addf %1409, %1412 : vector<3x128xf32>
    %c1_876 = arith.constant 1 : index
    %c6_877 = arith.constant 6 : index
    %c0_878 = arith.constant 0 : index
    %c0_879 = arith.constant 0 : index
    %1414 = vector.load %arg7[%c1_876, %c6_877, %c0_878, %c0_879] : memref<8x9x3x128xf32, #tpu.memory_space<vmem>>, vector<1x1x3x128xf32>
    %1415 = vector.shape_cast %1414 : vector<1x1x3x128xf32> to vector<3x128xf32>
    %1416 = arith.mulf %1415, %1244 : vector<3x128xf32>
    %1417 = arith.addf %1413, %1416 : vector<3x128xf32>
    %c1_880 = arith.constant 1 : index
    %c7_881 = arith.constant 7 : index
    %c0_882 = arith.constant 0 : index
    %c0_883 = arith.constant 0 : index
    %1418 = vector.load %arg7[%c1_880, %c7_881, %c0_882, %c0_883] : memref<8x9x3x128xf32, #tpu.memory_space<vmem>>, vector<1x1x3x128xf32>
    %1419 = vector.shape_cast %1418 : vector<1x1x3x128xf32> to vector<3x128xf32>
    %1420 = arith.mulf %1419, %1285 : vector<3x128xf32>
    %1421 = arith.addf %1417, %1420 : vector<3x128xf32>
    %c1_884 = arith.constant 1 : index
    %c8_885 = arith.constant 8 : index
    %c0_886 = arith.constant 0 : index
    %c0_887 = arith.constant 0 : index
    %1422 = vector.load %arg7[%c1_884, %c8_885, %c0_886, %c0_887] : memref<8x9x3x128xf32, #tpu.memory_space<vmem>>, vector<1x1x3x128xf32>
    %1423 = vector.shape_cast %1422 : vector<1x1x3x128xf32> to vector<3x128xf32>
    %1424 = arith.mulf %1423, %1326 : vector<3x128xf32>
    %1425 = arith.addf %1421, %1424 : vector<3x128xf32>
    %1426 = arith.mulf %928, %1425 : vector<3x128xf32>
    %1427 = arith.mulf %928, %1345 : vector<3x128xf32>
    %cst_888 = arith.constant 9.99999997E-7 : f32
    %1428 = vector.broadcast %cst_888 : f32 to vector<3x128xf32>
    %1429 = arith.addf %1427, %1428 : vector<3x128xf32>
    %1430 = tpu.reciprocal %1429 {approx = true} : vector<3x128xf32> -> vector<3x128xf32>
    %1431 = arith.mulf %1429, %1430 : vector<3x128xf32>
    %cst_889 = arith.constant 2.000000e+00 : f32
    %1432 = vector.broadcast %cst_889 : f32 to vector<3x128xf32>
    %1433 = arith.subf %1432, %1431 : vector<3x128xf32>
    %1434 = arith.mulf %1430, %1433 : vector<3x128xf32>
    %1435 = arith.mulf %1426, %1434 : vector<3x128xf32>
    %c2_890 = arith.constant 2 : index
    %c0_891 = arith.constant 0 : index
    %c0_892 = arith.constant 0 : index
    %c0_893 = arith.constant 0 : index
    %1436 = vector.load %arg7[%c2_890, %c0_891, %c0_892, %c0_893] : memref<8x9x3x128xf32, #tpu.memory_space<vmem>>, vector<1x1x3x128xf32>
    %1437 = vector.shape_cast %1436 : vector<1x1x3x128xf32> to vector<3x128xf32>
    %1438 = arith.mulf %1437, %998 : vector<3x128xf32>
    %c2_894 = arith.constant 2 : index
    %c1_895 = arith.constant 1 : index
    %c0_896 = arith.constant 0 : index
    %c0_897 = arith.constant 0 : index
    %1439 = vector.load %arg7[%c2_894, %c1_895, %c0_896, %c0_897] : memref<8x9x3x128xf32, #tpu.memory_space<vmem>>, vector<1x1x3x128xf32>
    %1440 = vector.shape_cast %1439 : vector<1x1x3x128xf32> to vector<3x128xf32>
    %1441 = arith.mulf %1440, %1039 : vector<3x128xf32>
    %1442 = arith.addf %1438, %1441 : vector<3x128xf32>
    %c2_898 = arith.constant 2 : index
    %c2_899 = arith.constant 2 : index
    %c0_900 = arith.constant 0 : index
    %c0_901 = arith.constant 0 : index
    %1443 = vector.load %arg7[%c2_898, %c2_899, %c0_900, %c0_901] : memref<8x9x3x128xf32, #tpu.memory_space<vmem>>, vector<1x1x3x128xf32>
    %1444 = vector.shape_cast %1443 : vector<1x1x3x128xf32> to vector<3x128xf32>
    %1445 = arith.mulf %1444, %1080 : vector<3x128xf32>
    %1446 = arith.addf %1442, %1445 : vector<3x128xf32>
    %c2_902 = arith.constant 2 : index
    %c3_903 = arith.constant 3 : index
    %c0_904 = arith.constant 0 : index
    %c0_905 = arith.constant 0 : index
    %1447 = vector.load %arg7[%c2_902, %c3_903, %c0_904, %c0_905] : memref<8x9x3x128xf32, #tpu.memory_space<vmem>>, vector<1x1x3x128xf32>
    %1448 = vector.shape_cast %1447 : vector<1x1x3x128xf32> to vector<3x128xf32>
    %1449 = arith.mulf %1448, %1121 : vector<3x128xf32>
    %1450 = arith.addf %1446, %1449 : vector<3x128xf32>
    %c2_906 = arith.constant 2 : index
    %c4_907 = arith.constant 4 : index
    %c0_908 = arith.constant 0 : index
    %c0_909 = arith.constant 0 : index
    %1451 = vector.load %arg7[%c2_906, %c4_907, %c0_908, %c0_909] : memref<8x9x3x128xf32, #tpu.memory_space<vmem>>, vector<1x1x3x128xf32>
    %1452 = vector.shape_cast %1451 : vector<1x1x3x128xf32> to vector<3x128xf32>
    %1453 = arith.mulf %1452, %1162 : vector<3x128xf32>
    %1454 = arith.addf %1450, %1453 : vector<3x128xf32>
    %c2_910 = arith.constant 2 : index
    %c5_911 = arith.constant 5 : index
    %c0_912 = arith.constant 0 : index
    %c0_913 = arith.constant 0 : index
    %1455 = vector.load %arg7[%c2_910, %c5_911, %c0_912, %c0_913] : memref<8x9x3x128xf32, #tpu.memory_space<vmem>>, vector<1x1x3x128xf32>
    %1456 = vector.shape_cast %1455 : vector<1x1x3x128xf32> to vector<3x128xf32>
    %1457 = arith.mulf %1456, %1203 : vector<3x128xf32>
    %1458 = arith.addf %1454, %1457 : vector<3x128xf32>
    %c2_914 = arith.constant 2 : index
    %c6_915 = arith.constant 6 : index
    %c0_916 = arith.constant 0 : index
    %c0_917 = arith.constant 0 : index
    %1459 = vector.load %arg7[%c2_914, %c6_915, %c0_916, %c0_917] : memref<8x9x3x128xf32, #tpu.memory_space<vmem>>, vector<1x1x3x128xf32>
    %1460 = vector.shape_cast %1459 : vector<1x1x3x128xf32> to vector<3x128xf32>
    %1461 = arith.mulf %1460, %1244 : vector<3x128xf32>
    %1462 = arith.addf %1458, %1461 : vector<3x128xf32>
    %c2_918 = arith.constant 2 : index
    %c7_919 = arith.constant 7 : index
    %c0_920 = arith.constant 0 : index
    %c0_921 = arith.constant 0 : index
    %1463 = vector.load %arg7[%c2_918, %c7_919, %c0_920, %c0_921] : memref<8x9x3x128xf32, #tpu.memory_space<vmem>>, vector<1x1x3x128xf32>
    %1464 = vector.shape_cast %1463 : vector<1x1x3x128xf32> to vector<3x128xf32>
    %1465 = arith.mulf %1464, %1285 : vector<3x128xf32>
    %1466 = arith.addf %1462, %1465 : vector<3x128xf32>
    %c2_922 = arith.constant 2 : index
    %c8_923 = arith.constant 8 : index
    %c0_924 = arith.constant 0 : index
    %c0_925 = arith.constant 0 : index
    %1467 = vector.load %arg7[%c2_922, %c8_923, %c0_924, %c0_925] : memref<8x9x3x128xf32, #tpu.memory_space<vmem>>, vector<1x1x3x128xf32>
    %1468 = vector.shape_cast %1467 : vector<1x1x3x128xf32> to vector<3x128xf32>
    %1469 = arith.mulf %1468, %1326 : vector<3x128xf32>
    %1470 = arith.addf %1466, %1469 : vector<3x128xf32>
    %1471 = arith.mulf %930, %1470 : vector<3x128xf32>
    %1472 = arith.mulf %930, %1345 : vector<3x128xf32>
    %cst_926 = arith.constant 9.99999997E-7 : f32
    %1473 = vector.broadcast %cst_926 : f32 to vector<3x128xf32>
    %1474 = arith.addf %1472, %1473 : vector<3x128xf32>
    %1475 = tpu.reciprocal %1474 {approx = true} : vector<3x128xf32> -> vector<3x128xf32>
    %1476 = arith.mulf %1474, %1475 : vector<3x128xf32>
    %cst_927 = arith.constant 2.000000e+00 : f32
    %1477 = vector.broadcast %cst_927 : f32 to vector<3x128xf32>
    %1478 = arith.subf %1477, %1476 : vector<3x128xf32>
    %1479 = arith.mulf %1475, %1478 : vector<3x128xf32>
    %1480 = arith.mulf %1471, %1479 : vector<3x128xf32>
    %c3_928 = arith.constant 3 : index
    %c0_929 = arith.constant 0 : index
    %c0_930 = arith.constant 0 : index
    %c0_931 = arith.constant 0 : index
    %1481 = vector.load %arg7[%c3_928, %c0_929, %c0_930, %c0_931] : memref<8x9x3x128xf32, #tpu.memory_space<vmem>>, vector<1x1x3x128xf32>
    %1482 = vector.shape_cast %1481 : vector<1x1x3x128xf32> to vector<3x128xf32>
    %1483 = arith.mulf %1482, %998 : vector<3x128xf32>
    %c3_932 = arith.constant 3 : index
    %c1_933 = arith.constant 1 : index
    %c0_934 = arith.constant 0 : index
    %c0_935 = arith.constant 0 : index
    %1484 = vector.load %arg7[%c3_932, %c1_933, %c0_934, %c0_935] : memref<8x9x3x128xf32, #tpu.memory_space<vmem>>, vector<1x1x3x128xf32>
    %1485 = vector.shape_cast %1484 : vector<1x1x3x128xf32> to vector<3x128xf32>
    %1486 = arith.mulf %1485, %1039 : vector<3x128xf32>
    %1487 = arith.addf %1483, %1486 : vector<3x128xf32>
    %c3_936 = arith.constant 3 : index
    %c2_937 = arith.constant 2 : index
    %c0_938 = arith.constant 0 : index
    %c0_939 = arith.constant 0 : index
    %1488 = vector.load %arg7[%c3_936, %c2_937, %c0_938, %c0_939] : memref<8x9x3x128xf32, #tpu.memory_space<vmem>>, vector<1x1x3x128xf32>
    %1489 = vector.shape_cast %1488 : vector<1x1x3x128xf32> to vector<3x128xf32>
    %1490 = arith.mulf %1489, %1080 : vector<3x128xf32>
    %1491 = arith.addf %1487, %1490 : vector<3x128xf32>
    %c3_940 = arith.constant 3 : index
    %c3_941 = arith.constant 3 : index
    %c0_942 = arith.constant 0 : index
    %c0_943 = arith.constant 0 : index
    %1492 = vector.load %arg7[%c3_940, %c3_941, %c0_942, %c0_943] : memref<8x9x3x128xf32, #tpu.memory_space<vmem>>, vector<1x1x3x128xf32>
    %1493 = vector.shape_cast %1492 : vector<1x1x3x128xf32> to vector<3x128xf32>
    %1494 = arith.mulf %1493, %1121 : vector<3x128xf32>
    %1495 = arith.addf %1491, %1494 : vector<3x128xf32>
    %c3_944 = arith.constant 3 : index
    %c4_945 = arith.constant 4 : index
    %c0_946 = arith.constant 0 : index
    %c0_947 = arith.constant 0 : index
    %1496 = vector.load %arg7[%c3_944, %c4_945, %c0_946, %c0_947] : memref<8x9x3x128xf32, #tpu.memory_space<vmem>>, vector<1x1x3x128xf32>
    %1497 = vector.shape_cast %1496 : vector<1x1x3x128xf32> to vector<3x128xf32>
    %1498 = arith.mulf %1497, %1162 : vector<3x128xf32>
    %1499 = arith.addf %1495, %1498 : vector<3x128xf32>
    %c3_948 = arith.constant 3 : index
    %c5_949 = arith.constant 5 : index
    %c0_950 = arith.constant 0 : index
    %c0_951 = arith.constant 0 : index
    %1500 = vector.load %arg7[%c3_948, %c5_949, %c0_950, %c0_951] : memref<8x9x3x128xf32, #tpu.memory_space<vmem>>, vector<1x1x3x128xf32>
    %1501 = vector.shape_cast %1500 : vector<1x1x3x128xf32> to vector<3x128xf32>
    %1502 = arith.mulf %1501, %1203 : vector<3x128xf32>
    %1503 = arith.addf %1499, %1502 : vector<3x128xf32>
    %c3_952 = arith.constant 3 : index
    %c6_953 = arith.constant 6 : index
    %c0_954 = arith.constant 0 : index
    %c0_955 = arith.constant 0 : index
    %1504 = vector.load %arg7[%c3_952, %c6_953, %c0_954, %c0_955] : memref<8x9x3x128xf32, #tpu.memory_space<vmem>>, vector<1x1x3x128xf32>
    %1505 = vector.shape_cast %1504 : vector<1x1x3x128xf32> to vector<3x128xf32>
    %1506 = arith.mulf %1505, %1244 : vector<3x128xf32>
    %1507 = arith.addf %1503, %1506 : vector<3x128xf32>
    %c3_956 = arith.constant 3 : index
    %c7_957 = arith.constant 7 : index
    %c0_958 = arith.constant 0 : index
    %c0_959 = arith.constant 0 : index
    %1508 = vector.load %arg7[%c3_956, %c7_957, %c0_958, %c0_959] : memref<8x9x3x128xf32, #tpu.memory_space<vmem>>, vector<1x1x3x128xf32>
    %1509 = vector.shape_cast %1508 : vector<1x1x3x128xf32> to vector<3x128xf32>
    %1510 = arith.mulf %1509, %1285 : vector<3x128xf32>
    %1511 = arith.addf %1507, %1510 : vector<3x128xf32>
    %c3_960 = arith.constant 3 : index
    %c8_961 = arith.constant 8 : index
    %c0_962 = arith.constant 0 : index
    %c0_963 = arith.constant 0 : index
    %1512 = vector.load %arg7[%c3_960, %c8_961, %c0_962, %c0_963] : memref<8x9x3x128xf32, #tpu.memory_space<vmem>>, vector<1x1x3x128xf32>
    %1513 = vector.shape_cast %1512 : vector<1x1x3x128xf32> to vector<3x128xf32>
    %1514 = arith.mulf %1513, %1326 : vector<3x128xf32>
    %1515 = arith.addf %1511, %1514 : vector<3x128xf32>
    %1516 = arith.mulf %932, %1515 : vector<3x128xf32>
    %1517 = arith.mulf %932, %1345 : vector<3x128xf32>
    %cst_964 = arith.constant 9.99999997E-7 : f32
    %1518 = vector.broadcast %cst_964 : f32 to vector<3x128xf32>
    %1519 = arith.addf %1517, %1518 : vector<3x128xf32>
    %1520 = tpu.reciprocal %1519 {approx = true} : vector<3x128xf32> -> vector<3x128xf32>
    %1521 = arith.mulf %1519, %1520 : vector<3x128xf32>
    %cst_965 = arith.constant 2.000000e+00 : f32
    %1522 = vector.broadcast %cst_965 : f32 to vector<3x128xf32>
    %1523 = arith.subf %1522, %1521 : vector<3x128xf32>
    %1524 = arith.mulf %1520, %1523 : vector<3x128xf32>
    %1525 = arith.mulf %1516, %1524 : vector<3x128xf32>
    %c4_966 = arith.constant 4 : index
    %c0_967 = arith.constant 0 : index
    %c0_968 = arith.constant 0 : index
    %c0_969 = arith.constant 0 : index
    %1526 = vector.load %arg7[%c4_966, %c0_967, %c0_968, %c0_969] : memref<8x9x3x128xf32, #tpu.memory_space<vmem>>, vector<1x1x3x128xf32>
    %1527 = vector.shape_cast %1526 : vector<1x1x3x128xf32> to vector<3x128xf32>
    %1528 = arith.mulf %1527, %998 : vector<3x128xf32>
    %c4_970 = arith.constant 4 : index
    %c1_971 = arith.constant 1 : index
    %c0_972 = arith.constant 0 : index
    %c0_973 = arith.constant 0 : index
    %1529 = vector.load %arg7[%c4_970, %c1_971, %c0_972, %c0_973] : memref<8x9x3x128xf32, #tpu.memory_space<vmem>>, vector<1x1x3x128xf32>
    %1530 = vector.shape_cast %1529 : vector<1x1x3x128xf32> to vector<3x128xf32>
    %1531 = arith.mulf %1530, %1039 : vector<3x128xf32>
    %1532 = arith.addf %1528, %1531 : vector<3x128xf32>
    %c4_974 = arith.constant 4 : index
    %c2_975 = arith.constant 2 : index
    %c0_976 = arith.constant 0 : index
    %c0_977 = arith.constant 0 : index
    %1533 = vector.load %arg7[%c4_974, %c2_975, %c0_976, %c0_977] : memref<8x9x3x128xf32, #tpu.memory_space<vmem>>, vector<1x1x3x128xf32>
    %1534 = vector.shape_cast %1533 : vector<1x1x3x128xf32> to vector<3x128xf32>
    %1535 = arith.mulf %1534, %1080 : vector<3x128xf32>
    %1536 = arith.addf %1532, %1535 : vector<3x128xf32>
    %c4_978 = arith.constant 4 : index
    %c3_979 = arith.constant 3 : index
    %c0_980 = arith.constant 0 : index
    %c0_981 = arith.constant 0 : index
    %1537 = vector.load %arg7[%c4_978, %c3_979, %c0_980, %c0_981] : memref<8x9x3x128xf32, #tpu.memory_space<vmem>>, vector<1x1x3x128xf32>
    %1538 = vector.shape_cast %1537 : vector<1x1x3x128xf32> to vector<3x128xf32>
    %1539 = arith.mulf %1538, %1121 : vector<3x128xf32>
    %1540 = arith.addf %1536, %1539 : vector<3x128xf32>
    %c4_982 = arith.constant 4 : index
    %c4_983 = arith.constant 4 : index
    %c0_984 = arith.constant 0 : index
    %c0_985 = arith.constant 0 : index
    %1541 = vector.load %arg7[%c4_982, %c4_983, %c0_984, %c0_985] : memref<8x9x3x128xf32, #tpu.memory_space<vmem>>, vector<1x1x3x128xf32>
    %1542 = vector.shape_cast %1541 : vector<1x1x3x128xf32> to vector<3x128xf32>
    %1543 = arith.mulf %1542, %1162 : vector<3x128xf32>
    %1544 = arith.addf %1540, %1543 : vector<3x128xf32>
    %c4_986 = arith.constant 4 : index
    %c5_987 = arith.constant 5 : index
    %c0_988 = arith.constant 0 : index
    %c0_989 = arith.constant 0 : index
    %1545 = vector.load %arg7[%c4_986, %c5_987, %c0_988, %c0_989] : memref<8x9x3x128xf32, #tpu.memory_space<vmem>>, vector<1x1x3x128xf32>
    %1546 = vector.shape_cast %1545 : vector<1x1x3x128xf32> to vector<3x128xf32>
    %1547 = arith.mulf %1546, %1203 : vector<3x128xf32>
    %1548 = arith.addf %1544, %1547 : vector<3x128xf32>
    %c4_990 = arith.constant 4 : index
    %c6_991 = arith.constant 6 : index
    %c0_992 = arith.constant 0 : index
    %c0_993 = arith.constant 0 : index
    %1549 = vector.load %arg7[%c4_990, %c6_991, %c0_992, %c0_993] : memref<8x9x3x128xf32, #tpu.memory_space<vmem>>, vector<1x1x3x128xf32>
    %1550 = vector.shape_cast %1549 : vector<1x1x3x128xf32> to vector<3x128xf32>
    %1551 = arith.mulf %1550, %1244 : vector<3x128xf32>
    %1552 = arith.addf %1548, %1551 : vector<3x128xf32>
    %c4_994 = arith.constant 4 : index
    %c7_995 = arith.constant 7 : index
    %c0_996 = arith.constant 0 : index
    %c0_997 = arith.constant 0 : index
    %1553 = vector.load %arg7[%c4_994, %c7_995, %c0_996, %c0_997] : memref<8x9x3x128xf32, #tpu.memory_space<vmem>>, vector<1x1x3x128xf32>
    %1554 = vector.shape_cast %1553 : vector<1x1x3x128xf32> to vector<3x128xf32>
    %1555 = arith.mulf %1554, %1285 : vector<3x128xf32>
    %1556 = arith.addf %1552, %1555 : vector<3x128xf32>
    %c4_998 = arith.constant 4 : index
    %c8_999 = arith.constant 8 : index
    %c0_1000 = arith.constant 0 : index
    %c0_1001 = arith.constant 0 : index
    %1557 = vector.load %arg7[%c4_998, %c8_999, %c0_1000, %c0_1001] : memref<8x9x3x128xf32, #tpu.memory_space<vmem>>, vector<1x1x3x128xf32>
    %1558 = vector.shape_cast %1557 : vector<1x1x3x128xf32> to vector<3x128xf32>
    %1559 = arith.mulf %1558, %1326 : vector<3x128xf32>
    %1560 = arith.addf %1556, %1559 : vector<3x128xf32>
    %1561 = arith.mulf %934, %1560 : vector<3x128xf32>
    %1562 = arith.mulf %934, %1345 : vector<3x128xf32>
    %cst_1002 = arith.constant 9.99999997E-7 : f32
    %1563 = vector.broadcast %cst_1002 : f32 to vector<3x128xf32>
    %1564 = arith.addf %1562, %1563 : vector<3x128xf32>
    %1565 = tpu.reciprocal %1564 {approx = true} : vector<3x128xf32> -> vector<3x128xf32>
    %1566 = arith.mulf %1564, %1565 : vector<3x128xf32>
    %cst_1003 = arith.constant 2.000000e+00 : f32
    %1567 = vector.broadcast %cst_1003 : f32 to vector<3x128xf32>
    %1568 = arith.subf %1567, %1566 : vector<3x128xf32>
    %1569 = arith.mulf %1565, %1568 : vector<3x128xf32>
    %1570 = arith.mulf %1561, %1569 : vector<3x128xf32>
    %c5_1004 = arith.constant 5 : index
    %c0_1005 = arith.constant 0 : index
    %c0_1006 = arith.constant 0 : index
    %c0_1007 = arith.constant 0 : index
    %1571 = vector.load %arg7[%c5_1004, %c0_1005, %c0_1006, %c0_1007] : memref<8x9x3x128xf32, #tpu.memory_space<vmem>>, vector<1x1x3x128xf32>
    %1572 = vector.shape_cast %1571 : vector<1x1x3x128xf32> to vector<3x128xf32>
    %1573 = arith.mulf %1572, %998 : vector<3x128xf32>
    %c5_1008 = arith.constant 5 : index
    %c1_1009 = arith.constant 1 : index
    %c0_1010 = arith.constant 0 : index
    %c0_1011 = arith.constant 0 : index
    %1574 = vector.load %arg7[%c5_1008, %c1_1009, %c0_1010, %c0_1011] : memref<8x9x3x128xf32, #tpu.memory_space<vmem>>, vector<1x1x3x128xf32>
    %1575 = vector.shape_cast %1574 : vector<1x1x3x128xf32> to vector<3x128xf32>
    %1576 = arith.mulf %1575, %1039 : vector<3x128xf32>
    %1577 = arith.addf %1573, %1576 : vector<3x128xf32>
    %c5_1012 = arith.constant 5 : index
    %c2_1013 = arith.constant 2 : index
    %c0_1014 = arith.constant 0 : index
    %c0_1015 = arith.constant 0 : index
    %1578 = vector.load %arg7[%c5_1012, %c2_1013, %c0_1014, %c0_1015] : memref<8x9x3x128xf32, #tpu.memory_space<vmem>>, vector<1x1x3x128xf32>
    %1579 = vector.shape_cast %1578 : vector<1x1x3x128xf32> to vector<3x128xf32>
    %1580 = arith.mulf %1579, %1080 : vector<3x128xf32>
    %1581 = arith.addf %1577, %1580 : vector<3x128xf32>
    %c5_1016 = arith.constant 5 : index
    %c3_1017 = arith.constant 3 : index
    %c0_1018 = arith.constant 0 : index
    %c0_1019 = arith.constant 0 : index
    %1582 = vector.load %arg7[%c5_1016, %c3_1017, %c0_1018, %c0_1019] : memref<8x9x3x128xf32, #tpu.memory_space<vmem>>, vector<1x1x3x128xf32>
    %1583 = vector.shape_cast %1582 : vector<1x1x3x128xf32> to vector<3x128xf32>
    %1584 = arith.mulf %1583, %1121 : vector<3x128xf32>
    %1585 = arith.addf %1581, %1584 : vector<3x128xf32>
    %c5_1020 = arith.constant 5 : index
    %c4_1021 = arith.constant 4 : index
    %c0_1022 = arith.constant 0 : index
    %c0_1023 = arith.constant 0 : index
    %1586 = vector.load %arg7[%c5_1020, %c4_1021, %c0_1022, %c0_1023] : memref<8x9x3x128xf32, #tpu.memory_space<vmem>>, vector<1x1x3x128xf32>
    %1587 = vector.shape_cast %1586 : vector<1x1x3x128xf32> to vector<3x128xf32>
    %1588 = arith.mulf %1587, %1162 : vector<3x128xf32>
    %1589 = arith.addf %1585, %1588 : vector<3x128xf32>
    %c5_1024 = arith.constant 5 : index
    %c5_1025 = arith.constant 5 : index
    %c0_1026 = arith.constant 0 : index
    %c0_1027 = arith.constant 0 : index
    %1590 = vector.load %arg7[%c5_1024, %c5_1025, %c0_1026, %c0_1027] : memref<8x9x3x128xf32, #tpu.memory_space<vmem>>, vector<1x1x3x128xf32>
    %1591 = vector.shape_cast %1590 : vector<1x1x3x128xf32> to vector<3x128xf32>
    %1592 = arith.mulf %1591, %1203 : vector<3x128xf32>
    %1593 = arith.addf %1589, %1592 : vector<3x128xf32>
    %c5_1028 = arith.constant 5 : index
    %c6_1029 = arith.constant 6 : index
    %c0_1030 = arith.constant 0 : index
    %c0_1031 = arith.constant 0 : index
    %1594 = vector.load %arg7[%c5_1028, %c6_1029, %c0_1030, %c0_1031] : memref<8x9x3x128xf32, #tpu.memory_space<vmem>>, vector<1x1x3x128xf32>
    %1595 = vector.shape_cast %1594 : vector<1x1x3x128xf32> to vector<3x128xf32>
    %1596 = arith.mulf %1595, %1244 : vector<3x128xf32>
    %1597 = arith.addf %1593, %1596 : vector<3x128xf32>
    %c5_1032 = arith.constant 5 : index
    %c7_1033 = arith.constant 7 : index
    %c0_1034 = arith.constant 0 : index
    %c0_1035 = arith.constant 0 : index
    %1598 = vector.load %arg7[%c5_1032, %c7_1033, %c0_1034, %c0_1035] : memref<8x9x3x128xf32, #tpu.memory_space<vmem>>, vector<1x1x3x128xf32>
    %1599 = vector.shape_cast %1598 : vector<1x1x3x128xf32> to vector<3x128xf32>
    %1600 = arith.mulf %1599, %1285 : vector<3x128xf32>
    %1601 = arith.addf %1597, %1600 : vector<3x128xf32>
    %c5_1036 = arith.constant 5 : index
    %c8_1037 = arith.constant 8 : index
    %c0_1038 = arith.constant 0 : index
    %c0_1039 = arith.constant 0 : index
    %1602 = vector.load %arg7[%c5_1036, %c8_1037, %c0_1038, %c0_1039] : memref<8x9x3x128xf32, #tpu.memory_space<vmem>>, vector<1x1x3x128xf32>
    %1603 = vector.shape_cast %1602 : vector<1x1x3x128xf32> to vector<3x128xf32>
    %1604 = arith.mulf %1603, %1326 : vector<3x128xf32>
    %1605 = arith.addf %1601, %1604 : vector<3x128xf32>
    %1606 = arith.mulf %936, %1605 : vector<3x128xf32>
    %1607 = arith.mulf %936, %1345 : vector<3x128xf32>
    %cst_1040 = arith.constant 9.99999997E-7 : f32
    %1608 = vector.broadcast %cst_1040 : f32 to vector<3x128xf32>
    %1609 = arith.addf %1607, %1608 : vector<3x128xf32>
    %1610 = tpu.reciprocal %1609 {approx = true} : vector<3x128xf32> -> vector<3x128xf32>
    %1611 = arith.mulf %1609, %1610 : vector<3x128xf32>
    %cst_1041 = arith.constant 2.000000e+00 : f32
    %1612 = vector.broadcast %cst_1041 : f32 to vector<3x128xf32>
    %1613 = arith.subf %1612, %1611 : vector<3x128xf32>
    %1614 = arith.mulf %1610, %1613 : vector<3x128xf32>
    %1615 = arith.mulf %1606, %1614 : vector<3x128xf32>
    %c6_1042 = arith.constant 6 : index
    %c0_1043 = arith.constant 0 : index
    %c0_1044 = arith.constant 0 : index
    %c0_1045 = arith.constant 0 : index
    %1616 = vector.load %arg7[%c6_1042, %c0_1043, %c0_1044, %c0_1045] : memref<8x9x3x128xf32, #tpu.memory_space<vmem>>, vector<1x1x3x128xf32>
    %1617 = vector.shape_cast %1616 : vector<1x1x3x128xf32> to vector<3x128xf32>
    %1618 = arith.mulf %1617, %998 : vector<3x128xf32>
    %c6_1046 = arith.constant 6 : index
    %c1_1047 = arith.constant 1 : index
    %c0_1048 = arith.constant 0 : index
    %c0_1049 = arith.constant 0 : index
    %1619 = vector.load %arg7[%c6_1046, %c1_1047, %c0_1048, %c0_1049] : memref<8x9x3x128xf32, #tpu.memory_space<vmem>>, vector<1x1x3x128xf32>
    %1620 = vector.shape_cast %1619 : vector<1x1x3x128xf32> to vector<3x128xf32>
    %1621 = arith.mulf %1620, %1039 : vector<3x128xf32>
    %1622 = arith.addf %1618, %1621 : vector<3x128xf32>
    %c6_1050 = arith.constant 6 : index
    %c2_1051 = arith.constant 2 : index
    %c0_1052 = arith.constant 0 : index
    %c0_1053 = arith.constant 0 : index
    %1623 = vector.load %arg7[%c6_1050, %c2_1051, %c0_1052, %c0_1053] : memref<8x9x3x128xf32, #tpu.memory_space<vmem>>, vector<1x1x3x128xf32>
    %1624 = vector.shape_cast %1623 : vector<1x1x3x128xf32> to vector<3x128xf32>
    %1625 = arith.mulf %1624, %1080 : vector<3x128xf32>
    %1626 = arith.addf %1622, %1625 : vector<3x128xf32>
    %c6_1054 = arith.constant 6 : index
    %c3_1055 = arith.constant 3 : index
    %c0_1056 = arith.constant 0 : index
    %c0_1057 = arith.constant 0 : index
    %1627 = vector.load %arg7[%c6_1054, %c3_1055, %c0_1056, %c0_1057] : memref<8x9x3x128xf32, #tpu.memory_space<vmem>>, vector<1x1x3x128xf32>
    %1628 = vector.shape_cast %1627 : vector<1x1x3x128xf32> to vector<3x128xf32>
    %1629 = arith.mulf %1628, %1121 : vector<3x128xf32>
    %1630 = arith.addf %1626, %1629 : vector<3x128xf32>
    %c6_1058 = arith.constant 6 : index
    %c4_1059 = arith.constant 4 : index
    %c0_1060 = arith.constant 0 : index
    %c0_1061 = arith.constant 0 : index
    %1631 = vector.load %arg7[%c6_1058, %c4_1059, %c0_1060, %c0_1061] : memref<8x9x3x128xf32, #tpu.memory_space<vmem>>, vector<1x1x3x128xf32>
    %1632 = vector.shape_cast %1631 : vector<1x1x3x128xf32> to vector<3x128xf32>
    %1633 = arith.mulf %1632, %1162 : vector<3x128xf32>
    %1634 = arith.addf %1630, %1633 : vector<3x128xf32>
    %c6_1062 = arith.constant 6 : index
    %c5_1063 = arith.constant 5 : index
    %c0_1064 = arith.constant 0 : index
    %c0_1065 = arith.constant 0 : index
    %1635 = vector.load %arg7[%c6_1062, %c5_1063, %c0_1064, %c0_1065] : memref<8x9x3x128xf32, #tpu.memory_space<vmem>>, vector<1x1x3x128xf32>
    %1636 = vector.shape_cast %1635 : vector<1x1x3x128xf32> to vector<3x128xf32>
    %1637 = arith.mulf %1636, %1203 : vector<3x128xf32>
    %1638 = arith.addf %1634, %1637 : vector<3x128xf32>
    %c6_1066 = arith.constant 6 : index
    %c6_1067 = arith.constant 6 : index
    %c0_1068 = arith.constant 0 : index
    %c0_1069 = arith.constant 0 : index
    %1639 = vector.load %arg7[%c6_1066, %c6_1067, %c0_1068, %c0_1069] : memref<8x9x3x128xf32, #tpu.memory_space<vmem>>, vector<1x1x3x128xf32>
    %1640 = vector.shape_cast %1639 : vector<1x1x3x128xf32> to vector<3x128xf32>
    %1641 = arith.mulf %1640, %1244 : vector<3x128xf32>
    %1642 = arith.addf %1638, %1641 : vector<3x128xf32>
    %c6_1070 = arith.constant 6 : index
    %c7_1071 = arith.constant 7 : index
    %c0_1072 = arith.constant 0 : index
    %c0_1073 = arith.constant 0 : index
    %1643 = vector.load %arg7[%c6_1070, %c7_1071, %c0_1072, %c0_1073] : memref<8x9x3x128xf32, #tpu.memory_space<vmem>>, vector<1x1x3x128xf32>
    %1644 = vector.shape_cast %1643 : vector<1x1x3x128xf32> to vector<3x128xf32>
    %1645 = arith.mulf %1644, %1285 : vector<3x128xf32>
    %1646 = arith.addf %1642, %1645 : vector<3x128xf32>
    %c6_1074 = arith.constant 6 : index
    %c8_1075 = arith.constant 8 : index
    %c0_1076 = arith.constant 0 : index
    %c0_1077 = arith.constant 0 : index
    %1647 = vector.load %arg7[%c6_1074, %c8_1075, %c0_1076, %c0_1077] : memref<8x9x3x128xf32, #tpu.memory_space<vmem>>, vector<1x1x3x128xf32>
    %1648 = vector.shape_cast %1647 : vector<1x1x3x128xf32> to vector<3x128xf32>
    %1649 = arith.mulf %1648, %1326 : vector<3x128xf32>
    %1650 = arith.addf %1646, %1649 : vector<3x128xf32>
    %1651 = arith.mulf %938, %1650 : vector<3x128xf32>
    %1652 = arith.mulf %938, %1345 : vector<3x128xf32>
    %cst_1078 = arith.constant 9.99999997E-7 : f32
    %1653 = vector.broadcast %cst_1078 : f32 to vector<3x128xf32>
    %1654 = arith.addf %1652, %1653 : vector<3x128xf32>
    %1655 = tpu.reciprocal %1654 {approx = true} : vector<3x128xf32> -> vector<3x128xf32>
    %1656 = arith.mulf %1654, %1655 : vector<3x128xf32>
    %cst_1079 = arith.constant 2.000000e+00 : f32
    %1657 = vector.broadcast %cst_1079 : f32 to vector<3x128xf32>
    %1658 = arith.subf %1657, %1656 : vector<3x128xf32>
    %1659 = arith.mulf %1655, %1658 : vector<3x128xf32>
    %1660 = arith.mulf %1651, %1659 : vector<3x128xf32>
    %c7_1080 = arith.constant 7 : index
    %c0_1081 = arith.constant 0 : index
    %c0_1082 = arith.constant 0 : index
    %c0_1083 = arith.constant 0 : index
    %1661 = vector.load %arg7[%c7_1080, %c0_1081, %c0_1082, %c0_1083] : memref<8x9x3x128xf32, #tpu.memory_space<vmem>>, vector<1x1x3x128xf32>
    %1662 = vector.shape_cast %1661 : vector<1x1x3x128xf32> to vector<3x128xf32>
    %1663 = arith.mulf %1662, %998 : vector<3x128xf32>
    %c7_1084 = arith.constant 7 : index
    %c1_1085 = arith.constant 1 : index
    %c0_1086 = arith.constant 0 : index
    %c0_1087 = arith.constant 0 : index
    %1664 = vector.load %arg7[%c7_1084, %c1_1085, %c0_1086, %c0_1087] : memref<8x9x3x128xf32, #tpu.memory_space<vmem>>, vector<1x1x3x128xf32>
    %1665 = vector.shape_cast %1664 : vector<1x1x3x128xf32> to vector<3x128xf32>
    %1666 = arith.mulf %1665, %1039 : vector<3x128xf32>
    %1667 = arith.addf %1663, %1666 : vector<3x128xf32>
    %c7_1088 = arith.constant 7 : index
    %c2_1089 = arith.constant 2 : index
    %c0_1090 = arith.constant 0 : index
    %c0_1091 = arith.constant 0 : index
    %1668 = vector.load %arg7[%c7_1088, %c2_1089, %c0_1090, %c0_1091] : memref<8x9x3x128xf32, #tpu.memory_space<vmem>>, vector<1x1x3x128xf32>
    %1669 = vector.shape_cast %1668 : vector<1x1x3x128xf32> to vector<3x128xf32>
    %1670 = arith.mulf %1669, %1080 : vector<3x128xf32>
    %1671 = arith.addf %1667, %1670 : vector<3x128xf32>
    %c7_1092 = arith.constant 7 : index
    %c3_1093 = arith.constant 3 : index
    %c0_1094 = arith.constant 0 : index
    %c0_1095 = arith.constant 0 : index
    %1672 = vector.load %arg7[%c7_1092, %c3_1093, %c0_1094, %c0_1095] : memref<8x9x3x128xf32, #tpu.memory_space<vmem>>, vector<1x1x3x128xf32>
    %1673 = vector.shape_cast %1672 : vector<1x1x3x128xf32> to vector<3x128xf32>
    %1674 = arith.mulf %1673, %1121 : vector<3x128xf32>
    %1675 = arith.addf %1671, %1674 : vector<3x128xf32>
    %c7_1096 = arith.constant 7 : index
    %c4_1097 = arith.constant 4 : index
    %c0_1098 = arith.constant 0 : index
    %c0_1099 = arith.constant 0 : index
    %1676 = vector.load %arg7[%c7_1096, %c4_1097, %c0_1098, %c0_1099] : memref<8x9x3x128xf32, #tpu.memory_space<vmem>>, vector<1x1x3x128xf32>
    %1677 = vector.shape_cast %1676 : vector<1x1x3x128xf32> to vector<3x128xf32>
    %1678 = arith.mulf %1677, %1162 : vector<3x128xf32>
    %1679 = arith.addf %1675, %1678 : vector<3x128xf32>
    %c7_1100 = arith.constant 7 : index
    %c5_1101 = arith.constant 5 : index
    %c0_1102 = arith.constant 0 : index
    %c0_1103 = arith.constant 0 : index
    %1680 = vector.load %arg7[%c7_1100, %c5_1101, %c0_1102, %c0_1103] : memref<8x9x3x128xf32, #tpu.memory_space<vmem>>, vector<1x1x3x128xf32>
    %1681 = vector.shape_cast %1680 : vector<1x1x3x128xf32> to vector<3x128xf32>
    %1682 = arith.mulf %1681, %1203 : vector<3x128xf32>
    %1683 = arith.addf %1679, %1682 : vector<3x128xf32>
    %c7_1104 = arith.constant 7 : index
    %c6_1105 = arith.constant 6 : index
    %c0_1106 = arith.constant 0 : index
    %c0_1107 = arith.constant 0 : index
    %1684 = vector.load %arg7[%c7_1104, %c6_1105, %c0_1106, %c0_1107] : memref<8x9x3x128xf32, #tpu.memory_space<vmem>>, vector<1x1x3x128xf32>
    %1685 = vector.shape_cast %1684 : vector<1x1x3x128xf32> to vector<3x128xf32>
    %1686 = arith.mulf %1685, %1244 : vector<3x128xf32>
    %1687 = arith.addf %1683, %1686 : vector<3x128xf32>
    %c7_1108 = arith.constant 7 : index
    %c7_1109 = arith.constant 7 : index
    %c0_1110 = arith.constant 0 : index
    %c0_1111 = arith.constant 0 : index
    %1688 = vector.load %arg7[%c7_1108, %c7_1109, %c0_1110, %c0_1111] : memref<8x9x3x128xf32, #tpu.memory_space<vmem>>, vector<1x1x3x128xf32>
    %1689 = vector.shape_cast %1688 : vector<1x1x3x128xf32> to vector<3x128xf32>
    %1690 = arith.mulf %1689, %1285 : vector<3x128xf32>
    %1691 = arith.addf %1687, %1690 : vector<3x128xf32>
    %c7_1112 = arith.constant 7 : index
    %c8_1113 = arith.constant 8 : index
    %c0_1114 = arith.constant 0 : index
    %c0_1115 = arith.constant 0 : index
    %1692 = vector.load %arg7[%c7_1112, %c8_1113, %c0_1114, %c0_1115] : memref<8x9x3x128xf32, #tpu.memory_space<vmem>>, vector<1x1x3x128xf32>
    %1693 = vector.shape_cast %1692 : vector<1x1x3x128xf32> to vector<3x128xf32>
    %1694 = arith.mulf %1693, %1326 : vector<3x128xf32>
    %1695 = arith.addf %1691, %1694 : vector<3x128xf32>
    %1696 = arith.mulf %940, %1695 : vector<3x128xf32>
    %1697 = arith.mulf %940, %1345 : vector<3x128xf32>
    %cst_1116 = arith.constant 9.99999997E-7 : f32
    %1698 = vector.broadcast %cst_1116 : f32 to vector<3x128xf32>
    %1699 = arith.addf %1697, %1698 : vector<3x128xf32>
    %1700 = tpu.reciprocal %1699 {approx = true} : vector<3x128xf32> -> vector<3x128xf32>
    %1701 = arith.mulf %1699, %1700 : vector<3x128xf32>
    %cst_1117 = arith.constant 2.000000e+00 : f32
    %1702 = vector.broadcast %cst_1117 : f32 to vector<3x128xf32>
    %1703 = arith.subf %1702, %1701 : vector<3x128xf32>
    %1704 = arith.mulf %1700, %1703 : vector<3x128xf32>
    %1705 = arith.mulf %1696, %1704 : vector<3x128xf32>
    %cst_1118 = arith.constant 3.000000e+00 : f32
    %1706 = vector.broadcast %cst_1118 : f32 to vector<3x128xf32>
    %1707 = arith.mulf %1162, %1706 : vector<3x128xf32>
    %1708 = arith.mulf %1390, %1707 : vector<3x128xf32>
    %1709 = arith.mulf %1435, %1707 : vector<3x128xf32>
    %1710 = arith.mulf %1480, %1707 : vector<3x128xf32>
    %1711 = arith.mulf %1525, %1707 : vector<3x128xf32>
    %1712 = arith.mulf %1570, %1707 : vector<3x128xf32>
    %1713 = arith.mulf %1615, %1707 : vector<3x128xf32>
    %1714 = arith.mulf %1660, %1707 : vector<3x128xf32>
    %1715 = arith.mulf %1705, %1707 : vector<3x128xf32>
    %c0_1119 = arith.constant 0 : index
    %c0_1120 = arith.constant 0 : index
    %1716 = memref.load %arg4[%c0_1119, %c0_1120] : memref<4x8xf32, #tpu.memory_space<smem>>
    %1717 = vector.broadcast %1716 : f32 to vector<3x128xf32>
    %1718 = arith.mulf %1717, %1708 : vector<3x128xf32>
    %c0_1121 = arith.constant 0 : index
    %c1_1122 = arith.constant 1 : index
    %1719 = memref.load %arg4[%c0_1121, %c1_1122] : memref<4x8xf32, #tpu.memory_space<smem>>
    %1720 = vector.broadcast %1719 : f32 to vector<3x128xf32>
    %1721 = arith.mulf %1720, %1709 : vector<3x128xf32>
    %1722 = arith.addf %1718, %1721 : vector<3x128xf32>
    %c0_1123 = arith.constant 0 : index
    %c2_1124 = arith.constant 2 : index
    %1723 = memref.load %arg4[%c0_1123, %c2_1124] : memref<4x8xf32, #tpu.memory_space<smem>>
    %1724 = vector.broadcast %1723 : f32 to vector<3x128xf32>
    %1725 = arith.mulf %1724, %1710 : vector<3x128xf32>
    %1726 = arith.addf %1722, %1725 : vector<3x128xf32>
    %c0_1125 = arith.constant 0 : index
    %c3_1126 = arith.constant 3 : index
    %1727 = memref.load %arg4[%c0_1125, %c3_1126] : memref<4x8xf32, #tpu.memory_space<smem>>
    %1728 = vector.broadcast %1727 : f32 to vector<3x128xf32>
    %1729 = arith.mulf %1728, %1711 : vector<3x128xf32>
    %1730 = arith.addf %1726, %1729 : vector<3x128xf32>
    %c0_1127 = arith.constant 0 : index
    %c4_1128 = arith.constant 4 : index
    %1731 = memref.load %arg4[%c0_1127, %c4_1128] : memref<4x8xf32, #tpu.memory_space<smem>>
    %1732 = vector.broadcast %1731 : f32 to vector<3x128xf32>
    %1733 = arith.mulf %1732, %1712 : vector<3x128xf32>
    %1734 = arith.addf %1730, %1733 : vector<3x128xf32>
    %c0_1129 = arith.constant 0 : index
    %c5_1130 = arith.constant 5 : index
    %1735 = memref.load %arg4[%c0_1129, %c5_1130] : memref<4x8xf32, #tpu.memory_space<smem>>
    %1736 = vector.broadcast %1735 : f32 to vector<3x128xf32>
    %1737 = arith.mulf %1736, %1713 : vector<3x128xf32>
    %1738 = arith.addf %1734, %1737 : vector<3x128xf32>
    %c0_1131 = arith.constant 0 : index
    %c6_1132 = arith.constant 6 : index
    %1739 = memref.load %arg4[%c0_1131, %c6_1132] : memref<4x8xf32, #tpu.memory_space<smem>>
    %1740 = vector.broadcast %1739 : f32 to vector<3x128xf32>
    %1741 = arith.mulf %1740, %1714 : vector<3x128xf32>
    %1742 = arith.addf %1738, %1741 : vector<3x128xf32>
    %c0_1133 = arith.constant 0 : index
    %c7_1134 = arith.constant 7 : index
    %1743 = memref.load %arg4[%c0_1133, %c7_1134] : memref<4x8xf32, #tpu.memory_space<smem>>
    %1744 = vector.broadcast %1743 : f32 to vector<3x128xf32>
    %1745 = arith.mulf %1744, %1715 : vector<3x128xf32>
    %1746 = arith.addf %1742, %1745 : vector<3x128xf32>
    %1747 = vector.extract_strided_slice %18 {offsets = [0, 0, 0], sizes = [1, 5, 128], strides = [1, 1, 1]} : vector<4x5x128xf32> to vector<1x5x128xf32>
    %1748 = vector.shape_cast %1747 : vector<1x5x128xf32> to vector<5x128xf32>
    %1749 = vector.extract_strided_slice %1748 {offsets = [0, 0], sizes = [3, 128], strides = [1, 1]} : vector<5x128xf32> to vector<3x128xf32>
    %1750 = vector.extract_strided_slice %1748 {offsets = [1, 0], sizes = [3, 128], strides = [1, 1]} : vector<5x128xf32> to vector<3x128xf32>
    %c78_i32_1135 = arith.constant 78 : i32
    %1751 = tpu.dynamic_rotate %1749 by %c78_i32_1135 dim 1 : vector<3x128xf32>, i32 -> vector<3x128xf32>
    %c78_i32_1136 = arith.constant 78 : i32
    %1752 = tpu.dynamic_rotate %1750 by %c78_i32_1136 dim 1 : vector<3x128xf32>, i32 -> vector<3x128xf32>
    %1753 = arith.select %513, %1751, %1752 : vector<3x128xi1>, vector<3x128xf32>
    %1754 = arith.addf %1746, %1753 : vector<3x128xf32>
    %c0_1137 = arith.constant 0 : index
    %c0_1138 = arith.constant 0 : index
    %c0_1139 = arith.constant 0 : index
    %c0_1140 = arith.constant 0 : index
    %1755 = vector.load %arg5[%c0_1137, %c0_1138, %c0_1139, %c0_1140] : memref<1x4x3x128xf32, #tpu.memory_space<vmem>>, vector<1x1x3x128xf32>
    %1756 = vector.shape_cast %1755 : vector<1x1x3x128xf32> to vector<3x128xf32>
    %1757 = vector.shape_cast %1754 : vector<3x128xf32> to vector<1x1x3x128xf32>
    tpu.vector_store %arg5[%c0_1137, %c0_1138, %c0_1139, %c0_1140], %1757 {strides = array<i32>} : memref<1x4x3x128xf32, #tpu.memory_space<vmem>>, vector<1x1x3x128xf32>,
    %c1_1141 = arith.constant 1 : index
    %c0_1142 = arith.constant 0 : index
    %1758 = memref.load %arg4[%c1_1141, %c0_1142] : memref<4x8xf32, #tpu.memory_space<smem>>
    %1759 = vector.broadcast %1758 : f32 to vector<3x128xf32>
    %1760 = arith.mulf %1759, %1708 : vector<3x128xf32>
    %c1_1143 = arith.constant 1 : index
    %c1_1144 = arith.constant 1 : index
    %1761 = memref.load %arg4[%c1_1143, %c1_1144] : memref<4x8xf32, #tpu.memory_space<smem>>
    %1762 = vector.broadcast %1761 : f32 to vector<3x128xf32>
    %1763 = arith.mulf %1762, %1709 : vector<3x128xf32>
    %1764 = arith.addf %1760, %1763 : vector<3x128xf32>
    %c1_1145 = arith.constant 1 : index
    %c2_1146 = arith.constant 2 : index
    %1765 = memref.load %arg4[%c1_1145, %c2_1146] : memref<4x8xf32, #tpu.memory_space<smem>>
    %1766 = vector.broadcast %1765 : f32 to vector<3x128xf32>
    %1767 = arith.mulf %1766, %1710 : vector<3x128xf32>
    %1768 = arith.addf %1764, %1767 : vector<3x128xf32>
    %c1_1147 = arith.constant 1 : index
    %c3_1148 = arith.constant 3 : index
    %1769 = memref.load %arg4[%c1_1147, %c3_1148] : memref<4x8xf32, #tpu.memory_space<smem>>
    %1770 = vector.broadcast %1769 : f32 to vector<3x128xf32>
    %1771 = arith.mulf %1770, %1711 : vector<3x128xf32>
    %1772 = arith.addf %1768, %1771 : vector<3x128xf32>
    %c1_1149 = arith.constant 1 : index
    %c4_1150 = arith.constant 4 : index
    %1773 = memref.load %arg4[%c1_1149, %c4_1150] : memref<4x8xf32, #tpu.memory_space<smem>>
    %1774 = vector.broadcast %1773 : f32 to vector<3x128xf32>
    %1775 = arith.mulf %1774, %1712 : vector<3x128xf32>
    %1776 = arith.addf %1772, %1775 : vector<3x128xf32>
    %c1_1151 = arith.constant 1 : index
    %c5_1152 = arith.constant 5 : index
    %1777 = memref.load %arg4[%c1_1151, %c5_1152] : memref<4x8xf32, #tpu.memory_space<smem>>
    %1778 = vector.broadcast %1777 : f32 to vector<3x128xf32>
    %1779 = arith.mulf %1778, %1713 : vector<3x128xf32>
    %1780 = arith.addf %1776, %1779 : vector<3x128xf32>
    %c1_1153 = arith.constant 1 : index
    %c6_1154 = arith.constant 6 : index
    %1781 = memref.load %arg4[%c1_1153, %c6_1154] : memref<4x8xf32, #tpu.memory_space<smem>>
    %1782 = vector.broadcast %1781 : f32 to vector<3x128xf32>
    %1783 = arith.mulf %1782, %1714 : vector<3x128xf32>
    %1784 = arith.addf %1780, %1783 : vector<3x128xf32>
    %c1_1155 = arith.constant 1 : index
    %c7_1156 = arith.constant 7 : index
    %1785 = memref.load %arg4[%c1_1155, %c7_1156] : memref<4x8xf32, #tpu.memory_space<smem>>
    %1786 = vector.broadcast %1785 : f32 to vector<3x128xf32>
    %1787 = arith.mulf %1786, %1715 : vector<3x128xf32>
    %1788 = arith.addf %1784, %1787 : vector<3x128xf32>
    %1789 = vector.extract_strided_slice %18 {offsets = [1, 0, 0], sizes = [1, 5, 128], strides = [1, 1, 1]} : vector<4x5x128xf32> to vector<1x5x128xf32>
    %1790 = vector.shape_cast %1789 : vector<1x5x128xf32> to vector<5x128xf32>
    %1791 = vector.extract_strided_slice %1790 {offsets = [0, 0], sizes = [3, 128], strides = [1, 1]} : vector<5x128xf32> to vector<3x128xf32>
    %1792 = vector.extract_strided_slice %1790 {offsets = [1, 0], sizes = [3, 128], strides = [1, 1]} : vector<5x128xf32> to vector<3x128xf32>
    %c78_i32_1157 = arith.constant 78 : i32
    %1793 = tpu.dynamic_rotate %1791 by %c78_i32_1157 dim 1 : vector<3x128xf32>, i32 -> vector<3x128xf32>
    %c78_i32_1158 = arith.constant 78 : i32
    %1794 = tpu.dynamic_rotate %1792 by %c78_i32_1158 dim 1 : vector<3x128xf32>, i32 -> vector<3x128xf32>
    %1795 = arith.select %513, %1793, %1794 : vector<3x128xi1>, vector<3x128xf32>
    %1796 = arith.addf %1788, %1795 : vector<3x128xf32>
    %c0_1159 = arith.constant 0 : index
    %c1_1160 = arith.constant 1 : index
    %c0_1161 = arith.constant 0 : index
    %c0_1162 = arith.constant 0 : index
    %1797 = vector.load %arg5[%c0_1159, %c1_1160, %c0_1161, %c0_1162] : memref<1x4x3x128xf32, #tpu.memory_space<vmem>>, vector<1x1x3x128xf32>
    %1798 = vector.shape_cast %1797 : vector<1x1x3x128xf32> to vector<3x128xf32>
    %1799 = vector.shape_cast %1796 : vector<3x128xf32> to vector<1x1x3x128xf32>
    tpu.vector_store %arg5[%c0_1159, %c1_1160, %c0_1161, %c0_1162], %1799 {strides = array<i32>} : memref<1x4x3x128xf32, #tpu.memory_space<vmem>>, vector<1x1x3x128xf32>,
    %c2_1163 = arith.constant 2 : index
    %c0_1164 = arith.constant 0 : index
    %1800 = memref.load %arg4[%c2_1163, %c0_1164] : memref<4x8xf32, #tpu.memory_space<smem>>
    %1801 = vector.broadcast %1800 : f32 to vector<3x128xf32>
    %1802 = arith.mulf %1801, %1708 : vector<3x128xf32>
    %c2_1165 = arith.constant 2 : index
    %c1_1166 = arith.constant 1 : index
    %1803 = memref.load %arg4[%c2_1165, %c1_1166] : memref<4x8xf32, #tpu.memory_space<smem>>
    %1804 = vector.broadcast %1803 : f32 to vector<3x128xf32>
    %1805 = arith.mulf %1804, %1709 : vector<3x128xf32>
    %1806 = arith.addf %1802, %1805 : vector<3x128xf32>
    %c2_1167 = arith.constant 2 : index
    %c2_1168 = arith.constant 2 : index
    %1807 = memref.load %arg4[%c2_1167, %c2_1168] : memref<4x8xf32, #tpu.memory_space<smem>>
    %1808 = vector.broadcast %1807 : f32 to vector<3x128xf32>
    %1809 = arith.mulf %1808, %1710 : vector<3x128xf32>
    %1810 = arith.addf %1806, %1809 : vector<3x128xf32>
    %c2_1169 = arith.constant 2 : index
    %c3_1170 = arith.constant 3 : index
    %1811 = memref.load %arg4[%c2_1169, %c3_1170] : memref<4x8xf32, #tpu.memory_space<smem>>
    %1812 = vector.broadcast %1811 : f32 to vector<3x128xf32>
    %1813 = arith.mulf %1812, %1711 : vector<3x128xf32>
    %1814 = arith.addf %1810, %1813 : vector<3x128xf32>
    %c2_1171 = arith.constant 2 : index
    %c4_1172 = arith.constant 4 : index
    %1815 = memref.load %arg4[%c2_1171, %c4_1172] : memref<4x8xf32, #tpu.memory_space<smem>>
    %1816 = vector.broadcast %1815 : f32 to vector<3x128xf32>
    %1817 = arith.mulf %1816, %1712 : vector<3x128xf32>
    %1818 = arith.addf %1814, %1817 : vector<3x128xf32>
    %c2_1173 = arith.constant 2 : index
    %c5_1174 = arith.constant 5 : index
    %1819 = memref.load %arg4[%c2_1173, %c5_1174] : memref<4x8xf32, #tpu.memory_space<smem>>
    %1820 = vector.broadcast %1819 : f32 to vector<3x128xf32>
    %1821 = arith.mulf %1820, %1713 : vector<3x128xf32>
    %1822 = arith.addf %1818, %1821 : vector<3x128xf32>
    %c2_1175 = arith.constant 2 : index
    %c6_1176 = arith.constant 6 : index
    %1823 = memref.load %arg4[%c2_1175, %c6_1176] : memref<4x8xf32, #tpu.memory_space<smem>>
    %1824 = vector.broadcast %1823 : f32 to vector<3x128xf32>
    %1825 = arith.mulf %1824, %1714 : vector<3x128xf32>
    %1826 = arith.addf %1822, %1825 : vector<3x128xf32>
    %c2_1177 = arith.constant 2 : index
    %c7_1178 = arith.constant 7 : index
    %1827 = memref.load %arg4[%c2_1177, %c7_1178] : memref<4x8xf32, #tpu.memory_space<smem>>
    %1828 = vector.broadcast %1827 : f32 to vector<3x128xf32>
    %1829 = arith.mulf %1828, %1715 : vector<3x128xf32>
    %1830 = arith.addf %1826, %1829 : vector<3x128xf32>
    %1831 = vector.extract_strided_slice %18 {offsets = [2, 0, 0], sizes = [1, 5, 128], strides = [1, 1, 1]} : vector<4x5x128xf32> to vector<1x5x128xf32>
    %1832 = vector.shape_cast %1831 : vector<1x5x128xf32> to vector<5x128xf32>
    %1833 = vector.extract_strided_slice %1832 {offsets = [0, 0], sizes = [3, 128], strides = [1, 1]} : vector<5x128xf32> to vector<3x128xf32>
    %1834 = vector.extract_strided_slice %1832 {offsets = [1, 0], sizes = [3, 128], strides = [1, 1]} : vector<5x128xf32> to vector<3x128xf32>
    %c78_i32_1179 = arith.constant 78 : i32
    %1835 = tpu.dynamic_rotate %1833 by %c78_i32_1179 dim 1 : vector<3x128xf32>, i32 -> vector<3x128xf32>
    %c78_i32_1180 = arith.constant 78 : i32
    %1836 = tpu.dynamic_rotate %1834 by %c78_i32_1180 dim 1 : vector<3x128xf32>, i32 -> vector<3x128xf32>
    %1837 = arith.select %513, %1835, %1836 : vector<3x128xi1>, vector<3x128xf32>
    %1838 = arith.addf %1830, %1837 : vector<3x128xf32>
    %c0_1181 = arith.constant 0 : index
    %c2_1182 = arith.constant 2 : index
    %c0_1183 = arith.constant 0 : index
    %c0_1184 = arith.constant 0 : index
    %1839 = vector.load %arg5[%c0_1181, %c2_1182, %c0_1183, %c0_1184] : memref<1x4x3x128xf32, #tpu.memory_space<vmem>>, vector<1x1x3x128xf32>
    %1840 = vector.shape_cast %1839 : vector<1x1x3x128xf32> to vector<3x128xf32>
    %1841 = vector.shape_cast %1838 : vector<3x128xf32> to vector<1x1x3x128xf32>
    tpu.vector_store %arg5[%c0_1181, %c2_1182, %c0_1183, %c0_1184], %1841 {strides = array<i32>} : memref<1x4x3x128xf32, #tpu.memory_space<vmem>>, vector<1x1x3x128xf32>,
    %c3_1185 = arith.constant 3 : index
    %c0_1186 = arith.constant 0 : index
    %1842 = memref.load %arg4[%c3_1185, %c0_1186] : memref<4x8xf32, #tpu.memory_space<smem>>
    %1843 = vector.broadcast %1842 : f32 to vector<3x128xf32>
    %1844 = arith.mulf %1843, %1708 : vector<3x128xf32>
    %c3_1187 = arith.constant 3 : index
    %c1_1188 = arith.constant 1 : index
    %1845 = memref.load %arg4[%c3_1187, %c1_1188] : memref<4x8xf32, #tpu.memory_space<smem>>
    %1846 = vector.broadcast %1845 : f32 to vector<3x128xf32>
    %1847 = arith.mulf %1846, %1709 : vector<3x128xf32>
    %1848 = arith.addf %1844, %1847 : vector<3x128xf32>
    %c3_1189 = arith.constant 3 : index
    %c2_1190 = arith.constant 2 : index
    %1849 = memref.load %arg4[%c3_1189, %c2_1190] : memref<4x8xf32, #tpu.memory_space<smem>>
    %1850 = vector.broadcast %1849 : f32 to vector<3x128xf32>
    %1851 = arith.mulf %1850, %1710 : vector<3x128xf32>
    %1852 = arith.addf %1848, %1851 : vector<3x128xf32>
    %c3_1191 = arith.constant 3 : index
    %c3_1192 = arith.constant 3 : index
    %1853 = memref.load %arg4[%c3_1191, %c3_1192] : memref<4x8xf32, #tpu.memory_space<smem>>
    %1854 = vector.broadcast %1853 : f32 to vector<3x128xf32>
    %1855 = arith.mulf %1854, %1711 : vector<3x128xf32>
    %1856 = arith.addf %1852, %1855 : vector<3x128xf32>
    %c3_1193 = arith.constant 3 : index
    %c4_1194 = arith.constant 4 : index
    %1857 = memref.load %arg4[%c3_1193, %c4_1194] : memref<4x8xf32, #tpu.memory_space<smem>>
    %1858 = vector.broadcast %1857 : f32 to vector<3x128xf32>
    %1859 = arith.mulf %1858, %1712 : vector<3x128xf32>
    %1860 = arith.addf %1856, %1859 : vector<3x128xf32>
    %c3_1195 = arith.constant 3 : index
    %c5_1196 = arith.constant 5 : index
    %1861 = memref.load %arg4[%c3_1195, %c5_1196] : memref<4x8xf32, #tpu.memory_space<smem>>
    %1862 = vector.broadcast %1861 : f32 to vector<3x128xf32>
    %1863 = arith.mulf %1862, %1713 : vector<3x128xf32>
    %1864 = arith.addf %1860, %1863 : vector<3x128xf32>
    %c3_1197 = arith.constant 3 : index
    %c6_1198 = arith.constant 6 : index
    %1865 = memref.load %arg4[%c3_1197, %c6_1198] : memref<4x8xf32, #tpu.memory_space<smem>>
    %1866 = vector.broadcast %1865 : f32 to vector<3x128xf32>
    %1867 = arith.mulf %1866, %1714 : vector<3x128xf32>
    %1868 = arith.addf %1864, %1867 : vector<3x128xf32>
    %c3_1199 = arith.constant 3 : index
    %c7_1200 = arith.constant 7 : index
    %1869 = memref.load %arg4[%c3_1199, %c7_1200] : memref<4x8xf32, #tpu.memory_space<smem>>
    %1870 = vector.broadcast %1869 : f32 to vector<3x128xf32>
    %1871 = arith.mulf %1870, %1715 : vector<3x128xf32>
    %1872 = arith.addf %1868, %1871 : vector<3x128xf32>
    %1873 = vector.extract_strided_slice %18 {offsets = [3, 0, 0], sizes = [1, 5, 128], strides = [1, 1, 1]} : vector<4x5x128xf32> to vector<1x5x128xf32>
    %1874 = vector.shape_cast %1873 : vector<1x5x128xf32> to vector<5x128xf32>
    %1875 = vector.extract_strided_slice %1874 {offsets = [0, 0], sizes = [3, 128], strides = [1, 1]} : vector<5x128xf32> to vector<3x128xf32>
    %1876 = vector.extract_strided_slice %1874 {offsets = [1, 0], sizes = [3, 128], strides = [1, 1]} : vector<5x128xf32> to vector<3x128xf32>
    %c78_i32_1201 = arith.constant 78 : i32
    %1877 = tpu.dynamic_rotate %1875 by %c78_i32_1201 dim 1 : vector<3x128xf32>, i32 -> vector<3x128xf32>
    %c78_i32_1202 = arith.constant 78 : i32
    %1878 = tpu.dynamic_rotate %1876 by %c78_i32_1202 dim 1 : vector<3x128xf32>, i32 -> vector<3x128xf32>
    %1879 = arith.select %513, %1877, %1878 : vector<3x128xi1>, vector<3x128xf32>
    %1880 = arith.addf %1872, %1879 : vector<3x128xf32>
    %c0_1203 = arith.constant 0 : index
    %c3_1204 = arith.constant 3 : index
    %c0_1205 = arith.constant 0 : index
    %c0_1206 = arith.constant 0 : index
    %1881 = vector.load %arg5[%c0_1203, %c3_1204, %c0_1205, %c0_1206] : memref<1x4x3x128xf32, #tpu.memory_space<vmem>>, vector<1x1x3x128xf32>
    %1882 = vector.shape_cast %1881 : vector<1x1x3x128xf32> to vector<3x128xf32>
    %1883 = vector.shape_cast %1880 : vector<3x128xf32> to vector<1x1x3x128xf32>
    tpu.vector_store %arg5[%c0_1203, %c3_1204, %c0_1205, %c0_1206], %1883 {strides = array<i32>} : memref<1x4x3x128xf32, #tpu.memory_space<vmem>>, vector<1x1x3x128xf32>,
    return
  }
  func.func @transform_1(%arg0: i32, %arg1: i32) -> (i32, i32) {
    %c0_i32 = arith.constant 0 : i32
    %c0_i32_0 = arith.constant 0 : i32
    %c0_i32_1 = arith.constant 0 : i32
    return %c0_i32, %c0_i32_0 : i32, i32
  }
  func.func @transform_2(%arg0: i32, %arg1: i32) -> (i32, i32) {
    %c0_i32 = arith.constant 0 : i32
    %c0_i32_0 = arith.constant 0 : i32
    %c0_i32_1 = arith.constant 0 : i32
    return %c0_i32, %c0_i32_0 : i32, i32
  }
  func.func @transform_3(%arg0: i32, %arg1: i32) -> (i32, i32, i32, i32) {
    %c0_i32 = arith.constant 0 : i32
    %c0_i32_0 = arith.constant 0 : i32
    %c0_i32_1 = arith.constant 0 : i32
    return %arg0, %c0_i32, %arg1, %c0_i32_0 : i32, i32, i32, i32
  }
}

</mosaic_0001>

<llo_original>
// kernel: tpu_custom_call.1
$region0: #{tpu_custom_call.1}
  #allocation0 [shape = 'u32[]', space=smem, size = 0x4, offset = 0x4, fixed_abs, tag = 'smem constant byte address 0x4 - core index']
  #allocation1 [shape = 'u32[144,128]{1,0:T(1,128)}', space=vmem, size = 0x12000, scoped, tag = 'internal scratch']
  #allocation2 [shape = 'f32[2,4,5,128]{3,2,1,0:T(8,128)}', space=vmem, size = 0x8000, scoped, tag = 'scratch operand']
  #allocation3 [shape = 'f32[8,9,3,128]{3,2,1,0:T(4,128)}', space=vmem, size = 0x24000, scoped, tag = 'scratch operand']
  #allocation4 [shape = 's32[2]{0}', space=sflag, size = 0x8, scoped, tag = 'scratch operand']
  #allocation9 [shape = 's32[]', space=sflag, size = 0x4, offset = 0, fixed_abs, tag = 'sflag constant byte address 0x0 - dummy sync flag']
  #allocation10 [shape = 's32[]', space=sflag, size = 0x4, offset = 0, fixed_abs, tag = 'sflag constant byte address 0x0 - dummy sync flag']
  %s0 = inlined_call_operand.vmem [shape: f32[2,4,5,128], index: 0, kind: input, shape index: {}]
  %s1 = inlined_call_operand.vmem [shape: f32[8,4], index: 1, kind: input, shape index: {}]
  %s2 = inlined_call_operand.vmem [shape: f32[4,8], index: 2, kind: input, shape index: {}]
  %s3 = inlined_call_operand.vmem [shape: f32[2,4,3,128], index: 3, kind: output, shape index: {}]
  %s4 = sld [smem:[#allocation0]]
  $region131: #{tpu_custom_call.1} parent=0
    _
  %s6 = ssub.s32 1, %s4
  %s7 = scalar_select 0, %s6, %s4
  $region1: #{tpu_custom_call.1} parent=0
    #allocation5 [shape = 'u8[4096]{0}', space=smem, size = 0x1000, scoped, tag = 'input window, operand 1, single buffered']
    #allocation6 [shape = 's32[2]{0}', space=sflag, size = 0x8, scoped, tag = 'scoped memory for tpu_custom_call.1']
    #allocation7 [shape = 'u8[2048]{0}', space=smem, size = 0x800, scoped, tag = 'input window, operand 2, single buffered']
    #allocation8 [shape = 's32[1]{0}', space=sflag, size = 0x4, scoped, tag = 'scoped memory for tpu_custom_call.1']
    %8 = vsyncpa [#allocation6], 0
    %9 = vsyncpa [#allocation8], 0
    loop: start=0, step=1, limit=4
    $region2: #{tpu_custom_call.1} parent=1 // loop_pre_header
      _
    $region3: #{tpu_custom_call.1} parent=1 // loop_header
      %s11 = sphi 0, %s15
      %p12 = scmp.ge.s32.totalorder %s11, 4
      %s18 = sphi 0, %s30
      %s19 = sphi 0, %s26
      %s20 = sphi 0, %s18
      %s21 = sphi 0, %s19
      %s22 = sphi 0, %s20
      %s23 = sphi 0, %s21
      %s31 = sphi 0, %s31
      %s33 = sphi 0, %s31
      %s34 = sphi 0, %s33
      %s48 = sphi 0, %s34
      %s52 = sphi 0, %s52
      %s54 = sphi 0, %s52
      %s55 = sphi 0, %s54
      %s69 = sphi 0, %s55
      %s77 = sphi 0, %s79
      %s80 = sphi 0, %s77
      %s81 = sphi 0, %s80
      %s97 = sphi 0, %s81
    $region4: #{tpu_custom_call.1} parent=1 // loop_header_branch
      %14 = sbr.rel (%p12) target = $region8
    $region5: #{tpu_custom_call.1} parent=1 // loop_body
      %s16 = ssub.s32 %s11, 1
      %s17 = ssub.s32 %s11, 2
      %s24 = sadd.s32 1, %s19
      %p25 = scmp.ge.s32.totalorder %s24, 1
      %s26 = scalar_select %p25, 0, %s24
      %s27 = sadd.s32 1, %s18
      %s28 = scalar_select %p25, %s27, %s18
      %p29 = scmp.ge.s32.totalorder %s28, 2
      %s30 = scalar_select %p29, 0, %s28
      %s32 = sadd.s32 %s31, 1
      %p35 = scmp.eq.s32.totalorder %s11, 1
      %p36 = scmp.ne.s32.totalorder %s31, %s33
      %p37 = scmp.eq.s32.totalorder %s11, 0
      %p38 = por %p36, %p37
      %p39 = scmp.ne.s32.totalorder %s31, %s33
      %p40 = scmp.eq.s32.totalorder %s16, 1
      %p41 = por %p39, %p40
      %p42 = scmp.ne.s32.totalorder %s33, %s34
      %p43 = scmp.eq.s32.totalorder %s16, 0
      %p44 = por %p42, %p43
      %p45 = scmp.ne.s32.totalorder %s33, %s34
      %p46 = scmp.eq.s32.totalorder %s17, 1
      %p47 = por %p45, %p46
      %p49 = scmp.ne.s32.totalorder %s34, %s48
      %p50 = scmp.eq.s32.totalorder %s17, 0
      %p51 = por %p49, %p50
      %s53 = sadd.s32 %s52, 1
      %p56 = scmp.eq.s32.totalorder %s11, 1
      %p57 = scmp.ne.s32.totalorder %s52, %s54
      %p58 = scmp.eq.s32.totalorder %s11, 0
      %p59 = por %p57, %p58
      %p60 = scmp.ne.s32.totalorder %s52, %s54
      %p61 = scmp.eq.s32.totalorder %s16, 1
      %p62 = por %p60, %p61
      %p63 = scmp.ne.s32.totalorder %s54, %s55
      %p64 = scmp.eq.s32.totalorder %s16, 0
      %p65 = por %p63, %p64
      %p66 = scmp.ne.s32.totalorder %s54, %s55
      %p67 = scmp.eq.s32.totalorder %s17, 1
      %p68 = por %p66, %p67
      %p70 = scmp.ne.s32.totalorder %s55, %s69
      %p71 = scmp.eq.s32.totalorder %s17, 0
      %p72 = por %p70, %p71
      %s73 = ssub.s32 %s18, %s30
      %s74 = ssub.s32 %s19, %s26
      %s75 = sor.u32 %s73, %s74
      %p76 = scmp.eq.s32.totalorder %s75, 0
      %s78 = sadd.s32 %s77, 1
      %s79 = scalar_select %p76, %s77, %s78
      %p82 = pneg %p76
      %p83 = scmp.eq.s32.totalorder %s11, 1
      %p84 = por %p82, %p83
      %p85 = scmp.ne.s32.totalorder %s77, %s80
      %p86 = scmp.eq.s32.totalorder %s11, 0
      %p87 = por %p85, %p86
      %p88 = scmp.ne.s32.totalorder %s77, %s80
      %p89 = scmp.eq.s32.totalorder %s16, 1
      %p90 = por %p88, %p89
      %p91 = scmp.ne.s32.totalorder %s80, %s81
      %p92 = scmp.eq.s32.totalorder %s16, 0
      %p93 = por %p91, %p92
      %p94 = scmp.ne.s32.totalorder %s80, %s81
      %p95 = scmp.eq.s32.totalorder %s17, 1
      %p96 = por %p94, %p95
      %p98 = scmp.ne.s32.totalorder %s81, %s97
      %p99 = scmp.eq.s32.totalorder %s17, 0
      %p100 = por %p98, %p99
      %p101 = scmp.le.s32.totalorder 1, %s11
      %p102 = scmp.lt.s32.totalorder %s11, 3
      %p103 = pnand %p101, %p102
      %p104 = pneg %p103
      // Predicated region
      $region9: #{tpu_custom_call.1} parent=5 // pred_check
        _
      $region10: #{tpu_custom_call.1} parent=5 // pred_check_branch
        %106 = sbr.rel (%p103) target = $region12
      $region11: #{tpu_custom_call.1} parent=5 // pred_region
        %s107 = ssub.s32 %s11, 1
        // Predicated region
        $region13: #{tpu_custom_call.1} parent=11 // pred_check
          %p108 = pneg %p44
        $region14: #{tpu_custom_call.1} parent=11 // pred_check_branch
          %110 = sbr.rel (%p108) target = $region16
        $region15: #{tpu_custom_call.1} parent=11 // pred_region
          %s112 = ssub.s32 128, 128
          %113 = vsyncadd [#allocation6], %s112
          %s115 = sshll.u32 %s1, 4
          %s116 = int_to_ptr.vmem [resolvable:$true] %s115
          %118 = dma.vmem_to_smem %s116, 128, [#allocation5], [#allocation6]
        $region16: #{tpu_custom_call.1} parent=11 // pred_fallthru
          _
        // Predicated region
        $region17: #{tpu_custom_call.1} parent=11 // pred_check
          %p119 = pneg %p65
        $region18: #{tpu_custom_call.1} parent=11 // pred_check_branch
          %121 = sbr.rel (%p119) target = $region20
        $region19: #{tpu_custom_call.1} parent=11 // pred_region
          %s123 = ssub.s32 64, 64
          %124 = vsyncadd [#allocation8], %s123
          %s126 = sshll.u32 %s2, 4
          %s127 = int_to_ptr.vmem [resolvable:$true] %s126
          %129 = dma.vmem_to_smem %s127, 64, [#allocation7], [#allocation8]
        $region20: #{tpu_custom_call.1} parent=11 // pred_fallthru
          _
      $region12: #{tpu_custom_call.1} parent=5 // pred_fallthru
        _
      %p130 = scmp.lt.s32.totalorder %s11, 2
      // Predicated region
      $region21: #{tpu_custom_call.1} parent=5 // pred_check
        %p131 = pneg %p130
      $region22: #{tpu_custom_call.1} parent=5 // pred_check_branch
        %133 = sbr.rel (%p131) target = $region24
      $region23: #{tpu_custom_call.1} parent=5 // pred_region
        _
      $region24: #{tpu_custom_call.1} parent=5 // pred_fallthru
        _
      %p134 = scmp.le.s32.totalorder 1, %s11
      %p135 = scmp.lt.s32.totalorder %s11, 3
      %p136 = pnand %p134, %p135
      %p137 = pneg %p136
      // Predicated region
      $region25: #{tpu_custom_call.1} parent=5 // pred_check
        _
      $region26: #{tpu_custom_call.1} parent=5 // pred_check_branch
        %139 = sbr.rel (%p136) target = $region28
      $region27: #{tpu_custom_call.1} parent=5 // pred_region
        %s140 = ssub.s32 %s11, 1
        // Predicated region
        $region29: #{tpu_custom_call.1} parent=27 // pred_check
          %p141 = pneg %p44
        $region30: #{tpu_custom_call.1} parent=27 // pred_check_branch
          %143 = sbr.rel (%p141) target = $region32
        $region31: #{tpu_custom_call.1} parent=27 // pred_region
          %144 = dma.done [#allocation6], 128
        $region32: #{tpu_custom_call.1} parent=27 // pred_fallthru
          _
        // Predicated region
        $region33: #{tpu_custom_call.1} parent=27 // pred_check
          %p145 = pneg %p65
        $region34: #{tpu_custom_call.1} parent=27 // pred_check_branch
          %147 = sbr.rel (%p145) target = $region36
        $region35: #{tpu_custom_call.1} parent=27 // pred_region
          %148 = dma.done [#allocation8], 64
        $region36: #{tpu_custom_call.1} parent=27 // pred_fallthru
          _
        %149 = sfence
        %p150 = pneg %p44
        %p151 = pneg %p41
        %p152 = pneg %p65
        %p153 = pneg %p62
        %p154 = pneg %p93
        %p155 = pneg %p90
        %p156 = scmp.lt.s32.totalorder %s20, 1
        %s157 = scalar_select %p156, %s20, 1
        %p158 = scmp.lt.s32.totalorder %s21, 0
        %s159 = scalar_select %p158, %s21, 0
        %s160 = smul.addr %s157, 4
        %s161 = sadd.s32 %s159, %s160
        %s162 = smul.addr %s161, 4
        %s163 = scalar_lea.vmem %s3, %s162
        %p164 = scmp.lt.s32.totalorder %s20, 1
        %s165 = scalar_select %p164, %s20, 1
        %p166 = scmp.lt.s32.totalorder %s21, 0
        %s167 = scalar_select %p166, %s21, 0
        %s168 = smul.addr %s165, 4
        %s169 = sadd.s32 %s167, %s168
        %s170 = smul.addr %s169, 4
        %s171 = scalar_lea.vmem %s3, %s170
        %p172 = scmp.lt.s32.totalorder %s21, 0
        %s173 = ssub.s32 0, %s21
        %s174 = scalar_select %p172, %s173, %s21
        %s175 = sand.u32 %s174, 1
        %s176 = ssub.s32 0, %s175
        %s177 = scalar_select %p172, %s176, %s175
        %p178 = scmp.eq.s32.totalorder %s21, 0
        // Predicated region
        $region37: #{tpu_custom_call.1} parent=27 // pred_check
          %p179 = pneg %p178
        $region38: #{tpu_custom_call.1} parent=27 // pred_check_branch
          %181 = sbr.rel (%p179) target = $region40
        $region39: #{tpu_custom_call.1} parent=27 // pred_region
          %s182 = smul.u32 %s21, 3
          %s183 = smul.u32 %s20, 32
          %s184 = sadd.s32 %s182, %s183
          %s185 = scalar_lea.vmem %s0, %s184
          %s186 = smul.u32 %s177, 32
          %s187 = scalar_lea.vmem [#allocation2], %s186
          %s188 = scalar_lea.sflag [#allocation4], %s177
          %p190 = scmp.lt.u32.totalorder 5, 8
          %p191 = pneg %p190
          // Predicated region
          $region41: #{tpu_custom_call.1} parent=39 // pred_check
            _
          $region42: #{tpu_custom_call.1} parent=39 // pred_check_branch
            %193 = sbr.rel (%p190) target = $region44
          $region43: #{tpu_custom_call.1} parent=39 // pred_region
            %s214 = sand.u32 5, 7
            %p215 = scmp.eq.s32.totalorder %s214, 0
            %p216 = pneg %p215
            // Predicated region
            $region56: #{tpu_custom_call.1} parent=43 // pred_check
              _
            $region57: #{tpu_custom_call.1} parent=43 // pred_check_branch
              %218 = sbr.rel (%p215) target = $region59
            $region58: #{tpu_custom_call.1} parent=43 // pred_region
              %s219 = sand.u32 5, 7
              %s220 = ssub.s32 5, %s219
              %s221 = scalar_lea.vmem %s185, %s220
              %s222 = ssub.s32 5, %s219
              %s223 = scalar_lea.vmem %s187, %s222 [#allocation2]
              loop: start=0, step=1, limit=1
              $region60: #{tpu_custom_call.1} parent=58 // loop_pre_header
                _
              $region61: #{tpu_custom_call.1} parent=58 // loop_header
                %s225 = sphi 0, %s229
                %p226 = scmp.ge.s32.totalorder %s225, 1
                %s230 = sphi %s185, %s185
                %s231 = sphi %s187, %s187
              $region62: #{tpu_custom_call.1} parent=58 // loop_header_branch
                %228 = sbr.rel (%p226) target = $region66
              $region63: #{tpu_custom_call.1} parent=58 // loop_body
                _
              $region64: #{tpu_custom_call.1} parent=58 // loop_footer
                %s229 = sadd.s32 1, %s225
              $region65: #{tpu_custom_call.1} parent=58 // loop_footer_branch
                %224 = sbr.rel target = $region61
              $region66: #{tpu_custom_call.1} parent=58 // loop_exit
                _
              %s232 = sshllo.u32 0, %s219
              loop: start=0, step=1, limit=1
              $region67: #{tpu_custom_call.1} parent=58 // loop_pre_header
                _
              $region68: #{tpu_custom_call.1} parent=58 // loop_header
                %s234 = sphi 0, %s238
                %p235 = scmp.ge.s32.totalorder %s234, 1
                %s239 = sphi %s221, %s221
                %s240 = sphi %s223, %s223
              $region69: #{tpu_custom_call.1} parent=58 // loop_header_branch
                %237 = sbr.rel (%p235) target = $region73
              $region70: #{tpu_custom_call.1} parent=58 // loop_body
                %v241 = vld [vmem:[%s239] sm:%s232]
                %242 = vst [vmem:[%s240] sm:%s232] %v241
                %v243 = vld [vmem:[%s239 + $0x8] sm:%s232]
                %244 = vst [vmem:[%s240 + $0x8] sm:%s232] %v243
                %v245 = vld [vmem:[%s239 + $0x10] sm:%s232]
                %246 = vst [vmem:[%s240 + $0x10] sm:%s232] %v245
                %v247 = vld [vmem:[%s239 + $0x18] sm:%s232]
                %248 = vst [vmem:[%s240 + $0x18] sm:%s232] %v247
              $region71: #{tpu_custom_call.1} parent=58 // loop_footer
                %s238 = sadd.s32 1, %s234
              $region72: #{tpu_custom_call.1} parent=58 // loop_footer_branch
                %233 = sbr.rel target = $region68
              $region73: #{tpu_custom_call.1} parent=58 // loop_exit
                _
            $region59: #{tpu_custom_call.1} parent=43 // pred_fallthru
              _
          $region44: #{tpu_custom_call.1} parent=39 // pred_fallthru
            _
          // Predicated region
          $region45: #{tpu_custom_call.1} parent=39 // pred_check
            %p194 = pneg %p190
          $region46: #{tpu_custom_call.1} parent=39 // pred_check_branch
            %196 = sbr.rel (%p194) target = $region48
          $region47: #{tpu_custom_call.1} parent=39 // pred_region
            %s197 = sshllo.u32 0, 5
            loop: start=0, step=1, limit=1
            $region49: #{tpu_custom_call.1} parent=47 // loop_pre_header
              _
            $region50: #{tpu_custom_call.1} parent=47 // loop_header
              %s199 = sphi 0, %s203
              %p200 = scmp.ge.s32.totalorder %s199, 1
              %s204 = sphi %s185, %s185
              %s205 = sphi %s187, %s187
            $region51: #{tpu_custom_call.1} parent=47 // loop_header_branch
              %202 = sbr.rel (%p200) target = $region55
            $region52: #{tpu_custom_call.1} parent=47 // loop_body
              %v206 = vld [vmem:[%s204] sm:%s197]
              %207 = vst [vmem:[%s205] sm:%s197] %v206
              %v208 = vld [vmem:[%s204 + $0x8] sm:%s197]
              %209 = vst [vmem:[%s205 + $0x8] sm:%s197] %v208
              %v210 = vld [vmem:[%s204 + $0x10] sm:%s197]
              %211 = vst [vmem:[%s205 + $0x10] sm:%s197] %v210
              %v212 = vld [vmem:[%s204 + $0x18] sm:%s197]
              %213 = vst [vmem:[%s205 + $0x18] sm:%s197] %v212
            $region53: #{tpu_custom_call.1} parent=47 // loop_footer
              %s203 = sadd.s32 1, %s199
            $region54: #{tpu_custom_call.1} parent=47 // loop_footer_branch
              %198 = sbr.rel target = $region50
            $region55: #{tpu_custom_call.1} parent=47 // loop_exit
              _
          $region48: #{tpu_custom_call.1} parent=39 // pred_fallthru
            _
          // Predicated region
          $region74: #{tpu_custom_call.1} parent=39 // pred_check
            _
          $region75: #{tpu_custom_call.1} parent=39 // pred_check_branch
            %251 = sbr.rel (0) target = $region77
          $region76: #{tpu_custom_call.1} parent=39 // pred_region
            %252 = vsyncadd %s188, 320
          $region77: #{tpu_custom_call.1} parent=39 // pred_fallthru
            _
        $region40: #{tpu_custom_call.1} parent=27 // pred_fallthru
          _
        %s253 = smul.u32 %s21, 3
        %s254 = smul.u32 %s177, 32
        %s255 = scalar_lea.vmem [#allocation2], %s254
        %s256 = scalar_lea.sflag [#allocation4], %s177
        %s257 = smul.u32 4, 5
        %s258 = smul.u32 %s257, 1
        %s259 = sshll.u32 %s258, 4
        %260 = dma.done %s256, %s259
        %s261 = sadd.s32 %s21, 1
        %p262 = scmp.lt.s32.totalorder %s261, 1
        // Predicated region
        $region78: #{tpu_custom_call.1} parent=27 // pred_check
          %p263 = pneg %p262
        $region79: #{tpu_custom_call.1} parent=27 // pred_check_branch
          %265 = sbr.rel (%p263) target = $region81
        $region80: #{tpu_custom_call.1} parent=27 // pred_region
          %s266 = ssub.s32 1, %s177
          %s267 = smul.u32 %s261, 3
          %s268 = smul.u32 %s20, 32
          %s269 = sadd.s32 %s267, %s268
          %s270 = scalar_lea.vmem %s0, %s269
          %s271 = smul.u32 %s266, 32
          %s272 = scalar_lea.vmem [#allocation2], %s271
          %s273 = scalar_lea.sflag [#allocation4], %s266
          %p275 = scmp.lt.u32.totalorder 5, 8
          %p276 = pneg %p275
          // Predicated region
          $region82: #{tpu_custom_call.1} parent=80 // pred_check
            _
          $region83: #{tpu_custom_call.1} parent=80 // pred_check_branch
            %278 = sbr.rel (%p275) target = $region85
          $region84: #{tpu_custom_call.1} parent=80 // pred_region
            %s299 = sand.u32 5, 7
            %p300 = scmp.eq.s32.totalorder %s299, 0
            %p301 = pneg %p300
            // Predicated region
            $region97: #{tpu_custom_call.1} parent=84 // pred_check
              _
            $region98: #{tpu_custom_call.1} parent=84 // pred_check_branch
              %303 = sbr.rel (%p300) target = $region100
            $region99: #{tpu_custom_call.1} parent=84 // pred_region
              %s304 = sand.u32 5, 7
              %s305 = ssub.s32 5, %s304
              %s306 = scalar_lea.vmem %s270, %s305
              %s307 = ssub.s32 5, %s304
              %s308 = scalar_lea.vmem %s272, %s307 [#allocation2]
              loop: start=0, step=1, limit=1
              $region101: #{tpu_custom_call.1} parent=99 // loop_pre_header
                _
              $region102: #{tpu_custom_call.1} parent=99 // loop_header
                %s310 = sphi 0, %s314
                %p311 = scmp.ge.s32.totalorder %s310, 1
                %s315 = sphi %s270, %s270
                %s316 = sphi %s272, %s272
              $region103: #{tpu_custom_call.1} parent=99 // loop_header_branch
                %313 = sbr.rel (%p311) target = $region107
              $region104: #{tpu_custom_call.1} parent=99 // loop_body
                _
              $region105: #{tpu_custom_call.1} parent=99 // loop_footer
                %s314 = sadd.s32 1, %s310
              $region106: #{tpu_custom_call.1} parent=99 // loop_footer_branch
                %309 = sbr.rel target = $region102
              $region107: #{tpu_custom_call.1} parent=99 // loop_exit
                _
              %s317 = sshllo.u32 0, %s304
              loop: start=0, step=1, limit=1
              $region108: #{tpu_custom_call.1} parent=99 // loop_pre_header
                _
              $region109: #{tpu_custom_call.1} parent=99 // loop_header
                %s319 = sphi 0, %s323
                %p320 = scmp.ge.s32.totalorder %s319, 1
                %s324 = sphi %s306, %s306
                %s325 = sphi %s308, %s308
              $region110: #{tpu_custom_call.1} parent=99 // loop_header_branch
                %322 = sbr.rel (%p320) target = $region114
              $region111: #{tpu_custom_call.1} parent=99 // loop_body
                %v326 = vld [vmem:[%s324] sm:%s317]
                %327 = vst [vmem:[%s325] sm:%s317] %v326
                %v328 = vld [vmem:[%s324 + $0x8] sm:%s317]
                %329 = vst [vmem:[%s325 + $0x8] sm:%s317] %v328
                %v330 = vld [vmem:[%s324 + $0x10] sm:%s317]
                %331 = vst [vmem:[%s325 + $0x10] sm:%s317] %v330
                %v332 = vld [vmem:[%s324 + $0x18] sm:%s317]
                %333 = vst [vmem:[%s325 + $0x18] sm:%s317] %v332
              $region112: #{tpu_custom_call.1} parent=99 // loop_footer
                %s323 = sadd.s32 1, %s319
              $region113: #{tpu_custom_call.1} parent=99 // loop_footer_branch
                %318 = sbr.rel target = $region109
              $region114: #{tpu_custom_call.1} parent=99 // loop_exit
                _
            $region100: #{tpu_custom_call.1} parent=84 // pred_fallthru
              _
          $region85: #{tpu_custom_call.1} parent=80 // pred_fallthru
            _
          // Predicated region
          $region86: #{tpu_custom_call.1} parent=80 // pred_check
            %p279 = pneg %p275
          $region87: #{tpu_custom_call.1} parent=80 // pred_check_branch
            %281 = sbr.rel (%p279) target = $region89
          $region88: #{tpu_custom_call.1} parent=80 // pred_region
            %s282 = sshllo.u32 0, 5
            loop: start=0, step=1, limit=1
            $region90: #{tpu_custom_call.1} parent=88 // loop_pre_header
              _
            $region91: #{tpu_custom_call.1} parent=88 // loop_header
              %s284 = sphi 0, %s288
              %p285 = scmp.ge.s32.totalorder %s284, 1
              %s289 = sphi %s270, %s270
              %s290 = sphi %s272, %s272
            $region92: #{tpu_custom_call.1} parent=88 // loop_header_branch
              %287 = sbr.rel (%p285) target = $region96
            $region93: #{tpu_custom_call.1} parent=88 // loop_body
              %v291 = vld [vmem:[%s289] sm:%s282]
              %292 = vst [vmem:[%s290] sm:%s282] %v291
              %v293 = vld [vmem:[%s289 + $0x8] sm:%s282]
              %294 = vst [vmem:[%s290 + $0x8] sm:%s282] %v293
              %v295 = vld [vmem:[%s289 + $0x10] sm:%s282]
              %296 = vst [vmem:[%s290 + $0x10] sm:%s282] %v295
              %v297 = vld [vmem:[%s289 + $0x18] sm:%s282]
              %298 = vst [vmem:[%s290 + $0x18] sm:%s282] %v297
            $region94: #{tpu_custom_call.1} parent=88 // loop_footer
              %s288 = sadd.s32 1, %s284
            $region95: #{tpu_custom_call.1} parent=88 // loop_footer_branch
              %283 = sbr.rel target = $region91
            $region96: #{tpu_custom_call.1} parent=88 // loop_exit
              _
          $region89: #{tpu_custom_call.1} parent=80 // pred_fallthru
            _
          // Predicated region
          $region115: #{tpu_custom_call.1} parent=80 // pred_check
            _
          $region116: #{tpu_custom_call.1} parent=80 // pred_check_branch
            %336 = sbr.rel (0) target = $region118
          $region117: #{tpu_custom_call.1} parent=80 // pred_region
            %337 = vsyncadd %s273, 320
          $region118: #{tpu_custom_call.1} parent=80 // pred_fallthru
            _
        $region81: #{tpu_custom_call.1} parent=27 // pred_fallthru
          _
        %v338 = vld [vmem:[%s255] sm:$0x1f]
        %v339 = vld [vmem:[%s255 + $0x8] sm:$0x1f]
        %v340 = vld [vmem:[%s255 + $0x10] sm:$0x1f]
        %v341 = vld [vmem:[%s255 + $0x18] sm:$0x1f]
        %s342 = sld [smem:[#allocation5]]
        %v343 = vstv %s342
        %v344 = vmul.f32 %v343, %v338
        %s345 = sld [smem:[#allocation5 + $0x1]]
        %v346 = vstv %s345
        %v347 = vmul.f32 %v346, %v339
        %v348 = vadd.f32 %v344, %v347
        %s349 = sld [smem:[#allocation5 + $0x2]]
        %v350 = vstv %s349
        %v351 = vmul.f32 %v350, %v340
        %v352 = vadd.f32 %v348, %v351
        %s353 = sld [smem:[#allocation5 + $0x3]]
        %v354 = vstv %s353
        %v355 = vmul.f32 %v354, %v341
        %v356 = vadd.f32 %v352, %v355
        %v357 = vmax.f32 %v356, 0.0
        %s358 = sld [smem:[#allocation5 + $0x80]]
        %v359 = vstv %s358
        %v360 = vmul.f32 %v359, %v338
        %s361 = sld [smem:[#allocation5 + $0x81]]
        %v362 = vstv %s361
        %v363 = vmul.f32 %v362, %v339
        %v364 = vadd.f32 %v360, %v363
        %s365 = sld [smem:[#allocation5 + $0x82]]
        %v366 = vstv %s365
        %v367 = vmul.f32 %v366, %v340
        %v368 = vadd.f32 %v364, %v367
        %s369 = sld [smem:[#allocation5 + $0x83]]
        %v370 = vstv %s369
        %v371 = vmul.f32 %v370, %v341
        %v372 = vadd.f32 %v368, %v371
        %v373 = vmax.f32 %v372, 0.0
        %s374 = sld [smem:[#allocation5 + $0x100]]
        %v375 = vstv %s374
        %v376 = vmul.f32 %v375, %v338
        %s377 = sld [smem:[#allocation5 + $0x101]]
        %v378 = vstv %s377
        %v379 = vmul.f32 %v378, %v339
        %v380 = vadd.f32 %v376, %v379
        %s381 = sld [smem:[#allocation5 + $0x102]]
        %v382 = vstv %s381
        %v383 = vmul.f32 %v382, %v340
        %v384 = vadd.f32 %v380, %v383
        %s385 = sld [smem:[#allocation5 + $0x103]]
        %v386 = vstv %s385
        %v387 = vmul.f32 %v386, %v341
        %v388 = vadd.f32 %v384, %v387
        %v389 = vmax.f32 %v388, 0.0
        %s390 = sld [smem:[#allocation5 + $0x180]]
        %v391 = vstv %s390
        %v392 = vmul.f32 %v391, %v338
        %s393 = sld [smem:[#allocation5 + $0x181]]
        %v394 = vstv %s393
        %v395 = vmul.f32 %v394, %v339
        %v396 = vadd.f32 %v392, %v395
        %s397 = sld [smem:[#allocation5 + $0x182]]
        %v398 = vstv %s397
        %v399 = vmul.f32 %v398, %v340
        %v400 = vadd.f32 %v396, %v399
        %s401 = sld [smem:[#allocation5 + $0x183]]
        %v402 = vstv %s401
        %v403 = vmul.f32 %v402, %v341
        %v404 = vadd.f32 %v400, %v403
        %v405 = vmax.f32 %v404, 0.0
        %s406 = sld [smem:[#allocation5 + $0x200]]
        %v407 = vstv %s406
        %v408 = vmul.f32 %v407, %v338
        %s409 = sld [smem:[#allocation5 + $0x201]]
        %v410 = vstv %s409
        %v411 = vmul.f32 %v410, %v339
        %v412 = vadd.f32 %v408, %v411
        %s413 = sld [smem:[#allocation5 + $0x202]]
        %v414 = vstv %s413
        %v415 = vmul.f32 %v414, %v340
        %v416 = vadd.f32 %v412, %v415
        %s417 = sld [smem:[#allocation5 + $0x203]]
        %v418 = vstv %s417
        %v419 = vmul.f32 %v418, %v341
        %v420 = vadd.f32 %v416, %v419
        %v421 = vmax.f32 %v420, 0.0
        %s422 = sld [smem:[#allocation5 + $0x280]]
        %v423 = vstv %s422
        %v424 = vmul.f32 %v423, %v338
        %s425 = sld [smem:[#allocation5 + $0x281]]
        %v426 = vstv %s425
        %v427 = vmul.f32 %v426, %v339
        %v428 = vadd.f32 %v424, %v427
        %s429 = sld [smem:[#allocation5 + $0x282]]
        %v430 = vstv %s429
        %v431 = vmul.f32 %v430, %v340
        %v432 = vadd.f32 %v428, %v431
        %s433 = sld [smem:[#allocation5 + $0x283]]
        %v434 = vstv %s433
        %v435 = vmul.f32 %v434, %v341
        %v436 = vadd.f32 %v432, %v435
        %v437 = vmax.f32 %v436, 0.0
        %s438 = sld [smem:[#allocation5 + $0x300]]
        %v439 = vstv %s438
        %v440 = vmul.f32 %v439, %v338
        %s441 = sld [smem:[#allocation5 + $0x301]]
        %v442 = vstv %s441
        %v443 = vmul.f32 %v442, %v339
        %v444 = vadd.f32 %v440, %v443
        %s445 = sld [smem:[#allocation5 + $0x302]]
        %v446 = vstv %s445
        %v447 = vmul.f32 %v446, %v340
        %v448 = vadd.f32 %v444, %v447
        %s449 = sld [smem:[#allocation5 + $0x303]]
        %v450 = vstv %s449
        %v451 = vmul.f32 %v450, %v341
        %v452 = vadd.f32 %v448, %v451
        %v453 = vmax.f32 %v452, 0.0
        %s454 = sld [smem:[#allocation5 + $0x380]]
        %v455 = vstv %s454
        %v456 = vmul.f32 %v455, %v338
        %s457 = sld [smem:[#allocation5 + $0x381]]
        %v458 = vstv %s457
        %v459 = vmul.f32 %v458, %v339
        %v460 = vadd.f32 %v456, %v459
        %s461 = sld [smem:[#allocation5 + $0x382]]
        %v462 = vstv %s461
        %v463 = vmul.f32 %v462, %v340
        %v464 = vadd.f32 %v460, %v463
        %s465 = sld [smem:[#allocation5 + $0x383]]
        %v466 = vstv %s465
        %v467 = vmul.f32 %v466, %v341
        %v468 = vadd.f32 %v464, %v467
        %v469 = vmax.f32 %v468, 0.0
        %v470 = vlaneseq
        %v471 = vand.u32 %v470, 127
        %472 = vst [vmem:[#allocation3] sm:$0x7] %v357
        %s473 = scalar_lea.vmem [#allocation3], 36
        %474 = vst [vmem:[%s473] sm:$0x7] %v373
        %v475 = vadd.f32 %v357, %v373
        %s476 = scalar_lea.vmem [#allocation3], 72
        %477 = vst [vmem:[%s476] sm:$0x7] %v389
        %v478 = vadd.f32 %v475, %v389
        %s479 = scalar_lea.vmem [#allocation3], 108
        %480 = vst [vmem:[%s479] sm:$0x7] %v405
        %v481 = vadd.f32 %v478, %v405
        %s482 = scalar_lea.vmem [#allocation3], 144
        %483 = vst [vmem:[%s482] sm:$0x7] %v421
        %v484 = vadd.f32 %v481, %v421
        %s485 = scalar_lea.vmem [#allocation3], 180
        %486 = vst [vmem:[%s485] sm:$0x7] %v437
        %v487 = vadd.f32 %v484, %v437
        %s488 = scalar_lea.vmem [#allocation3], 216
        %489 = vst [vmem:[%s488] sm:$0x7] %v453
        %v490 = vadd.f32 %v487, %v453
        %s491 = scalar_lea.vmem [#allocation3], 252
        %492 = vst [vmem:[%s491] sm:$0x7] %v469
        %v493 = vadd.f32 %v490, %v469
        %v494 = vmul.f32 %v493, 0.125
        %vm495 = vcmp.lt.s32.totalorder %v471, 126
        %496 = vrot.lane.b32.xlu0 %v357, 126
        %v497 = vpop.permute.xlu0 %496
        %v499 = vrot.slane %v357, 1
        %501 = vrot.lane.b32.xlu0 %v499, 126
        %v502 = vpop.permute.xlu0 %501
        %v503 = vsel %vm495, %v497, %v502
        %s504 = scalar_lea.vmem [#allocation3], 4
        %505 = vst [vmem:[%s504] sm:$0x7] %v503
        %v506 = vadd.f32 %v357, %v503
        %507 = vrot.lane.b32.xlu0 %v373, 126
        %v508 = vpop.permute.xlu0 %507
        %v510 = vrot.slane %v373, 1
        %512 = vrot.lane.b32.xlu0 %v510, 126
        %v513 = vpop.permute.xlu0 %512
        %v514 = vsel %vm495, %v508, %v513
        %s515 = scalar_lea.vmem [#allocation3], 40
        %516 = vst [vmem:[%s515] sm:$0x7] %v514
        %v517 = vadd.f32 %v503, %v514
        %v518 = vadd.f32 %v373, %v514
        %519 = vrot.lane.b32.xlu0 %v389, 126
        %v520 = vpop.permute.xlu0 %519
        %v522 = vrot.slane %v389, 1
        %524 = vrot.lane.b32.xlu0 %v522, 126
        %v525 = vpop.permute.xlu0 %524
        %v526 = vsel %vm495, %v520, %v525
        %s527 = scalar_lea.vmem [#allocation3], 76
        %528 = vst [vmem:[%s527] sm:$0x7] %v526
        %v529 = vadd.f32 %v517, %v526
        %v530 = vadd.f32 %v389, %v526
        %531 = vrot.lane.b32.xlu0 %v405, 126
        %v532 = vpop.permute.xlu0 %531
        %v534 = vrot.slane %v405, 1
        %536 = vrot.lane.b32.xlu0 %v534, 126
        %v537 = vpop.permute.xlu0 %536
        %v538 = vsel %vm495, %v532, %v537
        %s539 = scalar_lea.vmem [#allocation3], 112
        %540 = vst [vmem:[%s539] sm:$0x7] %v538
        %v541 = vadd.f32 %v529, %v538
        %v542 = vadd.f32 %v405, %v538
        %543 = vrot.lane.b32.xlu0 %v421, 126
        %v544 = vpop.permute.xlu0 %543
        %v546 = vrot.slane %v421, 1
        %548 = vrot.lane.b32.xlu0 %v546, 126
        %v549 = vpop.permute.xlu0 %548
        %v550 = vsel %vm495, %v544, %v549
        %s551 = scalar_lea.vmem [#allocation3], 148
        %552 = vst [vmem:[%s551] sm:$0x7] %v550
        %v553 = vadd.f32 %v541, %v550
        %v554 = vadd.f32 %v421, %v550
        %555 = vrot.lane.b32.xlu0 %v437, 126
        %v556 = vpop.permute.xlu0 %555
        %v558 = vrot.slane %v437, 1
        %560 = vrot.lane.b32.xlu0 %v558, 126
        %v561 = vpop.permute.xlu0 %560
        %v562 = vsel %vm495, %v556, %v561
        %s563 = scalar_lea.vmem [#allocation3], 184
        %564 = vst [vmem:[%s563] sm:$0x7] %v562
        %v565 = vadd.f32 %v553, %v562
        %v566 = vadd.f32 %v437, %v562
        %567 = vrot.lane.b32.xlu0 %v453, 126
        %v568 = vpop.permute.xlu0 %567
        %v570 = vrot.slane %v453, 1
        %572 = vrot.lane.b32.xlu0 %v570, 126
        %v573 = vpop.permute.xlu0 %572
        %v574 = vsel %vm495, %v568, %v573
        %s575 = scalar_lea.vmem [#allocation3], 220
        %576 = vst [vmem:[%s575] sm:$0x7] %v574
        %v577 = vadd.f32 %v565, %v574
        %v578 = vadd.f32 %v453, %v574
        %579 = vrot.lane.b32.xlu0 %v469, 126
        %v580 = vpop.permute.xlu0 %579
        %v582 = vrot.slane %v469, 1
        %584 = vrot.lane.b32.xlu0 %v582, 126
        %v585 = vpop.permute.xlu0 %584
        %v586 = vsel %vm495, %v580, %v585
        %s587 = scalar_lea.vmem [#allocation3], 256
        %588 = vst [vmem:[%s587] sm:$0x7] %v586
        %v589 = vadd.f32 %v577, %v586
        %v590 = vadd.f32 %v469, %v586
        %v591 = vmul.f32 %v589, 0.125
        %vm592 = vcmp.lt.s32.totalorder %v471, 124
        %593 = vrot.lane.b32.xlu0 %v357, 124
        %v594 = vpop.permute.xlu0 %593
        %595 = vrot.lane.b32.xlu0 %v499, 124
        %v596 = vpop.permute.xlu0 %595
        %v597 = vsel %vm592, %v594, %v596
        %s598 = scalar_lea.vmem [#allocation3], 8
        %599 = vst [vmem:[%s598] sm:$0x7] %v597
        %v600 = vadd.f32 %v506, %v597
        %601 = vrot.lane.b32.xlu0 %v373, 124
        %v602 = vpop.permute.xlu0 %601
        %603 = vrot.lane.b32.xlu0 %v510, 124
        %v604 = vpop.permute.xlu0 %603
        %v605 = vsel %vm592, %v602, %v604
        %s606 = scalar_lea.vmem [#allocation3], 44
        %607 = vst [vmem:[%s606] sm:$0x7] %v605
        %v608 = vadd.f32 %v597, %v605
        %v609 = vadd.f32 %v518, %v605
        %610 = vrot.lane.b32.xlu0 %v389, 124
        %v611 = vpop.permute.xlu0 %610
        %612 = vrot.lane.b32.xlu0 %v522, 124
        %v613 = vpop.permute.xlu0 %612
        %v614 = vsel %vm592, %v611, %v613
        %s615 = scalar_lea.vmem [#allocation3], 80
        %616 = vst [vmem:[%s615] sm:$0x7] %v614
        %v617 = vadd.f32 %v608, %v614
        %v618 = vadd.f32 %v530, %v614
        %619 = vrot.lane.b32.xlu0 %v405, 124
        %v620 = vpop.permute.xlu0 %619
        %621 = vrot.lane.b32.xlu0 %v534, 124
        %v622 = vpop.permute.xlu0 %621
        %v623 = vsel %vm592, %v620, %v622
        %s624 = scalar_lea.vmem [#allocation3], 116
        %625 = vst [vmem:[%s624] sm:$0x7] %v623
        %v626 = vadd.f32 %v617, %v623
        %v627 = vadd.f32 %v542, %v623
        %628 = vrot.lane.b32.xlu0 %v421, 124
        %v629 = vpop.permute.xlu0 %628
        %630 = vrot.lane.b32.xlu0 %v546, 124
        %v631 = vpop.permute.xlu0 %630
        %v632 = vsel %vm592, %v629, %v631
        %s633 = scalar_lea.vmem [#allocation3], 152
        %634 = vst [vmem:[%s633] sm:$0x7] %v632
        %v635 = vadd.f32 %v626, %v632
        %v636 = vadd.f32 %v554, %v632
        %637 = vrot.lane.b32.xlu0 %v437, 124
        %v638 = vpop.permute.xlu0 %637
        %639 = vrot.lane.b32.xlu0 %v558, 124
        %v640 = vpop.permute.xlu0 %639
        %v641 = vsel %vm592, %v638, %v640
        %s642 = scalar_lea.vmem [#allocation3], 188
        %643 = vst [vmem:[%s642] sm:$0x7] %v641
        %v644 = vadd.f32 %v635, %v641
        %v645 = vadd.f32 %v566, %v641
        %646 = vrot.lane.b32.xlu0 %v453, 124
        %v647 = vpop.permute.xlu0 %646
        %648 = vrot.lane.b32.xlu0 %v570, 124
        %v649 = vpop.permute.xlu0 %648
        %v650 = vsel %vm592, %v647, %v649
        %s651 = scalar_lea.vmem [#allocation3], 224
        %652 = vst [vmem:[%s651] sm:$0x7] %v650
        %v653 = vadd.f32 %v644, %v650
        %v654 = vadd.f32 %v578, %v650
        %655 = vrot.lane.b32.xlu0 %v469, 124
        %v656 = vpop.permute.xlu0 %655
        %657 = vrot.lane.b32.xlu0 %v582, 124
        %v658 = vpop.permute.xlu0 %657
        %v659 = vsel %vm592, %v656, %v658
        %s660 = scalar_lea.vmem [#allocation3], 260
        %661 = vst [vmem:[%s660] sm:$0x7] %v659
        %v662 = vadd.f32 %v653, %v659
        %v663 = vadd.f32 %v590, %v659
        %v664 = vmul.f32 %v662, 0.125
        %vm665 = vcmp.lt.s32.totalorder %v471, 80
        %666 = vrot.lane.b32.xlu0 %v357, 80
        %v667 = vpop.permute.xlu0 %666
        %668 = vrot.lane.b32.xlu0 %v499, 80
        %v669 = vpop.permute.xlu0 %668
        %v670 = vsel %vm665, %v667, %v669
        %s671 = scalar_lea.vmem [#allocation3], 12
        %672 = vst [vmem:[%s671] sm:$0x7] %v670
        %v673 = vadd.f32 %v600, %v670
        %674 = vrot.lane.b32.xlu0 %v373, 80
        %v675 = vpop.permute.xlu0 %674
        %676 = vrot.lane.b32.xlu0 %v510, 80
        %v677 = vpop.permute.xlu0 %676
        %v678 = vsel %vm665, %v675, %v677
        %s679 = scalar_lea.vmem [#allocation3], 48
        %680 = vst [vmem:[%s679] sm:$0x7] %v678
        %v681 = vadd.f32 %v670, %v678
        %v682 = vadd.f32 %v609, %v678
        %683 = vrot.lane.b32.xlu0 %v389, 80
        %v684 = vpop.permute.xlu0 %683
        %685 = vrot.lane.b32.xlu0 %v522, 80
        %v686 = vpop.permute.xlu0 %685
        %v687 = vsel %vm665, %v684, %v686
        %s688 = scalar_lea.vmem [#allocation3], 84
        %689 = vst [vmem:[%s688] sm:$0x7] %v687
        %v690 = vadd.f32 %v681, %v687
        %v691 = vadd.f32 %v618, %v687
        %692 = vrot.lane.b32.xlu0 %v405, 80
        %v693 = vpop.permute.xlu0 %692
        %694 = vrot.lane.b32.xlu0 %v534, 80
        %v695 = vpop.permute.xlu0 %694
        %v696 = vsel %vm665, %v693, %v695
        %s697 = scalar_lea.vmem [#allocation3], 120
        %698 = vst [vmem:[%s697] sm:$0x7] %v696
        %v699 = vadd.f32 %v690, %v696
        %v700 = vadd.f32 %v627, %v696
        %701 = vrot.lane.b32.xlu0 %v421, 80
        %v702 = vpop.permute.xlu0 %701
        %703 = vrot.lane.b32.xlu0 %v546, 80
        %v704 = vpop.permute.xlu0 %703
        %v705 = vsel %vm665, %v702, %v704
        %s706 = scalar_lea.vmem [#allocation3], 156
        %707 = vst [vmem:[%s706] sm:$0x7] %v705
        %v708 = vadd.f32 %v699, %v705
        %v709 = vadd.f32 %v636, %v705
        %710 = vrot.lane.b32.xlu0 %v437, 80
        %v711 = vpop.permute.xlu0 %710
        %712 = vrot.lane.b32.xlu0 %v558, 80
        %v713 = vpop.permute.xlu0 %712
        %v714 = vsel %vm665, %v711, %v713
        %s715 = scalar_lea.vmem [#allocation3], 192
        %716 = vst [vmem:[%s715] sm:$0x7] %v714
        %v717 = vadd.f32 %v708, %v714
        %v718 = vadd.f32 %v645, %v714
        %719 = vrot.lane.b32.xlu0 %v453, 80
        %v720 = vpop.permute.xlu0 %719
        %721 = vrot.lane.b32.xlu0 %v570, 80
        %v722 = vpop.permute.xlu0 %721
        %v723 = vsel %vm665, %v720, %v722
        %s724 = scalar_lea.vmem [#allocation3], 228
        %725 = vst [vmem:[%s724] sm:$0x7] %v723
        %v726 = vadd.f32 %v717, %v723
        %v727 = vadd.f32 %v654, %v723
        %728 = vrot.lane.b32.xlu0 %v469, 80
        %v729 = vpop.permute.xlu0 %728
        %730 = vrot.lane.b32.xlu0 %v582, 80
        %v731 = vpop.permute.xlu0 %730
        %v732 = vsel %vm665, %v729, %v731
        %s733 = scalar_lea.vmem [#allocation3], 264
        %734 = vst [vmem:[%s733] sm:$0x7] %v732
        %v735 = vadd.f32 %v726, %v732
        %v736 = vadd.f32 %v663, %v732
        %v737 = vmul.f32 %v735, 0.125
        %vm738 = vcmp.lt.s32.totalorder %v471, 78
        %739 = vrot.lane.b32.xlu0 %v357, 78
        %v740 = vpop.permute.xlu0 %739
        %741 = vrot.lane.b32.xlu0 %v499, 78
        %v742 = vpop.permute.xlu0 %741
        %v743 = vsel %vm738, %v740, %v742
        %s744 = scalar_lea.vmem [#allocation3], 16
        %745 = vst [vmem:[%s744] sm:$0x7] %v743
        %v746 = vadd.f32 %v673, %v743
        %747 = vrot.lane.b32.xlu0 %v373, 78
        %v748 = vpop.permute.xlu0 %747
        %749 = vrot.lane.b32.xlu0 %v510, 78
        %v750 = vpop.permute.xlu0 %749
        %v751 = vsel %vm738, %v748, %v750
        %s752 = scalar_lea.vmem [#allocation3], 52
        %753 = vst [vmem:[%s752] sm:$0x7] %v751
        %v754 = vadd.f32 %v743, %v751
        %v755 = vadd.f32 %v682, %v751
        %756 = vrot.lane.b32.xlu0 %v389, 78
        %v757 = vpop.permute.xlu0 %756
        %758 = vrot.lane.b32.xlu0 %v522, 78
        %v759 = vpop.permute.xlu0 %758
        %v760 = vsel %vm738, %v757, %v759
        %s761 = scalar_lea.vmem [#allocation3], 88
        %762 = vst [vmem:[%s761] sm:$0x7] %v760
        %v763 = vadd.f32 %v754, %v760
        %v764 = vadd.f32 %v691, %v760
        %765 = vrot.lane.b32.xlu0 %v405, 78
        %v766 = vpop.permute.xlu0 %765
        %767 = vrot.lane.b32.xlu0 %v534, 78
        %v768 = vpop.permute.xlu0 %767
        %v769 = vsel %vm738, %v766, %v768
        %s770 = scalar_lea.vmem [#allocation3], 124
        %771 = vst [vmem:[%s770] sm:$0x7] %v769
        %v772 = vadd.f32 %v763, %v769
        %v773 = vadd.f32 %v700, %v769
        %774 = vrot.lane.b32.xlu0 %v421, 78
        %v775 = vpop.permute.xlu0 %774
        %776 = vrot.lane.b32.xlu0 %v546, 78
        %v777 = vpop.permute.xlu0 %776
        %v778 = vsel %vm738, %v775, %v777
        %s779 = scalar_lea.vmem [#allocation3], 160
        %780 = vst [vmem:[%s779] sm:$0x7] %v778
        %v781 = vadd.f32 %v772, %v778
        %v782 = vadd.f32 %v709, %v778
        %783 = vrot.lane.b32.xlu0 %v437, 78
        %v784 = vpop.permute.xlu0 %783
        %785 = vrot.lane.b32.xlu0 %v558, 78
        %v786 = vpop.permute.xlu0 %785
        %v787 = vsel %vm738, %v784, %v786
        %s788 = scalar_lea.vmem [#allocation3], 196
        %789 = vst [vmem:[%s788] sm:$0x7] %v787
        %v790 = vadd.f32 %v781, %v787
        %v791 = vadd.f32 %v718, %v787
        %792 = vrot.lane.b32.xlu0 %v453, 78
        %v793 = vpop.permute.xlu0 %792
        %794 = vrot.lane.b32.xlu0 %v570, 78
        %v795 = vpop.permute.xlu0 %794
        %v796 = vsel %vm738, %v793, %v795
        %s797 = scalar_lea.vmem [#allocation3], 232
        %798 = vst [vmem:[%s797] sm:$0x7] %v796
        %v799 = vadd.f32 %v790, %v796
        %v800 = vadd.f32 %v727, %v796
        %801 = vrot.lane.b32.xlu0 %v469, 78
        %v802 = vpop.permute.xlu0 %801
        %803 = vrot.lane.b32.xlu0 %v582, 78
        %v804 = vpop.permute.xlu0 %803
        %v805 = vsel %vm738, %v802, %v804
        %s806 = scalar_lea.vmem [#allocation3], 268
        %807 = vst [vmem:[%s806] sm:$0x7] %v805
        %v808 = vadd.f32 %v799, %v805
        %v809 = vadd.f32 %v736, %v805
        %v810 = vmul.f32 %v808, 0.125
        %vm811 = vcmp.lt.s32.totalorder %v471, 76
        %812 = vrot.lane.b32.xlu0 %v357, 76
        %v813 = vpop.permute.xlu0 %812
        %814 = vrot.lane.b32.xlu0 %v499, 76
        %v815 = vpop.permute.xlu0 %814
        %v816 = vsel %vm811, %v813, %v815
        %s817 = scalar_lea.vmem [#allocation3], 20
        %818 = vst [vmem:[%s817] sm:$0x7] %v816
        %v819 = vadd.f32 %v746, %v816
        %820 = vrot.lane.b32.xlu0 %v373, 76
        %v821 = vpop.permute.xlu0 %820
        %822 = vrot.lane.b32.xlu0 %v510, 76
        %v823 = vpop.permute.xlu0 %822
        %v824 = vsel %vm811, %v821, %v823
        %s825 = scalar_lea.vmem [#allocation3], 56
        %826 = vst [vmem:[%s825] sm:$0x7] %v824
        %v827 = vadd.f32 %v816, %v824
        %v828 = vadd.f32 %v755, %v824
        %829 = vrot.lane.b32.xlu0 %v389, 76
        %v830 = vpop.permute.xlu0 %829
        %831 = vrot.lane.b32.xlu0 %v522, 76
        %v832 = vpop.permute.xlu0 %831
        %v833 = vsel %vm811, %v830, %v832
        %s834 = scalar_lea.vmem [#allocation3], 92
        %835 = vst [vmem:[%s834] sm:$0x7] %v833
        %v836 = vadd.f32 %v827, %v833
        %v837 = vadd.f32 %v764, %v833
        %838 = vrot.lane.b32.xlu0 %v405, 76
        %v839 = vpop.permute.xlu0 %838
        %840 = vrot.lane.b32.xlu0 %v534, 76
        %v841 = vpop.permute.xlu0 %840
        %v842 = vsel %vm811, %v839, %v841
        %s843 = scalar_lea.vmem [#allocation3], 128
        %844 = vst [vmem:[%s843] sm:$0x7] %v842
        %v845 = vadd.f32 %v836, %v842
        %v846 = vadd.f32 %v773, %v842
        %847 = vrot.lane.b32.xlu0 %v421, 76
        %v848 = vpop.permute.xlu0 %847
        %849 = vrot.lane.b32.xlu0 %v546, 76
        %v850 = vpop.permute.xlu0 %849
        %v851 = vsel %vm811, %v848, %v850
        %s852 = scalar_lea.vmem [#allocation3], 164
        %853 = vst [vmem:[%s852] sm:$0x7] %v851
        %v854 = vadd.f32 %v845, %v851
        %v855 = vadd.f32 %v782, %v851
        %856 = vrot.lane.b32.xlu0 %v437, 76
        %v857 = vpop.permute.xlu0 %856
        %858 = vrot.lane.b32.xlu0 %v558, 76
        %v859 = vpop.permute.xlu0 %858
        %v860 = vsel %vm811, %v857, %v859
        %s861 = scalar_lea.vmem [#allocation3], 200
        %862 = vst [vmem:[%s861] sm:$0x7] %v860
        %v863 = vadd.f32 %v854, %v860
        %v864 = vadd.f32 %v791, %v860
        %865 = vrot.lane.b32.xlu0 %v453, 76
        %v866 = vpop.permute.xlu0 %865
        %867 = vrot.lane.b32.xlu0 %v570, 76
        %v868 = vpop.permute.xlu0 %867
        %v869 = vsel %vm811, %v866, %v868
        %s870 = scalar_lea.vmem [#allocation3], 236
        %871 = vst [vmem:[%s870] sm:$0x7] %v869
        %v872 = vadd.f32 %v863, %v869
        %v873 = vadd.f32 %v800, %v869
        %874 = vrot.lane.b32.xlu0 %v469, 76
        %v875 = vpop.permute.xlu0 %874
        %876 = vrot.lane.b32.xlu0 %v582, 76
        %v877 = vpop.permute.xlu0 %876
        %v878 = vsel %vm811, %v875, %v877
        %s879 = scalar_lea.vmem [#allocation3], 272
        %880 = vst [vmem:[%s879] sm:$0x7] %v878
        %v881 = vadd.f32 %v872, %v878
        %v882 = vadd.f32 %v809, %v878
        %v883 = vmul.f32 %v881, 0.125
        %vm884 = vcmp.lt.s32.totalorder %v471, 32
        %885 = vrot.lane.b32.xlu0 %v357, 32
        %v886 = vpop.permute.xlu0 %885
        %887 = vrot.lane.b32.xlu0 %v499, 32
        %v888 = vpop.permute.xlu0 %887
        %v889 = vsel %vm884, %v886, %v888
        %s890 = scalar_lea.vmem [#allocation3], 24
        %891 = vst [vmem:[%s890] sm:$0x7] %v889
        %v892 = vadd.f32 %v819, %v889
        %893 = vrot.lane.b32.xlu0 %v373, 32
        %v894 = vpop.permute.xlu0 %893
        %895 = vrot.lane.b32.xlu0 %v510, 32
        %v896 = vpop.permute.xlu0 %895
        %v897 = vsel %vm884, %v894, %v896
        %s898 = scalar_lea.vmem [#allocation3], 60
        %899 = vst [vmem:[%s898] sm:$0x7] %v897
        %v900 = vadd.f32 %v889, %v897
        %v901 = vadd.f32 %v828, %v897
        %902 = vrot.lane.b32.xlu0 %v389, 32
        %v903 = vpop.permute.xlu0 %902
        %904 = vrot.lane.b32.xlu0 %v522, 32
        %v905 = vpop.permute.xlu0 %904
        %v906 = vsel %vm884, %v903, %v905
        %s907 = scalar_lea.vmem [#allocation3], 96
        %908 = vst [vmem:[%s907] sm:$0x7] %v906
        %v909 = vadd.f32 %v900, %v906
        %v910 = vadd.f32 %v837, %v906
        %911 = vrot.lane.b32.xlu0 %v405, 32
        %v912 = vpop.permute.xlu0 %911
        %913 = vrot.lane.b32.xlu0 %v534, 32
        %v914 = vpop.permute.xlu0 %913
        %v915 = vsel %vm884, %v912, %v914
        %s916 = scalar_lea.vmem [#allocation3], 132
        %917 = vst [vmem:[%s916] sm:$0x7] %v915
        %v918 = vadd.f32 %v909, %v915
        %v919 = vadd.f32 %v846, %v915
        %920 = vrot.lane.b32.xlu0 %v421, 32
        %v921 = vpop.permute.xlu0 %920
        %922 = vrot.lane.b32.xlu0 %v546, 32
        %v923 = vpop.permute.xlu0 %922
        %v924 = vsel %vm884, %v921, %v923
        %s925 = scalar_lea.vmem [#allocation3], 168
        %926 = vst [vmem:[%s925] sm:$0x7] %v924
        %v927 = vadd.f32 %v918, %v924
        %v928 = vadd.f32 %v855, %v924
        %929 = vrot.lane.b32.xlu0 %v437, 32
        %v930 = vpop.permute.xlu0 %929
        %931 = vrot.lane.b32.xlu0 %v558, 32
        %v932 = vpop.permute.xlu0 %931
        %v933 = vsel %vm884, %v930, %v932
        %s934 = scalar_lea.vmem [#allocation3], 204
        %935 = vst [vmem:[%s934] sm:$0x7] %v933
        %v936 = vadd.f32 %v927, %v933
        %v937 = vadd.f32 %v864, %v933
        %938 = vrot.lane.b32.xlu0 %v453, 32
        %v939 = vpop.permute.xlu0 %938
        %940 = vrot.lane.b32.xlu0 %v570, 32
        %v941 = vpop.permute.xlu0 %940
        %v942 = vsel %vm884, %v939, %v941
        %s943 = scalar_lea.vmem [#allocation3], 240
        %944 = vst [vmem:[%s943] sm:$0x7] %v942
        %v945 = vadd.f32 %v936, %v942
        %v946 = vadd.f32 %v873, %v942
        %947 = vrot.lane.b32.xlu0 %v469, 32
        %v948 = vpop.permute.xlu0 %947
        %949 = vrot.lane.b32.xlu0 %v582, 32
        %v950 = vpop.permute.xlu0 %949
        %v951 = vsel %vm884, %v948, %v950
        %s952 = scalar_lea.vmem [#allocation3], 276
        %953 = vst [vmem:[%s952] sm:$0x7] %v951
        %v954 = vadd.f32 %v945, %v951
        %v955 = vadd.f32 %v882, %v951
        %v956 = vmul.f32 %v954, 0.125
        %vm957 = vcmp.lt.s32.totalorder %v471, 30
        %958 = vrot.lane.b32.xlu0 %v357, 30
        %v959 = vpop.permute.xlu0 %958
        %960 = vrot.lane.b32.xlu0 %v499, 30
        %v961 = vpop.permute.xlu0 %960
        %v962 = vsel %vm957, %v959, %v961
        %s963 = scalar_lea.vmem [#allocation3], 28
        %964 = vst [vmem:[%s963] sm:$0x7] %v962
        %v965 = vadd.f32 %v892, %v962
        %966 = vrot.lane.b32.xlu0 %v373, 30
        %v967 = vpop.permute.xlu0 %966
        %968 = vrot.lane.b32.xlu0 %v510, 30
        %v969 = vpop.permute.xlu0 %968
        %v970 = vsel %vm957, %v967, %v969
        %s971 = scalar_lea.vmem [#allocation3], 64
        %972 = vst [vmem:[%s971] sm:$0x7] %v970
        %v973 = vadd.f32 %v962, %v970
        %v974 = vadd.f32 %v901, %v970
        %975 = vrot.lane.b32.xlu0 %v389, 30
        %v976 = vpop.permute.xlu0 %975
        %977 = vrot.lane.b32.xlu0 %v522, 30
        %v978 = vpop.permute.xlu0 %977
        %v979 = vsel %vm957, %v976, %v978
        %s980 = scalar_lea.vmem [#allocation3], 100
        %981 = vst [vmem:[%s980] sm:$0x7] %v979
        %v982 = vadd.f32 %v973, %v979
        %v983 = vadd.f32 %v910, %v979
        %984 = vrot.lane.b32.xlu0 %v405, 30
        %v985 = vpop.permute.xlu0 %984
        %986 = vrot.lane.b32.xlu0 %v534, 30
        %v987 = vpop.permute.xlu0 %986
        %v988 = vsel %vm957, %v985, %v987
        %s989 = scalar_lea.vmem [#allocation3], 136
        %990 = vst [vmem:[%s989] sm:$0x7] %v988
        %v991 = vadd.f32 %v982, %v988
        %v992 = vadd.f32 %v919, %v988
        %993 = vrot.lane.b32.xlu0 %v421, 30
        %v994 = vpop.permute.xlu0 %993
        %995 = vrot.lane.b32.xlu0 %v546, 30
        %v996 = vpop.permute.xlu0 %995
        %v997 = vsel %vm957, %v994, %v996
        %s998 = scalar_lea.vmem [#allocation3], 172
        %999 = vst [vmem:[%s998] sm:$0x7] %v997
        %v1000 = vadd.f32 %v991, %v997
        %v1001 = vadd.f32 %v928, %v997
        %1002 = vrot.lane.b32.xlu0 %v437, 30
        %v1003 = vpop.permute.xlu0 %1002
        %1004 = vrot.lane.b32.xlu0 %v558, 30
        %v1005 = vpop.permute.xlu0 %1004
        %v1006 = vsel %vm957, %v1003, %v1005
        %s1007 = scalar_lea.vmem [#allocation3], 208
        %1008 = vst [vmem:[%s1007] sm:$0x7] %v1006
        %v1009 = vadd.f32 %v1000, %v1006
        %v1010 = vadd.f32 %v937, %v1006
        %1011 = vrot.lane.b32.xlu0 %v453, 30
        %v1012 = vpop.permute.xlu0 %1011
        %1013 = vrot.lane.b32.xlu0 %v570, 30
        %v1014 = vpop.permute.xlu0 %1013
        %v1015 = vsel %vm957, %v1012, %v1014
        %s1016 = scalar_lea.vmem [#allocation3], 244
        %1017 = vst [vmem:[%s1016] sm:$0x7] %v1015
        %v1018 = vadd.f32 %v1009, %v1015
        %v1019 = vadd.f32 %v946, %v1015
        %1020 = vrot.lane.b32.xlu0 %v469, 30
        %v1021 = vpop.permute.xlu0 %1020
        %1022 = vrot.lane.b32.xlu0 %v582, 30
        %v1023 = vpop.permute.xlu0 %1022
        %v1024 = vsel %vm957, %v1021, %v1023
        %s1025 = scalar_lea.vmem [#allocation3], 280
        %1026 = vst [vmem:[%s1025] sm:$0x7] %v1024
        %v1027 = vadd.f32 %v1018, %v1024
        %v1028 = vadd.f32 %v955, %v1024
        %v1029 = vmul.f32 %v1027, 0.125
        %vm1030 = vcmp.lt.s32.totalorder %v471, 28
        %1031 = vrot.lane.b32.xlu0 %v357, 28
        %v1032 = vpop.permute.xlu0 %1031
        %1033 = vrot.lane.b32.xlu0 %v499, 28
        %v1034 = vpop.permute.xlu0 %1033
        %v1035 = vsel %vm1030, %v1032, %v1034
        %s1036 = scalar_lea.vmem [#allocation3], 32
        %1037 = vst [vmem:[%s1036] sm:$0x7] %v1035
        %v1038 = vadd.f32 %v965, %v1035
        %1039 = vrot.lane.b32.xlu0 %v373, 28
        %v1040 = vpop.permute.xlu0 %1039
        %1041 = vrot.lane.b32.xlu0 %v510, 28
        %v1042 = vpop.permute.xlu0 %1041
        %v1043 = vsel %vm1030, %v1040, %v1042
        %s1044 = scalar_lea.vmem [#allocation3], 68
        %1045 = vst [vmem:[%s1044] sm:$0x7] %v1043
        %v1046 = vadd.f32 %v1035, %v1043
        %v1047 = vadd.f32 %v974, %v1043
        %1048 = vrot.lane.b32.xlu0 %v389, 28
        %v1049 = vpop.permute.xlu0 %1048
        %1050 = vrot.lane.b32.xlu0 %v522, 28
        %v1051 = vpop.permute.xlu0 %1050
        %v1052 = vsel %vm1030, %v1049, %v1051
        %s1053 = scalar_lea.vmem [#allocation3], 104
        %1054 = vst [vmem:[%s1053] sm:$0x7] %v1052
        %v1055 = vadd.f32 %v1046, %v1052
        %v1056 = vadd.f32 %v983, %v1052
        %1057 = vrot.lane.b32.xlu0 %v405, 28
        %v1058 = vpop.permute.xlu0 %1057
        %1059 = vrot.lane.b32.xlu0 %v534, 28
        %v1060 = vpop.permute.xlu0 %1059
        %v1061 = vsel %vm1030, %v1058, %v1060
        %s1062 = scalar_lea.vmem [#allocation3], 140
        %1063 = vst [vmem:[%s1062] sm:$0x7] %v1061
        %v1064 = vadd.f32 %v1055, %v1061
        %v1065 = vadd.f32 %v992, %v1061
        %1066 = vrot.lane.b32.xlu0 %v421, 28
        %v1067 = vpop.permute.xlu0 %1066
        %1068 = vrot.lane.b32.xlu0 %v546, 28
        %v1069 = vpop.permute.xlu0 %1068
        %v1070 = vsel %vm1030, %v1067, %v1069
        %s1071 = scalar_lea.vmem [#allocation3], 176
        %1072 = vst [vmem:[%s1071] sm:$0x7] %v1070
        %v1073 = vadd.f32 %v1064, %v1070
        %v1074 = vadd.f32 %v1001, %v1070
        %1075 = vrot.lane.b32.xlu0 %v437, 28
        %v1076 = vpop.permute.xlu0 %1075
        %1077 = vrot.lane.b32.xlu0 %v558, 28
        %v1078 = vpop.permute.xlu0 %1077
        %v1079 = vsel %vm1030, %v1076, %v1078
        %s1080 = scalar_lea.vmem [#allocation3], 212
        %1081 = vst [vmem:[%s1080] sm:$0x7] %v1079
        %v1082 = vadd.f32 %v1073, %v1079
        %v1083 = vadd.f32 %v1010, %v1079
        %1084 = vrot.lane.b32.xlu0 %v453, 28
        %v1085 = vpop.permute.xlu0 %1084
        %1086 = vrot.lane.b32.xlu0 %v570, 28
        %v1087 = vpop.permute.xlu0 %1086
        %v1088 = vsel %vm1030, %v1085, %v1087
        %s1089 = scalar_lea.vmem [#allocation3], 248
        %1090 = vst [vmem:[%s1089] sm:$0x7] %v1088
        %v1091 = vadd.f32 %v1082, %v1088
        %v1092 = vadd.f32 %v1019, %v1088
        %1093 = vrot.lane.b32.xlu0 %v469, 28
        %v1094 = vpop.permute.xlu0 %1093
        %1095 = vrot.lane.b32.xlu0 %v582, 28
        %v1096 = vpop.permute.xlu0 %1095
        %v1097 = vsel %vm1030, %v1094, %v1096
        %s1098 = scalar_lea.vmem [#allocation3], 284
        %1099 = vst [vmem:[%s1098] sm:$0x7] %v1097
        %v1100 = vadd.f32 %v1091, %v1097
        %v1101 = vadd.f32 %v1028, %v1097
        %v1102 = vmul.f32 %v1100, 0.125
        %v1103 = vmul.f32 %v1038, 0.11111111
        %v1104 = vmul.f32 %v1047, 0.11111111
        %v1105 = vmul.f32 %v1056, 0.11111111
        %v1106 = vmul.f32 %v1065, 0.11111111
        %v1107 = vmul.f32 %v1074, 0.11111111
        %v1108 = vmul.f32 %v1083, 0.11111111
        %v1109 = vmul.f32 %v1092, 0.11111111
        %v1110 = vmul.f32 %v1101, 0.11111111
        %v1111 = vmul.f32 %v1103, %v1103
        %v1112 = vmul.f32 %v1104, %v1104
        %v1113 = vadd.f32 %v1111, %v1112
        %v1114 = vmul.f32 %v1105, %v1105
        %v1115 = vadd.f32 %v1113, %v1114
        %v1116 = vmul.f32 %v1106, %v1106
        %v1117 = vadd.f32 %v1115, %v1116
        %v1118 = vmul.f32 %v1107, %v1107
        %v1119 = vadd.f32 %v1117, %v1118
        %v1120 = vmul.f32 %v1108, %v1108
        %v1121 = vadd.f32 %v1119, %v1120
        %v1122 = vmul.f32 %v1109, %v1109
        %v1123 = vadd.f32 %v1121, %v1122
        %v1124 = vmul.f32 %v1110, %v1110
        %v1125 = vadd.f32 %v1123, %v1124
        %v1126 = vmul.f32 %v1125, 3.0
        %v1127 = vld [vmem:[#allocation3] sm:$0x7]
        %v1128 = vmul.f32 %v1103, %v1127
        %v1129 = vld [vmem:[%s473] sm:$0x7]
        %v1130 = vmul.f32 %v1104, %v1129
        %v1131 = vadd.f32 %v1128, %v1130
        %v1132 = vld [vmem:[%s476] sm:$0x7]
        %v1133 = vmul.f32 %v1105, %v1132
        %v1134 = vadd.f32 %v1131, %v1133
        %v1135 = vld [vmem:[%s479] sm:$0x7]
        %v1136 = vmul.f32 %v1106, %v1135
        %v1137 = vadd.f32 %v1134, %v1136
        %v1138 = vld [vmem:[%s482] sm:$0x7]
        %v1139 = vmul.f32 %v1107, %v1138
        %v1140 = vadd.f32 %v1137, %v1139
        %v1141 = vld [vmem:[%s485] sm:$0x7]
        %v1142 = vmul.f32 %v1108, %v1141
        %v1143 = vadd.f32 %v1140, %v1142
        %v1144 = vld [vmem:[%s488] sm:$0x7]
        %v1145 = vmul.f32 %v1109, %v1144
        %v1146 = vadd.f32 %v1143, %v1145
        %v1147 = vld [vmem:[%s491] sm:$0x7]
        %v1148 = vmul.f32 %v1110, %v1147
        %v1149 = vadd.f32 %v1146, %v1148
        %v1150 = vmul.f32 %v494, %v1149
        %v1151 = vmul.f32 %v494, %v1126
        %v1152 = vadd.f32 %v1151, 1e-06
        %v1153 = vrcp.pop %v1152
        %v1154 = vmul.f32 %v1152, %v1153
        %v1155 = vsub.f32 2.0, %v1154
        %v1156 = vmul.f32 %v1153, %v1155
        %v1157 = vmul.f32 %v1150, %v1156
        %v1158 = vld [vmem:[%s504] sm:$0x7]
        %v1159 = vmul.f32 %v1103, %v1158
        %v1160 = vld [vmem:[%s515] sm:$0x7]
        %v1161 = vmul.f32 %v1104, %v1160
        %v1162 = vadd.f32 %v1159, %v1161
        %v1163 = vld [vmem:[%s527] sm:$0x7]
        %v1164 = vmul.f32 %v1105, %v1163
        %v1165 = vadd.f32 %v1162, %v1164
        %v1166 = vld [vmem:[%s539] sm:$0x7]
        %v1167 = vmul.f32 %v1106, %v1166
        %v1168 = vadd.f32 %v1165, %v1167
        %v1169 = vld [vmem:[%s551] sm:$0x7]
        %v1170 = vmul.f32 %v1107, %v1169
        %v1171 = vadd.f32 %v1168, %v1170
        %v1172 = vld [vmem:[%s563] sm:$0x7]
        %v1173 = vmul.f32 %v1108, %v1172
        %v1174 = vadd.f32 %v1171, %v1173
        %v1175 = vld [vmem:[%s575] sm:$0x7]
        %v1176 = vmul.f32 %v1109, %v1175
        %v1177 = vadd.f32 %v1174, %v1176
        %v1178 = vld [vmem:[%s587] sm:$0x7]
        %v1179 = vmul.f32 %v1110, %v1178
        %v1180 = vadd.f32 %v1177, %v1179
        %v1181 = vmul.f32 %v591, %v1180
        %v1182 = vmul.f32 %v591, %v1126
        %v1183 = vadd.f32 %v1182, 1e-06
        %v1184 = vrcp.pop %v1183
        %v1185 = vmul.f32 %v1183, %v1184
        %v1186 = vsub.f32 2.0, %v1185
        %v1187 = vmul.f32 %v1184, %v1186
        %v1188 = vmul.f32 %v1181, %v1187
        %v1189 = vld [vmem:[%s598] sm:$0x7]
        %v1190 = vmul.f32 %v1103, %v1189
        %v1191 = vld [vmem:[%s606] sm:$0x7]
        %v1192 = vmul.f32 %v1104, %v1191
        %v1193 = vadd.f32 %v1190, %v1192
        %v1194 = vld [vmem:[%s615] sm:$0x7]
        %v1195 = vmul.f32 %v1105, %v1194
        %v1196 = vadd.f32 %v1193, %v1195
        %v1197 = vld [vmem:[%s624] sm:$0x7]
        %v1198 = vmul.f32 %v1106, %v1197
        %v1199 = vadd.f32 %v1196, %v1198
        %v1200 = vld [vmem:[%s633] sm:$0x7]
        %v1201 = vmul.f32 %v1107, %v1200
        %v1202 = vadd.f32 %v1199, %v1201
        %v1203 = vld [vmem:[%s642] sm:$0x7]
        %v1204 = vmul.f32 %v1108, %v1203
        %v1205 = vadd.f32 %v1202, %v1204
        %v1206 = vld [vmem:[%s651] sm:$0x7]
        %v1207 = vmul.f32 %v1109, %v1206
        %v1208 = vadd.f32 %v1205, %v1207
        %v1209 = vld [vmem:[%s660] sm:$0x7]
        %v1210 = vmul.f32 %v1110, %v1209
        %v1211 = vadd.f32 %v1208, %v1210
        %v1212 = vmul.f32 %v664, %v1211
        %v1213 = vmul.f32 %v664, %v1126
        %v1214 = vadd.f32 %v1213, 1e-06
        %v1215 = vrcp.pop %v1214
        %v1216 = vmul.f32 %v1214, %v1215
        %v1217 = vsub.f32 2.0, %v1216
        %v1218 = vmul.f32 %v1215, %v1217
        %v1219 = vmul.f32 %v1212, %v1218
        %v1220 = vld [vmem:[%s671] sm:$0x7]
        %v1221 = vmul.f32 %v1103, %v1220
        %v1222 = vld [vmem:[%s679] sm:$0x7]
        %v1223 = vmul.f32 %v1104, %v1222
        %v1224 = vadd.f32 %v1221, %v1223
        %v1225 = vld [vmem:[%s688] sm:$0x7]
        %v1226 = vmul.f32 %v1105, %v1225
        %v1227 = vadd.f32 %v1224, %v1226
        %v1228 = vld [vmem:[%s697] sm:$0x7]
        %v1229 = vmul.f32 %v1106, %v1228
        %v1230 = vadd.f32 %v1227, %v1229
        %v1231 = vld [vmem:[%s706] sm:$0x7]
        %v1232 = vmul.f32 %v1107, %v1231
        %v1233 = vadd.f32 %v1230, %v1232
        %v1234 = vld [vmem:[%s715] sm:$0x7]
        %v1235 = vmul.f32 %v1108, %v1234
        %v1236 = vadd.f32 %v1233, %v1235
        %v1237 = vld [vmem:[%s724] sm:$0x7]
        %v1238 = vmul.f32 %v1109, %v1237
        %v1239 = vadd.f32 %v1236, %v1238
        %v1240 = vld [vmem:[%s733] sm:$0x7]
        %v1241 = vmul.f32 %v1110, %v1240
        %v1242 = vadd.f32 %v1239, %v1241
        %v1243 = vmul.f32 %v737, %v1242
        %v1244 = vmul.f32 %v737, %v1126
        %v1245 = vadd.f32 %v1244, 1e-06
        %v1246 = vrcp.pop %v1245
        %v1247 = vmul.f32 %v1245, %v1246
        %v1248 = vsub.f32 2.0, %v1247
        %v1249 = vmul.f32 %v1246, %v1248
        %v1250 = vmul.f32 %v1243, %v1249
        %v1251 = vld [vmem:[%s744] sm:$0x7]
        %v1252 = vmul.f32 %v1103, %v1251
        %v1253 = vld [vmem:[%s752] sm:$0x7]
        %v1254 = vmul.f32 %v1104, %v1253
        %v1255 = vadd.f32 %v1252, %v1254
        %v1256 = vld [vmem:[%s761] sm:$0x7]
        %v1257 = vmul.f32 %v1105, %v1256
        %v1258 = vadd.f32 %v1255, %v1257
        %v1259 = vld [vmem:[%s770] sm:$0x7]
        %v1260 = vmul.f32 %v1106, %v1259
        %v1261 = vadd.f32 %v1258, %v1260
        %v1262 = vld [vmem:[%s779] sm:$0x7]
        %v1263 = vmul.f32 %v1107, %v1262
        %v1264 = vadd.f32 %v1261, %v1263
        %v1265 = vld [vmem:[%s788] sm:$0x7]
        %v1266 = vmul.f32 %v1108, %v1265
        %v1267 = vadd.f32 %v1264, %v1266
        %v1268 = vld [vmem:[%s797] sm:$0x7]
        %v1269 = vmul.f32 %v1109, %v1268
        %v1270 = vadd.f32 %v1267, %v1269
        %v1271 = vld [vmem:[%s806] sm:$0x7]
        %v1272 = vmul.f32 %v1110, %v1271
        %v1273 = vadd.f32 %v1270, %v1272
        %v1274 = vmul.f32 %v810, %v1273
        %v1275 = vmul.f32 %v810, %v1126
        %v1276 = vadd.f32 %v1275, 1e-06
        %v1277 = vrcp.pop %v1276
        %v1278 = vmul.f32 %v1276, %v1277
        %v1279 = vsub.f32 2.0, %v1278
        %v1280 = vmul.f32 %v1277, %v1279
        %v1281 = vmul.f32 %v1274, %v1280
        %v1282 = vld [vmem:[%s817] sm:$0x7]
        %v1283 = vmul.f32 %v1103, %v1282
        %v1284 = vld [vmem:[%s825] sm:$0x7]
        %v1285 = vmul.f32 %v1104, %v1284
        %v1286 = vadd.f32 %v1283, %v1285
        %v1287 = vld [vmem:[%s834] sm:$0x7]
        %v1288 = vmul.f32 %v1105, %v1287
        %v1289 = vadd.f32 %v1286, %v1288
        %v1290 = vld [vmem:[%s843] sm:$0x7]
        %v1291 = vmul.f32 %v1106, %v1290
        %v1292 = vadd.f32 %v1289, %v1291
        %v1293 = vld [vmem:[%s852] sm:$0x7]
        %v1294 = vmul.f32 %v1107, %v1293
        %v1295 = vadd.f32 %v1292, %v1294
        %v1296 = vld [vmem:[%s861] sm:$0x7]
        %v1297 = vmul.f32 %v1108, %v1296
        %v1298 = vadd.f32 %v1295, %v1297
        %v1299 = vld [vmem:[%s870] sm:$0x7]
        %v1300 = vmul.f32 %v1109, %v1299
        %v1301 = vadd.f32 %v1298, %v1300
        %v1302 = vld [vmem:[%s879] sm:$0x7]
        %v1303 = vmul.f32 %v1110, %v1302
        %v1304 = vadd.f32 %v1301, %v1303
        %v1305 = vmul.f32 %v883, %v1304
        %v1306 = vmul.f32 %v883, %v1126
        %v1307 = vadd.f32 %v1306, 1e-06
        %v1308 = vrcp.pop %v1307
        %v1309 = vmul.f32 %v1307, %v1308
        %v1310 = vsub.f32 2.0, %v1309
        %v1311 = vmul.f32 %v1308, %v1310
        %v1312 = vmul.f32 %v1305, %v1311
        %v1313 = vld [vmem:[%s890] sm:$0x7]
        %v1314 = vmul.f32 %v1103, %v1313
        %v1315 = vld [vmem:[%s898] sm:$0x7]
        %v1316 = vmul.f32 %v1104, %v1315
        %v1317 = vadd.f32 %v1314, %v1316
        %v1318 = vld [vmem:[%s907] sm:$0x7]
        %v1319 = vmul.f32 %v1105, %v1318
        %v1320 = vadd.f32 %v1317, %v1319
        %v1321 = vld [vmem:[%s916] sm:$0x7]
        %v1322 = vmul.f32 %v1106, %v1321
        %v1323 = vadd.f32 %v1320, %v1322
        %v1324 = vld [vmem:[%s925] sm:$0x7]
        %v1325 = vmul.f32 %v1107, %v1324
        %v1326 = vadd.f32 %v1323, %v1325
        %v1327 = vld [vmem:[%s934] sm:$0x7]
        %v1328 = vmul.f32 %v1108, %v1327
        %v1329 = vadd.f32 %v1326, %v1328
        %v1330 = vld [vmem:[%s943] sm:$0x7]
        %v1331 = vmul.f32 %v1109, %v1330
        %v1332 = vadd.f32 %v1329, %v1331
        %v1333 = vld [vmem:[%s952] sm:$0x7]
        %v1334 = vmul.f32 %v1110, %v1333
        %v1335 = vadd.f32 %v1332, %v1334
        %v1336 = vmul.f32 %v956, %v1335
        %v1337 = vmul.f32 %v956, %v1126
        %v1338 = vadd.f32 %v1337, 1e-06
        %v1339 = vrcp.pop %v1338
        %v1340 = vmul.f32 %v1338, %v1339
        %v1341 = vsub.f32 2.0, %v1340
        %v1342 = vmul.f32 %v1339, %v1341
        %v1343 = vmul.f32 %v1336, %v1342
        %v1344 = vld [vmem:[%s963] sm:$0x7]
        %v1345 = vmul.f32 %v1103, %v1344
        %v1346 = vld [vmem:[%s971] sm:$0x7]
        %v1347 = vmul.f32 %v1104, %v1346
        %v1348 = vadd.f32 %v1345, %v1347
        %v1349 = vld [vmem:[%s980] sm:$0x7]
        %v1350 = vmul.f32 %v1105, %v1349
        %v1351 = vadd.f32 %v1348, %v1350
        %v1352 = vld [vmem:[%s989] sm:$0x7]
        %v1353 = vmul.f32 %v1106, %v1352
        %v1354 = vadd.f32 %v1351, %v1353
        %v1355 = vld [vmem:[%s998] sm:$0x7]
        %v1356 = vmul.f32 %v1107, %v1355
        %v1357 = vadd.f32 %v1354, %v1356
        %v1358 = vld [vmem:[%s1007] sm:$0x7]
        %v1359 = vmul.f32 %v1108, %v1358
        %v1360 = vadd.f32 %v1357, %v1359
        %v1361 = vld [vmem:[%s1016] sm:$0x7]
        %v1362 = vmul.f32 %v1109, %v1361
        %v1363 = vadd.f32 %v1360, %v1362
        %v1364 = vld [vmem:[%s1025] sm:$0x7]
        %v1365 = vmul.f32 %v1110, %v1364
        %v1366 = vadd.f32 %v1363, %v1365
        %v1367 = vmul.f32 %v1029, %v1366
        %v1368 = vmul.f32 %v1029, %v1126
        %v1369 = vadd.f32 %v1368, 1e-06
        %v1370 = vrcp.pop %v1369
        %v1371 = vmul.f32 %v1369, %v1370
        %v1372 = vsub.f32 2.0, %v1371
        %v1373 = vmul.f32 %v1370, %v1372
        %v1374 = vmul.f32 %v1367, %v1373
        %v1375 = vld [vmem:[%s1036] sm:$0x7]
        %v1376 = vmul.f32 %v1103, %v1375
        %v1377 = vld [vmem:[%s1044] sm:$0x7]
        %v1378 = vmul.f32 %v1104, %v1377
        %v1379 = vadd.f32 %v1376, %v1378
        %v1380 = vld [vmem:[%s1053] sm:$0x7]
        %v1381 = vmul.f32 %v1105, %v1380
        %v1382 = vadd.f32 %v1379, %v1381
        %v1383 = vld [vmem:[%s1062] sm:$0x7]
        %v1384 = vmul.f32 %v1106, %v1383
        %v1385 = vadd.f32 %v1382, %v1384
        %v1386 = vld [vmem:[%s1071] sm:$0x7]
        %v1387 = vmul.f32 %v1107, %v1386
        %v1388 = vadd.f32 %v1385, %v1387
        %v1389 = vld [vmem:[%s1080] sm:$0x7]
        %v1390 = vmul.f32 %v1108, %v1389
        %v1391 = vadd.f32 %v1388, %v1390
        %v1392 = vld [vmem:[%s1089] sm:$0x7]
        %v1393 = vmul.f32 %v1109, %v1392
        %v1394 = vadd.f32 %v1391, %v1393
        %v1395 = vld [vmem:[%s1098] sm:$0x7]
        %v1396 = vmul.f32 %v1110, %v1395
        %v1397 = vadd.f32 %v1394, %v1396
        %v1398 = vmul.f32 %v1102, %v1397
        %v1399 = vmul.f32 %v1102, %v1126
        %v1400 = vadd.f32 %v1399, 1e-06
        %v1401 = vrcp.pop %v1400
        %v1402 = vmul.f32 %v1400, %v1401
        %v1403 = vsub.f32 2.0, %v1402
        %v1404 = vmul.f32 %v1401, %v1403
        %v1405 = vmul.f32 %v1398, %v1404
        %v1406 = vmul.f32 %v1157, %v1157
        %v1407 = vmul.f32 %v1188, %v1188
        %v1408 = vadd.f32 %v1406, %v1407
        %v1409 = vmul.f32 %v1219, %v1219
        %v1410 = vadd.f32 %v1408, %v1409
        %v1411 = vmul.f32 %v1250, %v1250
        %v1412 = vadd.f32 %v1410, %v1411
        %v1413 = vmul.f32 %v1281, %v1281
        %v1414 = vadd.f32 %v1412, %v1413
        %v1415 = vmul.f32 %v1312, %v1312
        %v1416 = vadd.f32 %v1414, %v1415
        %v1417 = vmul.f32 %v1343, %v1343
        %v1418 = vadd.f32 %v1416, %v1417
        %v1419 = vmul.f32 %v1374, %v1374
        %v1420 = vadd.f32 %v1418, %v1419
        %v1421 = vmul.f32 %v1405, %v1405
        %v1422 = vadd.f32 %v1420, %v1421
        %v1423 = vmul.f32 %v1422, 3.0
        %v1424 = vmul.f32 %v1127, %v1157
        %v1425 = vmul.f32 %v1158, %v1188
        %v1426 = vadd.f32 %v1424, %v1425
        %v1427 = vmul.f32 %v1189, %v1219
        %v1428 = vadd.f32 %v1426, %v1427
        %v1429 = vmul.f32 %v1220, %v1250
        %v1430 = vadd.f32 %v1428, %v1429
        %v1431 = vmul.f32 %v1251, %v1281
        %v1432 = vadd.f32 %v1430, %v1431
        %v1433 = vmul.f32 %v1282, %v1312
        %v1434 = vadd.f32 %v1432, %v1433
        %v1435 = vmul.f32 %v1313, %v1343
        %v1436 = vadd.f32 %v1434, %v1435
        %v1437 = vmul.f32 %v1344, %v1374
        %v1438 = vadd.f32 %v1436, %v1437
        %v1439 = vmul.f32 %v1375, %v1405
        %v1440 = vadd.f32 %v1438, %v1439
        %v1441 = vmul.f32 %v1103, %v1440
        %v1442 = vmul.f32 %v1103, %v1423
        %v1443 = vadd.f32 %v1442, 1e-06
        %v1444 = vrcp.pop %v1443
        %v1445 = vmul.f32 %v1443, %v1444
        %v1446 = vsub.f32 2.0, %v1445
        %v1447 = vmul.f32 %v1444, %v1446
        %v1448 = vmul.f32 %v1441, %v1447
        %v1449 = vmul.f32 %v1129, %v1157
        %v1450 = vmul.f32 %v1160, %v1188
        %v1451 = vadd.f32 %v1449, %v1450
        %v1452 = vmul.f32 %v1191, %v1219
        %v1453 = vadd.f32 %v1451, %v1452
        %v1454 = vmul.f32 %v1222, %v1250
        %v1455 = vadd.f32 %v1453, %v1454
        %v1456 = vmul.f32 %v1253, %v1281
        %v1457 = vadd.f32 %v1455, %v1456
        %v1458 = vmul.f32 %v1284, %v1312
        %v1459 = vadd.f32 %v1457, %v1458
        %v1460 = vmul.f32 %v1315, %v1343
        %v1461 = vadd.f32 %v1459, %v1460
        %v1462 = vmul.f32 %v1346, %v1374
        %v1463 = vadd.f32 %v1461, %v1462
        %v1464 = vmul.f32 %v1377, %v1405
        %v1465 = vadd.f32 %v1463, %v1464
        %v1466 = vmul.f32 %v1104, %v1465
        %v1467 = vmul.f32 %v1104, %v1423
        %v1468 = vadd.f32 %v1467, 1e-06
        %v1469 = vrcp.pop %v1468
        %v1470 = vmul.f32 %v1468, %v1469
        %v1471 = vsub.f32 2.0, %v1470
        %v1472 = vmul.f32 %v1469, %v1471
        %v1473 = vmul.f32 %v1466, %v1472
        %v1474 = vmul.f32 %v1132, %v1157
        %v1475 = vmul.f32 %v1163, %v1188
        %v1476 = vadd.f32 %v1474, %v1475
        %v1477 = vmul.f32 %v1194, %v1219
        %v1478 = vadd.f32 %v1476, %v1477
        %v1479 = vmul.f32 %v1225, %v1250
        %v1480 = vadd.f32 %v1478, %v1479
        %v1481 = vmul.f32 %v1256, %v1281
        %v1482 = vadd.f32 %v1480, %v1481
        %v1483 = vmul.f32 %v1287, %v1312
        %v1484 = vadd.f32 %v1482, %v1483
        %v1485 = vmul.f32 %v1318, %v1343
        %v1486 = vadd.f32 %v1484, %v1485
        %v1487 = vmul.f32 %v1349, %v1374
        %v1488 = vadd.f32 %v1486, %v1487
        %v1489 = vmul.f32 %v1380, %v1405
        %v1490 = vadd.f32 %v1488, %v1489
        %v1491 = vmul.f32 %v1105, %v1490
        %v1492 = vmul.f32 %v1105, %v1423
        %v1493 = vadd.f32 %v1492, 1e-06
        %v1494 = vrcp.pop %v1493
        %v1495 = vmul.f32 %v1493, %v1494
        %v1496 = vsub.f32 2.0, %v1495
        %v1497 = vmul.f32 %v1494, %v1496
        %v1498 = vmul.f32 %v1491, %v1497
        %v1499 = vmul.f32 %v1135, %v1157
        %v1500 = vmul.f32 %v1166, %v1188
        %v1501 = vadd.f32 %v1499, %v1500
        %v1502 = vmul.f32 %v1197, %v1219
        %v1503 = vadd.f32 %v1501, %v1502
        %v1504 = vmul.f32 %v1228, %v1250
        %v1505 = vadd.f32 %v1503, %v1504
        %v1506 = vmul.f32 %v1259, %v1281
        %v1507 = vadd.f32 %v1505, %v1506
        %v1508 = vmul.f32 %v1290, %v1312
        %v1509 = vadd.f32 %v1507, %v1508
        %v1510 = vmul.f32 %v1321, %v1343
        %v1511 = vadd.f32 %v1509, %v1510
        %v1512 = vmul.f32 %v1352, %v1374
        %v1513 = vadd.f32 %v1511, %v1512
        %v1514 = vmul.f32 %v1383, %v1405
        %v1515 = vadd.f32 %v1513, %v1514
        %v1516 = vmul.f32 %v1106, %v1515
        %v1517 = vmul.f32 %v1106, %v1423
        %v1518 = vadd.f32 %v1517, 1e-06
        %v1519 = vrcp.pop %v1518
        %v1520 = vmul.f32 %v1518, %v1519
        %v1521 = vsub.f32 2.0, %v1520
        %v1522 = vmul.f32 %v1519, %v1521
        %v1523 = vmul.f32 %v1516, %v1522
        %v1524 = vmul.f32 %v1138, %v1157
        %v1525 = vmul.f32 %v1169, %v1188
        %v1526 = vadd.f32 %v1524, %v1525
        %v1527 = vmul.f32 %v1200, %v1219
        %v1528 = vadd.f32 %v1526, %v1527
        %v1529 = vmul.f32 %v1231, %v1250
        %v1530 = vadd.f32 %v1528, %v1529
        %v1531 = vmul.f32 %v1262, %v1281
        %v1532 = vadd.f32 %v1530, %v1531
        %v1533 = vmul.f32 %v1293, %v1312
        %v1534 = vadd.f32 %v1532, %v1533
        %v1535 = vmul.f32 %v1324, %v1343
        %v1536 = vadd.f32 %v1534, %v1535
        %v1537 = vmul.f32 %v1355, %v1374
        %v1538 = vadd.f32 %v1536, %v1537
        %v1539 = vmul.f32 %v1386, %v1405
        %v1540 = vadd.f32 %v1538, %v1539
        %v1541 = vmul.f32 %v1107, %v1540
        %v1542 = vmul.f32 %v1107, %v1423
        %v1543 = vadd.f32 %v1542, 1e-06
        %v1544 = vrcp.pop %v1543
        %v1545 = vmul.f32 %v1543, %v1544
        %v1546 = vsub.f32 2.0, %v1545
        %v1547 = vmul.f32 %v1544, %v1546
        %v1548 = vmul.f32 %v1541, %v1547
        %v1549 = vmul.f32 %v1141, %v1157
        %v1550 = vmul.f32 %v1172, %v1188
        %v1551 = vadd.f32 %v1549, %v1550
        %v1552 = vmul.f32 %v1203, %v1219
        %v1553 = vadd.f32 %v1551, %v1552
        %v1554 = vmul.f32 %v1234, %v1250
        %v1555 = vadd.f32 %v1553, %v1554
        %v1556 = vmul.f32 %v1265, %v1281
        %v1557 = vadd.f32 %v1555, %v1556
        %v1558 = vmul.f32 %v1296, %v1312
        %v1559 = vadd.f32 %v1557, %v1558
        %v1560 = vmul.f32 %v1327, %v1343
        %v1561 = vadd.f32 %v1559, %v1560
        %v1562 = vmul.f32 %v1358, %v1374
        %v1563 = vadd.f32 %v1561, %v1562
        %v1564 = vmul.f32 %v1389, %v1405
        %v1565 = vadd.f32 %v1563, %v1564
        %v1566 = vmul.f32 %v1108, %v1565
        %v1567 = vmul.f32 %v1108, %v1423
        %v1568 = vadd.f32 %v1567, 1e-06
        %v1569 = vrcp.pop %v1568
        %v1570 = vmul.f32 %v1568, %v1569
        %v1571 = vsub.f32 2.0, %v1570
        %v1572 = vmul.f32 %v1569, %v1571
        %v1573 = vmul.f32 %v1566, %v1572
        %v1574 = vmul.f32 %v1144, %v1157
        %v1575 = vmul.f32 %v1175, %v1188
        %v1576 = vadd.f32 %v1574, %v1575
        %v1577 = vmul.f32 %v1206, %v1219
        %v1578 = vadd.f32 %v1576, %v1577
        %v1579 = vmul.f32 %v1237, %v1250
        %v1580 = vadd.f32 %v1578, %v1579
        %v1581 = vmul.f32 %v1268, %v1281
        %v1582 = vadd.f32 %v1580, %v1581
        %v1583 = vmul.f32 %v1299, %v1312
        %v1584 = vadd.f32 %v1582, %v1583
        %v1585 = vmul.f32 %v1330, %v1343
        %v1586 = vadd.f32 %v1584, %v1585
        %v1587 = vmul.f32 %v1361, %v1374
        %v1588 = vadd.f32 %v1586, %v1587
        %v1589 = vmul.f32 %v1392, %v1405
        %v1590 = vadd.f32 %v1588, %v1589
        %v1591 = vmul.f32 %v1109, %v1590
        %v1592 = vmul.f32 %v1109, %v1423
        %v1593 = vadd.f32 %v1592, 1e-06
        %v1594 = vrcp.pop %v1593
        %v1595 = vmul.f32 %v1593, %v1594
        %v1596 = vsub.f32 2.0, %v1595
        %v1597 = vmul.f32 %v1594, %v1596
        %v1598 = vmul.f32 %v1591, %v1597
        %v1599 = vmul.f32 %v1147, %v1157
        %v1600 = vmul.f32 %v1178, %v1188
        %v1601 = vadd.f32 %v1599, %v1600
        %v1602 = vmul.f32 %v1209, %v1219
        %v1603 = vadd.f32 %v1601, %v1602
        %v1604 = vmul.f32 %v1240, %v1250
        %v1605 = vadd.f32 %v1603, %v1604
        %v1606 = vmul.f32 %v1271, %v1281
        %v1607 = vadd.f32 %v1605, %v1606
        %v1608 = vmul.f32 %v1302, %v1312
        %v1609 = vadd.f32 %v1607, %v1608
        %v1610 = vmul.f32 %v1333, %v1343
        %v1611 = vadd.f32 %v1609, %v1610
        %v1612 = vmul.f32 %v1364, %v1374
        %v1613 = vadd.f32 %v1611, %v1612
        %v1614 = vmul.f32 %v1395, %v1405
        %v1615 = vadd.f32 %v1613, %v1614
        %v1616 = vmul.f32 %v1110, %v1615
        %v1617 = vmul.f32 %v1110, %v1423
        %v1618 = vadd.f32 %v1617, 1e-06
        %v1619 = vrcp.pop %v1618
        %v1620 = vmul.f32 %v1618, %v1619
        %v1621 = vsub.f32 2.0, %v1620
        %v1622 = vmul.f32 %v1619, %v1621
        %v1623 = vmul.f32 %v1616, %v1622
        %v1624 = vmul.f32 %v1281, 3.0
        %v1625 = vmul.f32 %v1448, %v1624
        %v1626 = vmul.f32 %v1473, %v1624
        %v1627 = vmul.f32 %v1498, %v1624
        %v1628 = vmul.f32 %v1523, %v1624
        %v1629 = vmul.f32 %v1548, %v1624
        %v1630 = vmul.f32 %v1573, %v1624
        %v1631 = vmul.f32 %v1598, %v1624
        %v1632 = vmul.f32 %v1623, %v1624
        %s1633 = sld [smem:[#allocation7]]
        %v1634 = vstv %s1633
        %v1635 = vmul.f32 %v1634, %v1625
        %s1636 = sld [smem:[#allocation7 + $0x1]]
        %v1637 = vstv %s1636
        %v1638 = vmul.f32 %v1637, %v1626
        %v1639 = vadd.f32 %v1635, %v1638
        %s1640 = sld [smem:[#allocation7 + $0x2]]
        %v1641 = vstv %s1640
        %v1642 = vmul.f32 %v1641, %v1627
        %v1643 = vadd.f32 %v1639, %v1642
        %s1644 = sld [smem:[#allocation7 + $0x3]]
        %v1645 = vstv %s1644
        %v1646 = vmul.f32 %v1645, %v1628
        %v1647 = vadd.f32 %v1643, %v1646
        %s1648 = sld [smem:[#allocation7 + $0x4]]
        %v1649 = vstv %s1648
        %v1650 = vmul.f32 %v1649, %v1629
        %v1651 = vadd.f32 %v1647, %v1650
        %s1652 = sld [smem:[#allocation7 + $0x5]]
        %v1653 = vstv %s1652
        %v1654 = vmul.f32 %v1653, %v1630
        %v1655 = vadd.f32 %v1651, %v1654
        %s1656 = sld [smem:[#allocation7 + $0x6]]
        %v1657 = vstv %s1656
        %v1658 = vmul.f32 %v1657, %v1631
        %v1659 = vadd.f32 %v1655, %v1658
        %s1660 = sld [smem:[#allocation7 + $0x7]]
        %v1661 = vstv %s1660
        %v1662 = vmul.f32 %v1661, %v1632
        %v1663 = vadd.f32 %v1659, %v1662
        %1664 = vrot.lane.b32.xlu0 %v338, 78
        %v1665 = vpop.permute.xlu0 %1664
        %v1667 = vrot.slane %v338, 1
        %1669 = vrot.lane.b32.xlu0 %v1667, 78
        %v1670 = vpop.permute.xlu0 %1669
        %v1671 = vsel %vm738, %v1665, %v1670
        %v1672 = vadd.f32 %v1663, %v1671
        %1673 = vst [vmem:[%s171] sm:$0x7] %v1672
        %s1674 = sld [smem:[#allocation7 + $0x80]]
        %v1675 = vstv %s1674
        %v1676 = vmul.f32 %v1675, %v1625
        %s1677 = sld [smem:[#allocation7 + $0x81]]
        %v1678 = vstv %s1677
        %v1679 = vmul.f32 %v1678, %v1626
        %v1680 = vadd.f32 %v1676, %v1679
        %s1681 = sld [smem:[#allocation7 + $0x82]]
        %v1682 = vstv %s1681
        %v1683 = vmul.f32 %v1682, %v1627
        %v1684 = vadd.f32 %v1680, %v1683
        %s1685 = sld [smem:[#allocation7 + $0x83]]
        %v1686 = vstv %s1685
        %v1687 = vmul.f32 %v1686, %v1628
        %v1688 = vadd.f32 %v1684, %v1687
        %s1689 = sld [smem:[#allocation7 + $0x84]]
        %v1690 = vstv %s1689
        %v1691 = vmul.f32 %v1690, %v1629
        %v1692 = vadd.f32 %v1688, %v1691
        %s1693 = sld [smem:[#allocation7 + $0x85]]
        %v1694 = vstv %s1693
        %v1695 = vmul.f32 %v1694, %v1630
        %v1696 = vadd.f32 %v1692, %v1695
        %s1697 = sld [smem:[#allocation7 + $0x86]]
        %v1698 = vstv %s1697
        %v1699 = vmul.f32 %v1698, %v1631
        %v1700 = vadd.f32 %v1696, %v1699
        %s1701 = sld [smem:[#allocation7 + $0x87]]
        %v1702 = vstv %s1701
        %v1703 = vmul.f32 %v1702, %v1632
        %v1704 = vadd.f32 %v1700, %v1703
        %1705 = vrot.lane.b32.xlu0 %v339, 78
        %v1706 = vpop.permute.xlu0 %1705
        %v1708 = vrot.slane %v339, 1
        %1710 = vrot.lane.b32.xlu0 %v1708, 78
        %v1711 = vpop.permute.xlu0 %1710
        %v1712 = vsel %vm738, %v1706, %v1711
        %v1713 = vadd.f32 %v1704, %v1712
        %s1714 = scalar_lea.vmem %s171, 4
        %1715 = vst [vmem:[%s1714] sm:$0x7] %v1713
        %s1716 = sld [smem:[#allocation7 + $0x100]]
        %v1717 = vstv %s1716
        %v1718 = vmul.f32 %v1717, %v1625
        %s1719 = sld [smem:[#allocation7 + $0x101]]
        %v1720 = vstv %s1719
        %v1721 = vmul.f32 %v1720, %v1626
        %v1722 = vadd.f32 %v1718, %v1721
        %s1723 = sld [smem:[#allocation7 + $0x102]]
        %v1724 = vstv %s1723
        %v1725 = vmul.f32 %v1724, %v1627
        %v1726 = vadd.f32 %v1722, %v1725
        %s1727 = sld [smem:[#allocation7 + $0x103]]
        %v1728 = vstv %s1727
        %v1729 = vmul.f32 %v1728, %v1628
        %v1730 = vadd.f32 %v1726, %v1729
        %s1731 = sld [smem:[#allocation7 + $0x104]]
        %v1732 = vstv %s1731
        %v1733 = vmul.f32 %v1732, %v1629
        %v1734 = vadd.f32 %v1730, %v1733
        %s1735 = sld [smem:[#allocation7 + $0x105]]
        %v1736 = vstv %s1735
        %v1737 = vmul.f32 %v1736, %v1630
        %v1738 = vadd.f32 %v1734, %v1737
        %s1739 = sld [smem:[#allocation7 + $0x106]]
        %v1740 = vstv %s1739
        %v1741 = vmul.f32 %v1740, %v1631
        %v1742 = vadd.f32 %v1738, %v1741
        %s1743 = sld [smem:[#allocation7 + $0x107]]
        %v1744 = vstv %s1743
        %v1745 = vmul.f32 %v1744, %v1632
        %v1746 = vadd.f32 %v1742, %v1745
        %1747 = vrot.lane.b32.xlu0 %v340, 78
        %v1748 = vpop.permute.xlu0 %1747
        %v1750 = vrot.slane %v340, 1
        %1752 = vrot.lane.b32.xlu0 %v1750, 78
        %v1753 = vpop.permute.xlu0 %1752
        %v1754 = vsel %vm738, %v1748, %v1753
        %v1755 = vadd.f32 %v1746, %v1754
        %s1756 = scalar_lea.vmem %s171, 8
        %1757 = vst [vmem:[%s1756] sm:$0x7] %v1755
        %s1758 = sld [smem:[#allocation7 + $0x180]]
        %v1759 = vstv %s1758
        %v1760 = vmul.f32 %v1759, %v1625
        %s1761 = sld [smem:[#allocation7 + $0x181]]
        %v1762 = vstv %s1761
        %v1763 = vmul.f32 %v1762, %v1626
        %v1764 = vadd.f32 %v1760, %v1763
        %s1765 = sld [smem:[#allocation7 + $0x182]]
        %v1766 = vstv %s1765
        %v1767 = vmul.f32 %v1766, %v1627
        %v1768 = vadd.f32 %v1764, %v1767
        %s1769 = sld [smem:[#allocation7 + $0x183]]
        %v1770 = vstv %s1769
        %v1771 = vmul.f32 %v1770, %v1628
        %v1772 = vadd.f32 %v1768, %v1771
        %s1773 = sld [smem:[#allocation7 + $0x184]]
        %v1774 = vstv %s1773
        %v1775 = vmul.f32 %v1774, %v1629
        %v1776 = vadd.f32 %v1772, %v1775
        %s1777 = sld [smem:[#allocation7 + $0x185]]
        %v1778 = vstv %s1777
        %v1779 = vmul.f32 %v1778, %v1630
        %v1780 = vadd.f32 %v1776, %v1779
        %s1781 = sld [smem:[#allocation7 + $0x186]]
        %v1782 = vstv %s1781
        %v1783 = vmul.f32 %v1782, %v1631
        %v1784 = vadd.f32 %v1780, %v1783
        %s1785 = sld [smem:[#allocation7 + $0x187]]
        %v1786 = vstv %s1785
        %v1787 = vmul.f32 %v1786, %v1632
        %v1788 = vadd.f32 %v1784, %v1787
        %1789 = vrot.lane.b32.xlu0 %v341, 78
        %v1790 = vpop.permute.xlu0 %1789
        %v1792 = vrot.slane %v341, 1
        %1794 = vrot.lane.b32.xlu0 %v1792, 78
        %v1795 = vpop.permute.xlu0 %1794
        %v1796 = vsel %vm738, %v1790, %v1795
        %v1797 = vadd.f32 %v1788, %v1796
        %s1798 = scalar_lea.vmem %s171, 12
        %1799 = vst [vmem:[%s1798] sm:$0x7] %v1797
        %p1800 = scmp.lt.s32.totalorder %s20, 1
        %s1801 = scalar_select %p1800, %s20, 1
        %p1802 = scmp.lt.s32.totalorder %s21, 0
        %s1803 = scalar_select %p1802, %s21, 0
        %s1804 = smul.addr %s1801, 4
        %s1805 = sadd.s32 %s1803, %s1804
        %s1806 = smul.addr %s1805, 4
        %s1807 = scalar_lea.vmem %s3, %s1806
        // Predicated region
        $region119: #{tpu_custom_call.1} parent=27 // pred_check
          %p1808 = pneg %p90
        $region120: #{tpu_custom_call.1} parent=27 // pred_check_branch
          %1810 = sbr.rel (%p1808) target = $region122
        $region121: #{tpu_custom_call.1} parent=27 // pred_region
          _
        $region122: #{tpu_custom_call.1} parent=27 // pred_fallthru
          _
      $region28: #{tpu_custom_call.1} parent=5 // pred_fallthru
        _
      %p1811 = scmp.le.s32.totalorder 2, %s11
      // Predicated region
      $region123: #{tpu_custom_call.1} parent=5 // pred_check
        %p1812 = pneg %p1811
      $region124: #{tpu_custom_call.1} parent=5 // pred_check_branch
        %1814 = sbr.rel (%p1812) target = $region126
      $region125: #{tpu_custom_call.1} parent=5 // pred_region
        %s1815 = ssub.s32 %s11, 2
        // Predicated region
        $region127: #{tpu_custom_call.1} parent=125 // pred_check
          %p1816 = pneg %p96
        $region128: #{tpu_custom_call.1} parent=125 // pred_check_branch
          %1818 = sbr.rel (%p1816) target = $region130
        $region129: #{tpu_custom_call.1} parent=125 // pred_region
          %p1819 = scmp.lt.s32.totalorder %s22, 1
          %s1820 = scalar_select %p1819, %s22, 1
          %p1821 = scmp.lt.s32.totalorder %s23, 0
          %s1822 = scalar_select %p1821, %s23, 0
          %s1823 = smul.addr %s1820, 4
          %s1824 = sadd.s32 %s1822, %s1823
          %s1825 = smul.addr %s1824, 4
          %s1826 = scalar_lea.vmem %s3, %s1825
        $region130: #{tpu_custom_call.1} parent=125 // pred_fallthru
          _
      $region126: #{tpu_custom_call.1} parent=5 // pred_fallthru
        _
    $region6: #{tpu_custom_call.1} parent=1 // loop_footer
      %s15 = sadd.s32 1, %s11
    $region7: #{tpu_custom_call.1} parent=1 // loop_footer_branch
      %10 = sbr.rel target = $region3
    $region8: #{tpu_custom_call.1} parent=1 // loop_exit
      _
    %1827 = vsyncpa [#allocation6], 1
    %s1828 = scalar_lea.sflag [#allocation6], 1
    %1829 = vsyncpa %s1828, 1
    %1830 = vsyncpa [#allocation8], 1
  %1831 = vsyncmov [#allocation4]
  %s1832 = vpop.sfrf %1831
  %p1833 = scmp.eq.s32.totalorder %s1832, 0
  %p1834 = pneg %p1833
  %1836 = shalt.err (%p1834)
  %s1837 = scalar_lea.sflag [#allocation4], 1
  %1838 = vsyncmov %s1837
  %s1839 = vpop.sfrf %1838
  %p1840 = scmp.eq.s32.totalorder %s1839, 0
  %p1841 = pneg %p1840
  %1843 = shalt.err (%p1841)

</llo_original>
